<compile_context>
chip_gen: v5e
topology: v5e:2x2
jax: 0.10.0
libtpu: 0.0.40
codegen_flags: <defaults>
</compile_context>

<pallas_src>
import functools
import math

import jax
import jax.numpy as jnp
from jax.experimental import pallas as pl
from jax.experimental.pallas import tpu as pltpu

# ------------------------- configuration -------------------------
IN_CHANNEL = 2            # flow channels; total input channels = IN_CHANNEL + 2 (tod, dow)
EMBED_DIM = 32
NUM_HEADS = 4
MLP_RATIO = 4
LAYER_DEPTH = 1
LAYERS = ["T", "S"]       # temporal encoder, then spatial encoder
ATTN_MASK_T = True        # causal (tril) mask for temporal attention
ATTN_MASK_S = False
POS_EMBED_T = "timepos"
LN_EPS = 1e-5


# ------------------------- helpers -------------------------
def sinusoidal_pe(T, D):
    pos = jnp.arange(T, dtype=jnp.float32)[:, None]
    i = jnp.arange(D // 2, dtype=jnp.float32)[None, :]
    angle = pos / jnp.power(10000.0, 2.0 * i / D)
    pe = jnp.zeros((T, D), jnp.float32)
    pe = pe.at[:, 0::2].set(jnp.sin(angle))
    pe = pe.at[:, 1::2].set(jnp.cos(angle))
    return pe


# ------------------------- fused ST-attention kernel -------------------------
def st_attention_kernel(flow_ref, wproj_ref, pe_ref, wqkv_ref, bqkv_ref,
                        wo_ref, w1_ref, b1_ref, w2_ref, vec_ref, out_ref,
                        *, N, T, D, H, layer_plan):
    Dh = D // H

    def layer_norm(z, g, b):
        mu = jnp.mean(z, axis=-1, keepdims=True)
        var = jnp.mean(jnp.square(z - mu), axis=-1, keepdims=True)
        return (z - mu) * jax.lax.rsqrt(var + LN_EPS) * g + b

    def encoder_layer(z, li, G, L, causal):
        # z: (G*L, D) f32, G sequences of length L, row index = g*L + l.
        vec = vec_ref[li]                                       # (8, D) f32
        ln1_g, ln1_b = vec[0:1, :], vec[1:2, :]
        bo = vec[2:3, :]
        ln2_g, ln2_b = vec[3:4, :], vec[4:5, :]
        b2 = vec[5:6, :]

        # ---- pre-LN multi-head self-attention (fused QKV, scale folded in wq) ----
        xn = layer_norm(z, ln1_g, ln1_b)
        qkv = jnp.dot(xn.astype(jnp.bfloat16), wqkv_ref[li],
                      preferred_element_type=jnp.float32) + bqkv_ref[li]   # (G*L, 3D)

        keep = None
        if causal:  # build the mask once per layer, reused by all heads
            row = jax.lax.broadcasted_iota(jnp.int32, (L, L), 0)
            col = jax.lax.broadcasted_iota(jnp.int32, (L, L), 1)
            keep = col <= row

        wo = wo_ref[li]                                         # (H, Dh, D) bf16
        attn = jnp.zeros((G * L, D), jnp.float32)
        for h in range(H):
            o0 = h * Dh
            qh = qkv[:, o0:o0 + Dh].reshape(G, L, Dh).astype(jnp.bfloat16)
            kh = qkv[:, D + o0:D + o0 + Dh].reshape(G, L, Dh).astype(jnp.bfloat16)
            vh = qkv[:, 2 * D + o0:2 * D + o0 + Dh].reshape(G, L, Dh).astype(jnp.bfloat16)
            s = jnp.einsum('gqd,gkd->gqk', qh, kh,
                           preferred_element_type=jnp.float32)  # (G, L, L)
            if causal:
                s = jnp.where(keep, s, jnp.float32(-1e30))
            s = s - jnp.max(s, axis=-1, keepdims=True)
            p = jnp.exp(s)
            p = p * pl.reciprocal(jnp.sum(p, axis=-1, keepdims=True), approx=True)
            oh = jnp.einsum('gqk,gkd->gqd', p.astype(jnp.bfloat16), vh,
                            preferred_element_type=jnp.float32)  # (G, L, Dh)
            # accumulate through the h-th row-block of Wo (no lane concat)
            attn = attn + jnp.dot(oh.reshape(G * L, Dh).astype(jnp.bfloat16), wo[h],
                                  preferred_element_type=jnp.float32)
        z = z + attn + bo

        # ---- pre-LN MLP ----
        xn2 = layer_norm(z, ln2_g, ln2_b)
        hdn = jnp.dot(xn2.astype(jnp.bfloat16), w1_ref[li],
                      preferred_element_type=jnp.float32) + b1_ref[li]
        hdn = jax.nn.gelu(hdn)
        mlp = jnp.dot(hdn.astype(jnp.bfloat16), w2_ref[li],
                      preferred_element_type=jnp.float32) + b2
        return z + mlp

    # ---- input projection + positional encoding; rows ordered (n, t) ----
    flow = flow_ref[0].astype(jnp.float32)                      # (N*T, Cin)
    Cin = flow.shape[-1]
    x = pe_ref[...]                                             # tiled PE + proj bias
    for c in range(Cin):                                        # tiny K=2 contraction
        x = x + flow[:, c:c + 1] * wproj_ref[c:c + 1, :]

    # ---- encoder stack; T<->S regrouping stays in VMEM ----
    order = "T"   # "T": row index = n*T + t ; "S": row index = t*N + n
    for li, kind in layer_plan:
        if kind == "T":
            if order != "T":
                x3 = x.reshape(T, N, D)
                x = jnp.concatenate([x3[:, n, :] for n in range(N)], axis=0)
                order = "T"
            x = encoder_layer(x, li, N, T, ATTN_MASK_T)
        else:
            if order != "S":
                x3 = x.reshape(N, T, D)
                x = jnp.concatenate([x3[:, t, :] for t in range(T)], axis=0)
                order = "S"
            x = encoder_layer(x, li, T, N, ATTN_MASK_S)

    # ---- lane-dense output: (N, T*D), out2d[n, t*D + d] = value(n, t, d) ----
    if order == "S":
        out2d = jnp.concatenate([x[t * N:(t + 1) * N, :] for t in range(T)], axis=1)
    else:
        x3 = x.reshape(N, T, D)
        out2d = jnp.concatenate([x3[:, t, :] for t in range(T)], axis=1)
    out_ref[0] = out2d.astype(out_ref.dtype)


# ------------------------- pallas_call wrapper -------------------------
def st_attention_pallas(flow_nt, wproj, pe_plus, packed, *, N, T, layer_plan):
    B = flow_nt.shape[0]
    Cin = flow_nt.shape[-1]
    D = EMBED_DIM

    kernel = functools.partial(st_attention_kernel, N=N, T=T, D=D, H=NUM_HEADS,
                               layer_plan=tuple(layer_plan))

    def const_spec(arr):
        nd = arr.ndim
        return pl.BlockSpec(arr.shape, lambda b, _nd=nd: (0,) * _nd)

    param_arrays = [wproj, pe_plus, packed["wqkv"], packed["bqkv"], packed["wo"],
                    packed["w1"], packed["b1"], packed["w2"], packed["vec"]]

    return pl.pallas_call(
        kernel,
        out_shape=jax.ShapeDtypeStruct((B, N, T * D), jnp.float32),
        grid=(B,),
        in_specs=[pl.BlockSpec((1, N * T, Cin), lambda b: (b, 0, 0))]
                 + [const_spec(a) for a in param_arrays],
        out_specs=pl.BlockSpec((1, N, T * D), lambda b: (b, 0, 0)),
        compiler_params=pltpu.CompilerParams(
            dimension_semantics=("parallel",)),
    )(flow_nt, *param_arrays)


# ------------------------- parameter packing -------------------------
def pack_encoder_params(params):
    D = EMBED_DIM
    H = NUM_HEADS
    Dh = D // H
    scale = 1.0 / math.sqrt(Dh)
    wqkv_l, bqkv_l, wo_l, w1_l, b1_l, w2_l, vec_l = [], [], [], [], [], [], []
    layer_plan = []
    layers_full = ["T"] + LAYERS
    idx = 0
    for i in range(1, len(layers_full)):
        kind = layers_full[i]
        for d in range(LAYER_DEPTH):
            p = params["encoder"][i - 1][d]
            wqkv_l.append(jnp.concatenate([p["wq"] * scale, p["wk"], p["wv"]], axis=1))
            bqkv_l.append(jnp.concatenate([p["bq"] * scale, p["bk"], p["bv"]], axis=1))
            wo_l.append(p["wo"].reshape(H, Dh, D))
            w1_l.append(p["w1"])
            b1_l.append(p["b1"])
            w2_l.append(p["w2"])
            vec_l.append(jnp.concatenate(
                [p["ln1_g"], p["ln1_b"], p["bo"], p["ln2_g"], p["ln2_b"], p["b2"],
                 jnp.zeros((2, D), jnp.float32)], axis=0))          # (8, D)
            layer_plan.append((idx, kind))
            idx += 1
    packed = {
        "wqkv": jnp.stack(wqkv_l).astype(jnp.bfloat16),   # (n_enc, D, 3D)
        "bqkv": jnp.stack(bqkv_l).astype(jnp.float32),    # (n_enc, 1, 3D)
        "wo": jnp.stack(wo_l).astype(jnp.bfloat16),       # (n_enc, H, Dh, D)
        "w1": jnp.stack(w1_l).astype(jnp.bfloat16),       # (n_enc, D, 4D)
        "b1": jnp.stack(b1_l).astype(jnp.float32),        # (n_enc, 1, 4D)
        "w2": jnp.stack(w2_l).astype(jnp.bfloat16),       # (n_enc, 4D, D)
        "vec": jnp.stack(vec_l).astype(jnp.float32),      # (n_enc, 8, D)
    }
    return packed, layer_plan


# ------------------------- parameter init -------------------------
def init_params(key):
    D = EMBED_DIM
    hid = D * MLP_RATIO
    keys = jax.random.split(key, 64)
    kit = iter(keys)

    def w(shape, scale=0.02):
        return (scale * jax.random.normal(next(kit), shape)).astype(jnp.float32)

    params = {
        "proj_w": w((IN_CHANNEL, D)),
        "proj_b": jnp.zeros((1, D), jnp.float32),
        "encoder": [],
    }
    for _ in LAYERS:
        depth_list = []
        for _ in range(LAYER_DEPTH):
            depth_list.append({
                "ln1_g": jnp.ones((1, D), jnp.float32), "ln1_b": jnp.zeros((1, D), jnp.float32),
                "wq": w((D, D)), "bq": jnp.zeros((1, D), jnp.float32),
                "wk": w((D, D)), "bk": jnp.zeros((1, D), jnp.float32),
                "wv": w((D, D)), "bv": jnp.zeros((1, D), jnp.float32),
                "wo": w((D, D)), "bo": jnp.zeros((1, D), jnp.float32),
                "ln2_g": jnp.ones((1, D), jnp.float32), "ln2_b": jnp.zeros((1, D), jnp.float32),
                "w1": w((D, hid)), "b1": jnp.zeros((1, hid), jnp.float32),
                "w2": w((hid, D)), "b2": jnp.zeros((1, D), jnp.float32),
            })
        params["encoder"].append(depth_list)
    return params


# ------------------------- forward -------------------------
def st_attention_forward(history_data, params):
    # history_data: (B, T, N, C_total); the PyTorch module permutes to (B, N, T, C).
    B, T, N, _ = history_data.shape
    D = EMBED_DIM
    flow = history_data[..., :IN_CHANNEL]                        # (B, T, N, Cin)
    # tod / dow channels unused with pos_embed_T='timepos'.
    flow_nt = jnp.transpose(flow, (0, 2, 1, 3)).reshape(B, N * T, IN_CHANNEL)

    pe_plus = jnp.tile(sinusoidal_pe(T, D), (N, 1)) + params["proj_b"]  # (N*T, D)
    packed, layer_plan = pack_encoder_params(params)

    out_flat = st_attention_pallas(flow_nt, params["proj_w"], pe_plus, packed,
                                   N=N, T=T, layer_plan=layer_plan)
    enc = out_flat.reshape(B, N, T, D)                           # trailing-dim split: free
    aux_loss = jnp.float32(0.0)                                  # no MoE in this config
    return enc, aux_loss


# ------------------------- pure-JAX reference (for a sanity check) -------------------------
def _ref_encoder_layer(x, p, causal):
    D = EMBED_DIM
    H = NUM_HEADS
    Dh = D // H
    L = x.shape[-2]

    def ln(z, g, b):
        mu = jnp.mean(z, -1, keepdims=True)
        var = jnp.mean(jnp.square(z - mu), -1, keepdims=True)
        return (z - mu) * jax.lax.rsqrt(var + LN_EPS) * g + b

    xn = ln(x, p["ln1_g"], p["ln1_b"])
    q = (xn @ p["wq"] + p["bq"]).reshape(x.shape[:-1] + (H, Dh))
    k = (xn @ p["wk"] + p["bk"]).reshape(x.shape[:-1] + (H, Dh))
    v = (xn @ p["wv"] + p["bv"]).reshape(x.shape[:-1] + (H, Dh))
    s = jnp.einsum('...qhd,...khd->...hqk', q, k) / math.sqrt(Dh)
    if causal:
        row = jnp.arange(L)[:, None]
        col = jnp.arange(L)[None, :]
        s = jnp.where(col <= row, s, -1e30)
    s = s - jnp.max(s, -1, keepdims=True)
    a = jnp.exp(s)
    a = a / jnp.sum(a, -1, keepdims=True)
    o = jnp.einsum('...hqk,...khd->...qhd', a, v).reshape(x.shape)
    x = x + o @ p["wo"] + p["bo"]
    xn2 = ln(x, p["ln2_g"], p["ln2_b"])
    h1 = jax.nn.gelu(xn2 @ p["w1"] + p["b1"])
    return x + h1 @ p["w2"] + p["b2"]


def ref_forward(history_data, params):
    x = jnp.transpose(history_data, (0, 2, 1, 3))
    flow = x[..., :IN_CHANNEL]
    B, N, T, _ = flow.shape
    enc = flow @ params["proj_w"] + params["proj_b"] + sinusoidal_pe(T, EMBED_DIM)
    layers_full = ["T"] + LAYERS
    for i in range(1, len(layers_full)):
        if layers_full[i] != layers_full[i - 1]:
            enc = jnp.swapaxes(enc, -2, -3)
        causal = ATTN_MASK_T if layers_full[i] == "T" else ATTN_MASK_S
        for d in range(LAYER_DEPTH):
            enc = _ref_encoder_layer(enc, params["encoder"][i - 1][d], causal)
    if layers_full[-1] == "S":
        enc = jnp.swapaxes(enc, -2, -3)
    return enc, jnp.float32(0.0)


# ------------------------- main -------------------------
if __name__ == "__main__":
    B, T, N = 2, 8, 16
    C_total = IN_CHANNEL + 2                                     # flow channels + tod + dow
    key = jax.random.PRNGKey(0)
    k_data, k_params = jax.random.split(key)
    history_data = jax.random.normal(k_data, (B, T, N, C_total), dtype=jnp.float32)
    params = init_params(k_params)

    fwd = jax.jit(st_attention_forward)
    out, aux = fwd(history_data, params)
    out = jax.block_until_ready(out)
    aux = jax.block_until_ready(aux)

    assert out.shape == (B, N, T, EMBED_DIM), out.shape
    assert bool(jnp.isfinite(out).all())

    # loose check against a pure-JAX f32 reference (kernel uses bf16 MXU operands)
    ref_out, _ = ref_forward(history_data, params)
    err = float(jnp.max(jnp.abs(out - ref_out)))
    assert err < 3e-2, f"max abs error {err}"

    print("KERNEL_OK")
</pallas_src>

<mosaic_0001>
module attributes {stable_mosaic.version = 11 : i64} {
  func.func @st_attention_kernel(%arg0: i32, %arg1: memref<1x128x2xf32, #tpu.memory_space<vmem>>, %arg2: memref<2x32xf32, #tpu.memory_space<vmem>>, %arg3: memref<128x32xf32, #tpu.memory_space<vmem>>, %arg4: memref<2x32x96xbf16, #tpu.memory_space<vmem>>, %arg5: memref<2x1x96xf32, #tpu.memory_space<vmem>>, %arg6: memref<2x4x8x32xbf16, #tpu.memory_space<vmem>>, %arg7: memref<2x32x128xbf16, #tpu.memory_space<vmem>>, %arg8: memref<2x1x128xf32, #tpu.memory_space<vmem>>, %arg9: memref<2x128x32xbf16, #tpu.memory_space<vmem>>, %arg10: memref<2x8x32xf32, #tpu.memory_space<vmem>>, %arg11: memref<1x16x256xf32, #tpu.memory_space<vmem>>) attributes {dimension_semantics = [#tpu.dimension_semantics<parallel>], iteration_bounds = array<i64: 2>, scalar_prefetch = 0 : i64, scratch_operands = 0 : i64, tpu.core_type = #tpu.core_type<tc>, window_params = [{transform_indices = @transform_0, window_bounds = array<i64: 1, 128, 2>}, {pipeline_mode = #tpu.pipeline_mode<synchronous>, transform_indices = @transform_1, window_bounds = array<i64: 2, 32>}, {pipeline_mode = #tpu.pipeline_mode<synchronous>, transform_indices = @transform_2, window_bounds = array<i64: 128, 32>}, {pipeline_mode = #tpu.pipeline_mode<synchronous>, transform_indices = @transform_3, window_bounds = array<i64: 2, 32, 96>}, {pipeline_mode = #tpu.pipeline_mode<synchronous>, transform_indices = @transform_4, window_bounds = array<i64: 2, 1, 96>}, {pipeline_mode = #tpu.pipeline_mode<synchronous>, transform_indices = @transform_5, window_bounds = array<i64: 2, 4, 8, 32>}, {pipeline_mode = #tpu.pipeline_mode<synchronous>, transform_indices = @transform_6, window_bounds = array<i64: 2, 32, 128>}, {pipeline_mode = #tpu.pipeline_mode<synchronous>, transform_indices = @transform_7, window_bounds = array<i64: 2, 1, 128>}, {pipeline_mode = #tpu.pipeline_mode<synchronous>, transform_indices = @transform_8, window_bounds = array<i64: 2, 128, 32>}, {pipeline_mode = #tpu.pipeline_mode<synchronous>, transform_indices = @transform_9, window_bounds = array<i64: 2, 8, 32>}, {transform_indices = @transform_10, window_bounds = array<i64: 1, 16, 256>}]} {
    %c0 = arith.constant 0 : index
    %c0_0 = arith.constant 0 : index
    %c0_1 = arith.constant 0 : index
    %0 = vector.load %arg1[%c0, %c0_0, %c0_1] : memref<1x128x2xf32, #tpu.memory_space<vmem>>, vector<1x128x2xf32>
    %1 = vector.shape_cast %0 : vector<1x128x2xf32> to vector<128x2xf32>
    %c0_2 = arith.constant 0 : index
    %c0_3 = arith.constant 0 : index
    %2 = vector.load %arg3[%c0_2, %c0_3] : memref<128x32xf32, #tpu.memory_space<vmem>>, vector<128x32xf32>
    %3 = vector.extract_strided_slice %1 {offsets = [0, 0], sizes = [128, 1], strides = [1, 1]} : vector<128x2xf32> to vector<128x1xf32>
    %c0_4 = arith.constant 0 : index
    %c0_5 = arith.constant 0 : index
    %4 = vector.load %arg2[%c0_4, %c0_5] : memref<2x32xf32, #tpu.memory_space<vmem>>, vector<1x32xf32>
    %5 = vector.broadcast %3 : vector<128x1xf32> to vector<128x32xf32>
    %6 = vector.broadcast %4 : vector<1x32xf32> to vector<128x32xf32>
    %7 = arith.mulf %5, %6 : vector<128x32xf32>
    %8 = arith.addf %2, %7 : vector<128x32xf32>
    %9 = vector.extract_strided_slice %1 {offsets = [0, 1], sizes = [128, 1], strides = [1, 1]} : vector<128x2xf32> to vector<128x1xf32>
    %c1 = arith.constant 1 : index
    %c0_6 = arith.constant 0 : index
    %10 = vector.load %arg2[%c1, %c0_6] : memref<2x32xf32, #tpu.memory_space<vmem>>, vector<1x32xf32>
    %11 = vector.broadcast %9 : vector<128x1xf32> to vector<128x32xf32>
    %12 = vector.broadcast %10 : vector<1x32xf32> to vector<128x32xf32>
    %13 = arith.mulf %11, %12 : vector<128x32xf32>
    %14 = arith.addf %8, %13 : vector<128x32xf32>
    %c0_7 = arith.constant 0 : index
    %c0_8 = arith.constant 0 : index
    %c0_9 = arith.constant 0 : index
    %15 = vector.load %arg10[%c0_7, %c0_8, %c0_9] : memref<2x8x32xf32, #tpu.memory_space<vmem>>, vector<1x8x32xf32>
    %16 = vector.shape_cast %15 : vector<1x8x32xf32> to vector<8x32xf32>
    %17 = vector.extract_strided_slice %16 {offsets = [0, 0], sizes = [1, 32], strides = [1, 1]} : vector<8x32xf32> to vector<1x32xf32>
    %18 = vector.extract_strided_slice %16 {offsets = [1, 0], sizes = [1, 32], strides = [1, 1]} : vector<8x32xf32> to vector<1x32xf32>
    %19 = vector.extract_strided_slice %16 {offsets = [2, 0], sizes = [1, 32], strides = [1, 1]} : vector<8x32xf32> to vector<1x32xf32>
    %20 = vector.extract_strided_slice %16 {offsets = [3, 0], sizes = [1, 32], strides = [1, 1]} : vector<8x32xf32> to vector<1x32xf32>
    %21 = vector.extract_strided_slice %16 {offsets = [4, 0], sizes = [1, 32], strides = [1, 1]} : vector<8x32xf32> to vector<1x32xf32>
    %22 = vector.extract_strided_slice %16 {offsets = [5, 0], sizes = [1, 32], strides = [1, 1]} : vector<8x32xf32> to vector<1x32xf32>
    %cst = arith.constant dense<0.000000e+00> : vector<128xf32>
    %23 = vector.multi_reduction <add>, %14, %cst [1] : vector<128x32xf32> to vector<128xf32>
    %24 = vector.shape_cast %23 : vector<128xf32> to vector<128x1xf32>
    %cst_10 = arith.constant 3.200000e+01 : f32
    %25 = vector.broadcast %cst_10 : f32 to vector<128x1xf32>
    %26 = arith.divf %24, %25 : vector<128x1xf32>
    %27 = vector.broadcast %26 : vector<128x1xf32> to vector<128x32xf32>
    %28 = arith.subf %14, %27 : vector<128x32xf32>
    %29 = arith.mulf %28, %28 : vector<128x32xf32>
    %cst_11 = arith.constant dense<0.000000e+00> : vector<128xf32>
    %30 = vector.multi_reduction <add>, %29, %cst_11 [1] : vector<128x32xf32> to vector<128xf32>
    %31 = vector.shape_cast %30 : vector<128xf32> to vector<128x1xf32>
    %cst_12 = arith.constant 3.200000e+01 : f32
    %32 = vector.broadcast %cst_12 : f32 to vector<128x1xf32>
    %33 = arith.divf %31, %32 : vector<128x1xf32>
    %34 = vector.broadcast %26 : vector<128x1xf32> to vector<128x32xf32>
    %35 = arith.subf %14, %34 : vector<128x32xf32>
    %cst_13 = arith.constant 9.99999974E-6 : f32
    %36 = vector.broadcast %cst_13 : f32 to vector<128x1xf32>
    %37 = arith.addf %33, %36 : vector<128x1xf32>
    %38 = math.rsqrt %37 : vector<128x1xf32>
    %39 = vector.broadcast %38 : vector<128x1xf32> to vector<128x32xf32>
    %40 = arith.mulf %35, %39 : vector<128x32xf32>
    %41 = vector.broadcast %17 : vector<1x32xf32> to vector<128x32xf32>
    %42 = arith.mulf %40, %41 : vector<128x32xf32>
    %43 = vector.broadcast %18 : vector<1x32xf32> to vector<128x32xf32>
    %44 = arith.addf %42, %43 : vector<128x32xf32>
    %45 = arith.truncf %44 : vector<128x32xf32> to vector<128x32xbf16>
    %c0_14 = arith.constant 0 : index
    %c0_15 = arith.constant 0 : index
    %c0_16 = arith.constant 0 : index
    %46 = vector.load %arg4[%c0_14, %c0_15, %c0_16] : memref<2x32x96xbf16, #tpu.memory_space<vmem>>, vector<1x32x96xbf16>
    %47 = vector.shape_cast %46 : vector<1x32x96xbf16> to vector<32x96xbf16>
    %cst_17 = arith.constant dense<0.000000e+00> : vector<128x96xf32>
    %48 = tpu.matmul %45, %47, %cst_17 {dimension_numbers = #tpu.dot_dimension_numbers<[1], [0], [0], [1], [0, 0, 1, 1], [], []>} : vector<128x32xbf16>, vector<32x96xbf16>, vector<128x96xf32> -> vector<128x96xf32>
    %c0_18 = arith.constant 0 : index
    %c0_19 = arith.constant 0 : index
    %c0_20 = arith.constant 0 : index
    %49 = vector.load %arg5[%c0_18, %c0_19, %c0_20] : memref<2x1x96xf32, #tpu.memory_space<vmem>>, vector<1x1x96xf32>
    %50 = vector.shape_cast %49 : vector<1x1x96xf32> to vector<1x96xf32>
    %51 = vector.broadcast %50 : vector<1x96xf32> to vector<128x96xf32>
    %52 = arith.addf %48, %51 : vector<128x96xf32>
    %53 = tpu.iota {dimensions = array<i32: 0>} : vector<8x8xi32>
    %54 = tpu.iota {dimensions = array<i32: 1>} : vector<8x8xi32>
    %55 = arith.cmpi sle, %54, %53 : vector<8x8xi32>
    %c0_21 = arith.constant 0 : index
    %c0_22 = arith.constant 0 : index
    %c0_23 = arith.constant 0 : index
    %c0_24 = arith.constant 0 : index
    %56 = vector.load %arg6[%c0_21, %c0_22, %c0_23, %c0_24] : memref<2x4x8x32xbf16, #tpu.memory_space<vmem>>, vector<1x4x8x32xbf16>
    %57 = vector.shape_cast %56 : vector<1x4x8x32xbf16> to vector<4x8x32xbf16>
    %cst_25 = arith.constant 0.000000e+00 : f32
    %58 = vector.broadcast %cst_25 : f32 to vector<128x32xf32>
    %59 = vector.extract_strided_slice %52 {offsets = [0, 0], sizes = [128, 8], strides = [1, 1]} : vector<128x96xf32> to vector<128x8xf32>
    %60 = vector.shape_cast %59 : vector<128x8xf32> to vector<16x8x8xf32>
    %61 = arith.truncf %60 : vector<16x8x8xf32> to vector<16x8x8xbf16>
    %62 = vector.extract_strided_slice %52 {offsets = [0, 32], sizes = [128, 8], strides = [1, 1]} : vector<128x96xf32> to vector<128x8xf32>
    %63 = vector.shape_cast %62 : vector<128x8xf32> to vector<16x8x8xf32>
    %64 = arith.truncf %63 : vector<16x8x8xf32> to vector<16x8x8xbf16>
    %65 = vector.extract_strided_slice %52 {offsets = [0, 64], sizes = [128, 8], strides = [1, 1]} : vector<128x96xf32> to vector<128x8xf32>
    %66 = vector.shape_cast %65 : vector<128x8xf32> to vector<16x8x8xf32>
    %67 = arith.truncf %66 : vector<16x8x8xf32> to vector<16x8x8xbf16>
    "tpu.trace_start"() <{level = 10 : i32, message = "gqd,gkd->gqk"}> : () -> ()
    %cst_26 = arith.constant dense<0.000000e+00> : vector<16x8x8xf32>
    %68 = tpu.matmul %61, %64, %cst_26 {dimension_numbers = #tpu.dot_dimension_numbers<[2], [2], [1], [1], [0, 0, 0, 1, 1, 1], [0], [0]>} : vector<16x8x8xbf16>, vector<16x8x8xbf16>, vector<16x8x8xf32> -> vector<16x8x8xf32>
    %cst_27 = arith.constant -1.000000e+30 : f32
    "tpu.trace_stop"() : () -> ()
    %69 = vector.shape_cast %55 : vector<8x8xi1> to vector<1x8x8xi1>
    %70 = vector.broadcast %69 : vector<1x8x8xi1> to vector<16x8x8xi1>
    %71 = vector.broadcast %cst_27 : f32 to vector<16x8x8xf32>
    %72 = arith.select %70, %68, %71 : vector<16x8x8xi1>, vector<16x8x8xf32>
    %cst_28 = arith.constant dense<0xFF800000> : vector<16x8xf32>
    %73 = vector.multi_reduction <maximumf>, %72, %cst_28 [2] : vector<16x8x8xf32> to vector<16x8xf32>
    %74 = vector.shape_cast %73 : vector<16x8xf32> to vector<16x8x1xf32>
    %75 = vector.broadcast %74 : vector<16x8x1xf32> to vector<16x8x8xf32>
    %76 = arith.subf %72, %75 : vector<16x8x8xf32>
    %77 = math.exp %76 : vector<16x8x8xf32>
    %cst_29 = arith.constant dense<0.000000e+00> : vector<16x8xf32>
    %78 = vector.multi_reduction <add>, %77, %cst_29 [2] : vector<16x8x8xf32> to vector<16x8xf32>
    %79 = vector.shape_cast %78 : vector<16x8xf32> to vector<16x8x1xf32>
    %80 = tpu.reciprocal %79 {approx = true} : vector<16x8x1xf32> -> vector<16x8x1xf32>
    %81 = vector.broadcast %80 : vector<16x8x1xf32> to vector<16x8x8xf32>
    %82 = arith.mulf %77, %81 : vector<16x8x8xf32>
    %83 = arith.truncf %82 : vector<16x8x8xf32> to vector<16x8x8xbf16>
    "tpu.trace_start"() <{level = 10 : i32, message = "gqk,gkd->gqd"}> : () -> ()
    %cst_30 = arith.constant dense<0.000000e+00> : vector<16x8x8xf32>
    %84 = tpu.matmul %83, %67, %cst_30 {dimension_numbers = #tpu.dot_dimension_numbers<[2], [1], [1], [2], [0, 0, 0, 1, 1, 2], [0], [0]>} : vector<16x8x8xbf16>, vector<16x8x8xbf16>, vector<16x8x8xf32> -> vector<16x8x8xf32>
    "tpu.trace_stop"() : () -> ()
    %85 = vector.shape_cast %84 : vector<16x8x8xf32> to vector<128x8xf32>
    %86 = arith.truncf %85 : vector<128x8xf32> to vector<128x8xbf16>
    %87 = vector.extract_strided_slice %57 {offsets = [0, 0, 0], sizes = [1, 8, 32], strides = [1, 1, 1]} : vector<4x8x32xbf16> to vector<1x8x32xbf16>
    %88 = vector.shape_cast %87 : vector<1x8x32xbf16> to vector<8x32xbf16>
    %cst_31 = arith.constant dense<0.000000e+00> : vector<128x32xf32>
    %89 = tpu.matmul %86, %88, %cst_31 {dimension_numbers = #tpu.dot_dimension_numbers<[1], [0], [0], [1], [0, 0, 1, 1], [], []>} : vector<128x8xbf16>, vector<8x32xbf16>, vector<128x32xf32> -> vector<128x32xf32>
    %90 = arith.addf %58, %89 : vector<128x32xf32>
    %91 = vector.extract_strided_slice %52 {offsets = [0, 8], sizes = [128, 8], strides = [1, 1]} : vector<128x96xf32> to vector<128x8xf32>
    %92 = vector.shape_cast %91 : vector<128x8xf32> to vector<16x8x8xf32>
    %93 = arith.truncf %92 : vector<16x8x8xf32> to vector<16x8x8xbf16>
    %94 = vector.extract_strided_slice %52 {offsets = [0, 40], sizes = [128, 8], strides = [1, 1]} : vector<128x96xf32> to vector<128x8xf32>
    %95 = vector.shape_cast %94 : vector<128x8xf32> to vector<16x8x8xf32>
    %96 = arith.truncf %95 : vector<16x8x8xf32> to vector<16x8x8xbf16>
    %97 = vector.extract_strided_slice %52 {offsets = [0, 72], sizes = [128, 8], strides = [1, 1]} : vector<128x96xf32> to vector<128x8xf32>
    %98 = vector.shape_cast %97 : vector<128x8xf32> to vector<16x8x8xf32>
    %99 = arith.truncf %98 : vector<16x8x8xf32> to vector<16x8x8xbf16>
    "tpu.trace_start"() <{level = 10 : i32, message = "gqd,gkd->gqk"}> : () -> ()
    %cst_32 = arith.constant dense<0.000000e+00> : vector<16x8x8xf32>
    %100 = tpu.matmul %93, %96, %cst_32 {dimension_numbers = #tpu.dot_dimension_numbers<[2], [2], [1], [1], [0, 0, 0, 1, 1, 1], [0], [0]>} : vector<16x8x8xbf16>, vector<16x8x8xbf16>, vector<16x8x8xf32> -> vector<16x8x8xf32>
    %cst_33 = arith.constant -1.000000e+30 : f32
    "tpu.trace_stop"() : () -> ()
    %101 = vector.shape_cast %55 : vector<8x8xi1> to vector<1x8x8xi1>
    %102 = vector.broadcast %101 : vector<1x8x8xi1> to vector<16x8x8xi1>
    %103 = vector.broadcast %cst_33 : f32 to vector<16x8x8xf32>
    %104 = arith.select %102, %100, %103 : vector<16x8x8xi1>, vector<16x8x8xf32>
    %cst_34 = arith.constant dense<0xFF800000> : vector<16x8xf32>
    %105 = vector.multi_reduction <maximumf>, %104, %cst_34 [2] : vector<16x8x8xf32> to vector<16x8xf32>
    %106 = vector.shape_cast %105 : vector<16x8xf32> to vector<16x8x1xf32>
    %107 = vector.broadcast %106 : vector<16x8x1xf32> to vector<16x8x8xf32>
    %108 = arith.subf %104, %107 : vector<16x8x8xf32>
    %109 = math.exp %108 : vector<16x8x8xf32>
    %cst_35 = arith.constant dense<0.000000e+00> : vector<16x8xf32>
    %110 = vector.multi_reduction <add>, %109, %cst_35 [2] : vector<16x8x8xf32> to vector<16x8xf32>
    %111 = vector.shape_cast %110 : vector<16x8xf32> to vector<16x8x1xf32>
    %112 = tpu.reciprocal %111 {approx = true} : vector<16x8x1xf32> -> vector<16x8x1xf32>
    %113 = vector.broadcast %112 : vector<16x8x1xf32> to vector<16x8x8xf32>
    %114 = arith.mulf %109, %113 : vector<16x8x8xf32>
    %115 = arith.truncf %114 : vector<16x8x8xf32> to vector<16x8x8xbf16>
    "tpu.trace_start"() <{level = 10 : i32, message = "gqk,gkd->gqd"}> : () -> ()
    %cst_36 = arith.constant dense<0.000000e+00> : vector<16x8x8xf32>
    %116 = tpu.matmul %115, %99, %cst_36 {dimension_numbers = #tpu.dot_dimension_numbers<[2], [1], [1], [2], [0, 0, 0, 1, 1, 2], [0], [0]>} : vector<16x8x8xbf16>, vector<16x8x8xbf16>, vector<16x8x8xf32> -> vector<16x8x8xf32>
    "tpu.trace_stop"() : () -> ()
    %117 = vector.shape_cast %116 : vector<16x8x8xf32> to vector<128x8xf32>
    %118 = arith.truncf %117 : vector<128x8xf32> to vector<128x8xbf16>
    %119 = vector.extract_strided_slice %57 {offsets = [1, 0, 0], sizes = [1, 8, 32], strides = [1, 1, 1]} : vector<4x8x32xbf16> to vector<1x8x32xbf16>
    %120 = vector.shape_cast %119 : vector<1x8x32xbf16> to vector<8x32xbf16>
    %cst_37 = arith.constant dense<0.000000e+00> : vector<128x32xf32>
    %121 = tpu.matmul %118, %120, %cst_37 {dimension_numbers = #tpu.dot_dimension_numbers<[1], [0], [0], [1], [0, 0, 1, 1], [], []>} : vector<128x8xbf16>, vector<8x32xbf16>, vector<128x32xf32> -> vector<128x32xf32>
    %122 = arith.addf %90, %121 : vector<128x32xf32>
    %123 = vector.extract_strided_slice %52 {offsets = [0, 16], sizes = [128, 8], strides = [1, 1]} : vector<128x96xf32> to vector<128x8xf32>
    %124 = vector.shape_cast %123 : vector<128x8xf32> to vector<16x8x8xf32>
    %125 = arith.truncf %124 : vector<16x8x8xf32> to vector<16x8x8xbf16>
    %126 = vector.extract_strided_slice %52 {offsets = [0, 48], sizes = [128, 8], strides = [1, 1]} : vector<128x96xf32> to vector<128x8xf32>
    %127 = vector.shape_cast %126 : vector<128x8xf32> to vector<16x8x8xf32>
    %128 = arith.truncf %127 : vector<16x8x8xf32> to vector<16x8x8xbf16>
    %129 = vector.extract_strided_slice %52 {offsets = [0, 80], sizes = [128, 8], strides = [1, 1]} : vector<128x96xf32> to vector<128x8xf32>
    %130 = vector.shape_cast %129 : vector<128x8xf32> to vector<16x8x8xf32>
    %131 = arith.truncf %130 : vector<16x8x8xf32> to vector<16x8x8xbf16>
    "tpu.trace_start"() <{level = 10 : i32, message = "gqd,gkd->gqk"}> : () -> ()
    %cst_38 = arith.constant dense<0.000000e+00> : vector<16x8x8xf32>
    %132 = tpu.matmul %125, %128, %cst_38 {dimension_numbers = #tpu.dot_dimension_numbers<[2], [2], [1], [1], [0, 0, 0, 1, 1, 1], [0], [0]>} : vector<16x8x8xbf16>, vector<16x8x8xbf16>, vector<16x8x8xf32> -> vector<16x8x8xf32>
    %cst_39 = arith.constant -1.000000e+30 : f32
    "tpu.trace_stop"() : () -> ()
    %133 = vector.shape_cast %55 : vector<8x8xi1> to vector<1x8x8xi1>
    %134 = vector.broadcast %133 : vector<1x8x8xi1> to vector<16x8x8xi1>
    %135 = vector.broadcast %cst_39 : f32 to vector<16x8x8xf32>
    %136 = arith.select %134, %132, %135 : vector<16x8x8xi1>, vector<16x8x8xf32>
    %cst_40 = arith.constant dense<0xFF800000> : vector<16x8xf32>
    %137 = vector.multi_reduction <maximumf>, %136, %cst_40 [2] : vector<16x8x8xf32> to vector<16x8xf32>
    %138 = vector.shape_cast %137 : vector<16x8xf32> to vector<16x8x1xf32>
    %139 = vector.broadcast %138 : vector<16x8x1xf32> to vector<16x8x8xf32>
    %140 = arith.subf %136, %139 : vector<16x8x8xf32>
    %141 = math.exp %140 : vector<16x8x8xf32>
    %cst_41 = arith.constant dense<0.000000e+00> : vector<16x8xf32>
    %142 = vector.multi_reduction <add>, %141, %cst_41 [2] : vector<16x8x8xf32> to vector<16x8xf32>
    %143 = vector.shape_cast %142 : vector<16x8xf32> to vector<16x8x1xf32>
    %144 = tpu.reciprocal %143 {approx = true} : vector<16x8x1xf32> -> vector<16x8x1xf32>
    %145 = vector.broadcast %144 : vector<16x8x1xf32> to vector<16x8x8xf32>
    %146 = arith.mulf %141, %145 : vector<16x8x8xf32>
    %147 = arith.truncf %146 : vector<16x8x8xf32> to vector<16x8x8xbf16>
    "tpu.trace_start"() <{level = 10 : i32, message = "gqk,gkd->gqd"}> : () -> ()
    %cst_42 = arith.constant dense<0.000000e+00> : vector<16x8x8xf32>
    %148 = tpu.matmul %147, %131, %cst_42 {dimension_numbers = #tpu.dot_dimension_numbers<[2], [1], [1], [2], [0, 0, 0, 1, 1, 2], [0], [0]>} : vector<16x8x8xbf16>, vector<16x8x8xbf16>, vector<16x8x8xf32> -> vector<16x8x8xf32>
    "tpu.trace_stop"() : () -> ()
    %149 = vector.shape_cast %148 : vector<16x8x8xf32> to vector<128x8xf32>
    %150 = arith.truncf %149 : vector<128x8xf32> to vector<128x8xbf16>
    %151 = vector.extract_strided_slice %57 {offsets = [2, 0, 0], sizes = [1, 8, 32], strides = [1, 1, 1]} : vector<4x8x32xbf16> to vector<1x8x32xbf16>
    %152 = vector.shape_cast %151 : vector<1x8x32xbf16> to vector<8x32xbf16>
    %cst_43 = arith.constant dense<0.000000e+00> : vector<128x32xf32>
    %153 = tpu.matmul %150, %152, %cst_43 {dimension_numbers = #tpu.dot_dimension_numbers<[1], [0], [0], [1], [0, 0, 1, 1], [], []>} : vector<128x8xbf16>, vector<8x32xbf16>, vector<128x32xf32> -> vector<128x32xf32>
    %154 = arith.addf %122, %153 : vector<128x32xf32>
    %155 = vector.extract_strided_slice %52 {offsets = [0, 24], sizes = [128, 8], strides = [1, 1]} : vector<128x96xf32> to vector<128x8xf32>
    %156 = vector.shape_cast %155 : vector<128x8xf32> to vector<16x8x8xf32>
    %157 = arith.truncf %156 : vector<16x8x8xf32> to vector<16x8x8xbf16>
    %158 = vector.extract_strided_slice %52 {offsets = [0, 56], sizes = [128, 8], strides = [1, 1]} : vector<128x96xf32> to vector<128x8xf32>
    %159 = vector.shape_cast %158 : vector<128x8xf32> to vector<16x8x8xf32>
    %160 = arith.truncf %159 : vector<16x8x8xf32> to vector<16x8x8xbf16>
    %161 = vector.extract_strided_slice %52 {offsets = [0, 88], sizes = [128, 8], strides = [1, 1]} : vector<128x96xf32> to vector<128x8xf32>
    %162 = vector.shape_cast %161 : vector<128x8xf32> to vector<16x8x8xf32>
    %163 = arith.truncf %162 : vector<16x8x8xf32> to vector<16x8x8xbf16>
    "tpu.trace_start"() <{level = 10 : i32, message = "gqd,gkd->gqk"}> : () -> ()
    %cst_44 = arith.constant dense<0.000000e+00> : vector<16x8x8xf32>
    %164 = tpu.matmul %157, %160, %cst_44 {dimension_numbers = #tpu.dot_dimension_numbers<[2], [2], [1], [1], [0, 0, 0, 1, 1, 1], [0], [0]>} : vector<16x8x8xbf16>, vector<16x8x8xbf16>, vector<16x8x8xf32> -> vector<16x8x8xf32>
    %cst_45 = arith.constant -1.000000e+30 : f32
    "tpu.trace_stop"() : () -> ()
    %165 = vector.shape_cast %55 : vector<8x8xi1> to vector<1x8x8xi1>
    %166 = vector.broadcast %165 : vector<1x8x8xi1> to vector<16x8x8xi1>
    %167 = vector.broadcast %cst_45 : f32 to vector<16x8x8xf32>
    %168 = arith.select %166, %164, %167 : vector<16x8x8xi1>, vector<16x8x8xf32>
    %cst_46 = arith.constant dense<0xFF800000> : vector<16x8xf32>
    %169 = vector.multi_reduction <maximumf>, %168, %cst_46 [2] : vector<16x8x8xf32> to vector<16x8xf32>
    %170 = vector.shape_cast %169 : vector<16x8xf32> to vector<16x8x1xf32>
    %171 = vector.broadcast %170 : vector<16x8x1xf32> to vector<16x8x8xf32>
    %172 = arith.subf %168, %171 : vector<16x8x8xf32>
    %173 = math.exp %172 : vector<16x8x8xf32>
    %cst_47 = arith.constant dense<0.000000e+00> : vector<16x8xf32>
    %174 = vector.multi_reduction <add>, %173, %cst_47 [2] : vector<16x8x8xf32> to vector<16x8xf32>
    %175 = vector.shape_cast %174 : vector<16x8xf32> to vector<16x8x1xf32>
    %176 = tpu.reciprocal %175 {approx = true} : vector<16x8x1xf32> -> vector<16x8x1xf32>
    %177 = vector.broadcast %176 : vector<16x8x1xf32> to vector<16x8x8xf32>
    %178 = arith.mulf %173, %177 : vector<16x8x8xf32>
    %179 = arith.truncf %178 : vector<16x8x8xf32> to vector<16x8x8xbf16>
    "tpu.trace_start"() <{level = 10 : i32, message = "gqk,gkd->gqd"}> : () -> ()
    %cst_48 = arith.constant dense<0.000000e+00> : vector<16x8x8xf32>
    %180 = tpu.matmul %179, %163, %cst_48 {dimension_numbers = #tpu.dot_dimension_numbers<[2], [1], [1], [2], [0, 0, 0, 1, 1, 2], [0], [0]>} : vector<16x8x8xbf16>, vector<16x8x8xbf16>, vector<16x8x8xf32> -> vector<16x8x8xf32>
    "tpu.trace_stop"() : () -> ()
    %181 = vector.shape_cast %180 : vector<16x8x8xf32> to vector<128x8xf32>
    %182 = arith.truncf %181 : vector<128x8xf32> to vector<128x8xbf16>
    %183 = vector.extract_strided_slice %57 {offsets = [3, 0, 0], sizes = [1, 8, 32], strides = [1, 1, 1]} : vector<4x8x32xbf16> to vector<1x8x32xbf16>
    %184 = vector.shape_cast %183 : vector<1x8x32xbf16> to vector<8x32xbf16>
    %cst_49 = arith.constant dense<0.000000e+00> : vector<128x32xf32>
    %185 = tpu.matmul %182, %184, %cst_49 {dimension_numbers = #tpu.dot_dimension_numbers<[1], [0], [0], [1], [0, 0, 1, 1], [], []>} : vector<128x8xbf16>, vector<8x32xbf16>, vector<128x32xf32> -> vector<128x32xf32>
    %186 = arith.addf %154, %185 : vector<128x32xf32>
    %187 = arith.addf %14, %186 : vector<128x32xf32>
    %188 = vector.broadcast %19 : vector<1x32xf32> to vector<128x32xf32>
    %189 = arith.addf %187, %188 : vector<128x32xf32>
    %cst_50 = arith.constant dense<0.000000e+00> : vector<128xf32>
    %190 = vector.multi_reduction <add>, %189, %cst_50 [1] : vector<128x32xf32> to vector<128xf32>
    %191 = vector.shape_cast %190 : vector<128xf32> to vector<128x1xf32>
    %cst_51 = arith.constant 3.200000e+01 : f32
    %192 = vector.broadcast %cst_51 : f32 to vector<128x1xf32>
    %193 = arith.divf %191, %192 : vector<128x1xf32>
    %194 = vector.broadcast %193 : vector<128x1xf32> to vector<128x32xf32>
    %195 = arith.subf %189, %194 : vector<128x32xf32>
    %196 = arith.mulf %195, %195 : vector<128x32xf32>
    %cst_52 = arith.constant dense<0.000000e+00> : vector<128xf32>
    %197 = vector.multi_reduction <add>, %196, %cst_52 [1] : vector<128x32xf32> to vector<128xf32>
    %198 = vector.shape_cast %197 : vector<128xf32> to vector<128x1xf32>
    %cst_53 = arith.constant 3.200000e+01 : f32
    %199 = vector.broadcast %cst_53 : f32 to vector<128x1xf32>
    %200 = arith.divf %198, %199 : vector<128x1xf32>
    %201 = vector.broadcast %193 : vector<128x1xf32> to vector<128x32xf32>
    %202 = arith.subf %189, %201 : vector<128x32xf32>
    %cst_54 = arith.constant 9.99999974E-6 : f32
    %203 = vector.broadcast %cst_54 : f32 to vector<128x1xf32>
    %204 = arith.addf %200, %203 : vector<128x1xf32>
    %205 = math.rsqrt %204 : vector<128x1xf32>
    %206 = vector.broadcast %205 : vector<128x1xf32> to vector<128x32xf32>
    %207 = arith.mulf %202, %206 : vector<128x32xf32>
    %208 = vector.broadcast %20 : vector<1x32xf32> to vector<128x32xf32>
    %209 = arith.mulf %207, %208 : vector<128x32xf32>
    %210 = vector.broadcast %21 : vector<1x32xf32> to vector<128x32xf32>
    %211 = arith.addf %209, %210 : vector<128x32xf32>
    %212 = arith.truncf %211 : vector<128x32xf32> to vector<128x32xbf16>
    %c0_55 = arith.constant 0 : index
    %c0_56 = arith.constant 0 : index
    %c0_57 = arith.constant 0 : index
    %213 = vector.load %arg7[%c0_55, %c0_56, %c0_57] : memref<2x32x128xbf16, #tpu.memory_space<vmem>>, vector<1x32x128xbf16>
    %214 = vector.shape_cast %213 : vector<1x32x128xbf16> to vector<32x128xbf16>
    %cst_58 = arith.constant dense<0.000000e+00> : vector<128x128xf32>
    %215 = tpu.matmul %212, %214, %cst_58 {dimension_numbers = #tpu.dot_dimension_numbers<[1], [0], [0], [1], [0, 0, 1, 1], [], []>} : vector<128x32xbf16>, vector<32x128xbf16>, vector<128x128xf32> -> vector<128x128xf32>
    %c0_59 = arith.constant 0 : index
    %c0_60 = arith.constant 0 : index
    %c0_61 = arith.constant 0 : index
    %216 = vector.load %arg8[%c0_59, %c0_60, %c0_61] : memref<2x1x128xf32, #tpu.memory_space<vmem>>, vector<1x1x128xf32>
    %217 = vector.shape_cast %216 : vector<1x1x128xf32> to vector<1x128xf32>
    %218 = vector.broadcast %217 : vector<1x128xf32> to vector<128x128xf32>
    %219 = arith.addf %215, %218 : vector<128x128xf32>
    %220 = arith.mulf %219, %219 : vector<128x128xf32>
    %221 = arith.mulf %219, %220 : vector<128x128xf32>
    %cst_62 = arith.constant 4.471500e-02 : f32
    %222 = vector.broadcast %cst_62 : f32 to vector<128x128xf32>
    %223 = arith.mulf %222, %221 : vector<128x128xf32>
    %224 = arith.addf %219, %223 : vector<128x128xf32>
    %cst_63 = arith.constant 0.797884583 : f32
    %225 = vector.broadcast %cst_63 : f32 to vector<128x128xf32>
    %226 = arith.mulf %225, %224 : vector<128x128xf32>
    %227 = math.tanh %226 : vector<128x128xf32>
    %cst_64 = arith.constant 1.000000e+00 : f32
    %228 = vector.broadcast %cst_64 : f32 to vector<128x128xf32>
    %229 = arith.addf %228, %227 : vector<128x128xf32>
    %cst_65 = arith.constant 5.000000e-01 : f32
    %230 = vector.broadcast %cst_65 : f32 to vector<128x128xf32>
    %231 = arith.mulf %230, %229 : vector<128x128xf32>
    %232 = arith.mulf %219, %231 : vector<128x128xf32>
    %233 = arith.truncf %232 : vector<128x128xf32> to vector<128x128xbf16>
    %c0_66 = arith.constant 0 : index
    %c0_67 = arith.constant 0 : index
    %c0_68 = arith.constant 0 : index
    %234 = vector.load %arg9[%c0_66, %c0_67, %c0_68] : memref<2x128x32xbf16, #tpu.memory_space<vmem>>, vector<1x128x32xbf16>
    %235 = vector.shape_cast %234 : vector<1x128x32xbf16> to vector<128x32xbf16>
    %cst_69 = arith.constant dense<0.000000e+00> : vector<128x32xf32>
    %236 = tpu.matmul %233, %235, %cst_69 {dimension_numbers = #tpu.dot_dimension_numbers<[1], [0], [0], [1], [0, 0, 1, 1], [], []>} : vector<128x128xbf16>, vector<128x32xbf16>, vector<128x32xf32> -> vector<128x32xf32>
    %237 = vector.broadcast %22 : vector<1x32xf32> to vector<128x32xf32>
    %238 = arith.addf %236, %237 : vector<128x32xf32>
    %239 = arith.addf %189, %238 : vector<128x32xf32>
    %240 = vector.shape_cast %239 : vector<128x32xf32> to vector<16x8x32xf32>
    %241 = vector.extract_strided_slice %240 {offsets = [0, 0, 0], sizes = [16, 1, 32], strides = [1, 1, 1]} : vector<16x8x32xf32> to vector<16x1x32xf32>
    %242 = vector.shape_cast %241 : vector<16x1x32xf32> to vector<16x32xf32>
    %243 = vector.extract_strided_slice %240 {offsets = [0, 1, 0], sizes = [16, 1, 32], strides = [1, 1, 1]} : vector<16x8x32xf32> to vector<16x1x32xf32>
    %244 = vector.shape_cast %243 : vector<16x1x32xf32> to vector<16x32xf32>
    %245 = vector.extract_strided_slice %240 {offsets = [0, 2, 0], sizes = [16, 1, 32], strides = [1, 1, 1]} : vector<16x8x32xf32> to vector<16x1x32xf32>
    %246 = vector.shape_cast %245 : vector<16x1x32xf32> to vector<16x32xf32>
    %247 = vector.extract_strided_slice %240 {offsets = [0, 3, 0], sizes = [16, 1, 32], strides = [1, 1, 1]} : vector<16x8x32xf32> to vector<16x1x32xf32>
    %248 = vector.shape_cast %247 : vector<16x1x32xf32> to vector<16x32xf32>
    %249 = vector.extract_strided_slice %240 {offsets = [0, 4, 0], sizes = [16, 1, 32], strides = [1, 1, 1]} : vector<16x8x32xf32> to vector<16x1x32xf32>
    %250 = vector.shape_cast %249 : vector<16x1x32xf32> to vector<16x32xf32>
    %251 = vector.extract_strided_slice %240 {offsets = [0, 5, 0], sizes = [16, 1, 32], strides = [1, 1, 1]} : vector<16x8x32xf32> to vector<16x1x32xf32>
    %252 = vector.shape_cast %251 : vector<16x1x32xf32> to vector<16x32xf32>
    %253 = vector.extract_strided_slice %240 {offsets = [0, 6, 0], sizes = [16, 1, 32], strides = [1, 1, 1]} : vector<16x8x32xf32> to vector<16x1x32xf32>
    %254 = vector.shape_cast %253 : vector<16x1x32xf32> to vector<16x32xf32>
    %255 = vector.extract_strided_slice %240 {offsets = [0, 7, 0], sizes = [16, 1, 32], strides = [1, 1, 1]} : vector<16x8x32xf32> to vector<16x1x32xf32>
    %256 = vector.shape_cast %255 : vector<16x1x32xf32> to vector<16x32xf32>
    %257 = tpu.concatenate %242, %244, %246, %248, %250, %252, %254, %256 in 0 : vector<16x32xf32>, vector<16x32xf32>, vector<16x32xf32>, vector<16x32xf32>, vector<16x32xf32>, vector<16x32xf32>, vector<16x32xf32>, vector<16x32xf32> -> vector<128x32xf32>
    %c1_70 = arith.constant 1 : index
    %c0_71 = arith.constant 0 : index
    %c0_72 = arith.constant 0 : index
    %258 = vector.load %arg10[%c1_70, %c0_71, %c0_72] : memref<2x8x32xf32, #tpu.memory_space<vmem>>, vector<1x8x32xf32>
    %259 = vector.shape_cast %258 : vector<1x8x32xf32> to vector<8x32xf32>
    %260 = vector.extract_strided_slice %259 {offsets = [0, 0], sizes = [1, 32], strides = [1, 1]} : vector<8x32xf32> to vector<1x32xf32>
    %261 = vector.extract_strided_slice %259 {offsets = [1, 0], sizes = [1, 32], strides = [1, 1]} : vector<8x32xf32> to vector<1x32xf32>
    %262 = vector.extract_strided_slice %259 {offsets = [2, 0], sizes = [1, 32], strides = [1, 1]} : vector<8x32xf32> to vector<1x32xf32>
    %263 = vector.extract_strided_slice %259 {offsets = [3, 0], sizes = [1, 32], strides = [1, 1]} : vector<8x32xf32> to vector<1x32xf32>
    %264 = vector.extract_strided_slice %259 {offsets = [4, 0], sizes = [1, 32], strides = [1, 1]} : vector<8x32xf32> to vector<1x32xf32>
    %265 = vector.extract_strided_slice %259 {offsets = [5, 0], sizes = [1, 32], strides = [1, 1]} : vector<8x32xf32> to vector<1x32xf32>
    %cst_73 = arith.constant dense<0.000000e+00> : vector<128xf32>
    %266 = vector.multi_reduction <add>, %257, %cst_73 [1] : vector<128x32xf32> to vector<128xf32>
    %267 = vector.shape_cast %266 : vector<128xf32> to vector<128x1xf32>
    %cst_74 = arith.constant 3.200000e+01 : f32
    %268 = vector.broadcast %cst_74 : f32 to vector<128x1xf32>
    %269 = arith.divf %267, %268 : vector<128x1xf32>
    %270 = vector.broadcast %269 : vector<128x1xf32> to vector<128x32xf32>
    %271 = arith.subf %257, %270 : vector<128x32xf32>
    %272 = arith.mulf %271, %271 : vector<128x32xf32>
    %cst_75 = arith.constant dense<0.000000e+00> : vector<128xf32>
    %273 = vector.multi_reduction <add>, %272, %cst_75 [1] : vector<128x32xf32> to vector<128xf32>
    %274 = vector.shape_cast %273 : vector<128xf32> to vector<128x1xf32>
    %cst_76 = arith.constant 3.200000e+01 : f32
    %275 = vector.broadcast %cst_76 : f32 to vector<128x1xf32>
    %276 = arith.divf %274, %275 : vector<128x1xf32>
    %277 = vector.broadcast %269 : vector<128x1xf32> to vector<128x32xf32>
    %278 = arith.subf %257, %277 : vector<128x32xf32>
    %cst_77 = arith.constant 9.99999974E-6 : f32
    %279 = vector.broadcast %cst_77 : f32 to vector<128x1xf32>
    %280 = arith.addf %276, %279 : vector<128x1xf32>
    %281 = math.rsqrt %280 : vector<128x1xf32>
    %282 = vector.broadcast %281 : vector<128x1xf32> to vector<128x32xf32>
    %283 = arith.mulf %278, %282 : vector<128x32xf32>
    %284 = vector.broadcast %260 : vector<1x32xf32> to vector<128x32xf32>
    %285 = arith.mulf %283, %284 : vector<128x32xf32>
    %286 = vector.broadcast %261 : vector<1x32xf32> to vector<128x32xf32>
    %287 = arith.addf %285, %286 : vector<128x32xf32>
    %288 = arith.truncf %287 : vector<128x32xf32> to vector<128x32xbf16>
    %c1_78 = arith.constant 1 : index
    %c0_79 = arith.constant 0 : index
    %c0_80 = arith.constant 0 : index
    %289 = vector.load %arg4[%c1_78, %c0_79, %c0_80] : memref<2x32x96xbf16, #tpu.memory_space<vmem>>, vector<1x32x96xbf16>
    %290 = vector.shape_cast %289 : vector<1x32x96xbf16> to vector<32x96xbf16>
    %cst_81 = arith.constant dense<0.000000e+00> : vector<128x96xf32>
    %291 = tpu.matmul %288, %290, %cst_81 {dimension_numbers = #tpu.dot_dimension_numbers<[1], [0], [0], [1], [0, 0, 1, 1], [], []>} : vector<128x32xbf16>, vector<32x96xbf16>, vector<128x96xf32> -> vector<128x96xf32>
    %c1_82 = arith.constant 1 : index
    %c0_83 = arith.constant 0 : index
    %c0_84 = arith.constant 0 : index
    %292 = vector.load %arg5[%c1_82, %c0_83, %c0_84] : memref<2x1x96xf32, #tpu.memory_space<vmem>>, vector<1x1x96xf32>
    %293 = vector.shape_cast %292 : vector<1x1x96xf32> to vector<1x96xf32>
    %294 = vector.broadcast %293 : vector<1x96xf32> to vector<128x96xf32>
    %295 = arith.addf %291, %294 : vector<128x96xf32>
    %c1_85 = arith.constant 1 : index
    %c0_86 = arith.constant 0 : index
    %c0_87 = arith.constant 0 : index
    %c0_88 = arith.constant 0 : index
    %296 = vector.load %arg6[%c1_85, %c0_86, %c0_87, %c0_88] : memref<2x4x8x32xbf16, #tpu.memory_space<vmem>>, vector<1x4x8x32xbf16>
    %297 = vector.shape_cast %296 : vector<1x4x8x32xbf16> to vector<4x8x32xbf16>
    %cst_89 = arith.constant 0.000000e+00 : f32
    %298 = vector.broadcast %cst_89 : f32 to vector<128x32xf32>
    %299 = vector.extract_strided_slice %295 {offsets = [0, 0], sizes = [128, 8], strides = [1, 1]} : vector<128x96xf32> to vector<128x8xf32>
    %300 = vector.shape_cast %299 : vector<128x8xf32> to vector<8x16x8xf32>
    %301 = arith.truncf %300 : vector<8x16x8xf32> to vector<8x16x8xbf16>
    %302 = vector.extract_strided_slice %295 {offsets = [0, 32], sizes = [128, 8], strides = [1, 1]} : vector<128x96xf32> to vector<128x8xf32>
    %303 = vector.shape_cast %302 : vector<128x8xf32> to vector<8x16x8xf32>
    %304 = arith.truncf %303 : vector<8x16x8xf32> to vector<8x16x8xbf16>
    %305 = vector.extract_strided_slice %295 {offsets = [0, 64], sizes = [128, 8], strides = [1, 1]} : vector<128x96xf32> to vector<128x8xf32>
    %306 = vector.shape_cast %305 : vector<128x8xf32> to vector<8x16x8xf32>
    %307 = arith.truncf %306 : vector<8x16x8xf32> to vector<8x16x8xbf16>
    "tpu.trace_start"() <{level = 10 : i32, message = "gqd,gkd->gqk"}> : () -> ()
    %cst_90 = arith.constant dense<0.000000e+00> : vector<8x16x16xf32>
    %308 = tpu.matmul %301, %304, %cst_90 {dimension_numbers = #tpu.dot_dimension_numbers<[2], [2], [1], [1], [0, 0, 0, 1, 1, 1], [0], [0]>} : vector<8x16x8xbf16>, vector<8x16x8xbf16>, vector<8x16x16xf32> -> vector<8x16x16xf32>
    "tpu.trace_stop"() : () -> ()
    %cst_91 = arith.constant dense<0xFF800000> : vector<8x16xf32>
    %309 = vector.multi_reduction <maximumf>, %308, %cst_91 [2] : vector<8x16x16xf32> to vector<8x16xf32>
    %310 = vector.shape_cast %309 : vector<8x16xf32> to vector<8x16x1xf32>
    %311 = vector.broadcast %310 : vector<8x16x1xf32> to vector<8x16x16xf32>
    %312 = arith.subf %308, %311 : vector<8x16x16xf32>
    %313 = math.exp %312 : vector<8x16x16xf32>
    %cst_92 = arith.constant dense<0.000000e+00> : vector<8x16xf32>
    %314 = vector.multi_reduction <add>, %313, %cst_92 [2] : vector<8x16x16xf32> to vector<8x16xf32>
    %315 = vector.shape_cast %314 : vector<8x16xf32> to vector<8x16x1xf32>
    %316 = tpu.reciprocal %315 {approx = true} : vector<8x16x1xf32> -> vector<8x16x1xf32>
    %317 = vector.broadcast %316 : vector<8x16x1xf32> to vector<8x16x16xf32>
    %318 = arith.mulf %313, %317 : vector<8x16x16xf32>
    %319 = arith.truncf %318 : vector<8x16x16xf32> to vector<8x16x16xbf16>
    "tpu.trace_start"() <{level = 10 : i32, message = "gqk,gkd->gqd"}> : () -> ()
    %cst_93 = arith.constant dense<0.000000e+00> : vector<8x16x8xf32>
    %320 = tpu.matmul %319, %307, %cst_93 {dimension_numbers = #tpu.dot_dimension_numbers<[2], [1], [1], [2], [0, 0, 0, 1, 1, 2], [0], [0]>} : vector<8x16x16xbf16>, vector<8x16x8xbf16>, vector<8x16x8xf32> -> vector<8x16x8xf32>
    "tpu.trace_stop"() : () -> ()
    %321 = vector.shape_cast %320 : vector<8x16x8xf32> to vector<128x8xf32>
    %322 = arith.truncf %321 : vector<128x8xf32> to vector<128x8xbf16>
    %323 = vector.extract_strided_slice %297 {offsets = [0, 0, 0], sizes = [1, 8, 32], strides = [1, 1, 1]} : vector<4x8x32xbf16> to vector<1x8x32xbf16>
    %324 = vector.shape_cast %323 : vector<1x8x32xbf16> to vector<8x32xbf16>
    %cst_94 = arith.constant dense<0.000000e+00> : vector<128x32xf32>
    %325 = tpu.matmul %322, %324, %cst_94 {dimension_numbers = #tpu.dot_dimension_numbers<[1], [0], [0], [1], [0, 0, 1, 1], [], []>} : vector<128x8xbf16>, vector<8x32xbf16>, vector<128x32xf32> -> vector<128x32xf32>
    %326 = arith.addf %298, %325 : vector<128x32xf32>
    %327 = vector.extract_strided_slice %295 {offsets = [0, 8], sizes = [128, 8], strides = [1, 1]} : vector<128x96xf32> to vector<128x8xf32>
    %328 = vector.shape_cast %327 : vector<128x8xf32> to vector<8x16x8xf32>
    %329 = arith.truncf %328 : vector<8x16x8xf32> to vector<8x16x8xbf16>
    %330 = vector.extract_strided_slice %295 {offsets = [0, 40], sizes = [128, 8], strides = [1, 1]} : vector<128x96xf32> to vector<128x8xf32>
    %331 = vector.shape_cast %330 : vector<128x8xf32> to vector<8x16x8xf32>
    %332 = arith.truncf %331 : vector<8x16x8xf32> to vector<8x16x8xbf16>
    %333 = vector.extract_strided_slice %295 {offsets = [0, 72], sizes = [128, 8], strides = [1, 1]} : vector<128x96xf32> to vector<128x8xf32>
    %334 = vector.shape_cast %333 : vector<128x8xf32> to vector<8x16x8xf32>
    %335 = arith.truncf %334 : vector<8x16x8xf32> to vector<8x16x8xbf16>
    "tpu.trace_start"() <{level = 10 : i32, message = "gqd,gkd->gqk"}> : () -> ()
    %cst_95 = arith.constant dense<0.000000e+00> : vector<8x16x16xf32>
    %336 = tpu.matmul %329, %332, %cst_95 {dimension_numbers = #tpu.dot_dimension_numbers<[2], [2], [1], [1], [0, 0, 0, 1, 1, 1], [0], [0]>} : vector<8x16x8xbf16>, vector<8x16x8xbf16>, vector<8x16x16xf32> -> vector<8x16x16xf32>
    "tpu.trace_stop"() : () -> ()
    %cst_96 = arith.constant dense<0xFF800000> : vector<8x16xf32>
    %337 = vector.multi_reduction <maximumf>, %336, %cst_96 [2] : vector<8x16x16xf32> to vector<8x16xf32>
    %338 = vector.shape_cast %337 : vector<8x16xf32> to vector<8x16x1xf32>
    %339 = vector.broadcast %338 : vector<8x16x1xf32> to vector<8x16x16xf32>
    %340 = arith.subf %336, %339 : vector<8x16x16xf32>
    %341 = math.exp %340 : vector<8x16x16xf32>
    %cst_97 = arith.constant dense<0.000000e+00> : vector<8x16xf32>
    %342 = vector.multi_reduction <add>, %341, %cst_97 [2] : vector<8x16x16xf32> to vector<8x16xf32>
    %343 = vector.shape_cast %342 : vector<8x16xf32> to vector<8x16x1xf32>
    %344 = tpu.reciprocal %343 {approx = true} : vector<8x16x1xf32> -> vector<8x16x1xf32>
    %345 = vector.broadcast %344 : vector<8x16x1xf32> to vector<8x16x16xf32>
    %346 = arith.mulf %341, %345 : vector<8x16x16xf32>
    %347 = arith.truncf %346 : vector<8x16x16xf32> to vector<8x16x16xbf16>
    "tpu.trace_start"() <{level = 10 : i32, message = "gqk,gkd->gqd"}> : () -> ()
    %cst_98 = arith.constant dense<0.000000e+00> : vector<8x16x8xf32>
    %348 = tpu.matmul %347, %335, %cst_98 {dimension_numbers = #tpu.dot_dimension_numbers<[2], [1], [1], [2], [0, 0, 0, 1, 1, 2], [0], [0]>} : vector<8x16x16xbf16>, vector<8x16x8xbf16>, vector<8x16x8xf32> -> vector<8x16x8xf32>
    "tpu.trace_stop"() : () -> ()
    %349 = vector.shape_cast %348 : vector<8x16x8xf32> to vector<128x8xf32>
    %350 = arith.truncf %349 : vector<128x8xf32> to vector<128x8xbf16>
    %351 = vector.extract_strided_slice %297 {offsets = [1, 0, 0], sizes = [1, 8, 32], strides = [1, 1, 1]} : vector<4x8x32xbf16> to vector<1x8x32xbf16>
    %352 = vector.shape_cast %351 : vector<1x8x32xbf16> to vector<8x32xbf16>
    %cst_99 = arith.constant dense<0.000000e+00> : vector<128x32xf32>
    %353 = tpu.matmul %350, %352, %cst_99 {dimension_numbers = #tpu.dot_dimension_numbers<[1], [0], [0], [1], [0, 0, 1, 1], [], []>} : vector<128x8xbf16>, vector<8x32xbf16>, vector<128x32xf32> -> vector<128x32xf32>
    %354 = arith.addf %326, %353 : vector<128x32xf32>
    %355 = vector.extract_strided_slice %295 {offsets = [0, 16], sizes = [128, 8], strides = [1, 1]} : vector<128x96xf32> to vector<128x8xf32>
    %356 = vector.shape_cast %355 : vector<128x8xf32> to vector<8x16x8xf32>
    %357 = arith.truncf %356 : vector<8x16x8xf32> to vector<8x16x8xbf16>
    %358 = vector.extract_strided_slice %295 {offsets = [0, 48], sizes = [128, 8], strides = [1, 1]} : vector<128x96xf32> to vector<128x8xf32>
    %359 = vector.shape_cast %358 : vector<128x8xf32> to vector<8x16x8xf32>
    %360 = arith.truncf %359 : vector<8x16x8xf32> to vector<8x16x8xbf16>
    %361 = vector.extract_strided_slice %295 {offsets = [0, 80], sizes = [128, 8], strides = [1, 1]} : vector<128x96xf32> to vector<128x8xf32>
    %362 = vector.shape_cast %361 : vector<128x8xf32> to vector<8x16x8xf32>
    %363 = arith.truncf %362 : vector<8x16x8xf32> to vector<8x16x8xbf16>
    "tpu.trace_start"() <{level = 10 : i32, message = "gqd,gkd->gqk"}> : () -> ()
    %cst_100 = arith.constant dense<0.000000e+00> : vector<8x16x16xf32>
    %364 = tpu.matmul %357, %360, %cst_100 {dimension_numbers = #tpu.dot_dimension_numbers<[2], [2], [1], [1], [0, 0, 0, 1, 1, 1], [0], [0]>} : vector<8x16x8xbf16>, vector<8x16x8xbf16>, vector<8x16x16xf32> -> vector<8x16x16xf32>
    "tpu.trace_stop"() : () -> ()
    %cst_101 = arith.constant dense<0xFF800000> : vector<8x16xf32>
    %365 = vector.multi_reduction <maximumf>, %364, %cst_101 [2] : vector<8x16x16xf32> to vector<8x16xf32>
    %366 = vector.shape_cast %365 : vector<8x16xf32> to vector<8x16x1xf32>
    %367 = vector.broadcast %366 : vector<8x16x1xf32> to vector<8x16x16xf32>
    %368 = arith.subf %364, %367 : vector<8x16x16xf32>
    %369 = math.exp %368 : vector<8x16x16xf32>
    %cst_102 = arith.constant dense<0.000000e+00> : vector<8x16xf32>
    %370 = vector.multi_reduction <add>, %369, %cst_102 [2] : vector<8x16x16xf32> to vector<8x16xf32>
    %371 = vector.shape_cast %370 : vector<8x16xf32> to vector<8x16x1xf32>
    %372 = tpu.reciprocal %371 {approx = true} : vector<8x16x1xf32> -> vector<8x16x1xf32>
    %373 = vector.broadcast %372 : vector<8x16x1xf32> to vector<8x16x16xf32>
    %374 = arith.mulf %369, %373 : vector<8x16x16xf32>
    %375 = arith.truncf %374 : vector<8x16x16xf32> to vector<8x16x16xbf16>
    "tpu.trace_start"() <{level = 10 : i32, message = "gqk,gkd->gqd"}> : () -> ()
    %cst_103 = arith.constant dense<0.000000e+00> : vector<8x16x8xf32>
    %376 = tpu.matmul %375, %363, %cst_103 {dimension_numbers = #tpu.dot_dimension_numbers<[2], [1], [1], [2], [0, 0, 0, 1, 1, 2], [0], [0]>} : vector<8x16x16xbf16>, vector<8x16x8xbf16>, vector<8x16x8xf32> -> vector<8x16x8xf32>
    "tpu.trace_stop"() : () -> ()
    %377 = vector.shape_cast %376 : vector<8x16x8xf32> to vector<128x8xf32>
    %378 = arith.truncf %377 : vector<128x8xf32> to vector<128x8xbf16>
    %379 = vector.extract_strided_slice %297 {offsets = [2, 0, 0], sizes = [1, 8, 32], strides = [1, 1, 1]} : vector<4x8x32xbf16> to vector<1x8x32xbf16>
    %380 = vector.shape_cast %379 : vector<1x8x32xbf16> to vector<8x32xbf16>
    %cst_104 = arith.constant dense<0.000000e+00> : vector<128x32xf32>
    %381 = tpu.matmul %378, %380, %cst_104 {dimension_numbers = #tpu.dot_dimension_numbers<[1], [0], [0], [1], [0, 0, 1, 1], [], []>} : vector<128x8xbf16>, vector<8x32xbf16>, vector<128x32xf32> -> vector<128x32xf32>
    %382 = arith.addf %354, %381 : vector<128x32xf32>
    %383 = vector.extract_strided_slice %295 {offsets = [0, 24], sizes = [128, 8], strides = [1, 1]} : vector<128x96xf32> to vector<128x8xf32>
    %384 = vector.shape_cast %383 : vector<128x8xf32> to vector<8x16x8xf32>
    %385 = arith.truncf %384 : vector<8x16x8xf32> to vector<8x16x8xbf16>
    %386 = vector.extract_strided_slice %295 {offsets = [0, 56], sizes = [128, 8], strides = [1, 1]} : vector<128x96xf32> to vector<128x8xf32>
    %387 = vector.shape_cast %386 : vector<128x8xf32> to vector<8x16x8xf32>
    %388 = arith.truncf %387 : vector<8x16x8xf32> to vector<8x16x8xbf16>
    %389 = vector.extract_strided_slice %295 {offsets = [0, 88], sizes = [128, 8], strides = [1, 1]} : vector<128x96xf32> to vector<128x8xf32>
    %390 = vector.shape_cast %389 : vector<128x8xf32> to vector<8x16x8xf32>
    %391 = arith.truncf %390 : vector<8x16x8xf32> to vector<8x16x8xbf16>
    "tpu.trace_start"() <{level = 10 : i32, message = "gqd,gkd->gqk"}> : () -> ()
    %cst_105 = arith.constant dense<0.000000e+00> : vector<8x16x16xf32>
    %392 = tpu.matmul %385, %388, %cst_105 {dimension_numbers = #tpu.dot_dimension_numbers<[2], [2], [1], [1], [0, 0, 0, 1, 1, 1], [0], [0]>} : vector<8x16x8xbf16>, vector<8x16x8xbf16>, vector<8x16x16xf32> -> vector<8x16x16xf32>
    "tpu.trace_stop"() : () -> ()
    %cst_106 = arith.constant dense<0xFF800000> : vector<8x16xf32>
    %393 = vector.multi_reduction <maximumf>, %392, %cst_106 [2] : vector<8x16x16xf32> to vector<8x16xf32>
    %394 = vector.shape_cast %393 : vector<8x16xf32> to vector<8x16x1xf32>
    %395 = vector.broadcast %394 : vector<8x16x1xf32> to vector<8x16x16xf32>
    %396 = arith.subf %392, %395 : vector<8x16x16xf32>
    %397 = math.exp %396 : vector<8x16x16xf32>
    %cst_107 = arith.constant dense<0.000000e+00> : vector<8x16xf32>
    %398 = vector.multi_reduction <add>, %397, %cst_107 [2] : vector<8x16x16xf32> to vector<8x16xf32>
    %399 = vector.shape_cast %398 : vector<8x16xf32> to vector<8x16x1xf32>
    %400 = tpu.reciprocal %399 {approx = true} : vector<8x16x1xf32> -> vector<8x16x1xf32>
    %401 = vector.broadcast %400 : vector<8x16x1xf32> to vector<8x16x16xf32>
    %402 = arith.mulf %397, %401 : vector<8x16x16xf32>
    %403 = arith.truncf %402 : vector<8x16x16xf32> to vector<8x16x16xbf16>
    "tpu.trace_start"() <{level = 10 : i32, message = "gqk,gkd->gqd"}> : () -> ()
    %cst_108 = arith.constant dense<0.000000e+00> : vector<8x16x8xf32>
    %404 = tpu.matmul %403, %391, %cst_108 {dimension_numbers = #tpu.dot_dimension_numbers<[2], [1], [1], [2], [0, 0, 0, 1, 1, 2], [0], [0]>} : vector<8x16x16xbf16>, vector<8x16x8xbf16>, vector<8x16x8xf32> -> vector<8x16x8xf32>
    "tpu.trace_stop"() : () -> ()
    %405 = vector.shape_cast %404 : vector<8x16x8xf32> to vector<128x8xf32>
    %406 = arith.truncf %405 : vector<128x8xf32> to vector<128x8xbf16>
    %407 = vector.extract_strided_slice %297 {offsets = [3, 0, 0], sizes = [1, 8, 32], strides = [1, 1, 1]} : vector<4x8x32xbf16> to vector<1x8x32xbf16>
    %408 = vector.shape_cast %407 : vector<1x8x32xbf16> to vector<8x32xbf16>
    %cst_109 = arith.constant dense<0.000000e+00> : vector<128x32xf32>
    %409 = tpu.matmul %406, %408, %cst_109 {dimension_numbers = #tpu.dot_dimension_numbers<[1], [0], [0], [1], [0, 0, 1, 1], [], []>} : vector<128x8xbf16>, vector<8x32xbf16>, vector<128x32xf32> -> vector<128x32xf32>
    %410 = arith.addf %382, %409 : vector<128x32xf32>
    %411 = arith.addf %257, %410 : vector<128x32xf32>
    %412 = vector.broadcast %262 : vector<1x32xf32> to vector<128x32xf32>
    %413 = arith.addf %411, %412 : vector<128x32xf32>
    %cst_110 = arith.constant dense<0.000000e+00> : vector<128xf32>
    %414 = vector.multi_reduction <add>, %413, %cst_110 [1] : vector<128x32xf32> to vector<128xf32>
    %415 = vector.shape_cast %414 : vector<128xf32> to vector<128x1xf32>
    %cst_111 = arith.constant 3.200000e+01 : f32
    %416 = vector.broadcast %cst_111 : f32 to vector<128x1xf32>
    %417 = arith.divf %415, %416 : vector<128x1xf32>
    %418 = vector.broadcast %417 : vector<128x1xf32> to vector<128x32xf32>
    %419 = arith.subf %413, %418 : vector<128x32xf32>
    %420 = arith.mulf %419, %419 : vector<128x32xf32>
    %cst_112 = arith.constant dense<0.000000e+00> : vector<128xf32>
    %421 = vector.multi_reduction <add>, %420, %cst_112 [1] : vector<128x32xf32> to vector<128xf32>
    %422 = vector.shape_cast %421 : vector<128xf32> to vector<128x1xf32>
    %cst_113 = arith.constant 3.200000e+01 : f32
    %423 = vector.broadcast %cst_113 : f32 to vector<128x1xf32>
    %424 = arith.divf %422, %423 : vector<128x1xf32>
    %425 = vector.broadcast %417 : vector<128x1xf32> to vector<128x32xf32>
    %426 = arith.subf %413, %425 : vector<128x32xf32>
    %cst_114 = arith.constant 9.99999974E-6 : f32
    %427 = vector.broadcast %cst_114 : f32 to vector<128x1xf32>
    %428 = arith.addf %424, %427 : vector<128x1xf32>
    %429 = math.rsqrt %428 : vector<128x1xf32>
    %430 = vector.broadcast %429 : vector<128x1xf32> to vector<128x32xf32>
    %431 = arith.mulf %426, %430 : vector<128x32xf32>
    %432 = vector.broadcast %263 : vector<1x32xf32> to vector<128x32xf32>
    %433 = arith.mulf %431, %432 : vector<128x32xf32>
    %434 = vector.broadcast %264 : vector<1x32xf32> to vector<128x32xf32>
    %435 = arith.addf %433, %434 : vector<128x32xf32>
    %436 = arith.truncf %435 : vector<128x32xf32> to vector<128x32xbf16>
    %c1_115 = arith.constant 1 : index
    %c0_116 = arith.constant 0 : index
    %c0_117 = arith.constant 0 : index
    %437 = vector.load %arg7[%c1_115, %c0_116, %c0_117] : memref<2x32x128xbf16, #tpu.memory_space<vmem>>, vector<1x32x128xbf16>
    %438 = vector.shape_cast %437 : vector<1x32x128xbf16> to vector<32x128xbf16>
    %cst_118 = arith.constant dense<0.000000e+00> : vector<128x128xf32>
    %439 = tpu.matmul %436, %438, %cst_118 {dimension_numbers = #tpu.dot_dimension_numbers<[1], [0], [0], [1], [0, 0, 1, 1], [], []>} : vector<128x32xbf16>, vector<32x128xbf16>, vector<128x128xf32> -> vector<128x128xf32>
    %c1_119 = arith.constant 1 : index
    %c0_120 = arith.constant 0 : index
    %c0_121 = arith.constant 0 : index
    %440 = vector.load %arg8[%c1_119, %c0_120, %c0_121] : memref<2x1x128xf32, #tpu.memory_space<vmem>>, vector<1x1x128xf32>
    %441 = vector.shape_cast %440 : vector<1x1x128xf32> to vector<1x128xf32>
    %442 = vector.broadcast %441 : vector<1x128xf32> to vector<128x128xf32>
    %443 = arith.addf %439, %442 : vector<128x128xf32>
    %444 = arith.mulf %443, %443 : vector<128x128xf32>
    %445 = arith.mulf %443, %444 : vector<128x128xf32>
    %cst_122 = arith.constant 4.471500e-02 : f32
    %446 = vector.broadcast %cst_122 : f32 to vector<128x128xf32>
    %447 = arith.mulf %446, %445 : vector<128x128xf32>
    %448 = arith.addf %443, %447 : vector<128x128xf32>
    %cst_123 = arith.constant 0.797884583 : f32
    %449 = vector.broadcast %cst_123 : f32 to vector<128x128xf32>
    %450 = arith.mulf %449, %448 : vector<128x128xf32>
    %451 = math.tanh %450 : vector<128x128xf32>
    %cst_124 = arith.constant 1.000000e+00 : f32
    %452 = vector.broadcast %cst_124 : f32 to vector<128x128xf32>
    %453 = arith.addf %452, %451 : vector<128x128xf32>
    %cst_125 = arith.constant 5.000000e-01 : f32
    %454 = vector.broadcast %cst_125 : f32 to vector<128x128xf32>
    %455 = arith.mulf %454, %453 : vector<128x128xf32>
    %456 = arith.mulf %443, %455 : vector<128x128xf32>
    %457 = arith.truncf %456 : vector<128x128xf32> to vector<128x128xbf16>
    %c1_126 = arith.constant 1 : index
    %c0_127 = arith.constant 0 : index
    %c0_128 = arith.constant 0 : index
    %458 = vector.load %arg9[%c1_126, %c0_127, %c0_128] : memref<2x128x32xbf16, #tpu.memory_space<vmem>>, vector<1x128x32xbf16>
    %459 = vector.shape_cast %458 : vector<1x128x32xbf16> to vector<128x32xbf16>
    %cst_129 = arith.constant dense<0.000000e+00> : vector<128x32xf32>
    %460 = tpu.matmul %457, %459, %cst_129 {dimension_numbers = #tpu.dot_dimension_numbers<[1], [0], [0], [1], [0, 0, 1, 1], [], []>} : vector<128x128xbf16>, vector<128x32xbf16>, vector<128x32xf32> -> vector<128x32xf32>
    %461 = vector.broadcast %265 : vector<1x32xf32> to vector<128x32xf32>
    %462 = arith.addf %460, %461 : vector<128x32xf32>
    %463 = arith.addf %413, %462 : vector<128x32xf32>
    %464 = vector.extract_strided_slice %463 {offsets = [0, 0], sizes = [16, 32], strides = [1, 1]} : vector<128x32xf32> to vector<16x32xf32>
    %465 = vector.extract_strided_slice %463 {offsets = [16, 0], sizes = [16, 32], strides = [1, 1]} : vector<128x32xf32> to vector<16x32xf32>
    %466 = vector.extract_strided_slice %463 {offsets = [32, 0], sizes = [16, 32], strides = [1, 1]} : vector<128x32xf32> to vector<16x32xf32>
    %467 = vector.extract_strided_slice %463 {offsets = [48, 0], sizes = [16, 32], strides = [1, 1]} : vector<128x32xf32> to vector<16x32xf32>
    %468 = vector.extract_strided_slice %463 {offsets = [64, 0], sizes = [16, 32], strides = [1, 1]} : vector<128x32xf32> to vector<16x32xf32>
    %469 = vector.extract_strided_slice %463 {offsets = [80, 0], sizes = [16, 32], strides = [1, 1]} : vector<128x32xf32> to vector<16x32xf32>
    %470 = vector.extract_strided_slice %463 {offsets = [96, 0], sizes = [16, 32], strides = [1, 1]} : vector<128x32xf32> to vector<16x32xf32>
    %471 = vector.extract_strided_slice %463 {offsets = [112, 0], sizes = [16, 32], strides = [1, 1]} : vector<128x32xf32> to vector<16x32xf32>
    %472 = tpu.concatenate %464, %465, %466, %467, %468, %469, %470, %471 in 1 : vector<16x32xf32>, vector<16x32xf32>, vector<16x32xf32>, vector<16x32xf32>, vector<16x32xf32>, vector<16x32xf32>, vector<16x32xf32>, vector<16x32xf32> -> vector<16x256xf32>
    %c0_130 = arith.constant 0 : index
    %c0_131 = arith.constant 0 : index
    %c0_132 = arith.constant 0 : index
    %473 = vector.load %arg11[%c0_130, %c0_131, %c0_132] : memref<1x16x256xf32, #tpu.memory_space<vmem>>, vector<1x16x256xf32>
    %474 = vector.shape_cast %473 : vector<1x16x256xf32> to vector<16x256xf32>
    %475 = vector.shape_cast %472 : vector<16x256xf32> to vector<1x16x256xf32>
    tpu.vector_store %arg11[%c0_130, %c0_131, %c0_132], %475 {strides = array<i32>} : memref<1x16x256xf32, #tpu.memory_space<vmem>>, vector<1x16x256xf32>,
    return
  }
  func.func @transform_0(%arg0: i32) -> (i32, i32, i32) {
    %c0_i32 = arith.constant 0 : i32
    %c0_i32_0 = arith.constant 0 : i32
    %c0_i32_1 = arith.constant 0 : i32
    return %arg0, %c0_i32, %c0_i32_0 : i32, i32, i32
  }
  func.func @transform_1(%arg0: i32) -> (i32, i32) {
    %c0_i32 = arith.constant 0 : i32
    %c0_i32_0 = arith.constant 0 : i32
    %c0_i32_1 = arith.constant 0 : i32
    return %c0_i32, %c0_i32_0 : i32, i32
  }
  func.func @transform_2(%arg0: i32) -> (i32, i32) {
    %c0_i32 = arith.constant 0 : i32
    %c0_i32_0 = arith.constant 0 : i32
    %c0_i32_1 = arith.constant 0 : i32
    return %c0_i32, %c0_i32_0 : i32, i32
  }
  func.func @transform_3(%arg0: i32) -> (i32, i32, i32) {
    %c0_i32 = arith.constant 0 : i32
    %c0_i32_0 = arith.constant 0 : i32
    %c0_i32_1 = arith.constant 0 : i32
    %c0_i32_2 = arith.constant 0 : i32
    return %c0_i32, %c0_i32_0, %c0_i32_1 : i32, i32, i32
  }
  func.func @transform_4(%arg0: i32) -> (i32, i32, i32) {
    %c0_i32 = arith.constant 0 : i32
    %c0_i32_0 = arith.constant 0 : i32
    %c0_i32_1 = arith.constant 0 : i32
    %c0_i32_2 = arith.constant 0 : i32
    return %c0_i32, %c0_i32_0, %c0_i32_1 : i32, i32, i32
  }
  func.func @transform_5(%arg0: i32) -> (i32, i32, i32, i32) {
    %c0_i32 = arith.constant 0 : i32
    %c0_i32_0 = arith.constant 0 : i32
    %c0_i32_1 = arith.constant 0 : i32
    %c0_i32_2 = arith.constant 0 : i32
    %c0_i32_3 = arith.constant 0 : i32
    return %c0_i32, %c0_i32_0, %c0_i32_1, %c0_i32_2 : i32, i32, i32, i32
  }
  func.func @transform_6(%arg0: i32) -> (i32, i32, i32) {
    %c0_i32 = arith.constant 0 : i32
    %c0_i32_0 = arith.constant 0 : i32
    %c0_i32_1 = arith.constant 0 : i32
    %c0_i32_2 = arith.constant 0 : i32
    return %c0_i32, %c0_i32_0, %c0_i32_1 : i32, i32, i32
  }
  func.func @transform_7(%arg0: i32) -> (i32, i32, i32) {
    %c0_i32 = arith.constant 0 : i32
    %c0_i32_0 = arith.constant 0 : i32
    %c0_i32_1 = arith.constant 0 : i32
    %c0_i32_2 = arith.constant 0 : i32
    return %c0_i32, %c0_i32_0, %c0_i32_1 : i32, i32, i32
  }
  func.func @transform_8(%arg0: i32) -> (i32, i32, i32) {
    %c0_i32 = arith.constant 0 : i32
    %c0_i32_0 = arith.constant 0 : i32
    %c0_i32_1 = arith.constant 0 : i32
    %c0_i32_2 = arith.constant 0 : i32
    return %c0_i32, %c0_i32_0, %c0_i32_1 : i32, i32, i32
  }
  func.func @transform_9(%arg0: i32) -> (i32, i32, i32) {
    %c0_i32 = arith.constant 0 : i32
    %c0_i32_0 = arith.constant 0 : i32
    %c0_i32_1 = arith.constant 0 : i32
    %c0_i32_2 = arith.constant 0 : i32
    return %c0_i32, %c0_i32_0, %c0_i32_1 : i32, i32, i32
  }
  func.func @transform_10(%arg0: i32) -> (i32, i32, i32) {
    %c0_i32 = arith.constant 0 : i32
    %c0_i32_0 = arith.constant 0 : i32
    %c0_i32_1 = arith.constant 0 : i32
    return %arg0, %c0_i32, %c0_i32_0 : i32, i32, i32
  }
}

</mosaic_0001>

<llo_original>
// kernel: st_attention_forward.1
$region0: #{st_attention_forward.1}
  #allocation0 [shape = 'u32[]', space=smem, size = 0x4, offset = 0x4, fixed_abs, tag = 'smem constant byte address 0x4 - core index']
  #allocation1 [shape = 'u32[72,128]{1,0:T(1,128)}', space=vmem, size = 0x9000, scoped, tag = 'internal scratch']
  %s0 = inlined_call_operand.vmem [shape: f32[2,128,2], index: 0, kind: input, shape index: {}]
  %s1 = inlined_call_operand.vmem [shape: f32[2,32], index: 1, kind: input, shape index: {}]
  %s2 = inlined_call_operand.vmem [shape: f32[128,32], index: 2, kind: input, shape index: {}]
  %s3 = inlined_call_operand.vmem [shape: bf16[2,32,96], index: 3, kind: input, shape index: {}]
  %s4 = inlined_call_operand.vmem [shape: f32[2,1,96], index: 4, kind: input, shape index: {}]
  %s5 = inlined_call_operand.vmem [shape: bf16[2,4,8,32], index: 5, kind: input, shape index: {}]
  %s6 = inlined_call_operand.vmem [shape: bf16[2,32,128], index: 6, kind: input, shape index: {}]
  %s7 = inlined_call_operand.vmem [shape: f32[2,1,128], index: 7, kind: input, shape index: {}]
  %s8 = inlined_call_operand.vmem [shape: bf16[2,128,32], index: 8, kind: input, shape index: {}]
  %s9 = inlined_call_operand.vmem [shape: f32[2,8,32], index: 9, kind: input, shape index: {}]
  %s10 = inlined_call_operand.vmem [shape: f32[2,16,256], index: 10, kind: output, shape index: {}]
  %s11 = sld [smem:[#allocation0]]
  $region73: #{st_attention_forward.1} parent=0
    _
  %s13 = ssub.s32 1, %s11
  %s14 = scalar_select 0, %s13, %s11
  loop: start=0, step=1, limit=4
  $region2: #{st_attention_forward.1} parent=0 // loop_pre_header
    _
  $region3: #{st_attention_forward.1} parent=0 // loop_header
    %s16 = sphi 0, %s20
    %p17 = scmp.ge.s32.totalorder %s16, 4
    %s26 = sphi 0, %s28
    %s29 = sphi 0, %s26
    %s30 = sphi 0, %s29
    %s46 = sphi 0, %s30
    %s50 = sphi 0, %s50
    %s52 = sphi 0, %s50
    %s53 = sphi 0, %s52
    %s67 = sphi 0, %s53
    %s71 = sphi 0, %s71
    %s73 = sphi 0, %s71
    %s74 = sphi 0, %s73
    %s88 = sphi 0, %s74
    %s92 = sphi 0, %s92
    %s94 = sphi 0, %s92
    %s95 = sphi 0, %s94
    %s109 = sphi 0, %s95
    %s113 = sphi 0, %s113
    %s115 = sphi 0, %s113
    %s116 = sphi 0, %s115
    %s130 = sphi 0, %s116
    %s134 = sphi 0, %s134
    %s136 = sphi 0, %s134
    %s137 = sphi 0, %s136
    %s151 = sphi 0, %s137
    %s155 = sphi 0, %s155
    %s157 = sphi 0, %s155
    %s158 = sphi 0, %s157
    %s172 = sphi 0, %s158
    %s176 = sphi 0, %s176
    %s178 = sphi 0, %s176
    %s179 = sphi 0, %s178
    %s193 = sphi 0, %s179
    %s197 = sphi 0, %s197
    %s199 = sphi 0, %s197
    %s200 = sphi 0, %s199
    %s214 = sphi 0, %s200
    %s218 = sphi 0, %s218
    %s220 = sphi 0, %s218
    %s221 = sphi 0, %s220
    %s235 = sphi 0, %s221
    %s241 = sphi 0, %s243
    %s244 = sphi 0, %s241
    %s245 = sphi 0, %s244
    %s261 = sphi 0, %s245
  $region4: #{st_attention_forward.1} parent=0 // loop_header_branch
    %19 = sbr.rel (%p17) target = $region8
  $region5: #{st_attention_forward.1} parent=0 // loop_body
    %s21 = ssub.s32 %s16, 1
    %s22 = ssub.s32 %s16, 2
    %s23 = sadd.s32 %s16, 1
    %s24 = ssub.s32 %s16, %s23
    %p25 = scmp.eq.s32.totalorder %s24, 0
    %s27 = sadd.s32 %s26, 1
    %s28 = scalar_select %p25, %s26, %s27
    %p31 = pneg %p25
    %p32 = scmp.eq.s32.totalorder %s16, 1
    %p33 = por %p31, %p32
    %p34 = scmp.ne.s32.totalorder %s26, %s29
    %p35 = scmp.eq.s32.totalorder %s16, 0
    %p36 = por %p34, %p35
    %p37 = scmp.ne.s32.totalorder %s26, %s29
    %p38 = scmp.eq.s32.totalorder %s21, 1
    %p39 = por %p37, %p38
    %p40 = scmp.ne.s32.totalorder %s29, %s30
    %p41 = scmp.eq.s32.totalorder %s21, 0
    %p42 = por %p40, %p41
    %p43 = scmp.ne.s32.totalorder %s29, %s30
    %p44 = scmp.eq.s32.totalorder %s22, 1
    %p45 = por %p43, %p44
    %p47 = scmp.ne.s32.totalorder %s30, %s46
    %p48 = scmp.eq.s32.totalorder %s22, 0
    %p49 = por %p47, %p48
    %s51 = sadd.s32 %s50, 1
    %p54 = scmp.eq.s32.totalorder %s16, 1
    %p55 = scmp.ne.s32.totalorder %s50, %s52
    %p56 = scmp.eq.s32.totalorder %s16, 0
    %p57 = por %p55, %p56
    %p58 = scmp.ne.s32.totalorder %s50, %s52
    %p59 = scmp.eq.s32.totalorder %s21, 1
    %p60 = por %p58, %p59
    %p61 = scmp.ne.s32.totalorder %s52, %s53
    %p62 = scmp.eq.s32.totalorder %s21, 0
    %p63 = por %p61, %p62
    %p64 = scmp.ne.s32.totalorder %s52, %s53
    %p65 = scmp.eq.s32.totalorder %s22, 1
    %p66 = por %p64, %p65
    %p68 = scmp.ne.s32.totalorder %s53, %s67
    %p69 = scmp.eq.s32.totalorder %s22, 0
    %p70 = por %p68, %p69
    %s72 = sadd.s32 %s71, 1
    %p75 = scmp.eq.s32.totalorder %s16, 1
    %p76 = scmp.ne.s32.totalorder %s71, %s73
    %p77 = scmp.eq.s32.totalorder %s16, 0
    %p78 = por %p76, %p77
    %p79 = scmp.ne.s32.totalorder %s71, %s73
    %p80 = scmp.eq.s32.totalorder %s21, 1
    %p81 = por %p79, %p80
    %p82 = scmp.ne.s32.totalorder %s73, %s74
    %p83 = scmp.eq.s32.totalorder %s21, 0
    %p84 = por %p82, %p83
    %p85 = scmp.ne.s32.totalorder %s73, %s74
    %p86 = scmp.eq.s32.totalorder %s22, 1
    %p87 = por %p85, %p86
    %p89 = scmp.ne.s32.totalorder %s74, %s88
    %p90 = scmp.eq.s32.totalorder %s22, 0
    %p91 = por %p89, %p90
    %s93 = sadd.s32 %s92, 1
    %p96 = scmp.eq.s32.totalorder %s16, 1
    %p97 = scmp.ne.s32.totalorder %s92, %s94
    %p98 = scmp.eq.s32.totalorder %s16, 0
    %p99 = por %p97, %p98
    %p100 = scmp.ne.s32.totalorder %s92, %s94
    %p101 = scmp.eq.s32.totalorder %s21, 1
    %p102 = por %p100, %p101
    %p103 = scmp.ne.s32.totalorder %s94, %s95
    %p104 = scmp.eq.s32.totalorder %s21, 0
    %p105 = por %p103, %p104
    %p106 = scmp.ne.s32.totalorder %s94, %s95
    %p107 = scmp.eq.s32.totalorder %s22, 1
    %p108 = por %p106, %p107
    %p110 = scmp.ne.s32.totalorder %s95, %s109
    %p111 = scmp.eq.s32.totalorder %s22, 0
    %p112 = por %p110, %p111
    %s114 = sadd.s32 %s113, 1
    %p117 = scmp.eq.s32.totalorder %s16, 1
    %p118 = scmp.ne.s32.totalorder %s113, %s115
    %p119 = scmp.eq.s32.totalorder %s16, 0
    %p120 = por %p118, %p119
    %p121 = scmp.ne.s32.totalorder %s113, %s115
    %p122 = scmp.eq.s32.totalorder %s21, 1
    %p123 = por %p121, %p122
    %p124 = scmp.ne.s32.totalorder %s115, %s116
    %p125 = scmp.eq.s32.totalorder %s21, 0
    %p126 = por %p124, %p125
    %p127 = scmp.ne.s32.totalorder %s115, %s116
    %p128 = scmp.eq.s32.totalorder %s22, 1
    %p129 = por %p127, %p128
    %p131 = scmp.ne.s32.totalorder %s116, %s130
    %p132 = scmp.eq.s32.totalorder %s22, 0
    %p133 = por %p131, %p132
    %s135 = sadd.s32 %s134, 1
    %p138 = scmp.eq.s32.totalorder %s16, 1
    %p139 = scmp.ne.s32.totalorder %s134, %s136
    %p140 = scmp.eq.s32.totalorder %s16, 0
    %p141 = por %p139, %p140
    %p142 = scmp.ne.s32.totalorder %s134, %s136
    %p143 = scmp.eq.s32.totalorder %s21, 1
    %p144 = por %p142, %p143
    %p145 = scmp.ne.s32.totalorder %s136, %s137
    %p146 = scmp.eq.s32.totalorder %s21, 0
    %p147 = por %p145, %p146
    %p148 = scmp.ne.s32.totalorder %s136, %s137
    %p149 = scmp.eq.s32.totalorder %s22, 1
    %p150 = por %p148, %p149
    %p152 = scmp.ne.s32.totalorder %s137, %s151
    %p153 = scmp.eq.s32.totalorder %s22, 0
    %p154 = por %p152, %p153
    %s156 = sadd.s32 %s155, 1
    %p159 = scmp.eq.s32.totalorder %s16, 1
    %p160 = scmp.ne.s32.totalorder %s155, %s157
    %p161 = scmp.eq.s32.totalorder %s16, 0
    %p162 = por %p160, %p161
    %p163 = scmp.ne.s32.totalorder %s155, %s157
    %p164 = scmp.eq.s32.totalorder %s21, 1
    %p165 = por %p163, %p164
    %p166 = scmp.ne.s32.totalorder %s157, %s158
    %p167 = scmp.eq.s32.totalorder %s21, 0
    %p168 = por %p166, %p167
    %p169 = scmp.ne.s32.totalorder %s157, %s158
    %p170 = scmp.eq.s32.totalorder %s22, 1
    %p171 = por %p169, %p170
    %p173 = scmp.ne.s32.totalorder %s158, %s172
    %p174 = scmp.eq.s32.totalorder %s22, 0
    %p175 = por %p173, %p174
    %s177 = sadd.s32 %s176, 1
    %p180 = scmp.eq.s32.totalorder %s16, 1
    %p181 = scmp.ne.s32.totalorder %s176, %s178
    %p182 = scmp.eq.s32.totalorder %s16, 0
    %p183 = por %p181, %p182
    %p184 = scmp.ne.s32.totalorder %s176, %s178
    %p185 = scmp.eq.s32.totalorder %s21, 1
    %p186 = por %p184, %p185
    %p187 = scmp.ne.s32.totalorder %s178, %s179
    %p188 = scmp.eq.s32.totalorder %s21, 0
    %p189 = por %p187, %p188
    %p190 = scmp.ne.s32.totalorder %s178, %s179
    %p191 = scmp.eq.s32.totalorder %s22, 1
    %p192 = por %p190, %p191
    %p194 = scmp.ne.s32.totalorder %s179, %s193
    %p195 = scmp.eq.s32.totalorder %s22, 0
    %p196 = por %p194, %p195
    %s198 = sadd.s32 %s197, 1
    %p201 = scmp.eq.s32.totalorder %s16, 1
    %p202 = scmp.ne.s32.totalorder %s197, %s199
    %p203 = scmp.eq.s32.totalorder %s16, 0
    %p204 = por %p202, %p203
    %p205 = scmp.ne.s32.totalorder %s197, %s199
    %p206 = scmp.eq.s32.totalorder %s21, 1
    %p207 = por %p205, %p206
    %p208 = scmp.ne.s32.totalorder %s199, %s200
    %p209 = scmp.eq.s32.totalorder %s21, 0
    %p210 = por %p208, %p209
    %p211 = scmp.ne.s32.totalorder %s199, %s200
    %p212 = scmp.eq.s32.totalorder %s22, 1
    %p213 = por %p211, %p212
    %p215 = scmp.ne.s32.totalorder %s200, %s214
    %p216 = scmp.eq.s32.totalorder %s22, 0
    %p217 = por %p215, %p216
    %s219 = sadd.s32 %s218, 1
    %p222 = scmp.eq.s32.totalorder %s16, 1
    %p223 = scmp.ne.s32.totalorder %s218, %s220
    %p224 = scmp.eq.s32.totalorder %s16, 0
    %p225 = por %p223, %p224
    %p226 = scmp.ne.s32.totalorder %s218, %s220
    %p227 = scmp.eq.s32.totalorder %s21, 1
    %p228 = por %p226, %p227
    %p229 = scmp.ne.s32.totalorder %s220, %s221
    %p230 = scmp.eq.s32.totalorder %s21, 0
    %p231 = por %p229, %p230
    %p232 = scmp.ne.s32.totalorder %s220, %s221
    %p233 = scmp.eq.s32.totalorder %s22, 1
    %p234 = por %p232, %p233
    %p236 = scmp.ne.s32.totalorder %s221, %s235
    %p237 = scmp.eq.s32.totalorder %s22, 0
    %p238 = por %p236, %p237
    %s239 = ssub.s32 %s16, %s23
    %p240 = scmp.eq.s32.totalorder %s239, 0
    %s242 = sadd.s32 %s241, 1
    %s243 = scalar_select %p240, %s241, %s242
    %p246 = pneg %p240
    %p247 = scmp.eq.s32.totalorder %s16, 1
    %p248 = por %p246, %p247
    %p249 = scmp.ne.s32.totalorder %s241, %s244
    %p250 = scmp.eq.s32.totalorder %s16, 0
    %p251 = por %p249, %p250
    %p252 = scmp.ne.s32.totalorder %s241, %s244
    %p253 = scmp.eq.s32.totalorder %s21, 1
    %p254 = por %p252, %p253
    %p255 = scmp.ne.s32.totalorder %s244, %s245
    %p256 = scmp.eq.s32.totalorder %s21, 0
    %p257 = por %p255, %p256
    %p258 = scmp.ne.s32.totalorder %s244, %s245
    %p259 = scmp.eq.s32.totalorder %s22, 1
    %p260 = por %p258, %p259
    %p262 = scmp.ne.s32.totalorder %s245, %s261
    %p263 = scmp.eq.s32.totalorder %s22, 0
    %p264 = por %p262, %p263
    %p265 = scmp.le.s32.totalorder 1, %s16
    %p266 = scmp.lt.s32.totalorder %s16, 3
    %p267 = pnand %p265, %p266
    %p268 = pneg %p267
    // Predicated region
    $region9: #{st_attention_forward.1} parent=5 // pred_check
      _
    $region10: #{st_attention_forward.1} parent=5 // pred_check_branch
      %270 = sbr.rel (%p267) target = $region12
    $region11: #{st_attention_forward.1} parent=5 // pred_region
      %s271 = ssub.s32 %s16, 1
      // Predicated region
      $region13: #{st_attention_forward.1} parent=11 // pred_check
        %p272 = pneg %p63
      $region14: #{st_attention_forward.1} parent=11 // pred_check_branch
        %274 = sbr.rel (%p272) target = $region16
      $region15: #{st_attention_forward.1} parent=11 // pred_region
        _
      $region16: #{st_attention_forward.1} parent=11 // pred_fallthru
        _
      // Predicated region
      $region17: #{st_attention_forward.1} parent=11 // pred_check
        %p275 = pneg %p84
      $region18: #{st_attention_forward.1} parent=11 // pred_check_branch
        %277 = sbr.rel (%p275) target = $region20
      $region19: #{st_attention_forward.1} parent=11 // pred_region
        _
      $region20: #{st_attention_forward.1} parent=11 // pred_fallthru
        _
      // Predicated region
      $region21: #{st_attention_forward.1} parent=11 // pred_check
        %p278 = pneg %p105
      $region22: #{st_attention_forward.1} parent=11 // pred_check_branch
        %280 = sbr.rel (%p278) target = $region24
      $region23: #{st_attention_forward.1} parent=11 // pred_region
        _
      $region24: #{st_attention_forward.1} parent=11 // pred_fallthru
        _
      // Predicated region
      $region25: #{st_attention_forward.1} parent=11 // pred_check
        %p281 = pneg %p126
      $region26: #{st_attention_forward.1} parent=11 // pred_check_branch
        %283 = sbr.rel (%p281) target = $region28
      $region27: #{st_attention_forward.1} parent=11 // pred_region
        _
      $region28: #{st_attention_forward.1} parent=11 // pred_fallthru
        _
      // Predicated region
      $region29: #{st_attention_forward.1} parent=11 // pred_check
        %p284 = pneg %p147
      $region30: #{st_attention_forward.1} parent=11 // pred_check_branch
        %286 = sbr.rel (%p284) target = $region32
      $region31: #{st_attention_forward.1} parent=11 // pred_region
        _
      $region32: #{st_attention_forward.1} parent=11 // pred_fallthru
        _
      // Predicated region
      $region33: #{st_attention_forward.1} parent=11 // pred_check
        %p287 = pneg %p168
      $region34: #{st_attention_forward.1} parent=11 // pred_check_branch
        %289 = sbr.rel (%p287) target = $region36
      $region35: #{st_attention_forward.1} parent=11 // pred_region
        _
      $region36: #{st_attention_forward.1} parent=11 // pred_fallthru
        _
      // Predicated region
      $region37: #{st_attention_forward.1} parent=11 // pred_check
        %p290 = pneg %p189
      $region38: #{st_attention_forward.1} parent=11 // pred_check_branch
        %292 = sbr.rel (%p290) target = $region40
      $region39: #{st_attention_forward.1} parent=11 // pred_region
        _
      $region40: #{st_attention_forward.1} parent=11 // pred_fallthru
        _
      // Predicated region
      $region41: #{st_attention_forward.1} parent=11 // pred_check
        %p293 = pneg %p210
      $region42: #{st_attention_forward.1} parent=11 // pred_check_branch
        %295 = sbr.rel (%p293) target = $region44
      $region43: #{st_attention_forward.1} parent=11 // pred_region
        _
      $region44: #{st_attention_forward.1} parent=11 // pred_fallthru
        _
      // Predicated region
      $region45: #{st_attention_forward.1} parent=11 // pred_check
        %p296 = pneg %p231
      $region46: #{st_attention_forward.1} parent=11 // pred_check_branch
        %298 = sbr.rel (%p296) target = $region48
      $region47: #{st_attention_forward.1} parent=11 // pred_region
        _
      $region48: #{st_attention_forward.1} parent=11 // pred_fallthru
        _
    $region12: #{st_attention_forward.1} parent=5 // pred_fallthru
      _
    %p299 = scmp.lt.s32.totalorder %s16, 2
    // Predicated region
    $region49: #{st_attention_forward.1} parent=5 // pred_check
      %p300 = pneg %p299
    $region50: #{st_attention_forward.1} parent=5 // pred_check_branch
      %302 = sbr.rel (%p300) target = $region52
    $region51: #{st_attention_forward.1} parent=5 // pred_region
      // Predicated region
      $region53: #{st_attention_forward.1} parent=51 // pred_check
        %p303 = pneg %p36
      $region54: #{st_attention_forward.1} parent=51 // pred_check_branch
        %305 = sbr.rel (%p303) target = $region56
      $region55: #{st_attention_forward.1} parent=51 // pred_region
        %p306 = scmp.lt.s32.totalorder %s16, 1
        %s307 = scalar_select %p306, %s16, 1
        %s308 = smul.addr %s307, 16
        %s309 = smul.addr %s308, 8
        %s310 = scalar_lea.vmem %s0, %s309
      $region56: #{st_attention_forward.1} parent=51 // pred_fallthru
        _
    $region52: #{st_attention_forward.1} parent=5 // pred_fallthru
      _
    %p311 = scmp.le.s32.totalorder 1, %s16
    %p312 = scmp.lt.s32.totalorder %s16, 3
    %p313 = pnand %p311, %p312
    %p314 = pneg %p313
    // Predicated region
    $region57: #{st_attention_forward.1} parent=5 // pred_check
      _
    $region58: #{st_attention_forward.1} parent=5 // pred_check_branch
      %316 = sbr.rel (%p313) target = $region60
    $region59: #{st_attention_forward.1} parent=5 // pred_region
      %s317 = ssub.s32 %s16, 1
      %p318 = scmp.lt.s32.totalorder %s21, 1
      %s319 = scalar_select %p318, %s21, 1
      %s320 = smul.addr %s319, 16
      %s321 = smul.addr %s320, 8
      %s322 = scalar_lea.vmem %s0, %s321
      %p323 = pneg %p42
      %p324 = pneg %p39
      %p325 = pneg %p63
      %p326 = pneg %p60
      %p327 = pneg %p84
      %p328 = pneg %p81
      %p329 = pneg %p105
      %p330 = pneg %p102
      %p331 = pneg %p126
      %p332 = pneg %p123
      %p333 = pneg %p147
      %p334 = pneg %p144
      %p335 = pneg %p168
      %p336 = pneg %p165
      %p337 = pneg %p189
      %p338 = pneg %p186
      %p339 = pneg %p210
      %p340 = pneg %p207
      %p341 = pneg %p231
      %p342 = pneg %p228
      %p343 = pneg %p257
      %p344 = pneg %p254
      %p345 = scmp.lt.s32.totalorder %s21, 1
      %s346 = scalar_select %p345, %s21, 1
      %s347 = smul.addr %s346, 4
      %s348 = smul.addr %s347, 8
      %s349 = scalar_lea.vmem %s10, %s348
      %p350 = scmp.lt.s32.totalorder %s21, 1
      %s351 = scalar_select %p350, %s21, 1
      %s352 = smul.addr %s351, 16
      %s353 = smul.addr %s352, 8
      %s354 = scalar_lea.vmem %s0, %s353
      %p355 = scmp.lt.s32.totalorder %s21, 1
      %s356 = scalar_select %p355, %s21, 1
      %s357 = smul.addr %s356, 4
      %s358 = smul.addr %s357, 8
      %s359 = scalar_lea.vmem %s10, %s358
      %v361 = vld [vmem:[%s354] sm:$0xff]
      %v362 = vld [vmem:[%s354 + $0x8] sm:$0xff]
      %v363 = vld [vmem:[%s354 + $0x10] sm:$0xff]
      %v364 = vld [vmem:[%s354 + $0x18] sm:$0xff]
      %v365 = vld [vmem:[%s354 + $0x20] sm:$0xff]
      %v366 = vld [vmem:[%s354 + $0x28] sm:$0xff]
      %v367 = vld [vmem:[%s354 + $0x30] sm:$0xff]
      %v368 = vld [vmem:[%s354 + $0x38] sm:$0xff]
      %v369 = vld [vmem:[%s354 + $0x40] sm:$0xff]
      %v370 = vld [vmem:[%s354 + $0x48] sm:$0xff]
      %v371 = vld [vmem:[%s354 + $0x50] sm:$0xff]
      %v372 = vld [vmem:[%s354 + $0x58] sm:$0xff]
      %v373 = vld [vmem:[%s354 + $0x60] sm:$0xff]
      %v374 = vld [vmem:[%s354 + $0x68] sm:$0xff]
      %v375 = vld [vmem:[%s354 + $0x70] sm:$0xff]
      %v376 = vld [vmem:[%s354 + $0x78] sm:$0xff]
      %v377 = vld [vmem:[%s2] sm:$0xff]
      %v378 = vld [vmem:[%s2 + $0x8] sm:$0xff]
      %v379 = vld [vmem:[%s2 + $0x10] sm:$0xff]
      %v380 = vld [vmem:[%s2 + $0x18] sm:$0xff]
      %v381 = vld [vmem:[%s2 + $0x20] sm:$0xff]
      %v382 = vld [vmem:[%s2 + $0x28] sm:$0xff]
      %v383 = vld [vmem:[%s2 + $0x30] sm:$0xff]
      %v384 = vld [vmem:[%s2 + $0x38] sm:$0xff]
      %v385 = vld [vmem:[%s2 + $0x40] sm:$0xff]
      %v386 = vld [vmem:[%s2 + $0x48] sm:$0xff]
      %v387 = vld [vmem:[%s2 + $0x50] sm:$0xff]
      %v388 = vld [vmem:[%s2 + $0x58] sm:$0xff]
      %v389 = vld [vmem:[%s2 + $0x60] sm:$0xff]
      %v390 = vld [vmem:[%s2 + $0x68] sm:$0xff]
      %v391 = vld [vmem:[%s2 + $0x70] sm:$0xff]
      %v392 = vld [vmem:[%s2 + $0x78] sm:$0xff]
      %v393 = vld [vmem:[%s1] sm:$0x1]
      %395 = vset.pattern.permute.xlu0 0
      %396 = vperm.xlu0 %395, %v361
      %v397 = vpop.permute.xlu0 %396
      %400 = vset.pattern.permute.xlu0 0
      %401 = vperm.xlu0 %400, %v362
      %v402 = vpop.permute.xlu0 %401
      %405 = vset.pattern.permute.xlu0 0
      %406 = vperm.xlu0 %405, %v363
      %v407 = vpop.permute.xlu0 %406
      %410 = vset.pattern.permute.xlu0 0
      %411 = vperm.xlu0 %410, %v364
      %v412 = vpop.permute.xlu0 %411
      %415 = vset.pattern.permute.xlu0 0
      %416 = vperm.xlu0 %415, %v365
      %v417 = vpop.permute.xlu0 %416
      %420 = vset.pattern.permute.xlu0 0
      %421 = vperm.xlu0 %420, %v366
      %v422 = vpop.permute.xlu0 %421
      %425 = vset.pattern.permute.xlu0 0
      %426 = vperm.xlu0 %425, %v367
      %v427 = vpop.permute.xlu0 %426
      %430 = vset.pattern.permute.xlu0 0
      %431 = vperm.xlu0 %430, %v368
      %v432 = vpop.permute.xlu0 %431
      %435 = vset.pattern.permute.xlu0 0
      %436 = vperm.xlu0 %435, %v369
      %v437 = vpop.permute.xlu0 %436
      %440 = vset.pattern.permute.xlu0 0
      %441 = vperm.xlu0 %440, %v370
      %v442 = vpop.permute.xlu0 %441
      %445 = vset.pattern.permute.xlu0 0
      %446 = vperm.xlu0 %445, %v371
      %v447 = vpop.permute.xlu0 %446
      %450 = vset.pattern.permute.xlu0 0
      %451 = vperm.xlu0 %450, %v372
      %v452 = vpop.permute.xlu0 %451
      %455 = vset.pattern.permute.xlu0 0
      %456 = vperm.xlu0 %455, %v373
      %v457 = vpop.permute.xlu0 %456
      %460 = vset.pattern.permute.xlu0 0
      %461 = vperm.xlu0 %460, %v374
      %v462 = vpop.permute.xlu0 %461
      %465 = vset.pattern.permute.xlu0 0
      %466 = vperm.xlu0 %465, %v375
      %v467 = vpop.permute.xlu0 %466
      %470 = vset.pattern.permute.xlu0 0
      %471 = vperm.xlu0 %470, %v376
      %v472 = vpop.permute.xlu0 %471
      %v474 = vperm.slane %v393, 0
      %v475 = vmul.f32 %v397, %v474
      %v476 = vmul.f32 %v402, %v474
      %v477 = vmul.f32 %v407, %v474
      %v478 = vmul.f32 %v412, %v474
      %v479 = vmul.f32 %v417, %v474
      %v480 = vmul.f32 %v422, %v474
      %v481 = vmul.f32 %v427, %v474
      %v482 = vmul.f32 %v432, %v474
      %v483 = vmul.f32 %v437, %v474
      %v484 = vmul.f32 %v442, %v474
      %v485 = vmul.f32 %v447, %v474
      %v486 = vmul.f32 %v452, %v474
      %v487 = vmul.f32 %v457, %v474
      %v488 = vmul.f32 %v462, %v474
      %v489 = vmul.f32 %v467, %v474
      %v490 = vmul.f32 %v472, %v474
      %v491 = vadd.f32 %v377, %v475
      %v492 = vadd.f32 %v378, %v476
      %v493 = vadd.f32 %v379, %v477
      %v494 = vadd.f32 %v380, %v478
      %v495 = vadd.f32 %v381, %v479
      %v496 = vadd.f32 %v382, %v480
      %v497 = vadd.f32 %v383, %v481
      %v498 = vadd.f32 %v384, %v482
      %v499 = vadd.f32 %v385, %v483
      %v500 = vadd.f32 %v386, %v484
      %v501 = vadd.f32 %v387, %v485
      %v502 = vadd.f32 %v388, %v486
      %v503 = vadd.f32 %v389, %v487
      %v504 = vadd.f32 %v390, %v488
      %v505 = vadd.f32 %v391, %v489
      %v506 = vadd.f32 %v392, %v490
      %v507 = vld [vmem:[%s1 + $0x1] sm:$0x1]
      %508 = vset.pattern.permute.xlu0 1
      %509 = vperm.xlu0 %508, %v361
      %v510 = vpop.permute.xlu0 %509
      %512 = vset.pattern.permute.xlu0 1
      %513 = vperm.xlu0 %512, %v362
      %v514 = vpop.permute.xlu0 %513
      %516 = vset.pattern.permute.xlu0 1
      %517 = vperm.xlu0 %516, %v363
      %v518 = vpop.permute.xlu0 %517
      %520 = vset.pattern.permute.xlu0 1
      %521 = vperm.xlu0 %520, %v364
      %v522 = vpop.permute.xlu0 %521
      %524 = vset.pattern.permute.xlu0 1
      %525 = vperm.xlu0 %524, %v365
      %v526 = vpop.permute.xlu0 %525
      %528 = vset.pattern.permute.xlu0 1
      %529 = vperm.xlu0 %528, %v366
      %v530 = vpop.permute.xlu0 %529
      %532 = vset.pattern.permute.xlu0 1
      %533 = vperm.xlu0 %532, %v367
      %v534 = vpop.permute.xlu0 %533
      %536 = vset.pattern.permute.xlu0 1
      %537 = vperm.xlu0 %536, %v368
      %v538 = vpop.permute.xlu0 %537
      %540 = vset.pattern.permute.xlu0 1
      %541 = vperm.xlu0 %540, %v369
      %v542 = vpop.permute.xlu0 %541
      %544 = vset.pattern.permute.xlu0 1
      %545 = vperm.xlu0 %544, %v370
      %v546 = vpop.permute.xlu0 %545
      %548 = vset.pattern.permute.xlu0 1
      %549 = vperm.xlu0 %548, %v371
      %v550 = vpop.permute.xlu0 %549
      %552 = vset.pattern.permute.xlu0 1
      %553 = vperm.xlu0 %552, %v372
      %v554 = vpop.permute.xlu0 %553
      %556 = vset.pattern.permute.xlu0 1
      %557 = vperm.xlu0 %556, %v373
      %v558 = vpop.permute.xlu0 %557
      %560 = vset.pattern.permute.xlu0 1
      %561 = vperm.xlu0 %560, %v374
      %v562 = vpop.permute.xlu0 %561
      %564 = vset.pattern.permute.xlu0 1
      %565 = vperm.xlu0 %564, %v375
      %v566 = vpop.permute.xlu0 %565
      %568 = vset.pattern.permute.xlu0 1
      %569 = vperm.xlu0 %568, %v376
      %v570 = vpop.permute.xlu0 %569
      %v572 = vperm.slane %v507, 0
      %v573 = vmul.f32 %v510, %v572
      %v574 = vmul.f32 %v514, %v572
      %v575 = vmul.f32 %v518, %v572
      %v576 = vmul.f32 %v522, %v572
      %v577 = vmul.f32 %v526, %v572
      %v578 = vmul.f32 %v530, %v572
      %v579 = vmul.f32 %v534, %v572
      %v580 = vmul.f32 %v538, %v572
      %v581 = vmul.f32 %v542, %v572
      %v582 = vmul.f32 %v546, %v572
      %v583 = vmul.f32 %v550, %v572
      %v584 = vmul.f32 %v554, %v572
      %v585 = vmul.f32 %v558, %v572
      %v586 = vmul.f32 %v562, %v572
      %v587 = vmul.f32 %v566, %v572
      %v588 = vmul.f32 %v570, %v572
      %v589 = vadd.f32 %v491, %v573
      %v590 = vadd.f32 %v492, %v574
      %v591 = vadd.f32 %v493, %v575
      %v592 = vadd.f32 %v494, %v576
      %v593 = vadd.f32 %v495, %v577
      %v594 = vadd.f32 %v496, %v578
      %v595 = vadd.f32 %v497, %v579
      %v596 = vadd.f32 %v498, %v580
      %v597 = vadd.f32 %v499, %v581
      %v598 = vadd.f32 %v500, %v582
      %v599 = vadd.f32 %v501, %v583
      %v600 = vadd.f32 %v502, %v584
      %v601 = vadd.f32 %v503, %v585
      %v602 = vadd.f32 %v504, %v586
      %v603 = vadd.f32 %v505, %v587
      %v604 = vadd.f32 %v506, %v588
      %v605 = vld [vmem:[%s9] sm:$0xff]
      %vm606 = vcmask 261120
      %v607 = vsel %vm606, %v589, 0.0
      %608 = vadd.xlane.f32.xlu0 %v607
      %v609 = vpop.xlane.xlu0 %608
      %v610 = vsel %vm606, %v590, 0.0
      %611 = vadd.xlane.f32.xlu0 %v610
      %v612 = vpop.xlane.xlu0 %611
      %v613 = vsel %vm606, %v591, 0.0
      %614 = vadd.xlane.f32.xlu0 %v613
      %v615 = vpop.xlane.xlu0 %614
      %v616 = vsel %vm606, %v592, 0.0
      %617 = vadd.xlane.f32.xlu0 %v616
      %v618 = vpop.xlane.xlu0 %617
      %v619 = vsel %vm606, %v593, 0.0
      %620 = vadd.xlane.f32.xlu0 %v619
      %v621 = vpop.xlane.xlu0 %620
      %v622 = vsel %vm606, %v594, 0.0
      %623 = vadd.xlane.f32.xlu0 %v622
      %v624 = vpop.xlane.xlu0 %623
      %v625 = vsel %vm606, %v595, 0.0
      %626 = vadd.xlane.f32.xlu0 %v625
      %v627 = vpop.xlane.xlu0 %626
      %v628 = vsel %vm606, %v596, 0.0
      %629 = vadd.xlane.f32.xlu0 %v628
      %v630 = vpop.xlane.xlu0 %629
      %v631 = vsel %vm606, %v597, 0.0
      %632 = vadd.xlane.f32.xlu0 %v631
      %v633 = vpop.xlane.xlu0 %632
      %v634 = vsel %vm606, %v598, 0.0
      %635 = vadd.xlane.f32.xlu0 %v634
      %v636 = vpop.xlane.xlu0 %635
      %v637 = vsel %vm606, %v599, 0.0
      %638 = vadd.xlane.f32.xlu0 %v637
      %v639 = vpop.xlane.xlu0 %638
      %v640 = vsel %vm606, %v600, 0.0
      %641 = vadd.xlane.f32.xlu0 %v640
      %v642 = vpop.xlane.xlu0 %641
      %v643 = vsel %vm606, %v601, 0.0
      %644 = vadd.xlane.f32.xlu0 %v643
      %v645 = vpop.xlane.xlu0 %644
      %v646 = vsel %vm606, %v602, 0.0
      %647 = vadd.xlane.f32.xlu0 %v646
      %v648 = vpop.xlane.xlu0 %647
      %v649 = vsel %vm606, %v603, 0.0
      %650 = vadd.xlane.f32.xlu0 %v649
      %v651 = vpop.xlane.xlu0 %650
      %v652 = vsel %vm606, %v604, 0.0
      %653 = vadd.xlane.f32.xlu0 %v652
      %v654 = vpop.xlane.xlu0 %653
      %v655 = vrcp.pop 32.0
      %v656 = vmul.f32 32.0, %v655
      %v657 = vsub.f32 1.0, %v656
      %v658 = vmul.f32 %v655, %v657
      %v659 = vadd.f32 %v655, %v658
      %vm660 = vweird.f32 %v655
      %v661 = vsel %vm660, %v655, %v659
      %v662 = vmul.f32 %v609, %v661
      %v663 = vmul.f32 %v612, %v661
      %v664 = vmul.f32 %v615, %v661
      %v665 = vmul.f32 %v618, %v661
      %v666 = vmul.f32 %v621, %v661
      %v667 = vmul.f32 %v624, %v661
      %v668 = vmul.f32 %v627, %v661
      %v669 = vmul.f32 %v630, %v661
      %v670 = vmul.f32 %v633, %v661
      %v671 = vmul.f32 %v636, %v661
      %v672 = vmul.f32 %v639, %v661
      %v673 = vmul.f32 %v642, %v661
      %v674 = vmul.f32 %v645, %v661
      %v675 = vmul.f32 %v648, %v661
      %v676 = vmul.f32 %v651, %v661
      %v677 = vmul.f32 %v654, %v661
      %v678 = vsub.f32 %v589, %v662
      %v679 = vsub.f32 %v590, %v663
      %v680 = vsub.f32 %v591, %v664
      %v681 = vsub.f32 %v592, %v665
      %v682 = vsub.f32 %v593, %v666
      %v683 = vsub.f32 %v594, %v667
      %v684 = vsub.f32 %v595, %v668
      %v685 = vsub.f32 %v596, %v669
      %v686 = vsub.f32 %v597, %v670
      %v687 = vsub.f32 %v598, %v671
      %v688 = vsub.f32 %v599, %v672
      %v689 = vsub.f32 %v600, %v673
      %v690 = vsub.f32 %v601, %v674
      %v691 = vsub.f32 %v602, %v675
      %v692 = vsub.f32 %v603, %v676
      %v693 = vsub.f32 %v604, %v677
      %v694 = vmul.f32 %v678, %v678
      %v695 = vmul.f32 %v679, %v679
      %v696 = vmul.f32 %v680, %v680
      %v697 = vmul.f32 %v681, %v681
      %v698 = vmul.f32 %v682, %v682
      %v699 = vmul.f32 %v683, %v683
      %v700 = vmul.f32 %v684, %v684
      %v701 = vmul.f32 %v685, %v685
      %v702 = vmul.f32 %v686, %v686
      %v703 = vmul.f32 %v687, %v687
      %v704 = vmul.f32 %v688, %v688
      %v705 = vmul.f32 %v689, %v689
      %v706 = vmul.f32 %v690, %v690
      %v707 = vmul.f32 %v691, %v691
      %v708 = vmul.f32 %v692, %v692
      %v709 = vmul.f32 %v693, %v693
      %v710 = vsel %vm606, %v694, 0.0
      %711 = vadd.xlane.f32.xlu0 %v710
      %v712 = vpop.xlane.xlu0 %711
      %v713 = vsel %vm606, %v695, 0.0
      %714 = vadd.xlane.f32.xlu0 %v713
      %v715 = vpop.xlane.xlu0 %714
      %v716 = vsel %vm606, %v696, 0.0
      %717 = vadd.xlane.f32.xlu0 %v716
      %v718 = vpop.xlane.xlu0 %717
      %v719 = vsel %vm606, %v697, 0.0
      %720 = vadd.xlane.f32.xlu0 %v719
      %v721 = vpop.xlane.xlu0 %720
      %v722 = vsel %vm606, %v698, 0.0
      %723 = vadd.xlane.f32.xlu0 %v722
      %v724 = vpop.xlane.xlu0 %723
      %v725 = vsel %vm606, %v699, 0.0
      %726 = vadd.xlane.f32.xlu0 %v725
      %v727 = vpop.xlane.xlu0 %726
      %v728 = vsel %vm606, %v700, 0.0
      %729 = vadd.xlane.f32.xlu0 %v728
      %v730 = vpop.xlane.xlu0 %729
      %v731 = vsel %vm606, %v701, 0.0
      %732 = vadd.xlane.f32.xlu0 %v731
      %v733 = vpop.xlane.xlu0 %732
      %v734 = vsel %vm606, %v702, 0.0
      %735 = vadd.xlane.f32.xlu0 %v734
      %v736 = vpop.xlane.xlu0 %735
      %v737 = vsel %vm606, %v703, 0.0
      %738 = vadd.xlane.f32.xlu0 %v737
      %v739 = vpop.xlane.xlu0 %738
      %v740 = vsel %vm606, %v704, 0.0
      %741 = vadd.xlane.f32.xlu0 %v740
      %v742 = vpop.xlane.xlu0 %741
      %v743 = vsel %vm606, %v705, 0.0
      %744 = vadd.xlane.f32.xlu0 %v743
      %v745 = vpop.xlane.xlu0 %744
      %v746 = vsel %vm606, %v706, 0.0
      %747 = vadd.xlane.f32.xlu0 %v746
      %v748 = vpop.xlane.xlu0 %747
      %v749 = vsel %vm606, %v707, 0.0
      %750 = vadd.xlane.f32.xlu0 %v749
      %v751 = vpop.xlane.xlu0 %750
      %v752 = vsel %vm606, %v708, 0.0
      %753 = vadd.xlane.f32.xlu0 %v752
      %v754 = vpop.xlane.xlu0 %753
      %v755 = vsel %vm606, %v709, 0.0
      %756 = vadd.xlane.f32.xlu0 %v755
      %v757 = vpop.xlane.xlu0 %756
      %v758 = vmul.f32 %v712, %v661
      %v759 = vmul.f32 %v715, %v661
      %v760 = vmul.f32 %v718, %v661
      %v761 = vmul.f32 %v721, %v661
      %v762 = vmul.f32 %v724, %v661
      %v763 = vmul.f32 %v727, %v661
      %v764 = vmul.f32 %v730, %v661
      %v765 = vmul.f32 %v733, %v661
      %v766 = vmul.f32 %v736, %v661
      %v767 = vmul.f32 %v739, %v661
      %v768 = vmul.f32 %v742, %v661
      %v769 = vmul.f32 %v745, %v661
      %v770 = vmul.f32 %v748, %v661
      %v771 = vmul.f32 %v751, %v661
      %v772 = vmul.f32 %v754, %v661
      %v773 = vmul.f32 %v757, %v661
      %v774 = vadd.f32 %v758, 1e-05
      %v775 = vadd.f32 %v759, 1e-05
      %v776 = vadd.f32 %v760, 1e-05
      %v777 = vadd.f32 %v761, 1e-05
      %v778 = vadd.f32 %v762, 1e-05
      %v779 = vadd.f32 %v763, 1e-05
      %v780 = vadd.f32 %v764, 1e-05
      %v781 = vadd.f32 %v765, 1e-05
      %v782 = vadd.f32 %v766, 1e-05
      %v783 = vadd.f32 %v767, 1e-05
      %v784 = vadd.f32 %v768, 1e-05
      %v785 = vadd.f32 %v769, 1e-05
      %v786 = vadd.f32 %v770, 1e-05
      %v787 = vadd.f32 %v771, 1e-05
      %v788 = vadd.f32 %v772, 1e-05
      %v789 = vadd.f32 %v773, 1e-05
      %v790 = vrsqrt.pop %v774
      %v791 = vmul.f32 %v790, %v774
      %v792 = vmul.f32 %v791, %v790
      %v793 = vmul.f32 0.5, %v792
      %v794 = vsub.f32 1.5, %v793
      %v795 = vmul.f32 %v790, %v794
      %vm796 = vweird.f32 %v774
      %vm797 = vweird.f32 %v790
      %vm798 = vmor %vm796, %vm797
      %v799 = vsel %vm798, %v790, %v795
      %v800 = vrsqrt.pop %v775
      %v801 = vmul.f32 %v800, %v775
      %v802 = vmul.f32 %v801, %v800
      %v803 = vmul.f32 0.5, %v802
      %v804 = vsub.f32 1.5, %v803
      %v805 = vmul.f32 %v800, %v804
      %vm806 = vweird.f32 %v775
      %vm807 = vweird.f32 %v800
      %vm808 = vmor %vm806, %vm807
      %v809 = vsel %vm808, %v800, %v805
      %v810 = vrsqrt.pop %v776
      %v811 = vmul.f32 %v810, %v776
      %v812 = vmul.f32 %v811, %v810
      %v813 = vmul.f32 0.5, %v812
      %v814 = vsub.f32 1.5, %v813
      %v815 = vmul.f32 %v810, %v814
      %vm816 = vweird.f32 %v776
      %vm817 = vweird.f32 %v810
      %vm818 = vmor %vm816, %vm817
      %v819 = vsel %vm818, %v810, %v815
      %v820 = vrsqrt.pop %v777
      %v821 = vmul.f32 %v820, %v777
      %v822 = vmul.f32 %v821, %v820
      %v823 = vmul.f32 0.5, %v822
      %v824 = vsub.f32 1.5, %v823
      %v825 = vmul.f32 %v820, %v824
      %vm826 = vweird.f32 %v777
      %vm827 = vweird.f32 %v820
      %vm828 = vmor %vm826, %vm827
      %v829 = vsel %vm828, %v820, %v825
      %v830 = vrsqrt.pop %v778
      %v831 = vmul.f32 %v830, %v778
      %v832 = vmul.f32 %v831, %v830
      %v833 = vmul.f32 0.5, %v832
      %v834 = vsub.f32 1.5, %v833
      %v835 = vmul.f32 %v830, %v834
      %vm836 = vweird.f32 %v778
      %vm837 = vweird.f32 %v830
      %vm838 = vmor %vm836, %vm837
      %v839 = vsel %vm838, %v830, %v835
      %v840 = vrsqrt.pop %v779
      %v841 = vmul.f32 %v840, %v779
      %v842 = vmul.f32 %v841, %v840
      %v843 = vmul.f32 0.5, %v842
      %v844 = vsub.f32 1.5, %v843
      %v845 = vmul.f32 %v840, %v844
      %vm846 = vweird.f32 %v779
      %vm847 = vweird.f32 %v840
      %vm848 = vmor %vm846, %vm847
      %v849 = vsel %vm848, %v840, %v845
      %v850 = vrsqrt.pop %v780
      %v851 = vmul.f32 %v850, %v780
      %v852 = vmul.f32 %v851, %v850
      %v853 = vmul.f32 0.5, %v852
      %v854 = vsub.f32 1.5, %v853
      %v855 = vmul.f32 %v850, %v854
      %vm856 = vweird.f32 %v780
      %vm857 = vweird.f32 %v850
      %vm858 = vmor %vm856, %vm857
      %v859 = vsel %vm858, %v850, %v855
      %v860 = vrsqrt.pop %v781
      %v861 = vmul.f32 %v860, %v781
      %v862 = vmul.f32 %v861, %v860
      %v863 = vmul.f32 0.5, %v862
      %v864 = vsub.f32 1.5, %v863
      %v865 = vmul.f32 %v860, %v864
      %vm866 = vweird.f32 %v781
      %vm867 = vweird.f32 %v860
      %vm868 = vmor %vm866, %vm867
      %v869 = vsel %vm868, %v860, %v865
      %v870 = vrsqrt.pop %v782
      %v871 = vmul.f32 %v870, %v782
      %v872 = vmul.f32 %v871, %v870
      %v873 = vmul.f32 0.5, %v872
      %v874 = vsub.f32 1.5, %v873
      %v875 = vmul.f32 %v870, %v874
      %vm876 = vweird.f32 %v782
      %vm877 = vweird.f32 %v870
      %vm878 = vmor %vm876, %vm877
      %v879 = vsel %vm878, %v870, %v875
      %v880 = vrsqrt.pop %v783
      %v881 = vmul.f32 %v880, %v783
      %v882 = vmul.f32 %v881, %v880
      %v883 = vmul.f32 0.5, %v882
      %v884 = vsub.f32 1.5, %v883
      %v885 = vmul.f32 %v880, %v884
      %vm886 = vweird.f32 %v783
      %vm887 = vweird.f32 %v880
      %vm888 = vmor %vm886, %vm887
      %v889 = vsel %vm888, %v880, %v885
      %v890 = vrsqrt.pop %v784
      %v891 = vmul.f32 %v890, %v784
      %v892 = vmul.f32 %v891, %v890
      %v893 = vmul.f32 0.5, %v892
      %v894 = vsub.f32 1.5, %v893
      %v895 = vmul.f32 %v890, %v894
      %vm896 = vweird.f32 %v784
      %vm897 = vweird.f32 %v890
      %vm898 = vmor %vm896, %vm897
      %v899 = vsel %vm898, %v890, %v895
      %v900 = vrsqrt.pop %v785
      %v901 = vmul.f32 %v900, %v785
      %v902 = vmul.f32 %v901, %v900
      %v903 = vmul.f32 0.5, %v902
      %v904 = vsub.f32 1.5, %v903
      %v905 = vmul.f32 %v900, %v904
      %vm906 = vweird.f32 %v785
      %vm907 = vweird.f32 %v900
      %vm908 = vmor %vm906, %vm907
      %v909 = vsel %vm908, %v900, %v905
      %v910 = vrsqrt.pop %v786
      %v911 = vmul.f32 %v910, %v786
      %v912 = vmul.f32 %v911, %v910
      %v913 = vmul.f32 0.5, %v912
      %v914 = vsub.f32 1.5, %v913
      %v915 = vmul.f32 %v910, %v914
      %vm916 = vweird.f32 %v786
      %vm917 = vweird.f32 %v910
      %vm918 = vmor %vm916, %vm917
      %v919 = vsel %vm918, %v910, %v915
      %v920 = vrsqrt.pop %v787
      %v921 = vmul.f32 %v920, %v787
      %v922 = vmul.f32 %v921, %v920
      %v923 = vmul.f32 0.5, %v922
      %v924 = vsub.f32 1.5, %v923
      %v925 = vmul.f32 %v920, %v924
      %vm926 = vweird.f32 %v787
      %vm927 = vweird.f32 %v920
      %vm928 = vmor %vm926, %vm927
      %v929 = vsel %vm928, %v920, %v925
      %v930 = vrsqrt.pop %v788
      %v931 = vmul.f32 %v930, %v788
      %v932 = vmul.f32 %v931, %v930
      %v933 = vmul.f32 0.5, %v932
      %v934 = vsub.f32 1.5, %v933
      %v935 = vmul.f32 %v930, %v934
      %vm936 = vweird.f32 %v788
      %vm937 = vweird.f32 %v930
      %vm938 = vmor %vm936, %vm937
      %v939 = vsel %vm938, %v930, %v935
      %v940 = vrsqrt.pop %v789
      %v941 = vmul.f32 %v940, %v789
      %v942 = vmul.f32 %v941, %v940
      %v943 = vmul.f32 0.5, %v942
      %v944 = vsub.f32 1.5, %v943
      %v945 = vmul.f32 %v940, %v944
      %vm946 = vweird.f32 %v789
      %vm947 = vweird.f32 %v940
      %vm948 = vmor %vm946, %vm947
      %v949 = vsel %vm948, %v940, %v945
      %v950 = vmul.f32 %v678, %v799
      %v951 = vmul.f32 %v679, %v809
      %v952 = vmul.f32 %v680, %v819
      %v953 = vmul.f32 %v681, %v829
      %v954 = vmul.f32 %v682, %v839
      %v955 = vmul.f32 %v683, %v849
      %v956 = vmul.f32 %v684, %v859
      %v957 = vmul.f32 %v685, %v869
      %v958 = vmul.f32 %v686, %v879
      %v959 = vmul.f32 %v687, %v889
      %v960 = vmul.f32 %v688, %v899
      %v961 = vmul.f32 %v689, %v909
      %v962 = vmul.f32 %v690, %v919
      %v963 = vmul.f32 %v691, %v929
      %v964 = vmul.f32 %v692, %v939
      %v965 = vmul.f32 %v693, %v949
      %v966 = vperm.slane %v605, 0
      %v967 = vmul.f32 %v950, %v966
      %v968 = vmul.f32 %v951, %v966
      %v969 = vmul.f32 %v952, %v966
      %v970 = vmul.f32 %v953, %v966
      %v971 = vmul.f32 %v954, %v966
      %v972 = vmul.f32 %v955, %v966
      %v973 = vmul.f32 %v956, %v966
      %v974 = vmul.f32 %v957, %v966
      %v975 = vmul.f32 %v958, %v966
      %v976 = vmul.f32 %v959, %v966
      %v977 = vmul.f32 %v960, %v966
      %v978 = vmul.f32 %v961, %v966
      %v979 = vmul.f32 %v962, %v966
      %v980 = vmul.f32 %v963, %v966
      %v981 = vmul.f32 %v964, %v966
      %v982 = vmul.f32 %v965, %v966
      %v983 = vperm.slane %v605, 1
      %v984 = vadd.f32 %v967, %v983
      %v985 = vadd.f32 %v968, %v983
      %v986 = vadd.f32 %v969, %v983
      %v987 = vadd.f32 %v970, %v983
      %v988 = vadd.f32 %v971, %v983
      %v989 = vadd.f32 %v972, %v983
      %v990 = vadd.f32 %v973, %v983
      %v991 = vadd.f32 %v974, %v983
      %v992 = vadd.f32 %v975, %v983
      %v993 = vadd.f32 %v976, %v983
      %v994 = vadd.f32 %v977, %v983
      %v995 = vadd.f32 %v978, %v983
      %v996 = vadd.f32 %v979, %v983
      %v997 = vadd.f32 %v980, %v983
      %v998 = vadd.f32 %v981, %v983
      %v999 = vadd.f32 %v982, %v983
      %v1000 = vpack.c.bf16 %v985, %v984
      %v1001 = vpack.c.bf16 %v987, %v986
      %v1002 = vpack.c.bf16 %v989, %v988
      %v1003 = vpack.c.bf16 %v991, %v990
      %v1004 = vpack.c.bf16 %v993, %v992
      %v1005 = vpack.c.bf16 %v995, %v994
      %v1006 = vpack.c.bf16 %v997, %v996
      %v1007 = vpack.c.bf16 %v999, %v998
      %v1008 = vld [vmem:[%s3] sm:$0xf]
      %v1009 = vld [vmem:[%s3 + $0x4] sm:$0xf]
      %v1010 = vld [vmem:[%s3 + $0x8] sm:$0xf]
      %v1011 = vld [vmem:[%s3 + $0xc] sm:$0xf]
      %v1012 = vld [vmem:[%s4] sm:$0x1]
      %v1014 = vperm.slane %v1012, 0
      %v1020 = vunpack.c.l.b16 %v1008
      %v1021 = vunpack.c.l.b16 %v1009
      %v1022 = vunpack.c.l.b16 %v1010
      %v1023 = vunpack.c.l.b16 %v1011
      %v1024 = vpack.c.b16 %v1021, %v1020
      %v1025 = vpack.c.b16 %v1023, %v1022
      %v1029 = vsel %vm606, %v1000, 0
      %v1032 = vsel %vm606, %v1001, 0
      %v1035 = vsel %vm606, %v1002, 0
      %v1038 = vsel %vm606, %v1003, 0
      %v1041 = vsel %vm606, %v1004, 0
      %v1044 = vsel %vm606, %v1005, 0
      %v1047 = vsel %vm606, %v1006, 0
      %v1050 = vsel %vm606, %v1007, 0
      %1052 = vmatpush.bf16.msra.mxu0 0
      %1053 = vmatpush.bf16.msra.mxu0 0
      %1054 = vmatpush.bf16.msra.mxu0 0
      %1055 = vmatpush.bf16.msra.mxu0 0
      %1056 = vmatpush.bf16.msra.mxu0 0
      %1057 = vmatpush.bf16.msra.mxu0 0
      %1058 = vmatpush.bf16.msra.mxu0 %v1025
      %1059 = vmatpush.bf16.msra.mxu0 %v1024
      %1060 = vmatmul.bf16.gmra.mxu0 %v1029
      %v1061 = vpop.f32.mrf.mxu0
      %v1062 = vadd.f32 %v1014, %v1061
      %v1063 = vpop.f32.mrf.mxu0
      %v1064 = vadd.f32 %v1014, %v1063
      %1065 = vmatmul.bf16.gmra.mxu0 %v1032
      %v1066 = vpop.f32.mrf.mxu0
      %v1067 = vadd.f32 %v1014, %v1066
      %v1068 = vpop.f32.mrf.mxu0
      %v1069 = vadd.f32 %v1014, %v1068
      %1070 = vmatmul.bf16.gmra.mxu0 %v1035
      %v1071 = vpop.f32.mrf.mxu0
      %v1072 = vadd.f32 %v1014, %v1071
      %v1073 = vpop.f32.mrf.mxu0
      %v1074 = vadd.f32 %v1014, %v1073
      %1075 = vmatmul.bf16.gmra.mxu0 %v1038
      %v1076 = vpop.f32.mrf.mxu0
      %v1077 = vadd.f32 %v1014, %v1076
      %v1078 = vpop.f32.mrf.mxu0
      %v1079 = vadd.f32 %v1014, %v1078
      %1080 = vmatmul.bf16.gmra.mxu0 %v1041
      %v1081 = vpop.f32.mrf.mxu0
      %v1082 = vadd.f32 %v1014, %v1081
      %v1083 = vpop.f32.mrf.mxu0
      %v1084 = vadd.f32 %v1014, %v1083
      %1085 = vmatmul.bf16.gmra.mxu0 %v1044
      %v1086 = vpop.f32.mrf.mxu0
      %v1087 = vadd.f32 %v1014, %v1086
      %v1088 = vpop.f32.mrf.mxu0
      %v1089 = vadd.f32 %v1014, %v1088
      %1090 = vmatmul.bf16.gmra.mxu0 %v1047
      %v1091 = vpop.f32.mrf.mxu0
      %v1092 = vadd.f32 %v1014, %v1091
      %v1093 = vpop.f32.mrf.mxu0
      %v1094 = vadd.f32 %v1014, %v1093
      %1095 = vmatmul.bf16.gmra.mxu0 %v1050
      %v1096 = vpop.f32.mrf.mxu0
      %v1097 = vadd.f32 %v1014, %v1096
      %v1098 = vpop.f32.mrf.mxu0
      %v1099 = vadd.f32 %v1014, %v1098
      %1100 = vdwg.mxu0
      %v1101 = vlaneseq
      %v1102 = vshrl.u32 %v1101, 7
      %v1103 = vlaneseq
      %v1104 = vand.u32 %v1103, 127
      %vm1105 = vcmp.le.s32.totalorder %v1104, %v1102
      %v1106 = vld [vmem:[%s5] sm:$0xf]
      %v1107 = vld [vmem:[%s5 + $0x4] sm:$0xf]
      %v1108 = vld [vmem:[%s5 + $0x8] sm:$0xf]
      %v1109 = vld [vmem:[%s5 + $0xc] sm:$0xf]
      %v1110 = vpack.c.bf16 %v1062, %v1062
      %v1111 = vpack.c.bf16 %v1064, %v1064
      %v1112 = vpack.c.bf16 %v1067, %v1067
      %v1113 = vpack.c.bf16 %v1069, %v1069
      %v1114 = vpack.c.bf16 %v1072, %v1072
      %v1115 = vpack.c.bf16 %v1074, %v1074
      %v1116 = vpack.c.bf16 %v1077, %v1077
      %v1117 = vpack.c.bf16 %v1079, %v1079
      %v1118 = vpack.c.bf16 %v1082, %v1082
      %v1119 = vpack.c.bf16 %v1084, %v1084
      %v1120 = vpack.c.bf16 %v1087, %v1087
      %v1121 = vpack.c.bf16 %v1089, %v1089
      %v1122 = vpack.c.bf16 %v1092, %v1092
      %v1123 = vpack.c.bf16 %v1094, %v1094
      %v1124 = vpack.c.bf16 %v1097, %v1097
      %v1125 = vpack.c.bf16 %v1099, %v1099
      %v1127 = vunpack.c.l.b16 %v1110
      %v1128 = vpack.c.b16 %v1127, %v1127
      %1129 = vrot.lane.b32.xlu0 %v1128, 96
      %v1130 = vpop.permute.xlu0 %1129
      %vm1131 = vcmask 64512
      %v1133 = vsel %vm1131, %v1110, 0
      %v1136 = vsel %vm1131, %v1130, 0
      %1138 = vmatpush.bf16.xpose.msra.mxu0 0
      %1139 = vmatpush.bf16.xpose.msra.mxu0 0
      %1140 = vmatpush.bf16.xpose.msra.mxu0 0
      %1141 = vmatpush.bf16.xpose.msra.mxu0 0
      %1142 = vmatpush.bf16.xpose.msra.mxu0 0
      %1143 = vmatpush.bf16.xpose.msra.mxu0 0
      %1144 = vmatpush.bf16.xpose.msra.mxu0 0
      %1145 = vmatpush.bf16.xpose.msra.mxu0 %v1136
      %1146 = vmatmul.bf16.gmra.mxu0 %v1133
      %v1147 = vpop.f32.mrf.mxu0
      %v1148 = vadd.f32 0.0, %v1147
      %v1149 = vpop.f32.mrf.mxu0
      %1150 = vdwg.mxu0
      %v1152 = vunpack.c.l.b16 %v1111
      %v1153 = vpack.c.b16 %v1152, %v1152
      %1154 = vrot.lane.b32.xlu0 %v1153, 96
      %v1155 = vpop.permute.xlu0 %1154
      %v1157 = vsel %vm1131, %v1111, 0
      %v1160 = vsel %vm1131, %v1155, 0
      %1162 = vmatpush.bf16.xpose.msra.mxu0 0
      %1163 = vmatpush.bf16.xpose.msra.mxu0 0
      %1164 = vmatpush.bf16.xpose.msra.mxu0 0
      %1165 = vmatpush.bf16.xpose.msra.mxu0 0
      %1166 = vmatpush.bf16.xpose.msra.mxu0 0
      %1167 = vmatpush.bf16.xpose.msra.mxu0 0
      %1168 = vmatpush.bf16.xpose.msra.mxu0 0
      %1169 = vmatpush.bf16.xpose.msra.mxu0 %v1160
      %1170 = vmatmul.bf16.gmra.mxu0 %v1157
      %v1171 = vpop.f32.mrf.mxu0
      %v1172 = vadd.f32 0.0, %v1171
      %v1173 = vpop.f32.mrf.mxu0
      %1174 = vdwg.mxu0
      %v1176 = vunpack.c.l.b16 %v1112
      %v1177 = vpack.c.b16 %v1176, %v1176
      %1178 = vrot.lane.b32.xlu0 %v1177, 96
      %v1179 = vpop.permute.xlu0 %1178
      %v1181 = vsel %vm1131, %v1112, 0
      %v1184 = vsel %vm1131, %v1179, 0
      %1186 = vmatpush.bf16.xpose.msra.mxu0 0
      %1187 = vmatpush.bf16.xpose.msra.mxu0 0
      %1188 = vmatpush.bf16.xpose.msra.mxu0 0
      %1189 = vmatpush.bf16.xpose.msra.mxu0 0
      %1190 = vmatpush.bf16.xpose.msra.mxu0 0
      %1191 = vmatpush.bf16.xpose.msra.mxu0 0
      %1192 = vmatpush.bf16.xpose.msra.mxu0 0
      %1193 = vmatpush.bf16.xpose.msra.mxu0 %v1184
      %1194 = vmatmul.bf16.gmra.mxu0 %v1181
      %v1195 = vpop.f32.mrf.mxu0
      %v1196 = vadd.f32 0.0, %v1195
      %v1197 = vpop.f32.mrf.mxu0
      %1198 = vdwg.mxu0
      %v1200 = vunpack.c.l.b16 %v1113
      %v1201 = vpack.c.b16 %v1200, %v1200
      %1202 = vrot.lane.b32.xlu0 %v1201, 96
      %v1203 = vpop.permute.xlu0 %1202
      %v1205 = vsel %vm1131, %v1113, 0
      %v1208 = vsel %vm1131, %v1203, 0
      %1210 = vmatpush.bf16.xpose.msra.mxu0 0
      %1211 = vmatpush.bf16.xpose.msra.mxu0 0
      %1212 = vmatpush.bf16.xpose.msra.mxu0 0
      %1213 = vmatpush.bf16.xpose.msra.mxu0 0
      %1214 = vmatpush.bf16.xpose.msra.mxu0 0
      %1215 = vmatpush.bf16.xpose.msra.mxu0 0
      %1216 = vmatpush.bf16.xpose.msra.mxu0 0
      %1217 = vmatpush.bf16.xpose.msra.mxu0 %v1208
      %1218 = vmatmul.bf16.gmra.mxu0 %v1205
      %v1219 = vpop.f32.mrf.mxu0
      %v1220 = vadd.f32 0.0, %v1219
      %v1221 = vpop.f32.mrf.mxu0
      %1222 = vdwg.mxu0
      %v1224 = vunpack.c.l.b16 %v1114
      %v1225 = vpack.c.b16 %v1224, %v1224
      %1226 = vrot.lane.b32.xlu0 %v1225, 96
      %v1227 = vpop.permute.xlu0 %1226
      %v1229 = vsel %vm1131, %v1114, 0
      %v1232 = vsel %vm1131, %v1227, 0
      %1234 = vmatpush.bf16.xpose.msra.mxu0 0
      %1235 = vmatpush.bf16.xpose.msra.mxu0 0
      %1236 = vmatpush.bf16.xpose.msra.mxu0 0
      %1237 = vmatpush.bf16.xpose.msra.mxu0 0
      %1238 = vmatpush.bf16.xpose.msra.mxu0 0
      %1239 = vmatpush.bf16.xpose.msra.mxu0 0
      %1240 = vmatpush.bf16.xpose.msra.mxu0 0
      %1241 = vmatpush.bf16.xpose.msra.mxu0 %v1232
      %1242 = vmatmul.bf16.gmra.mxu0 %v1229
      %v1243 = vpop.f32.mrf.mxu0
      %v1244 = vadd.f32 0.0, %v1243
      %v1245 = vpop.f32.mrf.mxu0
      %1246 = vdwg.mxu0
      %v1248 = vunpack.c.l.b16 %v1115
      %v1249 = vpack.c.b16 %v1248, %v1248
      %1250 = vrot.lane.b32.xlu0 %v1249, 96
      %v1251 = vpop.permute.xlu0 %1250
      %v1253 = vsel %vm1131, %v1115, 0
      %v1256 = vsel %vm1131, %v1251, 0
      %1258 = vmatpush.bf16.xpose.msra.mxu0 0
      %1259 = vmatpush.bf16.xpose.msra.mxu0 0
      %1260 = vmatpush.bf16.xpose.msra.mxu0 0
      %1261 = vmatpush.bf16.xpose.msra.mxu0 0
      %1262 = vmatpush.bf16.xpose.msra.mxu0 0
      %1263 = vmatpush.bf16.xpose.msra.mxu0 0
      %1264 = vmatpush.bf16.xpose.msra.mxu0 0
      %1265 = vmatpush.bf16.xpose.msra.mxu0 %v1256
      %1266 = vmatmul.bf16.gmra.mxu0 %v1253
      %v1267 = vpop.f32.mrf.mxu0
      %v1268 = vadd.f32 0.0, %v1267
      %v1269 = vpop.f32.mrf.mxu0
      %1270 = vdwg.mxu0
      %v1272 = vunpack.c.l.b16 %v1116
      %v1273 = vpack.c.b16 %v1272, %v1272
      %1274 = vrot.lane.b32.xlu0 %v1273, 96
      %v1275 = vpop.permute.xlu0 %1274
      %v1277 = vsel %vm1131, %v1116, 0
      %v1280 = vsel %vm1131, %v1275, 0
      %1282 = vmatpush.bf16.xpose.msra.mxu0 0
      %1283 = vmatpush.bf16.xpose.msra.mxu0 0
      %1284 = vmatpush.bf16.xpose.msra.mxu0 0
      %1285 = vmatpush.bf16.xpose.msra.mxu0 0
      %1286 = vmatpush.bf16.xpose.msra.mxu0 0
      %1287 = vmatpush.bf16.xpose.msra.mxu0 0
      %1288 = vmatpush.bf16.xpose.msra.mxu0 0
      %1289 = vmatpush.bf16.xpose.msra.mxu0 %v1280
      %1290 = vmatmul.bf16.gmra.mxu0 %v1277
      %v1291 = vpop.f32.mrf.mxu0
      %v1292 = vadd.f32 0.0, %v1291
      %v1293 = vpop.f32.mrf.mxu0
      %1294 = vdwg.mxu0
      %v1296 = vunpack.c.l.b16 %v1117
      %v1297 = vpack.c.b16 %v1296, %v1296
      %1298 = vrot.lane.b32.xlu0 %v1297, 96
      %v1299 = vpop.permute.xlu0 %1298
      %v1301 = vsel %vm1131, %v1117, 0
      %v1304 = vsel %vm1131, %v1299, 0
      %1306 = vmatpush.bf16.xpose.msra.mxu0 0
      %1307 = vmatpush.bf16.xpose.msra.mxu0 0
      %1308 = vmatpush.bf16.xpose.msra.mxu0 0
      %1309 = vmatpush.bf16.xpose.msra.mxu0 0
      %1310 = vmatpush.bf16.xpose.msra.mxu0 0
      %1311 = vmatpush.bf16.xpose.msra.mxu0 0
      %1312 = vmatpush.bf16.xpose.msra.mxu0 0
      %1313 = vmatpush.bf16.xpose.msra.mxu0 %v1304
      %1314 = vmatmul.bf16.gmra.mxu0 %v1301
      %v1315 = vpop.f32.mrf.mxu0
      %v1316 = vadd.f32 0.0, %v1315
      %v1317 = vpop.f32.mrf.mxu0
      %1318 = vdwg.mxu0
      %v1320 = vunpack.c.l.b16 %v1118
      %v1321 = vpack.c.b16 %v1320, %v1320
      %1322 = vrot.lane.b32.xlu0 %v1321, 96
      %v1323 = vpop.permute.xlu0 %1322
      %v1325 = vsel %vm1131, %v1118, 0
      %v1328 = vsel %vm1131, %v1323, 0
      %1330 = vmatpush.bf16.xpose.msra.mxu0 0
      %1331 = vmatpush.bf16.xpose.msra.mxu0 0
      %1332 = vmatpush.bf16.xpose.msra.mxu0 0
      %1333 = vmatpush.bf16.xpose.msra.mxu0 0
      %1334 = vmatpush.bf16.xpose.msra.mxu0 0
      %1335 = vmatpush.bf16.xpose.msra.mxu0 0
      %1336 = vmatpush.bf16.xpose.msra.mxu0 0
      %1337 = vmatpush.bf16.xpose.msra.mxu0 %v1328
      %1338 = vmatmul.bf16.gmra.mxu0 %v1325
      %v1339 = vpop.f32.mrf.mxu0
      %v1340 = vadd.f32 0.0, %v1339
      %v1341 = vpop.f32.mrf.mxu0
      %1342 = vdwg.mxu0
      %v1344 = vunpack.c.l.b16 %v1119
      %v1345 = vpack.c.b16 %v1344, %v1344
      %1346 = vrot.lane.b32.xlu0 %v1345, 96
      %v1347 = vpop.permute.xlu0 %1346
      %v1349 = vsel %vm1131, %v1119, 0
      %v1352 = vsel %vm1131, %v1347, 0
      %1354 = vmatpush.bf16.xpose.msra.mxu0 0
      %1355 = vmatpush.bf16.xpose.msra.mxu0 0
      %1356 = vmatpush.bf16.xpose.msra.mxu0 0
      %1357 = vmatpush.bf16.xpose.msra.mxu0 0
      %1358 = vmatpush.bf16.xpose.msra.mxu0 0
      %1359 = vmatpush.bf16.xpose.msra.mxu0 0
      %1360 = vmatpush.bf16.xpose.msra.mxu0 0
      %1361 = vmatpush.bf16.xpose.msra.mxu0 %v1352
      %1362 = vmatmul.bf16.gmra.mxu0 %v1349
      %v1363 = vpop.f32.mrf.mxu0
      %v1364 = vadd.f32 0.0, %v1363
      %v1365 = vpop.f32.mrf.mxu0
      %1366 = vdwg.mxu0
      %v1368 = vunpack.c.l.b16 %v1120
      %v1369 = vpack.c.b16 %v1368, %v1368
      %1370 = vrot.lane.b32.xlu0 %v1369, 96
      %v1371 = vpop.permute.xlu0 %1370
      %v1373 = vsel %vm1131, %v1120, 0
      %v1376 = vsel %vm1131, %v1371, 0
      %1378 = vmatpush.bf16.xpose.msra.mxu0 0
      %1379 = vmatpush.bf16.xpose.msra.mxu0 0
      %1380 = vmatpush.bf16.xpose.msra.mxu0 0
      %1381 = vmatpush.bf16.xpose.msra.mxu0 0
      %1382 = vmatpush.bf16.xpose.msra.mxu0 0
      %1383 = vmatpush.bf16.xpose.msra.mxu0 0
      %1384 = vmatpush.bf16.xpose.msra.mxu0 0
      %1385 = vmatpush.bf16.xpose.msra.mxu0 %v1376
      %1386 = vmatmul.bf16.gmra.mxu0 %v1373
      %v1387 = vpop.f32.mrf.mxu0
      %v1388 = vadd.f32 0.0, %v1387
      %v1389 = vpop.f32.mrf.mxu0
      %1390 = vdwg.mxu0
      %v1392 = vunpack.c.l.b16 %v1121
      %v1393 = vpack.c.b16 %v1392, %v1392
      %1394 = vrot.lane.b32.xlu0 %v1393, 96
      %v1395 = vpop.permute.xlu0 %1394
      %v1397 = vsel %vm1131, %v1121, 0
      %v1400 = vsel %vm1131, %v1395, 0
      %1402 = vmatpush.bf16.xpose.msra.mxu0 0
      %1403 = vmatpush.bf16.xpose.msra.mxu0 0
      %1404 = vmatpush.bf16.xpose.msra.mxu0 0
      %1405 = vmatpush.bf16.xpose.msra.mxu0 0
      %1406 = vmatpush.bf16.xpose.msra.mxu0 0
      %1407 = vmatpush.bf16.xpose.msra.mxu0 0
      %1408 = vmatpush.bf16.xpose.msra.mxu0 0
      %1409 = vmatpush.bf16.xpose.msra.mxu0 %v1400
      %1410 = vmatmul.bf16.gmra.mxu0 %v1397
      %v1411 = vpop.f32.mrf.mxu0
      %v1412 = vadd.f32 0.0, %v1411
      %v1413 = vpop.f32.mrf.mxu0
      %1414 = vdwg.mxu0
      %v1416 = vunpack.c.l.b16 %v1122
      %v1417 = vpack.c.b16 %v1416, %v1416
      %1418 = vrot.lane.b32.xlu0 %v1417, 96
      %v1419 = vpop.permute.xlu0 %1418
      %v1421 = vsel %vm1131, %v1122, 0
      %v1424 = vsel %vm1131, %v1419, 0
      %1426 = vmatpush.bf16.xpose.msra.mxu0 0
      %1427 = vmatpush.bf16.xpose.msra.mxu0 0
      %1428 = vmatpush.bf16.xpose.msra.mxu0 0
      %1429 = vmatpush.bf16.xpose.msra.mxu0 0
      %1430 = vmatpush.bf16.xpose.msra.mxu0 0
      %1431 = vmatpush.bf16.xpose.msra.mxu0 0
      %1432 = vmatpush.bf16.xpose.msra.mxu0 0
      %1433 = vmatpush.bf16.xpose.msra.mxu0 %v1424
      %1434 = vmatmul.bf16.gmra.mxu0 %v1421
      %v1435 = vpop.f32.mrf.mxu0
      %v1436 = vadd.f32 0.0, %v1435
      %v1437 = vpop.f32.mrf.mxu0
      %1438 = vdwg.mxu0
      %v1440 = vunpack.c.l.b16 %v1123
      %v1441 = vpack.c.b16 %v1440, %v1440
      %1442 = vrot.lane.b32.xlu0 %v1441, 96
      %v1443 = vpop.permute.xlu0 %1442
      %v1445 = vsel %vm1131, %v1123, 0
      %v1448 = vsel %vm1131, %v1443, 0
      %1450 = vmatpush.bf16.xpose.msra.mxu0 0
      %1451 = vmatpush.bf16.xpose.msra.mxu0 0
      %1452 = vmatpush.bf16.xpose.msra.mxu0 0
      %1453 = vmatpush.bf16.xpose.msra.mxu0 0
      %1454 = vmatpush.bf16.xpose.msra.mxu0 0
      %1455 = vmatpush.bf16.xpose.msra.mxu0 0
      %1456 = vmatpush.bf16.xpose.msra.mxu0 0
      %1457 = vmatpush.bf16.xpose.msra.mxu0 %v1448
      %1458 = vmatmul.bf16.gmra.mxu0 %v1445
      %v1459 = vpop.f32.mrf.mxu0
      %v1460 = vadd.f32 0.0, %v1459
      %v1461 = vpop.f32.mrf.mxu0
      %1462 = vdwg.mxu0
      %v1464 = vunpack.c.l.b16 %v1124
      %v1465 = vpack.c.b16 %v1464, %v1464
      %1466 = vrot.lane.b32.xlu0 %v1465, 96
      %v1467 = vpop.permute.xlu0 %1466
      %v1469 = vsel %vm1131, %v1124, 0
      %v1472 = vsel %vm1131, %v1467, 0
      %1474 = vmatpush.bf16.xpose.msra.mxu0 0
      %1475 = vmatpush.bf16.xpose.msra.mxu0 0
      %1476 = vmatpush.bf16.xpose.msra.mxu0 0
      %1477 = vmatpush.bf16.xpose.msra.mxu0 0
      %1478 = vmatpush.bf16.xpose.msra.mxu0 0
      %1479 = vmatpush.bf16.xpose.msra.mxu0 0
      %1480 = vmatpush.bf16.xpose.msra.mxu0 0
      %1481 = vmatpush.bf16.xpose.msra.mxu0 %v1472
      %1482 = vmatmul.bf16.gmra.mxu0 %v1469
      %v1483 = vpop.f32.mrf.mxu0
      %v1484 = vadd.f32 0.0, %v1483
      %v1485 = vpop.f32.mrf.mxu0
      %1486 = vdwg.mxu0
      %v1488 = vunpack.c.l.b16 %v1125
      %v1489 = vpack.c.b16 %v1488, %v1488
      %1490 = vrot.lane.b32.xlu0 %v1489, 96
      %v1491 = vpop.permute.xlu0 %1490
      %v1493 = vsel %vm1131, %v1125, 0
      %v1496 = vsel %vm1131, %v1491, 0
      %1498 = vmatpush.bf16.xpose.msra.mxu0 0
      %1499 = vmatpush.bf16.xpose.msra.mxu0 0
      %1500 = vmatpush.bf16.xpose.msra.mxu0 0
      %1501 = vmatpush.bf16.xpose.msra.mxu0 0
      %1502 = vmatpush.bf16.xpose.msra.mxu0 0
      %1503 = vmatpush.bf16.xpose.msra.mxu0 0
      %1504 = vmatpush.bf16.xpose.msra.mxu0 0
      %1505 = vmatpush.bf16.xpose.msra.mxu0 %v1496
      %1506 = vmatmul.bf16.gmra.mxu0 %v1493
      %v1507 = vpop.f32.mrf.mxu0
      %v1508 = vadd.f32 0.0, %v1507
      %v1509 = vpop.f32.mrf.mxu0
      %1510 = vdwg.mxu0
      %v1511 = vsel %vm1105, 1, 0
      %vm1512 = vcmp.eq.s32.totalorder %v1511, 1
      %v1513 = vsel %vm1512, %v1148, -1e+30
      %v1514 = vsel %vm1512, %v1172, -1e+30
      %v1515 = vsel %vm1512, %v1196, -1e+30
      %v1516 = vsel %vm1512, %v1220, -1e+30
      %v1517 = vsel %vm1512, %v1244, -1e+30
      %v1518 = vsel %vm1512, %v1268, -1e+30
      %v1519 = vsel %vm1512, %v1292, -1e+30
      %v1520 = vsel %vm1512, %v1316, -1e+30
      %v1521 = vsel %vm1512, %v1340, -1e+30
      %v1522 = vsel %vm1512, %v1364, -1e+30
      %v1523 = vsel %vm1512, %v1388, -1e+30
      %v1524 = vsel %vm1512, %v1412, -1e+30
      %v1525 = vsel %vm1512, %v1436, -1e+30
      %v1526 = vsel %vm1512, %v1460, -1e+30
      %v1527 = vsel %vm1512, %v1484, -1e+30
      %v1528 = vsel %vm1512, %v1508, -1e+30
      %v1529 = vsel %vm1131, %v1513, -inf
      %1530 = vmax.xlane.f32.xlu0 %v1529
      %v1531 = vpop.xlane.xlu0 %1530
      %v1532 = vsel %vm1131, %v1514, -inf
      %1533 = vmax.xlane.f32.xlu0 %v1532
      %v1534 = vpop.xlane.xlu0 %1533
      %v1535 = vsel %vm1131, %v1515, -inf
      %1536 = vmax.xlane.f32.xlu0 %v1535
      %v1537 = vpop.xlane.xlu0 %1536
      %v1538 = vsel %vm1131, %v1516, -inf
      %1539 = vmax.xlane.f32.xlu0 %v1538
      %v1540 = vpop.xlane.xlu0 %1539
      %v1541 = vsel %vm1131, %v1517, -inf
      %1542 = vmax.xlane.f32.xlu0 %v1541
      %v1543 = vpop.xlane.xlu0 %1542
      %v1544 = vsel %vm1131, %v1518, -inf
      %1545 = vmax.xlane.f32.xlu0 %v1544
      %v1546 = vpop.xlane.xlu0 %1545
      %v1547 = vsel %vm1131, %v1519, -inf
      %1548 = vmax.xlane.f32.xlu0 %v1547
      %v1549 = vpop.xlane.xlu0 %1548
      %v1550 = vsel %vm1131, %v1520, -inf
      %1551 = vmax.xlane.f32.xlu0 %v1550
      %v1552 = vpop.xlane.xlu0 %1551
      %v1553 = vsel %vm1131, %v1521, -inf
      %1554 = vmax.xlane.f32.xlu0 %v1553
      %v1555 = vpop.xlane.xlu0 %1554
      %v1556 = vsel %vm1131, %v1522, -inf
      %1557 = vmax.xlane.f32.xlu0 %v1556
      %v1558 = vpop.xlane.xlu0 %1557
      %v1559 = vsel %vm1131, %v1523, -inf
      %1560 = vmax.xlane.f32.xlu0 %v1559
      %v1561 = vpop.xlane.xlu0 %1560
      %v1562 = vsel %vm1131, %v1524, -inf
      %1563 = vmax.xlane.f32.xlu0 %v1562
      %v1564 = vpop.xlane.xlu0 %1563
      %v1565 = vsel %vm1131, %v1525, -inf
      %1566 = vmax.xlane.f32.xlu0 %v1565
      %v1567 = vpop.xlane.xlu0 %1566
      %v1568 = vsel %vm1131, %v1526, -inf
      %1569 = vmax.xlane.f32.xlu0 %v1568
      %v1570 = vpop.xlane.xlu0 %1569
      %v1571 = vsel %vm1131, %v1527, -inf
      %1572 = vmax.xlane.f32.xlu0 %v1571
      %v1573 = vpop.xlane.xlu0 %1572
      %v1574 = vsel %vm1131, %v1528, -inf
      %1575 = vmax.xlane.f32.xlu0 %v1574
      %v1576 = vpop.xlane.xlu0 %1575
      %v1577 = vsub.f32 %v1513, %v1531
      %v1578 = vsub.f32 %v1514, %v1534
      %v1579 = vsub.f32 %v1515, %v1537
      %v1580 = vsub.f32 %v1516, %v1540
      %v1581 = vsub.f32 %v1517, %v1543
      %v1582 = vsub.f32 %v1518, %v1546
      %v1583 = vsub.f32 %v1519, %v1549
      %v1584 = vsub.f32 %v1520, %v1552
      %v1585 = vsub.f32 %v1521, %v1555
      %v1586 = vsub.f32 %v1522, %v1558
      %v1587 = vsub.f32 %v1523, %v1561
      %v1588 = vsub.f32 %v1524, %v1564
      %v1589 = vsub.f32 %v1525, %v1567
      %v1590 = vsub.f32 %v1526, %v1570
      %v1591 = vsub.f32 %v1527, %v1573
      %v1592 = vsub.f32 %v1528, %v1576
      %v1593 = vmul.f32 %v1577, 1.442695
      %v1594 = vpow.pop %v1593
      %v1595 = vmul.f32 %v1578, 1.442695
      %v1596 = vpow.pop %v1595
      %v1597 = vmul.f32 %v1579, 1.442695
      %v1598 = vpow.pop %v1597
      %v1599 = vmul.f32 %v1580, 1.442695
      %v1600 = vpow.pop %v1599
      %v1601 = vmul.f32 %v1581, 1.442695
      %v1602 = vpow.pop %v1601
      %v1603 = vmul.f32 %v1582, 1.442695
      %v1604 = vpow.pop %v1603
      %v1605 = vmul.f32 %v1583, 1.442695
      %v1606 = vpow.pop %v1605
      %v1607 = vmul.f32 %v1584, 1.442695
      %v1608 = vpow.pop %v1607
      %v1609 = vmul.f32 %v1585, 1.442695
      %v1610 = vpow.pop %v1609
      %v1611 = vmul.f32 %v1586, 1.442695
      %v1612 = vpow.pop %v1611
      %v1613 = vmul.f32 %v1587, 1.442695
      %v1614 = vpow.pop %v1613
      %v1615 = vmul.f32 %v1588, 1.442695
      %v1616 = vpow.pop %v1615
      %v1617 = vmul.f32 %v1589, 1.442695
      %v1618 = vpow.pop %v1617
      %v1619 = vmul.f32 %v1590, 1.442695
      %v1620 = vpow.pop %v1619
      %v1621 = vmul.f32 %v1591, 1.442695
      %v1622 = vpow.pop %v1621
      %v1623 = vmul.f32 %v1592, 1.442695
      %v1624 = vpow.pop %v1623
      %v1625 = vsel %vm1131, %v1594, 0.0
      %1626 = vadd.xlane.f32.xlu0 %v1625
      %v1627 = vpop.xlane.xlu0 %1626
      %v1628 = vsel %vm1131, %v1596, 0.0
      %1629 = vadd.xlane.f32.xlu0 %v1628
      %v1630 = vpop.xlane.xlu0 %1629
      %v1631 = vsel %vm1131, %v1598, 0.0
      %1632 = vadd.xlane.f32.xlu0 %v1631
      %v1633 = vpop.xlane.xlu0 %1632
      %v1634 = vsel %vm1131, %v1600, 0.0
      %1635 = vadd.xlane.f32.xlu0 %v1634
      %v1636 = vpop.xlane.xlu0 %1635
      %v1637 = vsel %vm1131, %v1602, 0.0
      %1638 = vadd.xlane.f32.xlu0 %v1637
      %v1639 = vpop.xlane.xlu0 %1638
      %v1640 = vsel %vm1131, %v1604, 0.0
      %1641 = vadd.xlane.f32.xlu0 %v1640
      %v1642 = vpop.xlane.xlu0 %1641
      %v1643 = vsel %vm1131, %v1606, 0.0
      %1644 = vadd.xlane.f32.xlu0 %v1643
      %v1645 = vpop.xlane.xlu0 %1644
      %v1646 = vsel %vm1131, %v1608, 0.0
      %1647 = vadd.xlane.f32.xlu0 %v1646
      %v1648 = vpop.xlane.xlu0 %1647
      %v1649 = vsel %vm1131, %v1610, 0.0
      %1650 = vadd.xlane.f32.xlu0 %v1649
      %v1651 = vpop.xlane.xlu0 %1650
      %v1652 = vsel %vm1131, %v1612, 0.0
      %1653 = vadd.xlane.f32.xlu0 %v1652
      %v1654 = vpop.xlane.xlu0 %1653
      %v1655 = vsel %vm1131, %v1614, 0.0
      %1656 = vadd.xlane.f32.xlu0 %v1655
      %v1657 = vpop.xlane.xlu0 %1656
      %v1658 = vsel %vm1131, %v1616, 0.0
      %1659 = vadd.xlane.f32.xlu0 %v1658
      %v1660 = vpop.xlane.xlu0 %1659
      %v1661 = vsel %vm1131, %v1618, 0.0
      %1662 = vadd.xlane.f32.xlu0 %v1661
      %v1663 = vpop.xlane.xlu0 %1662
      %v1664 = vsel %vm1131, %v1620, 0.0
      %1665 = vadd.xlane.f32.xlu0 %v1664
      %v1666 = vpop.xlane.xlu0 %1665
      %v1667 = vsel %vm1131, %v1622, 0.0
      %1668 = vadd.xlane.f32.xlu0 %v1667
      %v1669 = vpop.xlane.xlu0 %1668
      %v1670 = vsel %vm1131, %v1624, 0.0
      %1671 = vadd.xlane.f32.xlu0 %v1670
      %v1672 = vpop.xlane.xlu0 %1671
      %v1673 = vrcp.pop %v1627
      %v1674 = vrcp.pop %v1630
      %v1675 = vrcp.pop %v1633
      %v1676 = vrcp.pop %v1636
      %v1677 = vrcp.pop %v1639
      %v1678 = vrcp.pop %v1642
      %v1679 = vrcp.pop %v1645
      %v1680 = vrcp.pop %v1648
      %v1681 = vrcp.pop %v1651
      %v1682 = vrcp.pop %v1654
      %v1683 = vrcp.pop %v1657
      %v1684 = vrcp.pop %v1660
      %v1685 = vrcp.pop %v1663
      %v1686 = vrcp.pop %v1666
      %v1687 = vrcp.pop %v1669
      %v1688 = vrcp.pop %v1672
      %v1689 = vmul.f32 %v1594, %v1673
      %v1690 = vmul.f32 %v1596, %v1674
      %v1691 = vmul.f32 %v1598, %v1675
      %v1692 = vmul.f32 %v1600, %v1676
      %v1693 = vmul.f32 %v1602, %v1677
      %v1694 = vmul.f32 %v1604, %v1678
      %v1695 = vmul.f32 %v1606, %v1679
      %v1696 = vmul.f32 %v1608, %v1680
      %v1697 = vmul.f32 %v1610, %v1681
      %v1698 = vmul.f32 %v1612, %v1682
      %v1699 = vmul.f32 %v1614, %v1683
      %v1700 = vmul.f32 %v1616, %v1684
      %v1701 = vmul.f32 %v1618, %v1685
      %v1702 = vmul.f32 %v1620, %v1686
      %v1703 = vmul.f32 %v1622, %v1687
      %v1704 = vmul.f32 %v1624, %v1688
      %v1705 = vpack.c.bf16 %v1689, %v1689
      %v1706 = vpack.c.bf16 %v1690, %v1690
      %v1707 = vpack.c.bf16 %v1691, %v1691
      %v1708 = vpack.c.bf16 %v1692, %v1692
      %v1709 = vpack.c.bf16 %v1693, %v1693
      %v1710 = vpack.c.bf16 %v1694, %v1694
      %v1711 = vpack.c.bf16 %v1695, %v1695
      %v1712 = vpack.c.bf16 %v1696, %v1696
      %v1713 = vpack.c.bf16 %v1697, %v1697
      %v1714 = vpack.c.bf16 %v1698, %v1698
      %v1715 = vpack.c.bf16 %v1699, %v1699
      %v1716 = vpack.c.bf16 %v1700, %v1700
      %v1717 = vpack.c.bf16 %v1701, %v1701
      %v1718 = vpack.c.bf16 %v1702, %v1702
      %v1719 = vpack.c.bf16 %v1703, %v1703
      %v1720 = vpack.c.bf16 %v1704, %v1704
      %1721 = vrot.lane.b32.xlu0 %v1128, 64
      %v1722 = vpop.permute.xlu0 %1721
      %v1724 = vsel %vm1131, %v1705, 0
      %vm1726 = vcmask 1043456
      %v1728 = vsel %vm1726, %v1722, 0
      %1730 = vmatpush.bf16.msra.mxu0 0
      %1731 = vmatpush.bf16.msra.mxu0 0
      %1732 = vmatpush.bf16.msra.mxu0 0
      %1733 = vmatpush.bf16.msra.mxu0 0
      %1734 = vmatpush.bf16.msra.mxu0 0
      %1735 = vmatpush.bf16.msra.mxu0 0
      %1736 = vmatpush.bf16.msra.mxu0 0
      %1737 = vmatpush.bf16.msra.mxu0 %v1728
      %1738 = vmatmul.bf16.gmra.mxu0 %v1724
      %v1739 = vpop.f32.mrf.mxu0
      %v1740 = vadd.f32 0.0, %v1739
      %v1741 = vpop.f32.mrf.mxu0
      %1742 = vdwg.mxu0
      %1743 = vrot.lane.b32.xlu0 %v1153, 64
      %v1744 = vpop.permute.xlu0 %1743
      %v1746 = vsel %vm1131, %v1706, 0
      %v1749 = vsel %vm1726, %v1744, 0
      %1751 = vmatpush.bf16.msra.mxu0 0
      %1752 = vmatpush.bf16.msra.mxu0 0
      %1753 = vmatpush.bf16.msra.mxu0 0
      %1754 = vmatpush.bf16.msra.mxu0 0
      %1755 = vmatpush.bf16.msra.mxu0 0
      %1756 = vmatpush.bf16.msra.mxu0 0
      %1757 = vmatpush.bf16.msra.mxu0 0
      %1758 = vmatpush.bf16.msra.mxu0 %v1749
      %1759 = vmatmul.bf16.gmra.mxu0 %v1746
      %v1760 = vpop.f32.mrf.mxu0
      %v1761 = vadd.f32 0.0, %v1760
      %v1762 = vpop.f32.mrf.mxu0
      %1763 = vdwg.mxu0
      %1764 = vrot.lane.b32.xlu0 %v1177, 64
      %v1765 = vpop.permute.xlu0 %1764
      %v1767 = vsel %vm1131, %v1707, 0
      %v1770 = vsel %vm1726, %v1765, 0
      %1772 = vmatpush.bf16.msra.mxu0 0
      %1773 = vmatpush.bf16.msra.mxu0 0
      %1774 = vmatpush.bf16.msra.mxu0 0
      %1775 = vmatpush.bf16.msra.mxu0 0
      %1776 = vmatpush.bf16.msra.mxu0 0
      %1777 = vmatpush.bf16.msra.mxu0 0
      %1778 = vmatpush.bf16.msra.mxu0 0
      %1779 = vmatpush.bf16.msra.mxu0 %v1770
      %1780 = vmatmul.bf16.gmra.mxu0 %v1767
      %v1781 = vpop.f32.mrf.mxu0
      %v1782 = vadd.f32 0.0, %v1781
      %v1783 = vpop.f32.mrf.mxu0
      %1784 = vdwg.mxu0
      %1785 = vrot.lane.b32.xlu0 %v1201, 64
      %v1786 = vpop.permute.xlu0 %1785
      %v1788 = vsel %vm1131, %v1708, 0
      %v1791 = vsel %vm1726, %v1786, 0
      %1793 = vmatpush.bf16.msra.mxu0 0
      %1794 = vmatpush.bf16.msra.mxu0 0
      %1795 = vmatpush.bf16.msra.mxu0 0
      %1796 = vmatpush.bf16.msra.mxu0 0
      %1797 = vmatpush.bf16.msra.mxu0 0
      %1798 = vmatpush.bf16.msra.mxu0 0
      %1799 = vmatpush.bf16.msra.mxu0 0
      %1800 = vmatpush.bf16.msra.mxu0 %v1791
      %1801 = vmatmul.bf16.gmra.mxu0 %v1788
      %v1802 = vpop.f32.mrf.mxu0
      %v1803 = vadd.f32 0.0, %v1802
      %v1804 = vpop.f32.mrf.mxu0
      %1805 = vdwg.mxu0
      %1806 = vrot.lane.b32.xlu0 %v1225, 64
      %v1807 = vpop.permute.xlu0 %1806
      %v1809 = vsel %vm1131, %v1709, 0
      %v1812 = vsel %vm1726, %v1807, 0
      %1814 = vmatpush.bf16.msra.mxu0 0
      %1815 = vmatpush.bf16.msra.mxu0 0
      %1816 = vmatpush.bf16.msra.mxu0 0
      %1817 = vmatpush.bf16.msra.mxu0 0
      %1818 = vmatpush.bf16.msra.mxu0 0
      %1819 = vmatpush.bf16.msra.mxu0 0
      %1820 = vmatpush.bf16.msra.mxu0 0
      %1821 = vmatpush.bf16.msra.mxu0 %v1812
      %1822 = vmatmul.bf16.gmra.mxu0 %v1809
      %v1823 = vpop.f32.mrf.mxu0
      %v1824 = vadd.f32 0.0, %v1823
      %v1825 = vpop.f32.mrf.mxu0
      %1826 = vdwg.mxu0
      %1827 = vrot.lane.b32.xlu0 %v1249, 64
      %v1828 = vpop.permute.xlu0 %1827
      %v1830 = vsel %vm1131, %v1710, 0
      %v1833 = vsel %vm1726, %v1828, 0
      %1835 = vmatpush.bf16.msra.mxu0 0
      %1836 = vmatpush.bf16.msra.mxu0 0
      %1837 = vmatpush.bf16.msra.mxu0 0
      %1838 = vmatpush.bf16.msra.mxu0 0
      %1839 = vmatpush.bf16.msra.mxu0 0
      %1840 = vmatpush.bf16.msra.mxu0 0
      %1841 = vmatpush.bf16.msra.mxu0 0
      %1842 = vmatpush.bf16.msra.mxu0 %v1833
      %1843 = vmatmul.bf16.gmra.mxu0 %v1830
      %v1844 = vpop.f32.mrf.mxu0
      %v1845 = vadd.f32 0.0, %v1844
      %v1846 = vpop.f32.mrf.mxu0
      %1847 = vdwg.mxu0
      %1848 = vrot.lane.b32.xlu0 %v1273, 64
      %v1849 = vpop.permute.xlu0 %1848
      %v1851 = vsel %vm1131, %v1711, 0
      %v1854 = vsel %vm1726, %v1849, 0
      %1856 = vmatpush.bf16.msra.mxu0 0
      %1857 = vmatpush.bf16.msra.mxu0 0
      %1858 = vmatpush.bf16.msra.mxu0 0
      %1859 = vmatpush.bf16.msra.mxu0 0
      %1860 = vmatpush.bf16.msra.mxu0 0
      %1861 = vmatpush.bf16.msra.mxu0 0
      %1862 = vmatpush.bf16.msra.mxu0 0
      %1863 = vmatpush.bf16.msra.mxu0 %v1854
      %1864 = vmatmul.bf16.gmra.mxu0 %v1851
      %v1865 = vpop.f32.mrf.mxu0
      %v1866 = vadd.f32 0.0, %v1865
      %v1867 = vpop.f32.mrf.mxu0
      %1868 = vdwg.mxu0
      %1869 = vrot.lane.b32.xlu0 %v1297, 64
      %v1870 = vpop.permute.xlu0 %1869
      %v1872 = vsel %vm1131, %v1712, 0
      %v1875 = vsel %vm1726, %v1870, 0
      %1877 = vmatpush.bf16.msra.mxu0 0
      %1878 = vmatpush.bf16.msra.mxu0 0
      %1879 = vmatpush.bf16.msra.mxu0 0
      %1880 = vmatpush.bf16.msra.mxu0 0
      %1881 = vmatpush.bf16.msra.mxu0 0
      %1882 = vmatpush.bf16.msra.mxu0 0
      %1883 = vmatpush.bf16.msra.mxu0 0
      %1884 = vmatpush.bf16.msra.mxu0 %v1875
      %1885 = vmatmul.bf16.gmra.mxu0 %v1872
      %v1886 = vpop.f32.mrf.mxu0
      %v1887 = vadd.f32 0.0, %v1886
      %v1888 = vpop.f32.mrf.mxu0
      %1889 = vdwg.mxu0
      %1890 = vrot.lane.b32.xlu0 %v1321, 64
      %v1891 = vpop.permute.xlu0 %1890
      %v1893 = vsel %vm1131, %v1713, 0
      %v1896 = vsel %vm1726, %v1891, 0
      %1898 = vmatpush.bf16.msra.mxu0 0
      %1899 = vmatpush.bf16.msra.mxu0 0
      %1900 = vmatpush.bf16.msra.mxu0 0
      %1901 = vmatpush.bf16.msra.mxu0 0
      %1902 = vmatpush.bf16.msra.mxu0 0
      %1903 = vmatpush.bf16.msra.mxu0 0
      %1904 = vmatpush.bf16.msra.mxu0 0
      %1905 = vmatpush.bf16.msra.mxu0 %v1896
      %1906 = vmatmul.bf16.gmra.mxu0 %v1893
      %v1907 = vpop.f32.mrf.mxu0
      %v1908 = vadd.f32 0.0, %v1907
      %v1909 = vpop.f32.mrf.mxu0
      %1910 = vdwg.mxu0
      %1911 = vrot.lane.b32.xlu0 %v1345, 64
      %v1912 = vpop.permute.xlu0 %1911
      %v1914 = vsel %vm1131, %v1714, 0
      %v1917 = vsel %vm1726, %v1912, 0
      %1919 = vmatpush.bf16.msra.mxu0 0
      %1920 = vmatpush.bf16.msra.mxu0 0
      %1921 = vmatpush.bf16.msra.mxu0 0
      %1922 = vmatpush.bf16.msra.mxu0 0
      %1923 = vmatpush.bf16.msra.mxu0 0
      %1924 = vmatpush.bf16.msra.mxu0 0
      %1925 = vmatpush.bf16.msra.mxu0 0
      %1926 = vmatpush.bf16.msra.mxu0 %v1917
      %1927 = vmatmul.bf16.gmra.mxu0 %v1914
      %v1928 = vpop.f32.mrf.mxu0
      %v1929 = vadd.f32 0.0, %v1928
      %v1930 = vpop.f32.mrf.mxu0
      %1931 = vdwg.mxu0
      %1932 = vrot.lane.b32.xlu0 %v1369, 64
      %v1933 = vpop.permute.xlu0 %1932
      %v1935 = vsel %vm1131, %v1715, 0
      %v1938 = vsel %vm1726, %v1933, 0
      %1940 = vmatpush.bf16.msra.mxu0 0
      %1941 = vmatpush.bf16.msra.mxu0 0
      %1942 = vmatpush.bf16.msra.mxu0 0
      %1943 = vmatpush.bf16.msra.mxu0 0
      %1944 = vmatpush.bf16.msra.mxu0 0
      %1945 = vmatpush.bf16.msra.mxu0 0
      %1946 = vmatpush.bf16.msra.mxu0 0
      %1947 = vmatpush.bf16.msra.mxu0 %v1938
      %1948 = vmatmul.bf16.gmra.mxu0 %v1935
      %v1949 = vpop.f32.mrf.mxu0
      %v1950 = vadd.f32 0.0, %v1949
      %v1951 = vpop.f32.mrf.mxu0
      %1952 = vdwg.mxu0
      %1953 = vrot.lane.b32.xlu0 %v1393, 64
      %v1954 = vpop.permute.xlu0 %1953
      %v1956 = vsel %vm1131, %v1716, 0
      %v1959 = vsel %vm1726, %v1954, 0
      %1961 = vmatpush.bf16.msra.mxu0 0
      %1962 = vmatpush.bf16.msra.mxu0 0
      %1963 = vmatpush.bf16.msra.mxu0 0
      %1964 = vmatpush.bf16.msra.mxu0 0
      %1965 = vmatpush.bf16.msra.mxu0 0
      %1966 = vmatpush.bf16.msra.mxu0 0
      %1967 = vmatpush.bf16.msra.mxu0 0
      %1968 = vmatpush.bf16.msra.mxu0 %v1959
      %1969 = vmatmul.bf16.gmra.mxu0 %v1956
      %v1970 = vpop.f32.mrf.mxu0
      %v1971 = vadd.f32 0.0, %v1970
      %v1972 = vpop.f32.mrf.mxu0
      %1973 = vdwg.mxu0
      %1974 = vrot.lane.b32.xlu0 %v1417, 64
      %v1975 = vpop.permute.xlu0 %1974
      %v1977 = vsel %vm1131, %v1717, 0
      %v1980 = vsel %vm1726, %v1975, 0
      %1982 = vmatpush.bf16.msra.mxu0 0
      %1983 = vmatpush.bf16.msra.mxu0 0
      %1984 = vmatpush.bf16.msra.mxu0 0
      %1985 = vmatpush.bf16.msra.mxu0 0
      %1986 = vmatpush.bf16.msra.mxu0 0
      %1987 = vmatpush.bf16.msra.mxu0 0
      %1988 = vmatpush.bf16.msra.mxu0 0
      %1989 = vmatpush.bf16.msra.mxu0 %v1980
      %1990 = vmatmul.bf16.gmra.mxu0 %v1977
      %v1991 = vpop.f32.mrf.mxu0
      %v1992 = vadd.f32 0.0, %v1991
      %v1993 = vpop.f32.mrf.mxu0
      %1994 = vdwg.mxu0
      %1995 = vrot.lane.b32.xlu0 %v1441, 64
      %v1996 = vpop.permute.xlu0 %1995
      %v1998 = vsel %vm1131, %v1718, 0
      %v2001 = vsel %vm1726, %v1996, 0
      %2003 = vmatpush.bf16.msra.mxu0 0
      %2004 = vmatpush.bf16.msra.mxu0 0
      %2005 = vmatpush.bf16.msra.mxu0 0
      %2006 = vmatpush.bf16.msra.mxu0 0
      %2007 = vmatpush.bf16.msra.mxu0 0
      %2008 = vmatpush.bf16.msra.mxu0 0
      %2009 = vmatpush.bf16.msra.mxu0 0
      %2010 = vmatpush.bf16.msra.mxu0 %v2001
      %2011 = vmatmul.bf16.gmra.mxu0 %v1998
      %v2012 = vpop.f32.mrf.mxu0
      %v2013 = vadd.f32 0.0, %v2012
      %v2014 = vpop.f32.mrf.mxu0
      %2015 = vdwg.mxu0
      %2016 = vrot.lane.b32.xlu0 %v1465, 64
      %v2017 = vpop.permute.xlu0 %2016
      %v2019 = vsel %vm1131, %v1719, 0
      %v2022 = vsel %vm1726, %v2017, 0
      %2024 = vmatpush.bf16.msra.mxu0 0
      %2025 = vmatpush.bf16.msra.mxu0 0
      %2026 = vmatpush.bf16.msra.mxu0 0
      %2027 = vmatpush.bf16.msra.mxu0 0
      %2028 = vmatpush.bf16.msra.mxu0 0
      %2029 = vmatpush.bf16.msra.mxu0 0
      %2030 = vmatpush.bf16.msra.mxu0 0
      %2031 = vmatpush.bf16.msra.mxu0 %v2022
      %2032 = vmatmul.bf16.gmra.mxu0 %v2019
      %v2033 = vpop.f32.mrf.mxu0
      %v2034 = vadd.f32 0.0, %v2033
      %v2035 = vpop.f32.mrf.mxu0
      %2036 = vdwg.mxu0
      %2037 = vrot.lane.b32.xlu0 %v1489, 64
      %v2038 = vpop.permute.xlu0 %2037
      %v2040 = vsel %vm1131, %v1720, 0
      %v2043 = vsel %vm1726, %v2038, 0
      %2045 = vmatpush.bf16.msra.mxu0 0
      %2046 = vmatpush.bf16.msra.mxu0 0
      %2047 = vmatpush.bf16.msra.mxu0 0
      %2048 = vmatpush.bf16.msra.mxu0 0
      %2049 = vmatpush.bf16.msra.mxu0 0
      %2050 = vmatpush.bf16.msra.mxu0 0
      %2051 = vmatpush.bf16.msra.mxu0 0
      %2052 = vmatpush.bf16.msra.mxu0 %v2043
      %2053 = vmatmul.bf16.gmra.mxu0 %v2040
      %v2054 = vpop.f32.mrf.mxu0
      %v2055 = vadd.f32 0.0, %v2054
      %v2056 = vpop.f32.mrf.mxu0
      %2057 = vdwg.mxu0
      %v2058 = vpack.c.bf16 %v1761, %v1740
      %v2059 = vpack.c.bf16 %v1803, %v1782
      %v2060 = vpack.c.bf16 %v1845, %v1824
      %v2061 = vpack.c.bf16 %v1887, %v1866
      %v2062 = vpack.c.bf16 %v1929, %v1908
      %v2063 = vpack.c.bf16 %v1971, %v1950
      %v2064 = vpack.c.bf16 %v2013, %v1992
      %v2065 = vpack.c.bf16 %v2055, %v2034
      %2066 = vrot.lane.b32.xlu0 %v1128, 120
      %v2067 = vpop.permute.xlu0 %2066
      %2068 = vrot.lane.b32.xlu0 %v1128, 88
      %v2069 = vpop.permute.xlu0 %2068
      %v2071 = vsel %vm1131, %v2067, 0
      %v2074 = vsel %vm1131, %v2069, 0
      %2076 = vmatpush.bf16.xpose.msra.mxu0 0
      %2077 = vmatpush.bf16.xpose.msra.mxu0 0
      %2078 = vmatpush.bf16.xpose.msra.mxu0 0
      %2079 = vmatpush.bf16.xpose.msra.mxu0 0
      %2080 = vmatpush.bf16.xpose.msra.mxu0 0
      %2081 = vmatpush.bf16.xpose.msra.mxu0 0
      %2082 = vmatpush.bf16.xpose.msra.mxu0 0
      %2083 = vmatpush.bf16.xpose.msra.mxu0 %v2074
      %2084 = vmatmul.bf16.gmra.mxu0 %v2071
      %v2085 = vpop.f32.mrf.mxu0
      %v2086 = vadd.f32 0.0, %v2085
      %v2087 = vpop.f32.mrf.mxu0
      %2088 = vdwg.mxu0
      %2089 = vrot.lane.b32.xlu0 %v1153, 120
      %v2090 = vpop.permute.xlu0 %2089
      %2091 = vrot.lane.b32.xlu0 %v1153, 88
      %v2092 = vpop.permute.xlu0 %2091
      %v2094 = vsel %vm1131, %v2090, 0
      %v2097 = vsel %vm1131, %v2092, 0
      %2099 = vmatpush.bf16.xpose.msra.mxu0 0
      %2100 = vmatpush.bf16.xpose.msra.mxu0 0
      %2101 = vmatpush.bf16.xpose.msra.mxu0 0
      %2102 = vmatpush.bf16.xpose.msra.mxu0 0
      %2103 = vmatpush.bf16.xpose.msra.mxu0 0
      %2104 = vmatpush.bf16.xpose.msra.mxu0 0
      %2105 = vmatpush.bf16.xpose.msra.mxu0 0
      %2106 = vmatpush.bf16.xpose.msra.mxu0 %v2097
      %2107 = vmatmul.bf16.gmra.mxu0 %v2094
      %v2108 = vpop.f32.mrf.mxu0
      %v2109 = vadd.f32 0.0, %v2108
      %v2110 = vpop.f32.mrf.mxu0
      %2111 = vdwg.mxu0
      %2112 = vrot.lane.b32.xlu0 %v1177, 120
      %v2113 = vpop.permute.xlu0 %2112
      %2114 = vrot.lane.b32.xlu0 %v1177, 88
      %v2115 = vpop.permute.xlu0 %2114
      %v2117 = vsel %vm1131, %v2113, 0
      %v2120 = vsel %vm1131, %v2115, 0
      %2122 = vmatpush.bf16.xpose.msra.mxu0 0
      %2123 = vmatpush.bf16.xpose.msra.mxu0 0
      %2124 = vmatpush.bf16.xpose.msra.mxu0 0
      %2125 = vmatpush.bf16.xpose.msra.mxu0 0
      %2126 = vmatpush.bf16.xpose.msra.mxu0 0
      %2127 = vmatpush.bf16.xpose.msra.mxu0 0
      %2128 = vmatpush.bf16.xpose.msra.mxu0 0
      %2129 = vmatpush.bf16.xpose.msra.mxu0 %v2120
      %2130 = vmatmul.bf16.gmra.mxu0 %v2117
      %v2131 = vpop.f32.mrf.mxu0
      %v2132 = vadd.f32 0.0, %v2131
      %v2133 = vpop.f32.mrf.mxu0
      %2134 = vdwg.mxu0
      %2135 = vrot.lane.b32.xlu0 %v1201, 120
      %v2136 = vpop.permute.xlu0 %2135
      %2137 = vrot.lane.b32.xlu0 %v1201, 88
      %v2138 = vpop.permute.xlu0 %2137
      %v2140 = vsel %vm1131, %v2136, 0
      %v2143 = vsel %vm1131, %v2138, 0
      %2145 = vmatpush.bf16.xpose.msra.mxu0 0
      %2146 = vmatpush.bf16.xpose.msra.mxu0 0
      %2147 = vmatpush.bf16.xpose.msra.mxu0 0
      %2148 = vmatpush.bf16.xpose.msra.mxu0 0
      %2149 = vmatpush.bf16.xpose.msra.mxu0 0
      %2150 = vmatpush.bf16.xpose.msra.mxu0 0
      %2151 = vmatpush.bf16.xpose.msra.mxu0 0
      %2152 = vmatpush.bf16.xpose.msra.mxu0 %v2143
      %2153 = vmatmul.bf16.gmra.mxu0 %v2140
      %v2154 = vpop.f32.mrf.mxu0
      %v2155 = vadd.f32 0.0, %v2154
      %v2156 = vpop.f32.mrf.mxu0
      %2157 = vdwg.mxu0
      %2158 = vrot.lane.b32.xlu0 %v1225, 120
      %v2159 = vpop.permute.xlu0 %2158
      %2160 = vrot.lane.b32.xlu0 %v1225, 88
      %v2161 = vpop.permute.xlu0 %2160
      %v2163 = vsel %vm1131, %v2159, 0
      %v2166 = vsel %vm1131, %v2161, 0
      %2168 = vmatpush.bf16.xpose.msra.mxu0 0
      %2169 = vmatpush.bf16.xpose.msra.mxu0 0
      %2170 = vmatpush.bf16.xpose.msra.mxu0 0
      %2171 = vmatpush.bf16.xpose.msra.mxu0 0
      %2172 = vmatpush.bf16.xpose.msra.mxu0 0
      %2173 = vmatpush.bf16.xpose.msra.mxu0 0
      %2174 = vmatpush.bf16.xpose.msra.mxu0 0
      %2175 = vmatpush.bf16.xpose.msra.mxu0 %v2166
      %2176 = vmatmul.bf16.gmra.mxu0 %v2163
      %v2177 = vpop.f32.mrf.mxu0
      %v2178 = vadd.f32 0.0, %v2177
      %v2179 = vpop.f32.mrf.mxu0
      %2180 = vdwg.mxu0
      %2181 = vrot.lane.b32.xlu0 %v1249, 120
      %v2182 = vpop.permute.xlu0 %2181
      %2183 = vrot.lane.b32.xlu0 %v1249, 88
      %v2184 = vpop.permute.xlu0 %2183
      %v2186 = vsel %vm1131, %v2182, 0
      %v2189 = vsel %vm1131, %v2184, 0
      %2191 = vmatpush.bf16.xpose.msra.mxu0 0
      %2192 = vmatpush.bf16.xpose.msra.mxu0 0
      %2193 = vmatpush.bf16.xpose.msra.mxu0 0
      %2194 = vmatpush.bf16.xpose.msra.mxu0 0
      %2195 = vmatpush.bf16.xpose.msra.mxu0 0
      %2196 = vmatpush.bf16.xpose.msra.mxu0 0
      %2197 = vmatpush.bf16.xpose.msra.mxu0 0
      %2198 = vmatpush.bf16.xpose.msra.mxu0 %v2189
      %2199 = vmatmul.bf16.gmra.mxu0 %v2186
      %v2200 = vpop.f32.mrf.mxu0
      %v2201 = vadd.f32 0.0, %v2200
      %v2202 = vpop.f32.mrf.mxu0
      %2203 = vdwg.mxu0
      %2204 = vrot.lane.b32.xlu0 %v1273, 120
      %v2205 = vpop.permute.xlu0 %2204
      %2206 = vrot.lane.b32.xlu0 %v1273, 88
      %v2207 = vpop.permute.xlu0 %2206
      %v2209 = vsel %vm1131, %v2205, 0
      %v2212 = vsel %vm1131, %v2207, 0
      %2214 = vmatpush.bf16.xpose.msra.mxu0 0
      %2215 = vmatpush.bf16.xpose.msra.mxu0 0
      %2216 = vmatpush.bf16.xpose.msra.mxu0 0
      %2217 = vmatpush.bf16.xpose.msra.mxu0 0
      %2218 = vmatpush.bf16.xpose.msra.mxu0 0
      %2219 = vmatpush.bf16.xpose.msra.mxu0 0
      %2220 = vmatpush.bf16.xpose.msra.mxu0 0
      %2221 = vmatpush.bf16.xpose.msra.mxu0 %v2212
      %2222 = vmatmul.bf16.gmra.mxu0 %v2209
      %v2223 = vpop.f32.mrf.mxu0
      %v2224 = vadd.f32 0.0, %v2223
      %v2225 = vpop.f32.mrf.mxu0
      %2226 = vdwg.mxu0
      %2227 = vrot.lane.b32.xlu0 %v1297, 120
      %v2228 = vpop.permute.xlu0 %2227
      %2229 = vrot.lane.b32.xlu0 %v1297, 88
      %v2230 = vpop.permute.xlu0 %2229
      %v2232 = vsel %vm1131, %v2228, 0
      %v2235 = vsel %vm1131, %v2230, 0
      %2237 = vmatpush.bf16.xpose.msra.mxu0 0
      %2238 = vmatpush.bf16.xpose.msra.mxu0 0
      %2239 = vmatpush.bf16.xpose.msra.mxu0 0
      %2240 = vmatpush.bf16.xpose.msra.mxu0 0
      %2241 = vmatpush.bf16.xpose.msra.mxu0 0
      %2242 = vmatpush.bf16.xpose.msra.mxu0 0
      %2243 = vmatpush.bf16.xpose.msra.mxu0 0
      %2244 = vmatpush.bf16.xpose.msra.mxu0 %v2235
      %2245 = vmatmul.bf16.gmra.mxu0 %v2232
      %v2246 = vpop.f32.mrf.mxu0
      %v2247 = vadd.f32 0.0, %v2246
      %v2248 = vpop.f32.mrf.mxu0
      %2249 = vdwg.mxu0
      %2250 = vrot.lane.b32.xlu0 %v1321, 120
      %v2251 = vpop.permute.xlu0 %2250
      %2252 = vrot.lane.b32.xlu0 %v1321, 88
      %v2253 = vpop.permute.xlu0 %2252
      %v2255 = vsel %vm1131, %v2251, 0
      %v2258 = vsel %vm1131, %v2253, 0
      %2260 = vmatpush.bf16.xpose.msra.mxu0 0
      %2261 = vmatpush.bf16.xpose.msra.mxu0 0
      %2262 = vmatpush.bf16.xpose.msra.mxu0 0
      %2263 = vmatpush.bf16.xpose.msra.mxu0 0
      %2264 = vmatpush.bf16.xpose.msra.mxu0 0
      %2265 = vmatpush.bf16.xpose.msra.mxu0 0
      %2266 = vmatpush.bf16.xpose.msra.mxu0 0
      %2267 = vmatpush.bf16.xpose.msra.mxu0 %v2258
      %2268 = vmatmul.bf16.gmra.mxu0 %v2255
      %v2269 = vpop.f32.mrf.mxu0
      %v2270 = vadd.f32 0.0, %v2269
      %v2271 = vpop.f32.mrf.mxu0
      %2272 = vdwg.mxu0
      %2273 = vrot.lane.b32.xlu0 %v1345, 120
      %v2274 = vpop.permute.xlu0 %2273
      %2275 = vrot.lane.b32.xlu0 %v1345, 88
      %v2276 = vpop.permute.xlu0 %2275
      %v2278 = vsel %vm1131, %v2274, 0
      %v2281 = vsel %vm1131, %v2276, 0
      %2283 = vmatpush.bf16.xpose.msra.mxu0 0
      %2284 = vmatpush.bf16.xpose.msra.mxu0 0
      %2285 = vmatpush.bf16.xpose.msra.mxu0 0
      %2286 = vmatpush.bf16.xpose.msra.mxu0 0
      %2287 = vmatpush.bf16.xpose.msra.mxu0 0
      %2288 = vmatpush.bf16.xpose.msra.mxu0 0
      %2289 = vmatpush.bf16.xpose.msra.mxu0 0
      %2290 = vmatpush.bf16.xpose.msra.mxu0 %v2281
      %2291 = vmatmul.bf16.gmra.mxu0 %v2278
      %v2292 = vpop.f32.mrf.mxu0
      %v2293 = vadd.f32 0.0, %v2292
      %v2294 = vpop.f32.mrf.mxu0
      %2295 = vdwg.mxu0
      %2296 = vrot.lane.b32.xlu0 %v1369, 120
      %v2297 = vpop.permute.xlu0 %2296
      %2298 = vrot.lane.b32.xlu0 %v1369, 88
      %v2299 = vpop.permute.xlu0 %2298
      %v2301 = vsel %vm1131, %v2297, 0
      %v2304 = vsel %vm1131, %v2299, 0
      %2306 = vmatpush.bf16.xpose.msra.mxu0 0
      %2307 = vmatpush.bf16.xpose.msra.mxu0 0
      %2308 = vmatpush.bf16.xpose.msra.mxu0 0
      %2309 = vmatpush.bf16.xpose.msra.mxu0 0
      %2310 = vmatpush.bf16.xpose.msra.mxu0 0
      %2311 = vmatpush.bf16.xpose.msra.mxu0 0
      %2312 = vmatpush.bf16.xpose.msra.mxu0 0
      %2313 = vmatpush.bf16.xpose.msra.mxu0 %v2304
      %2314 = vmatmul.bf16.gmra.mxu0 %v2301
      %v2315 = vpop.f32.mrf.mxu0
      %v2316 = vadd.f32 0.0, %v2315
      %v2317 = vpop.f32.mrf.mxu0
      %2318 = vdwg.mxu0
      %2319 = vrot.lane.b32.xlu0 %v1393, 120
      %v2320 = vpop.permute.xlu0 %2319
      %2321 = vrot.lane.b32.xlu0 %v1393, 88
      %v2322 = vpop.permute.xlu0 %2321
      %v2324 = vsel %vm1131, %v2320, 0
      %v2327 = vsel %vm1131, %v2322, 0
      %2329 = vmatpush.bf16.xpose.msra.mxu0 0
      %2330 = vmatpush.bf16.xpose.msra.mxu0 0
      %2331 = vmatpush.bf16.xpose.msra.mxu0 0
      %2332 = vmatpush.bf16.xpose.msra.mxu0 0
      %2333 = vmatpush.bf16.xpose.msra.mxu0 0
      %2334 = vmatpush.bf16.xpose.msra.mxu0 0
      %2335 = vmatpush.bf16.xpose.msra.mxu0 0
      %2336 = vmatpush.bf16.xpose.msra.mxu0 %v2327
      %2337 = vmatmul.bf16.gmra.mxu0 %v2324
      %v2338 = vpop.f32.mrf.mxu0
      %v2339 = vadd.f32 0.0, %v2338
      %v2340 = vpop.f32.mrf.mxu0
      %2341 = vdwg.mxu0
      %2342 = vrot.lane.b32.xlu0 %v1417, 120
      %v2343 = vpop.permute.xlu0 %2342
      %2344 = vrot.lane.b32.xlu0 %v1417, 88
      %v2345 = vpop.permute.xlu0 %2344
      %v2347 = vsel %vm1131, %v2343, 0
      %v2350 = vsel %vm1131, %v2345, 0
      %2352 = vmatpush.bf16.xpose.msra.mxu0 0
      %2353 = vmatpush.bf16.xpose.msra.mxu0 0
      %2354 = vmatpush.bf16.xpose.msra.mxu0 0
      %2355 = vmatpush.bf16.xpose.msra.mxu0 0
      %2356 = vmatpush.bf16.xpose.msra.mxu0 0
      %2357 = vmatpush.bf16.xpose.msra.mxu0 0
      %2358 = vmatpush.bf16.xpose.msra.mxu0 0
      %2359 = vmatpush.bf16.xpose.msra.mxu0 %v2350
      %2360 = vmatmul.bf16.gmra.mxu0 %v2347
      %v2361 = vpop.f32.mrf.mxu0
      %v2362 = vadd.f32 0.0, %v2361
      %v2363 = vpop.f32.mrf.mxu0
      %2364 = vdwg.mxu0
      %2365 = vrot.lane.b32.xlu0 %v1441, 120
      %v2366 = vpop.permute.xlu0 %2365
      %2367 = vrot.lane.b32.xlu0 %v1441, 88
      %v2368 = vpop.permute.xlu0 %2367
      %v2370 = vsel %vm1131, %v2366, 0
      %v2373 = vsel %vm1131, %v2368, 0
      %2375 = vmatpush.bf16.xpose.msra.mxu0 0
      %2376 = vmatpush.bf16.xpose.msra.mxu0 0
      %2377 = vmatpush.bf16.xpose.msra.mxu0 0
      %2378 = vmatpush.bf16.xpose.msra.mxu0 0
      %2379 = vmatpush.bf16.xpose.msra.mxu0 0
      %2380 = vmatpush.bf16.xpose.msra.mxu0 0
      %2381 = vmatpush.bf16.xpose.msra.mxu0 0
      %2382 = vmatpush.bf16.xpose.msra.mxu0 %v2373
      %2383 = vmatmul.bf16.gmra.mxu0 %v2370
      %v2384 = vpop.f32.mrf.mxu0
      %v2385 = vadd.f32 0.0, %v2384
      %v2386 = vpop.f32.mrf.mxu0
      %2387 = vdwg.mxu0
      %2388 = vrot.lane.b32.xlu0 %v1465, 120
      %v2389 = vpop.permute.xlu0 %2388
      %2390 = vrot.lane.b32.xlu0 %v1465, 88
      %v2391 = vpop.permute.xlu0 %2390
      %v2393 = vsel %vm1131, %v2389, 0
      %v2396 = vsel %vm1131, %v2391, 0
      %2398 = vmatpush.bf16.xpose.msra.mxu0 0
      %2399 = vmatpush.bf16.xpose.msra.mxu0 0
      %2400 = vmatpush.bf16.xpose.msra.mxu0 0
      %2401 = vmatpush.bf16.xpose.msra.mxu0 0
      %2402 = vmatpush.bf16.xpose.msra.mxu0 0
      %2403 = vmatpush.bf16.xpose.msra.mxu0 0
      %2404 = vmatpush.bf16.xpose.msra.mxu0 0
      %2405 = vmatpush.bf16.xpose.msra.mxu0 %v2396
      %2406 = vmatmul.bf16.gmra.mxu0 %v2393
      %v2407 = vpop.f32.mrf.mxu0
      %v2408 = vadd.f32 0.0, %v2407
      %v2409 = vpop.f32.mrf.mxu0
      %2410 = vdwg.mxu0
      %2411 = vrot.lane.b32.xlu0 %v1489, 120
      %v2412 = vpop.permute.xlu0 %2411
      %2413 = vrot.lane.b32.xlu0 %v1489, 88
      %v2414 = vpop.permute.xlu0 %2413
      %v2416 = vsel %vm1131, %v2412, 0
      %v2419 = vsel %vm1131, %v2414, 0
      %2421 = vmatpush.bf16.xpose.msra.mxu0 0
      %2422 = vmatpush.bf16.xpose.msra.mxu0 0
      %2423 = vmatpush.bf16.xpose.msra.mxu0 0
      %2424 = vmatpush.bf16.xpose.msra.mxu0 0
      %2425 = vmatpush.bf16.xpose.msra.mxu0 0
      %2426 = vmatpush.bf16.xpose.msra.mxu0 0
      %2427 = vmatpush.bf16.xpose.msra.mxu0 0
      %2428 = vmatpush.bf16.xpose.msra.mxu0 %v2419
      %2429 = vmatmul.bf16.gmra.mxu0 %v2416
      %v2430 = vpop.f32.mrf.mxu0
      %v2431 = vadd.f32 0.0, %v2430
      %v2432 = vpop.f32.mrf.mxu0
      %2433 = vdwg.mxu0
      %v2434 = vsel %vm1512, %v2086, -1e+30
      %v2435 = vsel %vm1512, %v2109, -1e+30
      %v2436 = vsel %vm1512, %v2132, -1e+30
      %v2437 = vsel %vm1512, %v2155, -1e+30
      %v2438 = vsel %vm1512, %v2178, -1e+30
      %v2439 = vsel %vm1512, %v2201, -1e+30
      %v2440 = vsel %vm1512, %v2224, -1e+30
      %v2441 = vsel %vm1512, %v2247, -1e+30
      %v2442 = vsel %vm1512, %v2270, -1e+30
      %v2443 = vsel %vm1512, %v2293, -1e+30
      %v2444 = vsel %vm1512, %v2316, -1e+30
      %v2445 = vsel %vm1512, %v2339, -1e+30
      %v2446 = vsel %vm1512, %v2362, -1e+30
      %v2447 = vsel %vm1512, %v2385, -1e+30
      %v2448 = vsel %vm1512, %v2408, -1e+30
      %v2449 = vsel %vm1512, %v2431, -1e+30
      %v2450 = vsel %vm1131, %v2434, -inf
      %2451 = vmax.xlane.f32.xlu0 %v2450
      %v2452 = vpop.xlane.xlu0 %2451
      %v2453 = vsel %vm1131, %v2435, -inf
      %2454 = vmax.xlane.f32.xlu0 %v2453
      %v2455 = vpop.xlane.xlu0 %2454
      %v2456 = vsel %vm1131, %v2436, -inf
      %2457 = vmax.xlane.f32.xlu0 %v2456
      %v2458 = vpop.xlane.xlu0 %2457
      %v2459 = vsel %vm1131, %v2437, -inf
      %2460 = vmax.xlane.f32.xlu0 %v2459
      %v2461 = vpop.xlane.xlu0 %2460
      %v2462 = vsel %vm1131, %v2438, -inf
      %2463 = vmax.xlane.f32.xlu0 %v2462
      %v2464 = vpop.xlane.xlu0 %2463
      %v2465 = vsel %vm1131, %v2439, -inf
      %2466 = vmax.xlane.f32.xlu0 %v2465
      %v2467 = vpop.xlane.xlu0 %2466
      %v2468 = vsel %vm1131, %v2440, -inf
      %2469 = vmax.xlane.f32.xlu0 %v2468
      %v2470 = vpop.xlane.xlu0 %2469
      %v2471 = vsel %vm1131, %v2441, -inf
      %2472 = vmax.xlane.f32.xlu0 %v2471
      %v2473 = vpop.xlane.xlu0 %2472
      %v2474 = vsel %vm1131, %v2442, -inf
      %2475 = vmax.xlane.f32.xlu0 %v2474
      %v2476 = vpop.xlane.xlu0 %2475
      %v2477 = vsel %vm1131, %v2443, -inf
      %2478 = vmax.xlane.f32.xlu0 %v2477
      %v2479 = vpop.xlane.xlu0 %2478
      %v2480 = vsel %vm1131, %v2444, -inf
      %2481 = vmax.xlane.f32.xlu0 %v2480
      %v2482 = vpop.xlane.xlu0 %2481
      %v2483 = vsel %vm1131, %v2445, -inf
      %2484 = vmax.xlane.f32.xlu0 %v2483
      %v2485 = vpop.xlane.xlu0 %2484
      %v2486 = vsel %vm1131, %v2446, -inf
      %2487 = vmax.xlane.f32.xlu0 %v2486
      %v2488 = vpop.xlane.xlu0 %2487
      %v2489 = vsel %vm1131, %v2447, -inf
      %2490 = vmax.xlane.f32.xlu0 %v2489
      %v2491 = vpop.xlane.xlu0 %2490
      %v2492 = vsel %vm1131, %v2448, -inf
      %2493 = vmax.xlane.f32.xlu0 %v2492
      %v2494 = vpop.xlane.xlu0 %2493
      %v2495 = vsel %vm1131, %v2449, -inf
      %2496 = vmax.xlane.f32.xlu0 %v2495
      %v2497 = vpop.xlane.xlu0 %2496
      %v2498 = vsub.f32 %v2434, %v2452
      %v2499 = vsub.f32 %v2435, %v2455
      %v2500 = vsub.f32 %v2436, %v2458
      %v2501 = vsub.f32 %v2437, %v2461
      %v2502 = vsub.f32 %v2438, %v2464
      %v2503 = vsub.f32 %v2439, %v2467
      %v2504 = vsub.f32 %v2440, %v2470
      %v2505 = vsub.f32 %v2441, %v2473
      %v2506 = vsub.f32 %v2442, %v2476
      %v2507 = vsub.f32 %v2443, %v2479
      %v2508 = vsub.f32 %v2444, %v2482
      %v2509 = vsub.f32 %v2445, %v2485
      %v2510 = vsub.f32 %v2446, %v2488
      %v2511 = vsub.f32 %v2447, %v2491
      %v2512 = vsub.f32 %v2448, %v2494
      %v2513 = vsub.f32 %v2449, %v2497
      %v2514 = vmul.f32 %v2498, 1.442695
      %v2515 = vpow.pop %v2514
      %v2516 = vmul.f32 %v2499, 1.442695
      %v2517 = vpow.pop %v2516
      %v2518 = vmul.f32 %v2500, 1.442695
      %v2519 = vpow.pop %v2518
      %v2520 = vmul.f32 %v2501, 1.442695
      %v2521 = vpow.pop %v2520
      %v2522 = vmul.f32 %v2502, 1.442695
      %v2523 = vpow.pop %v2522
      %v2524 = vmul.f32 %v2503, 1.442695
      %v2525 = vpow.pop %v2524
      %v2526 = vmul.f32 %v2504, 1.442695
      %v2527 = vpow.pop %v2526
      %v2528 = vmul.f32 %v2505, 1.442695
      %v2529 = vpow.pop %v2528
      %v2530 = vmul.f32 %v2506, 1.442695
      %v2531 = vpow.pop %v2530
      %v2532 = vmul.f32 %v2507, 1.442695
      %v2533 = vpow.pop %v2532
      %v2534 = vmul.f32 %v2508, 1.442695
      %v2535 = vpow.pop %v2534
      %v2536 = vmul.f32 %v2509, 1.442695
      %v2537 = vpow.pop %v2536
      %v2538 = vmul.f32 %v2510, 1.442695
      %v2539 = vpow.pop %v2538
      %v2540 = vmul.f32 %v2511, 1.442695
      %v2541 = vpow.pop %v2540
      %v2542 = vmul.f32 %v2512, 1.442695
      %v2543 = vpow.pop %v2542
      %v2544 = vmul.f32 %v2513, 1.442695
      %v2545 = vpow.pop %v2544
      %v2546 = vsel %vm1131, %v2515, 0.0
      %2547 = vadd.xlane.f32.xlu0 %v2546
      %v2548 = vpop.xlane.xlu0 %2547
      %v2549 = vsel %vm1131, %v2517, 0.0
      %2550 = vadd.xlane.f32.xlu0 %v2549
      %v2551 = vpop.xlane.xlu0 %2550
      %v2552 = vsel %vm1131, %v2519, 0.0
      %2553 = vadd.xlane.f32.xlu0 %v2552
      %v2554 = vpop.xlane.xlu0 %2553
      %v2555 = vsel %vm1131, %v2521, 0.0
      %2556 = vadd.xlane.f32.xlu0 %v2555
      %v2557 = vpop.xlane.xlu0 %2556
      %v2558 = vsel %vm1131, %v2523, 0.0
      %2559 = vadd.xlane.f32.xlu0 %v2558
      %v2560 = vpop.xlane.xlu0 %2559
      %v2561 = vsel %vm1131, %v2525, 0.0
      %2562 = vadd.xlane.f32.xlu0 %v2561
      %v2563 = vpop.xlane.xlu0 %2562
      %v2564 = vsel %vm1131, %v2527, 0.0
      %2565 = vadd.xlane.f32.xlu0 %v2564
      %v2566 = vpop.xlane.xlu0 %2565
      %v2567 = vsel %vm1131, %v2529, 0.0
      %2568 = vadd.xlane.f32.xlu0 %v2567
      %v2569 = vpop.xlane.xlu0 %2568
      %v2570 = vsel %vm1131, %v2531, 0.0
      %2571 = vadd.xlane.f32.xlu0 %v2570
      %v2572 = vpop.xlane.xlu0 %2571
      %v2573 = vsel %vm1131, %v2533, 0.0
      %2574 = vadd.xlane.f32.xlu0 %v2573
      %v2575 = vpop.xlane.xlu0 %2574
      %v2576 = vsel %vm1131, %v2535, 0.0
      %2577 = vadd.xlane.f32.xlu0 %v2576
      %v2578 = vpop.xlane.xlu0 %2577
      %v2579 = vsel %vm1131, %v2537, 0.0
      %2580 = vadd.xlane.f32.xlu0 %v2579
      %v2581 = vpop.xlane.xlu0 %2580
      %v2582 = vsel %vm1131, %v2539, 0.0
      %2583 = vadd.xlane.f32.xlu0 %v2582
      %v2584 = vpop.xlane.xlu0 %2583
      %v2585 = vsel %vm1131, %v2541, 0.0
      %2586 = vadd.xlane.f32.xlu0 %v2585
      %v2587 = vpop.xlane.xlu0 %2586
      %v2588 = vsel %vm1131, %v2543, 0.0
      %2589 = vadd.xlane.f32.xlu0 %v2588
      %v2590 = vpop.xlane.xlu0 %2589
      %v2591 = vsel %vm1131, %v2545, 0.0
      %2592 = vadd.xlane.f32.xlu0 %v2591
      %v2593 = vpop.xlane.xlu0 %2592
      %v2594 = vrcp.pop %v2548
      %v2595 = vrcp.pop %v2551
      %v2596 = vrcp.pop %v2554
      %v2597 = vrcp.pop %v2557
      %v2598 = vrcp.pop %v2560
      %v2599 = vrcp.pop %v2563
      %v2600 = vrcp.pop %v2566
      %v2601 = vrcp.pop %v2569
      %v2602 = vrcp.pop %v2572
      %v2603 = vrcp.pop %v2575
      %v2604 = vrcp.pop %v2578
      %v2605 = vrcp.pop %v2581
      %v2606 = vrcp.pop %v2584
      %v2607 = vrcp.pop %v2587
      %v2608 = vrcp.pop %v2590
      %v2609 = vrcp.pop %v2593
      %v2610 = vmul.f32 %v2515, %v2594
      %v2611 = vmul.f32 %v2517, %v2595
      %v2612 = vmul.f32 %v2519, %v2596
      %v2613 = vmul.f32 %v2521, %v2597
      %v2614 = vmul.f32 %v2523, %v2598
      %v2615 = vmul.f32 %v2525, %v2599
      %v2616 = vmul.f32 %v2527, %v2600
      %v2617 = vmul.f32 %v2529, %v2601
      %v2618 = vmul.f32 %v2531, %v2602
      %v2619 = vmul.f32 %v2533, %v2603
      %v2620 = vmul.f32 %v2535, %v2604
      %v2621 = vmul.f32 %v2537, %v2605
      %v2622 = vmul.f32 %v2539, %v2606
      %v2623 = vmul.f32 %v2541, %v2607
      %v2624 = vmul.f32 %v2543, %v2608
      %v2625 = vmul.f32 %v2545, %v2609
      %v2626 = vpack.c.bf16 %v2610, %v2610
      %v2627 = vpack.c.bf16 %v2611, %v2611
      %v2628 = vpack.c.bf16 %v2612, %v2612
      %v2629 = vpack.c.bf16 %v2613, %v2613
      %v2630 = vpack.c.bf16 %v2614, %v2614
      %v2631 = vpack.c.bf16 %v2615, %v2615
      %v2632 = vpack.c.bf16 %v2616, %v2616
      %v2633 = vpack.c.bf16 %v2617, %v2617
      %v2634 = vpack.c.bf16 %v2618, %v2618
      %v2635 = vpack.c.bf16 %v2619, %v2619
      %v2636 = vpack.c.bf16 %v2620, %v2620
      %v2637 = vpack.c.bf16 %v2621, %v2621
      %v2638 = vpack.c.bf16 %v2622, %v2622
      %v2639 = vpack.c.bf16 %v2623, %v2623
      %v2640 = vpack.c.bf16 %v2624, %v2624
      %v2641 = vpack.c.bf16 %v2625, %v2625
      %2642 = vrot.lane.b32.xlu0 %v1128, 56
      %v2643 = vpop.permute.xlu0 %2642
      %v2645 = vsel %vm1131, %v2626, 0
      %v2648 = vsel %vm1726, %v2643, 0
      %2650 = vmatpush.bf16.msra.mxu0 0
      %2651 = vmatpush.bf16.msra.mxu0 0
      %2652 = vmatpush.bf16.msra.mxu0 0
      %2653 = vmatpush.bf16.msra.mxu0 0
      %2654 = vmatpush.bf16.msra.mxu0 0
      %2655 = vmatpush.bf16.msra.mxu0 0
      %2656 = vmatpush.bf16.msra.mxu0 0
      %2657 = vmatpush.bf16.msra.mxu0 %v2648
      %2658 = vmatmul.bf16.gmra.mxu0 %v2645
      %v2659 = vpop.f32.mrf.mxu0
      %v2660 = vadd.f32 0.0, %v2659
      %v2661 = vpop.f32.mrf.mxu0
      %2662 = vdwg.mxu0
      %2663 = vrot.lane.b32.xlu0 %v1153, 56
      %v2664 = vpop.permute.xlu0 %2663
      %v2666 = vsel %vm1131, %v2627, 0
      %v2669 = vsel %vm1726, %v2664, 0
      %2671 = vmatpush.bf16.msra.mxu0 0
      %2672 = vmatpush.bf16.msra.mxu0 0
      %2673 = vmatpush.bf16.msra.mxu0 0
      %2674 = vmatpush.bf16.msra.mxu0 0
      %2675 = vmatpush.bf16.msra.mxu0 0
      %2676 = vmatpush.bf16.msra.mxu0 0
      %2677 = vmatpush.bf16.msra.mxu0 0
      %2678 = vmatpush.bf16.msra.mxu0 %v2669
      %2679 = vmatmul.bf16.gmra.mxu0 %v2666
      %v2680 = vpop.f32.mrf.mxu0
      %v2681 = vadd.f32 0.0, %v2680
      %v2682 = vpop.f32.mrf.mxu0
      %2683 = vdwg.mxu0
      %2684 = vrot.lane.b32.xlu0 %v1177, 56
      %v2685 = vpop.permute.xlu0 %2684
      %v2687 = vsel %vm1131, %v2628, 0
      %v2690 = vsel %vm1726, %v2685, 0
      %2692 = vmatpush.bf16.msra.mxu0 0
      %2693 = vmatpush.bf16.msra.mxu0 0
      %2694 = vmatpush.bf16.msra.mxu0 0
      %2695 = vmatpush.bf16.msra.mxu0 0
      %2696 = vmatpush.bf16.msra.mxu0 0
      %2697 = vmatpush.bf16.msra.mxu0 0
      %2698 = vmatpush.bf16.msra.mxu0 0
      %2699 = vmatpush.bf16.msra.mxu0 %v2690
      %2700 = vmatmul.bf16.gmra.mxu0 %v2687
      %v2701 = vpop.f32.mrf.mxu0
      %v2702 = vadd.f32 0.0, %v2701
      %v2703 = vpop.f32.mrf.mxu0
      %2704 = vdwg.mxu0
      %2705 = vrot.lane.b32.xlu0 %v1201, 56
      %v2706 = vpop.permute.xlu0 %2705
      %v2708 = vsel %vm1131, %v2629, 0
      %v2711 = vsel %vm1726, %v2706, 0
      %2713 = vmatpush.bf16.msra.mxu0 0
      %2714 = vmatpush.bf16.msra.mxu0 0
      %2715 = vmatpush.bf16.msra.mxu0 0
      %2716 = vmatpush.bf16.msra.mxu0 0
      %2717 = vmatpush.bf16.msra.mxu0 0
      %2718 = vmatpush.bf16.msra.mxu0 0
      %2719 = vmatpush.bf16.msra.mxu0 0
      %2720 = vmatpush.bf16.msra.mxu0 %v2711
      %2721 = vmatmul.bf16.gmra.mxu0 %v2708
      %v2722 = vpop.f32.mrf.mxu0
      %v2723 = vadd.f32 0.0, %v2722
      %v2724 = vpop.f32.mrf.mxu0
      %2725 = vdwg.mxu0
      %2726 = vrot.lane.b32.xlu0 %v1225, 56
      %v2727 = vpop.permute.xlu0 %2726
      %v2729 = vsel %vm1131, %v2630, 0
      %v2732 = vsel %vm1726, %v2727, 0
      %2734 = vmatpush.bf16.msra.mxu0 0
      %2735 = vmatpush.bf16.msra.mxu0 0
      %2736 = vmatpush.bf16.msra.mxu0 0
      %2737 = vmatpush.bf16.msra.mxu0 0
      %2738 = vmatpush.bf16.msra.mxu0 0
      %2739 = vmatpush.bf16.msra.mxu0 0
      %2740 = vmatpush.bf16.msra.mxu0 0
      %2741 = vmatpush.bf16.msra.mxu0 %v2732
      %2742 = vmatmul.bf16.gmra.mxu0 %v2729
      %v2743 = vpop.f32.mrf.mxu0
      %v2744 = vadd.f32 0.0, %v2743
      %v2745 = vpop.f32.mrf.mxu0
      %2746 = vdwg.mxu0
      %2747 = vrot.lane.b32.xlu0 %v1249, 56
      %v2748 = vpop.permute.xlu0 %2747
      %v2750 = vsel %vm1131, %v2631, 0
      %v2753 = vsel %vm1726, %v2748, 0
      %2755 = vmatpush.bf16.msra.mxu0 0
      %2756 = vmatpush.bf16.msra.mxu0 0
      %2757 = vmatpush.bf16.msra.mxu0 0
      %2758 = vmatpush.bf16.msra.mxu0 0
      %2759 = vmatpush.bf16.msra.mxu0 0
      %2760 = vmatpush.bf16.msra.mxu0 0
      %2761 = vmatpush.bf16.msra.mxu0 0
      %2762 = vmatpush.bf16.msra.mxu0 %v2753
      %2763 = vmatmul.bf16.gmra.mxu0 %v2750
      %v2764 = vpop.f32.mrf.mxu0
      %v2765 = vadd.f32 0.0, %v2764
      %v2766 = vpop.f32.mrf.mxu0
      %2767 = vdwg.mxu0
      %2768 = vrot.lane.b32.xlu0 %v1273, 56
      %v2769 = vpop.permute.xlu0 %2768
      %v2771 = vsel %vm1131, %v2632, 0
      %v2774 = vsel %vm1726, %v2769, 0
      %2776 = vmatpush.bf16.msra.mxu0 0
      %2777 = vmatpush.bf16.msra.mxu0 0
      %2778 = vmatpush.bf16.msra.mxu0 0
      %2779 = vmatpush.bf16.msra.mxu0 0
      %2780 = vmatpush.bf16.msra.mxu0 0
      %2781 = vmatpush.bf16.msra.mxu0 0
      %2782 = vmatpush.bf16.msra.mxu0 0
      %2783 = vmatpush.bf16.msra.mxu0 %v2774
      %2784 = vmatmul.bf16.gmra.mxu0 %v2771
      %v2785 = vpop.f32.mrf.mxu0
      %v2786 = vadd.f32 0.0, %v2785
      %v2787 = vpop.f32.mrf.mxu0
      %2788 = vdwg.mxu0
      %2789 = vrot.lane.b32.xlu0 %v1297, 56
      %v2790 = vpop.permute.xlu0 %2789
      %v2792 = vsel %vm1131, %v2633, 0
      %v2795 = vsel %vm1726, %v2790, 0
      %2797 = vmatpush.bf16.msra.mxu0 0
      %2798 = vmatpush.bf16.msra.mxu0 0
      %2799 = vmatpush.bf16.msra.mxu0 0
      %2800 = vmatpush.bf16.msra.mxu0 0
      %2801 = vmatpush.bf16.msra.mxu0 0
      %2802 = vmatpush.bf16.msra.mxu0 0
      %2803 = vmatpush.bf16.msra.mxu0 0
      %2804 = vmatpush.bf16.msra.mxu0 %v2795
      %2805 = vmatmul.bf16.gmra.mxu0 %v2792
      %v2806 = vpop.f32.mrf.mxu0
      %v2807 = vadd.f32 0.0, %v2806
      %v2808 = vpop.f32.mrf.mxu0
      %2809 = vdwg.mxu0
      %2810 = vrot.lane.b32.xlu0 %v1321, 56
      %v2811 = vpop.permute.xlu0 %2810
      %v2813 = vsel %vm1131, %v2634, 0
      %v2816 = vsel %vm1726, %v2811, 0
      %2818 = vmatpush.bf16.msra.mxu0 0
      %2819 = vmatpush.bf16.msra.mxu0 0
      %2820 = vmatpush.bf16.msra.mxu0 0
      %2821 = vmatpush.bf16.msra.mxu0 0
      %2822 = vmatpush.bf16.msra.mxu0 0
      %2823 = vmatpush.bf16.msra.mxu0 0
      %2824 = vmatpush.bf16.msra.mxu0 0
      %2825 = vmatpush.bf16.msra.mxu0 %v2816
      %2826 = vmatmul.bf16.gmra.mxu0 %v2813
      %v2827 = vpop.f32.mrf.mxu0
      %v2828 = vadd.f32 0.0, %v2827
      %v2829 = vpop.f32.mrf.mxu0
      %2830 = vdwg.mxu0
      %2831 = vrot.lane.b32.xlu0 %v1345, 56
      %v2832 = vpop.permute.xlu0 %2831
      %v2834 = vsel %vm1131, %v2635, 0
      %v2837 = vsel %vm1726, %v2832, 0
      %2839 = vmatpush.bf16.msra.mxu0 0
      %2840 = vmatpush.bf16.msra.mxu0 0
      %2841 = vmatpush.bf16.msra.mxu0 0
      %2842 = vmatpush.bf16.msra.mxu0 0
      %2843 = vmatpush.bf16.msra.mxu0 0
      %2844 = vmatpush.bf16.msra.mxu0 0
      %2845 = vmatpush.bf16.msra.mxu0 0
      %2846 = vmatpush.bf16.msra.mxu0 %v2837
      %2847 = vmatmul.bf16.gmra.mxu0 %v2834
      %v2848 = vpop.f32.mrf.mxu0
      %v2849 = vadd.f32 0.0, %v2848
      %v2850 = vpop.f32.mrf.mxu0
      %2851 = vdwg.mxu0
      %2852 = vrot.lane.b32.xlu0 %v1369, 56
      %v2853 = vpop.permute.xlu0 %2852
      %v2855 = vsel %vm1131, %v2636, 0
      %v2858 = vsel %vm1726, %v2853, 0
      %2860 = vmatpush.bf16.msra.mxu0 0
      %2861 = vmatpush.bf16.msra.mxu0 0
      %2862 = vmatpush.bf16.msra.mxu0 0
      %2863 = vmatpush.bf16.msra.mxu0 0
      %2864 = vmatpush.bf16.msra.mxu0 0
      %2865 = vmatpush.bf16.msra.mxu0 0
      %2866 = vmatpush.bf16.msra.mxu0 0
      %2867 = vmatpush.bf16.msra.mxu0 %v2858
      %2868 = vmatmul.bf16.gmra.mxu0 %v2855
      %v2869 = vpop.f32.mrf.mxu0
      %v2870 = vadd.f32 0.0, %v2869
      %v2871 = vpop.f32.mrf.mxu0
      %2872 = vdwg.mxu0
      %2873 = vrot.lane.b32.xlu0 %v1393, 56
      %v2874 = vpop.permute.xlu0 %2873
      %v2876 = vsel %vm1131, %v2637, 0
      %v2879 = vsel %vm1726, %v2874, 0
      %2881 = vmatpush.bf16.msra.mxu0 0
      %2882 = vmatpush.bf16.msra.mxu0 0
      %2883 = vmatpush.bf16.msra.mxu0 0
      %2884 = vmatpush.bf16.msra.mxu0 0
      %2885 = vmatpush.bf16.msra.mxu0 0
      %2886 = vmatpush.bf16.msra.mxu0 0
      %2887 = vmatpush.bf16.msra.mxu0 0
      %2888 = vmatpush.bf16.msra.mxu0 %v2879
      %2889 = vmatmul.bf16.gmra.mxu0 %v2876
      %v2890 = vpop.f32.mrf.mxu0
      %v2891 = vadd.f32 0.0, %v2890
      %v2892 = vpop.f32.mrf.mxu0
      %2893 = vdwg.mxu0
      %2894 = vrot.lane.b32.xlu0 %v1417, 56
      %v2895 = vpop.permute.xlu0 %2894
      %v2897 = vsel %vm1131, %v2638, 0
      %v2900 = vsel %vm1726, %v2895, 0
      %2902 = vmatpush.bf16.msra.mxu0 0
      %2903 = vmatpush.bf16.msra.mxu0 0
      %2904 = vmatpush.bf16.msra.mxu0 0
      %2905 = vmatpush.bf16.msra.mxu0 0
      %2906 = vmatpush.bf16.msra.mxu0 0
      %2907 = vmatpush.bf16.msra.mxu0 0
      %2908 = vmatpush.bf16.msra.mxu0 0
      %2909 = vmatpush.bf16.msra.mxu0 %v2900
      %2910 = vmatmul.bf16.gmra.mxu0 %v2897
      %v2911 = vpop.f32.mrf.mxu0
      %v2912 = vadd.f32 0.0, %v2911
      %v2913 = vpop.f32.mrf.mxu0
      %2914 = vdwg.mxu0
      %2915 = vrot.lane.b32.xlu0 %v1441, 56
      %v2916 = vpop.permute.xlu0 %2915
      %v2918 = vsel %vm1131, %v2639, 0
      %v2921 = vsel %vm1726, %v2916, 0
      %2923 = vmatpush.bf16.msra.mxu0 0
      %2924 = vmatpush.bf16.msra.mxu0 0
      %2925 = vmatpush.bf16.msra.mxu0 0
      %2926 = vmatpush.bf16.msra.mxu0 0
      %2927 = vmatpush.bf16.msra.mxu0 0
      %2928 = vmatpush.bf16.msra.mxu0 0
      %2929 = vmatpush.bf16.msra.mxu0 0
      %2930 = vmatpush.bf16.msra.mxu0 %v2921
      %2931 = vmatmul.bf16.gmra.mxu0 %v2918
      %v2932 = vpop.f32.mrf.mxu0
      %v2933 = vadd.f32 0.0, %v2932
      %v2934 = vpop.f32.mrf.mxu0
      %2935 = vdwg.mxu0
      %2936 = vrot.lane.b32.xlu0 %v1465, 56
      %v2937 = vpop.permute.xlu0 %2936
      %v2939 = vsel %vm1131, %v2640, 0
      %v2942 = vsel %vm1726, %v2937, 0
      %2944 = vmatpush.bf16.msra.mxu0 0
      %2945 = vmatpush.bf16.msra.mxu0 0
      %2946 = vmatpush.bf16.msra.mxu0 0
      %2947 = vmatpush.bf16.msra.mxu0 0
      %2948 = vmatpush.bf16.msra.mxu0 0
      %2949 = vmatpush.bf16.msra.mxu0 0
      %2950 = vmatpush.bf16.msra.mxu0 0
      %2951 = vmatpush.bf16.msra.mxu0 %v2942
      %2952 = vmatmul.bf16.gmra.mxu0 %v2939
      %v2953 = vpop.f32.mrf.mxu0
      %v2954 = vadd.f32 0.0, %v2953
      %v2955 = vpop.f32.mrf.mxu0
      %2956 = vdwg.mxu0
      %2957 = vrot.lane.b32.xlu0 %v1489, 56
      %v2958 = vpop.permute.xlu0 %2957
      %v2960 = vsel %vm1131, %v2641, 0
      %v2963 = vsel %vm1726, %v2958, 0
      %2965 = vmatpush.bf16.msra.mxu0 0
      %2966 = vmatpush.bf16.msra.mxu0 0
      %2967 = vmatpush.bf16.msra.mxu0 0
      %2968 = vmatpush.bf16.msra.mxu0 0
      %2969 = vmatpush.bf16.msra.mxu0 0
      %2970 = vmatpush.bf16.msra.mxu0 0
      %2971 = vmatpush.bf16.msra.mxu0 0
      %2972 = vmatpush.bf16.msra.mxu0 %v2963
      %2973 = vmatmul.bf16.gmra.mxu0 %v2960
      %v2974 = vpop.f32.mrf.mxu0
      %v2975 = vadd.f32 0.0, %v2974
      %v2976 = vpop.f32.mrf.mxu0
      %2977 = vdwg.mxu0
      %v2978 = vpack.c.bf16 %v2681, %v2660
      %v2979 = vpack.c.bf16 %v2723, %v2702
      %v2980 = vpack.c.bf16 %v2765, %v2744
      %v2981 = vpack.c.bf16 %v2807, %v2786
      %v2982 = vpack.c.bf16 %v2849, %v2828
      %v2983 = vpack.c.bf16 %v2891, %v2870
      %v2984 = vpack.c.bf16 %v2933, %v2912
      %v2985 = vpack.c.bf16 %v2975, %v2954
      %v2987 = vsel %vm1131, %v2978, 0
      %v2990 = vsel %vm1131, %v2979, 0
      %v2993 = vsel %vm1131, %v2980, 0
      %v2996 = vsel %vm1131, %v2981, 0
      %v2999 = vsel %vm1131, %v2982, 0
      %v3002 = vsel %vm1131, %v2983, 0
      %v3005 = vsel %vm1131, %v2984, 0
      %v3008 = vsel %vm1131, %v2985, 0
      %v3011 = vsel %vm1726, %v1107, 0
      %3013 = vmatpush.bf16.msra.mxu0 0
      %3014 = vmatpush.bf16.msra.mxu0 0
      %3015 = vmatpush.bf16.msra.mxu0 0
      %3016 = vmatpush.bf16.msra.mxu0 0
      %3017 = vmatpush.bf16.msra.mxu0 0
      %3018 = vmatpush.bf16.msra.mxu0 0
      %3019 = vmatpush.bf16.msra.mxu0 0
      %3020 = vmatpush.bf16.msra.mxu0 %v3011
      %3021 = vmatmul.bf16.gmra.mxu0 %v2987
      %v3022 = vpop.f32.mrf.mxu0
      %v3023 = vadd.f32 0.0, %v3022
      %v3024 = vpop.f32.mrf.mxu0
      %v3025 = vadd.f32 0.0, %v3024
      %3026 = vmatmul.bf16.gmra.mxu0 %v2990
      %v3027 = vpop.f32.mrf.mxu0
      %v3028 = vadd.f32 0.0, %v3027
      %v3029 = vpop.f32.mrf.mxu0
      %v3030 = vadd.f32 0.0, %v3029
      %3031 = vmatmul.bf16.gmra.mxu0 %v2993
      %v3032 = vpop.f32.mrf.mxu0
      %v3033 = vadd.f32 0.0, %v3032
      %v3034 = vpop.f32.mrf.mxu0
      %v3035 = vadd.f32 0.0, %v3034
      %3036 = vmatmul.bf16.gmra.mxu0 %v2996
      %v3037 = vpop.f32.mrf.mxu0
      %v3038 = vadd.f32 0.0, %v3037
      %v3039 = vpop.f32.mrf.mxu0
      %v3040 = vadd.f32 0.0, %v3039
      %3041 = vmatmul.bf16.gmra.mxu0 %v2999
      %v3042 = vpop.f32.mrf.mxu0
      %v3043 = vadd.f32 0.0, %v3042
      %v3044 = vpop.f32.mrf.mxu0
      %v3045 = vadd.f32 0.0, %v3044
      %3046 = vmatmul.bf16.gmra.mxu0 %v3002
      %v3047 = vpop.f32.mrf.mxu0
      %v3048 = vadd.f32 0.0, %v3047
      %v3049 = vpop.f32.mrf.mxu0
      %v3050 = vadd.f32 0.0, %v3049
      %3051 = vmatmul.bf16.gmra.mxu0 %v3005
      %v3052 = vpop.f32.mrf.mxu0
      %v3053 = vadd.f32 0.0, %v3052
      %v3054 = vpop.f32.mrf.mxu0
      %v3055 = vadd.f32 0.0, %v3054
      %3056 = vmatmul.bf16.gmra.mxu0 %v3008
      %v3057 = vpop.f32.mrf.mxu0
      %v3058 = vadd.f32 0.0, %v3057
      %v3059 = vpop.f32.mrf.mxu0
      %v3060 = vadd.f32 0.0, %v3059
      %3061 = vdwg.mxu0
      %v3063 = vsel %vm1131, %v2058, 0
      %v3066 = vsel %vm1131, %v2059, 0
      %v3069 = vsel %vm1131, %v2060, 0
      %v3072 = vsel %vm1131, %v2061, 0
      %v3075 = vsel %vm1131, %v2062, 0
      %v3078 = vsel %vm1131, %v2063, 0
      %v3081 = vsel %vm1131, %v2064, 0
      %v3084 = vsel %vm1131, %v2065, 0
      %v3087 = vsel %vm1726, %v1106, 0
      %3089 = vmatpush.bf16.msra.mxu0 0
      %3090 = vmatpush.bf16.msra.mxu0 0
      %3091 = vmatpush.bf16.msra.mxu0 0
      %3092 = vmatpush.bf16.msra.mxu0 0
      %3093 = vmatpush.bf16.msra.mxu0 0
      %3094 = vmatpush.bf16.msra.mxu0 0
      %3095 = vmatpush.bf16.msra.mxu0 0
      %3096 = vmatpush.bf16.msra.mxu0 %v3087
      %3097 = vmatmul.bf16.gmra.mxu0 %v3063
      %v3098 = vpop.f32.mrf.mxu0
      %v3099 = vadd.f32 %v3023, %v3098
      %v3100 = vpop.f32.mrf.mxu0
      %v3101 = vadd.f32 %v3025, %v3100
      %3102 = vmatmul.bf16.gmra.mxu0 %v3066
      %v3103 = vpop.f32.mrf.mxu0
      %v3104 = vadd.f32 %v3028, %v3103
      %v3105 = vpop.f32.mrf.mxu0
      %v3106 = vadd.f32 %v3030, %v3105
      %3107 = vmatmul.bf16.gmra.mxu0 %v3069
      %v3108 = vpop.f32.mrf.mxu0
      %v3109 = vadd.f32 %v3033, %v3108
      %v3110 = vpop.f32.mrf.mxu0
      %v3111 = vadd.f32 %v3035, %v3110
      %3112 = vmatmul.bf16.gmra.mxu0 %v3072
      %v3113 = vpop.f32.mrf.mxu0
      %v3114 = vadd.f32 %v3038, %v3113
      %v3115 = vpop.f32.mrf.mxu0
      %v3116 = vadd.f32 %v3040, %v3115
      %3117 = vmatmul.bf16.gmra.mxu0 %v3075
      %v3118 = vpop.f32.mrf.mxu0
      %v3119 = vadd.f32 %v3043, %v3118
      %v3120 = vpop.f32.mrf.mxu0
      %v3121 = vadd.f32 %v3045, %v3120
      %3122 = vmatmul.bf16.gmra.mxu0 %v3078
      %v3123 = vpop.f32.mrf.mxu0
      %v3124 = vadd.f32 %v3048, %v3123
      %v3125 = vpop.f32.mrf.mxu0
      %v3126 = vadd.f32 %v3050, %v3125
      %3127 = vmatmul.bf16.gmra.mxu0 %v3081
      %v3128 = vpop.f32.mrf.mxu0
      %v3129 = vadd.f32 %v3053, %v3128
      %v3130 = vpop.f32.mrf.mxu0
      %v3131 = vadd.f32 %v3055, %v3130
      %3132 = vmatmul.bf16.gmra.mxu0 %v3084
      %v3133 = vpop.f32.mrf.mxu0
      %v3134 = vadd.f32 %v3058, %v3133
      %v3135 = vpop.f32.mrf.mxu0
      %v3136 = vadd.f32 %v3060, %v3135
      %3137 = vdwg.mxu0
      %3138 = vrot.lane.b32.xlu0 %v1128, 112
      %v3139 = vpop.permute.xlu0 %3138
      %3140 = vrot.lane.b32.xlu0 %v1128, 80
      %v3141 = vpop.permute.xlu0 %3140
      %v3143 = vsel %vm1131, %v3139, 0
      %v3146 = vsel %vm1131, %v3141, 0
      %3148 = vmatpush.bf16.xpose.msra.mxu0 0
      %3149 = vmatpush.bf16.xpose.msra.mxu0 0
      %3150 = vmatpush.bf16.xpose.msra.mxu0 0
      %3151 = vmatpush.bf16.xpose.msra.mxu0 0
      %3152 = vmatpush.bf16.xpose.msra.mxu0 0
      %3153 = vmatpush.bf16.xpose.msra.mxu0 0
      %3154 = vmatpush.bf16.xpose.msra.mxu0 0
      %3155 = vmatpush.bf16.xpose.msra.mxu0 %v3146
      %3156 = vmatmul.bf16.gmra.mxu0 %v3143
      %v3157 = vpop.f32.mrf.mxu0
      %v3158 = vadd.f32 0.0, %v3157
      %v3159 = vpop.f32.mrf.mxu0
      %3160 = vdwg.mxu0
      %3161 = vrot.lane.b32.xlu0 %v1153, 112
      %v3162 = vpop.permute.xlu0 %3161
      %3163 = vrot.lane.b32.xlu0 %v1153, 80
      %v3164 = vpop.permute.xlu0 %3163
      %v3166 = vsel %vm1131, %v3162, 0
      %v3169 = vsel %vm1131, %v3164, 0
      %3171 = vmatpush.bf16.xpose.msra.mxu0 0
      %3172 = vmatpush.bf16.xpose.msra.mxu0 0
      %3173 = vmatpush.bf16.xpose.msra.mxu0 0
      %3174 = vmatpush.bf16.xpose.msra.mxu0 0
      %3175 = vmatpush.bf16.xpose.msra.mxu0 0
      %3176 = vmatpush.bf16.xpose.msra.mxu0 0
      %3177 = vmatpush.bf16.xpose.msra.mxu0 0
      %3178 = vmatpush.bf16.xpose.msra.mxu0 %v3169
      %3179 = vmatmul.bf16.gmra.mxu0 %v3166
      %v3180 = vpop.f32.mrf.mxu0
      %v3181 = vadd.f32 0.0, %v3180
      %v3182 = vpop.f32.mrf.mxu0
      %3183 = vdwg.mxu0
      %3184 = vrot.lane.b32.xlu0 %v1177, 112
      %v3185 = vpop.permute.xlu0 %3184
      %3186 = vrot.lane.b32.xlu0 %v1177, 80
      %v3187 = vpop.permute.xlu0 %3186
      %v3189 = vsel %vm1131, %v3185, 0
      %v3192 = vsel %vm1131, %v3187, 0
      %3194 = vmatpush.bf16.xpose.msra.mxu0 0
      %3195 = vmatpush.bf16.xpose.msra.mxu0 0
      %3196 = vmatpush.bf16.xpose.msra.mxu0 0
      %3197 = vmatpush.bf16.xpose.msra.mxu0 0
      %3198 = vmatpush.bf16.xpose.msra.mxu0 0
      %3199 = vmatpush.bf16.xpose.msra.mxu0 0
      %3200 = vmatpush.bf16.xpose.msra.mxu0 0
      %3201 = vmatpush.bf16.xpose.msra.mxu0 %v3192
      %3202 = vmatmul.bf16.gmra.mxu0 %v3189
      %v3203 = vpop.f32.mrf.mxu0
      %v3204 = vadd.f32 0.0, %v3203
      %v3205 = vpop.f32.mrf.mxu0
      %3206 = vdwg.mxu0
      %3207 = vrot.lane.b32.xlu0 %v1201, 112
      %v3208 = vpop.permute.xlu0 %3207
      %3209 = vrot.lane.b32.xlu0 %v1201, 80
      %v3210 = vpop.permute.xlu0 %3209
      %v3212 = vsel %vm1131, %v3208, 0
      %v3215 = vsel %vm1131, %v3210, 0
      %3217 = vmatpush.bf16.xpose.msra.mxu0 0
      %3218 = vmatpush.bf16.xpose.msra.mxu0 0
      %3219 = vmatpush.bf16.xpose.msra.mxu0 0
      %3220 = vmatpush.bf16.xpose.msra.mxu0 0
      %3221 = vmatpush.bf16.xpose.msra.mxu0 0
      %3222 = vmatpush.bf16.xpose.msra.mxu0 0
      %3223 = vmatpush.bf16.xpose.msra.mxu0 0
      %3224 = vmatpush.bf16.xpose.msra.mxu0 %v3215
      %3225 = vmatmul.bf16.gmra.mxu0 %v3212
      %v3226 = vpop.f32.mrf.mxu0
      %v3227 = vadd.f32 0.0, %v3226
      %v3228 = vpop.f32.mrf.mxu0
      %3229 = vdwg.mxu0
      %3230 = vrot.lane.b32.xlu0 %v1225, 112
      %v3231 = vpop.permute.xlu0 %3230
      %3232 = vrot.lane.b32.xlu0 %v1225, 80
      %v3233 = vpop.permute.xlu0 %3232
      %v3235 = vsel %vm1131, %v3231, 0
      %v3238 = vsel %vm1131, %v3233, 0
      %3240 = vmatpush.bf16.xpose.msra.mxu0 0
      %3241 = vmatpush.bf16.xpose.msra.mxu0 0
      %3242 = vmatpush.bf16.xpose.msra.mxu0 0
      %3243 = vmatpush.bf16.xpose.msra.mxu0 0
      %3244 = vmatpush.bf16.xpose.msra.mxu0 0
      %3245 = vmatpush.bf16.xpose.msra.mxu0 0
      %3246 = vmatpush.bf16.xpose.msra.mxu0 0
      %3247 = vmatpush.bf16.xpose.msra.mxu0 %v3238
      %3248 = vmatmul.bf16.gmra.mxu0 %v3235
      %v3249 = vpop.f32.mrf.mxu0
      %v3250 = vadd.f32 0.0, %v3249
      %v3251 = vpop.f32.mrf.mxu0
      %3252 = vdwg.mxu0
      %3253 = vrot.lane.b32.xlu0 %v1249, 112
      %v3254 = vpop.permute.xlu0 %3253
      %3255 = vrot.lane.b32.xlu0 %v1249, 80
      %v3256 = vpop.permute.xlu0 %3255
      %v3258 = vsel %vm1131, %v3254, 0
      %v3261 = vsel %vm1131, %v3256, 0
      %3263 = vmatpush.bf16.xpose.msra.mxu0 0
      %3264 = vmatpush.bf16.xpose.msra.mxu0 0
      %3265 = vmatpush.bf16.xpose.msra.mxu0 0
      %3266 = vmatpush.bf16.xpose.msra.mxu0 0
      %3267 = vmatpush.bf16.xpose.msra.mxu0 0
      %3268 = vmatpush.bf16.xpose.msra.mxu0 0
      %3269 = vmatpush.bf16.xpose.msra.mxu0 0
      %3270 = vmatpush.bf16.xpose.msra.mxu0 %v3261
      %3271 = vmatmul.bf16.gmra.mxu0 %v3258
      %v3272 = vpop.f32.mrf.mxu0
      %v3273 = vadd.f32 0.0, %v3272
      %v3274 = vpop.f32.mrf.mxu0
      %3275 = vdwg.mxu0
      %3276 = vrot.lane.b32.xlu0 %v1273, 112
      %v3277 = vpop.permute.xlu0 %3276
      %3278 = vrot.lane.b32.xlu0 %v1273, 80
      %v3279 = vpop.permute.xlu0 %3278
      %v3281 = vsel %vm1131, %v3277, 0
      %v3284 = vsel %vm1131, %v3279, 0
      %3286 = vmatpush.bf16.xpose.msra.mxu0 0
      %3287 = vmatpush.bf16.xpose.msra.mxu0 0
      %3288 = vmatpush.bf16.xpose.msra.mxu0 0
      %3289 = vmatpush.bf16.xpose.msra.mxu0 0
      %3290 = vmatpush.bf16.xpose.msra.mxu0 0
      %3291 = vmatpush.bf16.xpose.msra.mxu0 0
      %3292 = vmatpush.bf16.xpose.msra.mxu0 0
      %3293 = vmatpush.bf16.xpose.msra.mxu0 %v3284
      %3294 = vmatmul.bf16.gmra.mxu0 %v3281
      %v3295 = vpop.f32.mrf.mxu0
      %v3296 = vadd.f32 0.0, %v3295
      %v3297 = vpop.f32.mrf.mxu0
      %3298 = vdwg.mxu0
      %3299 = vrot.lane.b32.xlu0 %v1297, 112
      %v3300 = vpop.permute.xlu0 %3299
      %3301 = vrot.lane.b32.xlu0 %v1297, 80
      %v3302 = vpop.permute.xlu0 %3301
      %v3304 = vsel %vm1131, %v3300, 0
      %v3307 = vsel %vm1131, %v3302, 0
      %3309 = vmatpush.bf16.xpose.msra.mxu0 0
      %3310 = vmatpush.bf16.xpose.msra.mxu0 0
      %3311 = vmatpush.bf16.xpose.msra.mxu0 0
      %3312 = vmatpush.bf16.xpose.msra.mxu0 0
      %3313 = vmatpush.bf16.xpose.msra.mxu0 0
      %3314 = vmatpush.bf16.xpose.msra.mxu0 0
      %3315 = vmatpush.bf16.xpose.msra.mxu0 0
      %3316 = vmatpush.bf16.xpose.msra.mxu0 %v3307
      %3317 = vmatmul.bf16.gmra.mxu0 %v3304
      %v3318 = vpop.f32.mrf.mxu0
      %v3319 = vadd.f32 0.0, %v3318
      %v3320 = vpop.f32.mrf.mxu0
      %3321 = vdwg.mxu0
      %3322 = vrot.lane.b32.xlu0 %v1321, 112
      %v3323 = vpop.permute.xlu0 %3322
      %3324 = vrot.lane.b32.xlu0 %v1321, 80
      %v3325 = vpop.permute.xlu0 %3324
      %v3327 = vsel %vm1131, %v3323, 0
      %v3330 = vsel %vm1131, %v3325, 0
      %3332 = vmatpush.bf16.xpose.msra.mxu0 0
      %3333 = vmatpush.bf16.xpose.msra.mxu0 0
      %3334 = vmatpush.bf16.xpose.msra.mxu0 0
      %3335 = vmatpush.bf16.xpose.msra.mxu0 0
      %3336 = vmatpush.bf16.xpose.msra.mxu0 0
      %3337 = vmatpush.bf16.xpose.msra.mxu0 0
      %3338 = vmatpush.bf16.xpose.msra.mxu0 0
      %3339 = vmatpush.bf16.xpose.msra.mxu0 %v3330
      %3340 = vmatmul.bf16.gmra.mxu0 %v3327
      %v3341 = vpop.f32.mrf.mxu0
      %v3342 = vadd.f32 0.0, %v3341
      %v3343 = vpop.f32.mrf.mxu0
      %3344 = vdwg.mxu0
      %3345 = vrot.lane.b32.xlu0 %v1345, 112
      %v3346 = vpop.permute.xlu0 %3345
      %3347 = vrot.lane.b32.xlu0 %v1345, 80
      %v3348 = vpop.permute.xlu0 %3347
      %v3350 = vsel %vm1131, %v3346, 0
      %v3353 = vsel %vm1131, %v3348, 0
      %3355 = vmatpush.bf16.xpose.msra.mxu0 0
      %3356 = vmatpush.bf16.xpose.msra.mxu0 0
      %3357 = vmatpush.bf16.xpose.msra.mxu0 0
      %3358 = vmatpush.bf16.xpose.msra.mxu0 0
      %3359 = vmatpush.bf16.xpose.msra.mxu0 0
      %3360 = vmatpush.bf16.xpose.msra.mxu0 0
      %3361 = vmatpush.bf16.xpose.msra.mxu0 0
      %3362 = vmatpush.bf16.xpose.msra.mxu0 %v3353
      %3363 = vmatmul.bf16.gmra.mxu0 %v3350
      %v3364 = vpop.f32.mrf.mxu0
      %v3365 = vadd.f32 0.0, %v3364
      %v3366 = vpop.f32.mrf.mxu0
      %3367 = vdwg.mxu0
      %3368 = vrot.lane.b32.xlu0 %v1369, 112
      %v3369 = vpop.permute.xlu0 %3368
      %3370 = vrot.lane.b32.xlu0 %v1369, 80
      %v3371 = vpop.permute.xlu0 %3370
      %v3373 = vsel %vm1131, %v3369, 0
      %v3376 = vsel %vm1131, %v3371, 0
      %3378 = vmatpush.bf16.xpose.msra.mxu0 0
      %3379 = vmatpush.bf16.xpose.msra.mxu0 0
      %3380 = vmatpush.bf16.xpose.msra.mxu0 0
      %3381 = vmatpush.bf16.xpose.msra.mxu0 0
      %3382 = vmatpush.bf16.xpose.msra.mxu0 0
      %3383 = vmatpush.bf16.xpose.msra.mxu0 0
      %3384 = vmatpush.bf16.xpose.msra.mxu0 0
      %3385 = vmatpush.bf16.xpose.msra.mxu0 %v3376
      %3386 = vmatmul.bf16.gmra.mxu0 %v3373
      %v3387 = vpop.f32.mrf.mxu0
      %v3388 = vadd.f32 0.0, %v3387
      %v3389 = vpop.f32.mrf.mxu0
      %3390 = vdwg.mxu0
      %3391 = vrot.lane.b32.xlu0 %v1393, 112
      %v3392 = vpop.permute.xlu0 %3391
      %3393 = vrot.lane.b32.xlu0 %v1393, 80
      %v3394 = vpop.permute.xlu0 %3393
      %v3396 = vsel %vm1131, %v3392, 0
      %v3399 = vsel %vm1131, %v3394, 0
      %3401 = vmatpush.bf16.xpose.msra.mxu0 0
      %3402 = vmatpush.bf16.xpose.msra.mxu0 0
      %3403 = vmatpush.bf16.xpose.msra.mxu0 0
      %3404 = vmatpush.bf16.xpose.msra.mxu0 0
      %3405 = vmatpush.bf16.xpose.msra.mxu0 0
      %3406 = vmatpush.bf16.xpose.msra.mxu0 0
      %3407 = vmatpush.bf16.xpose.msra.mxu0 0
      %3408 = vmatpush.bf16.xpose.msra.mxu0 %v3399
      %3409 = vmatmul.bf16.gmra.mxu0 %v3396
      %v3410 = vpop.f32.mrf.mxu0
      %v3411 = vadd.f32 0.0, %v3410
      %v3412 = vpop.f32.mrf.mxu0
      %3413 = vdwg.mxu0
      %3414 = vrot.lane.b32.xlu0 %v1417, 112
      %v3415 = vpop.permute.xlu0 %3414
      %3416 = vrot.lane.b32.xlu0 %v1417, 80
      %v3417 = vpop.permute.xlu0 %3416
      %v3419 = vsel %vm1131, %v3415, 0
      %v3422 = vsel %vm1131, %v3417, 0
      %3424 = vmatpush.bf16.xpose.msra.mxu0 0
      %3425 = vmatpush.bf16.xpose.msra.mxu0 0
      %3426 = vmatpush.bf16.xpose.msra.mxu0 0
      %3427 = vmatpush.bf16.xpose.msra.mxu0 0
      %3428 = vmatpush.bf16.xpose.msra.mxu0 0
      %3429 = vmatpush.bf16.xpose.msra.mxu0 0
      %3430 = vmatpush.bf16.xpose.msra.mxu0 0
      %3431 = vmatpush.bf16.xpose.msra.mxu0 %v3422
      %3432 = vmatmul.bf16.gmra.mxu0 %v3419
      %v3433 = vpop.f32.mrf.mxu0
      %v3434 = vadd.f32 0.0, %v3433
      %v3435 = vpop.f32.mrf.mxu0
      %3436 = vdwg.mxu0
      %3437 = vrot.lane.b32.xlu0 %v1441, 112
      %v3438 = vpop.permute.xlu0 %3437
      %3439 = vrot.lane.b32.xlu0 %v1441, 80
      %v3440 = vpop.permute.xlu0 %3439
      %v3442 = vsel %vm1131, %v3438, 0
      %v3445 = vsel %vm1131, %v3440, 0
      %3447 = vmatpush.bf16.xpose.msra.mxu0 0
      %3448 = vmatpush.bf16.xpose.msra.mxu0 0
      %3449 = vmatpush.bf16.xpose.msra.mxu0 0
      %3450 = vmatpush.bf16.xpose.msra.mxu0 0
      %3451 = vmatpush.bf16.xpose.msra.mxu0 0
      %3452 = vmatpush.bf16.xpose.msra.mxu0 0
      %3453 = vmatpush.bf16.xpose.msra.mxu0 0
      %3454 = vmatpush.bf16.xpose.msra.mxu0 %v3445
      %3455 = vmatmul.bf16.gmra.mxu0 %v3442
      %v3456 = vpop.f32.mrf.mxu0
      %v3457 = vadd.f32 0.0, %v3456
      %v3458 = vpop.f32.mrf.mxu0
      %3459 = vdwg.mxu0
      %3460 = vrot.lane.b32.xlu0 %v1465, 112
      %v3461 = vpop.permute.xlu0 %3460
      %3462 = vrot.lane.b32.xlu0 %v1465, 80
      %v3463 = vpop.permute.xlu0 %3462
      %v3465 = vsel %vm1131, %v3461, 0
      %v3468 = vsel %vm1131, %v3463, 0
      %3470 = vmatpush.bf16.xpose.msra.mxu0 0
      %3471 = vmatpush.bf16.xpose.msra.mxu0 0
      %3472 = vmatpush.bf16.xpose.msra.mxu0 0
      %3473 = vmatpush.bf16.xpose.msra.mxu0 0
      %3474 = vmatpush.bf16.xpose.msra.mxu0 0
      %3475 = vmatpush.bf16.xpose.msra.mxu0 0
      %3476 = vmatpush.bf16.xpose.msra.mxu0 0
      %3477 = vmatpush.bf16.xpose.msra.mxu0 %v3468
      %3478 = vmatmul.bf16.gmra.mxu0 %v3465
      %v3479 = vpop.f32.mrf.mxu0
      %v3480 = vadd.f32 0.0, %v3479
      %v3481 = vpop.f32.mrf.mxu0
      %3482 = vdwg.mxu0
      %3483 = vrot.lane.b32.xlu0 %v1489, 112
      %v3484 = vpop.permute.xlu0 %3483
      %3485 = vrot.lane.b32.xlu0 %v1489, 80
      %v3486 = vpop.permute.xlu0 %3485
      %v3488 = vsel %vm1131, %v3484, 0
      %v3491 = vsel %vm1131, %v3486, 0
      %3493 = vmatpush.bf16.xpose.msra.mxu0 0
      %3494 = vmatpush.bf16.xpose.msra.mxu0 0
      %3495 = vmatpush.bf16.xpose.msra.mxu0 0
      %3496 = vmatpush.bf16.xpose.msra.mxu0 0
      %3497 = vmatpush.bf16.xpose.msra.mxu0 0
      %3498 = vmatpush.bf16.xpose.msra.mxu0 0
      %3499 = vmatpush.bf16.xpose.msra.mxu0 0
      %3500 = vmatpush.bf16.xpose.msra.mxu0 %v3491
      %3501 = vmatmul.bf16.gmra.mxu0 %v3488
      %v3502 = vpop.f32.mrf.mxu0
      %v3503 = vadd.f32 0.0, %v3502
      %v3504 = vpop.f32.mrf.mxu0
      %3505 = vdwg.mxu0
      %v3506 = vsel %vm1512, %v3158, -1e+30
      %v3507 = vsel %vm1512, %v3181, -1e+30
      %v3508 = vsel %vm1512, %v3204, -1e+30
      %v3509 = vsel %vm1512, %v3227, -1e+30
      %v3510 = vsel %vm1512, %v3250, -1e+30
      %v3511 = vsel %vm1512, %v3273, -1e+30
      %v3512 = vsel %vm1512, %v3296, -1e+30
      %v3513 = vsel %vm1512, %v3319, -1e+30
      %v3514 = vsel %vm1512, %v3342, -1e+30
      %v3515 = vsel %vm1512, %v3365, -1e+30
      %v3516 = vsel %vm1512, %v3388, -1e+30
      %v3517 = vsel %vm1512, %v3411, -1e+30
      %v3518 = vsel %vm1512, %v3434, -1e+30
      %v3519 = vsel %vm1512, %v3457, -1e+30
      %v3520 = vsel %vm1512, %v3480, -1e+30
      %v3521 = vsel %vm1512, %v3503, -1e+30
      %v3522 = vsel %vm1131, %v3506, -inf
      %3523 = vmax.xlane.f32.xlu0 %v3522
      %v3524 = vpop.xlane.xlu0 %3523
      %v3525 = vsel %vm1131, %v3507, -inf
      %3526 = vmax.xlane.f32.xlu0 %v3525
      %v3527 = vpop.xlane.xlu0 %3526
      %v3528 = vsel %vm1131, %v3508, -inf
      %3529 = vmax.xlane.f32.xlu0 %v3528
      %v3530 = vpop.xlane.xlu0 %3529
      %v3531 = vsel %vm1131, %v3509, -inf
      %3532 = vmax.xlane.f32.xlu0 %v3531
      %v3533 = vpop.xlane.xlu0 %3532
      %v3534 = vsel %vm1131, %v3510, -inf
      %3535 = vmax.xlane.f32.xlu0 %v3534
      %v3536 = vpop.xlane.xlu0 %3535
      %v3537 = vsel %vm1131, %v3511, -inf
      %3538 = vmax.xlane.f32.xlu0 %v3537
      %v3539 = vpop.xlane.xlu0 %3538
      %v3540 = vsel %vm1131, %v3512, -inf
      %3541 = vmax.xlane.f32.xlu0 %v3540
      %v3542 = vpop.xlane.xlu0 %3541
      %v3543 = vsel %vm1131, %v3513, -inf
      %3544 = vmax.xlane.f32.xlu0 %v3543
      %v3545 = vpop.xlane.xlu0 %3544
      %v3546 = vsel %vm1131, %v3514, -inf
      %3547 = vmax.xlane.f32.xlu0 %v3546
      %v3548 = vpop.xlane.xlu0 %3547
      %v3549 = vsel %vm1131, %v3515, -inf
      %3550 = vmax.xlane.f32.xlu0 %v3549
      %v3551 = vpop.xlane.xlu0 %3550
      %v3552 = vsel %vm1131, %v3516, -inf
      %3553 = vmax.xlane.f32.xlu0 %v3552
      %v3554 = vpop.xlane.xlu0 %3553
      %v3555 = vsel %vm1131, %v3517, -inf
      %3556 = vmax.xlane.f32.xlu0 %v3555
      %v3557 = vpop.xlane.xlu0 %3556
      %v3558 = vsel %vm1131, %v3518, -inf
      %3559 = vmax.xlane.f32.xlu0 %v3558
      %v3560 = vpop.xlane.xlu0 %3559
      %v3561 = vsel %vm1131, %v3519, -inf
      %3562 = vmax.xlane.f32.xlu0 %v3561
      %v3563 = vpop.xlane.xlu0 %3562
      %v3564 = vsel %vm1131, %v3520, -inf
      %3565 = vmax.xlane.f32.xlu0 %v3564
      %v3566 = vpop.xlane.xlu0 %3565
      %v3567 = vsel %vm1131, %v3521, -inf
      %3568 = vmax.xlane.f32.xlu0 %v3567
      %v3569 = vpop.xlane.xlu0 %3568
      %v3570 = vsub.f32 %v3506, %v3524
      %v3571 = vsub.f32 %v3507, %v3527
      %v3572 = vsub.f32 %v3508, %v3530
      %v3573 = vsub.f32 %v3509, %v3533
      %v3574 = vsub.f32 %v3510, %v3536
      %v3575 = vsub.f32 %v3511, %v3539
      %v3576 = vsub.f32 %v3512, %v3542
      %v3577 = vsub.f32 %v3513, %v3545
      %v3578 = vsub.f32 %v3514, %v3548
      %v3579 = vsub.f32 %v3515, %v3551
      %v3580 = vsub.f32 %v3516, %v3554
      %v3581 = vsub.f32 %v3517, %v3557
      %v3582 = vsub.f32 %v3518, %v3560
      %v3583 = vsub.f32 %v3519, %v3563
      %v3584 = vsub.f32 %v3520, %v3566
      %v3585 = vsub.f32 %v3521, %v3569
      %v3586 = vmul.f32 %v3570, 1.442695
      %v3587 = vpow.pop %v3586
      %v3588 = vmul.f32 %v3571, 1.442695
      %v3589 = vpow.pop %v3588
      %v3590 = vmul.f32 %v3572, 1.442695
      %v3591 = vpow.pop %v3590
      %v3592 = vmul.f32 %v3573, 1.442695
      %v3593 = vpow.pop %v3592
      %v3594 = vmul.f32 %v3574, 1.442695
      %v3595 = vpow.pop %v3594
      %v3596 = vmul.f32 %v3575, 1.442695
      %v3597 = vpow.pop %v3596
      %v3598 = vmul.f32 %v3576, 1.442695
      %v3599 = vpow.pop %v3598
      %v3600 = vmul.f32 %v3577, 1.442695
      %v3601 = vpow.pop %v3600
      %v3602 = vmul.f32 %v3578, 1.442695
      %v3603 = vpow.pop %v3602
      %v3604 = vmul.f32 %v3579, 1.442695
      %v3605 = vpow.pop %v3604
      %v3606 = vmul.f32 %v3580, 1.442695
      %v3607 = vpow.pop %v3606
      %v3608 = vmul.f32 %v3581, 1.442695
      %v3609 = vpow.pop %v3608
      %v3610 = vmul.f32 %v3582, 1.442695
      %v3611 = vpow.pop %v3610
      %v3612 = vmul.f32 %v3583, 1.442695
      %v3613 = vpow.pop %v3612
      %v3614 = vmul.f32 %v3584, 1.442695
      %v3615 = vpow.pop %v3614
      %v3616 = vmul.f32 %v3585, 1.442695
      %v3617 = vpow.pop %v3616
      %v3618 = vsel %vm1131, %v3587, 0.0
      %3619 = vadd.xlane.f32.xlu0 %v3618
      %v3620 = vpop.xlane.xlu0 %3619
      %v3621 = vsel %vm1131, %v3589, 0.0
      %3622 = vadd.xlane.f32.xlu0 %v3621
      %v3623 = vpop.xlane.xlu0 %3622
      %v3624 = vsel %vm1131, %v3591, 0.0
      %3625 = vadd.xlane.f32.xlu0 %v3624
      %v3626 = vpop.xlane.xlu0 %3625
      %v3627 = vsel %vm1131, %v3593, 0.0
      %3628 = vadd.xlane.f32.xlu0 %v3627
      %v3629 = vpop.xlane.xlu0 %3628
      %v3630 = vsel %vm1131, %v3595, 0.0
      %3631 = vadd.xlane.f32.xlu0 %v3630
      %v3632 = vpop.xlane.xlu0 %3631
      %v3633 = vsel %vm1131, %v3597, 0.0
      %3634 = vadd.xlane.f32.xlu0 %v3633
      %v3635 = vpop.xlane.xlu0 %3634
      %v3636 = vsel %vm1131, %v3599, 0.0
      %3637 = vadd.xlane.f32.xlu0 %v3636
      %v3638 = vpop.xlane.xlu0 %3637
      %v3639 = vsel %vm1131, %v3601, 0.0
      %3640 = vadd.xlane.f32.xlu0 %v3639
      %v3641 = vpop.xlane.xlu0 %3640
      %v3642 = vsel %vm1131, %v3603, 0.0
      %3643 = vadd.xlane.f32.xlu0 %v3642
      %v3644 = vpop.xlane.xlu0 %3643
      %v3645 = vsel %vm1131, %v3605, 0.0
      %3646 = vadd.xlane.f32.xlu0 %v3645
      %v3647 = vpop.xlane.xlu0 %3646
      %v3648 = vsel %vm1131, %v3607, 0.0
      %3649 = vadd.xlane.f32.xlu0 %v3648
      %v3650 = vpop.xlane.xlu0 %3649
      %v3651 = vsel %vm1131, %v3609, 0.0
      %3652 = vadd.xlane.f32.xlu0 %v3651
      %v3653 = vpop.xlane.xlu0 %3652
      %v3654 = vsel %vm1131, %v3611, 0.0
      %3655 = vadd.xlane.f32.xlu0 %v3654
      %v3656 = vpop.xlane.xlu0 %3655
      %v3657 = vsel %vm1131, %v3613, 0.0
      %3658 = vadd.xlane.f32.xlu0 %v3657
      %v3659 = vpop.xlane.xlu0 %3658
      %v3660 = vsel %vm1131, %v3615, 0.0
      %3661 = vadd.xlane.f32.xlu0 %v3660
      %v3662 = vpop.xlane.xlu0 %3661
      %v3663 = vsel %vm1131, %v3617, 0.0
      %3664 = vadd.xlane.f32.xlu0 %v3663
      %v3665 = vpop.xlane.xlu0 %3664
      %v3666 = vrcp.pop %v3620
      %v3667 = vrcp.pop %v3623
      %v3668 = vrcp.pop %v3626
      %v3669 = vrcp.pop %v3629
      %v3670 = vrcp.pop %v3632
      %v3671 = vrcp.pop %v3635
      %v3672 = vrcp.pop %v3638
      %v3673 = vrcp.pop %v3641
      %v3674 = vrcp.pop %v3644
      %v3675 = vrcp.pop %v3647
      %v3676 = vrcp.pop %v3650
      %v3677 = vrcp.pop %v3653
      %v3678 = vrcp.pop %v3656
      %v3679 = vrcp.pop %v3659
      %v3680 = vrcp.pop %v3662
      %v3681 = vrcp.pop %v3665
      %v3682 = vmul.f32 %v3587, %v3666
      %v3683 = vmul.f32 %v3589, %v3667
      %v3684 = vmul.f32 %v3591, %v3668
      %v3685 = vmul.f32 %v3593, %v3669
      %v3686 = vmul.f32 %v3595, %v3670
      %v3687 = vmul.f32 %v3597, %v3671
      %v3688 = vmul.f32 %v3599, %v3672
      %v3689 = vmul.f32 %v3601, %v3673
      %v3690 = vmul.f32 %v3603, %v3674
      %v3691 = vmul.f32 %v3605, %v3675
      %v3692 = vmul.f32 %v3607, %v3676
      %v3693 = vmul.f32 %v3609, %v3677
      %v3694 = vmul.f32 %v3611, %v3678
      %v3695 = vmul.f32 %v3613, %v3679
      %v3696 = vmul.f32 %v3615, %v3680
      %v3697 = vmul.f32 %v3617, %v3681
      %v3698 = vpack.c.bf16 %v3682, %v3682
      %v3699 = vpack.c.bf16 %v3683, %v3683
      %v3700 = vpack.c.bf16 %v3684, %v3684
      %v3701 = vpack.c.bf16 %v3685, %v3685
      %v3702 = vpack.c.bf16 %v3686, %v3686
      %v3703 = vpack.c.bf16 %v3687, %v3687
      %v3704 = vpack.c.bf16 %v3688, %v3688
      %v3705 = vpack.c.bf16 %v3689, %v3689
      %v3706 = vpack.c.bf16 %v3690, %v3690
      %v3707 = vpack.c.bf16 %v3691, %v3691
      %v3708 = vpack.c.bf16 %v3692, %v3692
      %v3709 = vpack.c.bf16 %v3693, %v3693
      %v3710 = vpack.c.bf16 %v3694, %v3694
      %v3711 = vpack.c.bf16 %v3695, %v3695
      %v3712 = vpack.c.bf16 %v3696, %v3696
      %v3713 = vpack.c.bf16 %v3697, %v3697
      %3714 = vrot.lane.b32.xlu0 %v1128, 48
      %v3715 = vpop.permute.xlu0 %3714
      %v3717 = vsel %vm1131, %v3698, 0
      %v3720 = vsel %vm1726, %v3715, 0
      %3722 = vmatpush.bf16.msra.mxu0 0
      %3723 = vmatpush.bf16.msra.mxu0 0
      %3724 = vmatpush.bf16.msra.mxu0 0
      %3725 = vmatpush.bf16.msra.mxu0 0
      %3726 = vmatpush.bf16.msra.mxu0 0
      %3727 = vmatpush.bf16.msra.mxu0 0
      %3728 = vmatpush.bf16.msra.mxu0 0
      %3729 = vmatpush.bf16.msra.mxu0 %v3720
      %3730 = vmatmul.bf16.gmra.mxu0 %v3717
      %v3731 = vpop.f32.mrf.mxu0
      %v3732 = vadd.f32 0.0, %v3731
      %v3733 = vpop.f32.mrf.mxu0
      %3734 = vdwg.mxu0
      %3735 = vrot.lane.b32.xlu0 %v1153, 48
      %v3736 = vpop.permute.xlu0 %3735
      %v3738 = vsel %vm1131, %v3699, 0
      %v3741 = vsel %vm1726, %v3736, 0
      %3743 = vmatpush.bf16.msra.mxu0 0
      %3744 = vmatpush.bf16.msra.mxu0 0
      %3745 = vmatpush.bf16.msra.mxu0 0
      %3746 = vmatpush.bf16.msra.mxu0 0
      %3747 = vmatpush.bf16.msra.mxu0 0
      %3748 = vmatpush.bf16.msra.mxu0 0
      %3749 = vmatpush.bf16.msra.mxu0 0
      %3750 = vmatpush.bf16.msra.mxu0 %v3741
      %3751 = vmatmul.bf16.gmra.mxu0 %v3738
      %v3752 = vpop.f32.mrf.mxu0
      %v3753 = vadd.f32 0.0, %v3752
      %v3754 = vpop.f32.mrf.mxu0
      %3755 = vdwg.mxu0
      %3756 = vrot.lane.b32.xlu0 %v1177, 48
      %v3757 = vpop.permute.xlu0 %3756
      %v3759 = vsel %vm1131, %v3700, 0
      %v3762 = vsel %vm1726, %v3757, 0
      %3764 = vmatpush.bf16.msra.mxu0 0
      %3765 = vmatpush.bf16.msra.mxu0 0
      %3766 = vmatpush.bf16.msra.mxu0 0
      %3767 = vmatpush.bf16.msra.mxu0 0
      %3768 = vmatpush.bf16.msra.mxu0 0
      %3769 = vmatpush.bf16.msra.mxu0 0
      %3770 = vmatpush.bf16.msra.mxu0 0
      %3771 = vmatpush.bf16.msra.mxu0 %v3762
      %3772 = vmatmul.bf16.gmra.mxu0 %v3759
      %v3773 = vpop.f32.mrf.mxu0
      %v3774 = vadd.f32 0.0, %v3773
      %v3775 = vpop.f32.mrf.mxu0
      %3776 = vdwg.mxu0
      %3777 = vrot.lane.b32.xlu0 %v1201, 48
      %v3778 = vpop.permute.xlu0 %3777
      %v3780 = vsel %vm1131, %v3701, 0
      %v3783 = vsel %vm1726, %v3778, 0
      %3785 = vmatpush.bf16.msra.mxu0 0
      %3786 = vmatpush.bf16.msra.mxu0 0
      %3787 = vmatpush.bf16.msra.mxu0 0
      %3788 = vmatpush.bf16.msra.mxu0 0
      %3789 = vmatpush.bf16.msra.mxu0 0
      %3790 = vmatpush.bf16.msra.mxu0 0
      %3791 = vmatpush.bf16.msra.mxu0 0
      %3792 = vmatpush.bf16.msra.mxu0 %v3783
      %3793 = vmatmul.bf16.gmra.mxu0 %v3780
      %v3794 = vpop.f32.mrf.mxu0
      %v3795 = vadd.f32 0.0, %v3794
      %v3796 = vpop.f32.mrf.mxu0
      %3797 = vdwg.mxu0
      %3798 = vrot.lane.b32.xlu0 %v1225, 48
      %v3799 = vpop.permute.xlu0 %3798
      %v3801 = vsel %vm1131, %v3702, 0
      %v3804 = vsel %vm1726, %v3799, 0
      %3806 = vmatpush.bf16.msra.mxu0 0
      %3807 = vmatpush.bf16.msra.mxu0 0
      %3808 = vmatpush.bf16.msra.mxu0 0
      %3809 = vmatpush.bf16.msra.mxu0 0
      %3810 = vmatpush.bf16.msra.mxu0 0
      %3811 = vmatpush.bf16.msra.mxu0 0
      %3812 = vmatpush.bf16.msra.mxu0 0
      %3813 = vmatpush.bf16.msra.mxu0 %v3804
      %3814 = vmatmul.bf16.gmra.mxu0 %v3801
      %v3815 = vpop.f32.mrf.mxu0
      %v3816 = vadd.f32 0.0, %v3815
      %v3817 = vpop.f32.mrf.mxu0
      %3818 = vdwg.mxu0
      %3819 = vrot.lane.b32.xlu0 %v1249, 48
      %v3820 = vpop.permute.xlu0 %3819
      %v3822 = vsel %vm1131, %v3703, 0
      %v3825 = vsel %vm1726, %v3820, 0
      %3827 = vmatpush.bf16.msra.mxu0 0
      %3828 = vmatpush.bf16.msra.mxu0 0
      %3829 = vmatpush.bf16.msra.mxu0 0
      %3830 = vmatpush.bf16.msra.mxu0 0
      %3831 = vmatpush.bf16.msra.mxu0 0
      %3832 = vmatpush.bf16.msra.mxu0 0
      %3833 = vmatpush.bf16.msra.mxu0 0
      %3834 = vmatpush.bf16.msra.mxu0 %v3825
      %3835 = vmatmul.bf16.gmra.mxu0 %v3822
      %v3836 = vpop.f32.mrf.mxu0
      %v3837 = vadd.f32 0.0, %v3836
      %v3838 = vpop.f32.mrf.mxu0
      %3839 = vdwg.mxu0
      %3840 = vrot.lane.b32.xlu0 %v1273, 48
      %v3841 = vpop.permute.xlu0 %3840
      %v3843 = vsel %vm1131, %v3704, 0
      %v3846 = vsel %vm1726, %v3841, 0
      %3848 = vmatpush.bf16.msra.mxu0 0
      %3849 = vmatpush.bf16.msra.mxu0 0
      %3850 = vmatpush.bf16.msra.mxu0 0
      %3851 = vmatpush.bf16.msra.mxu0 0
      %3852 = vmatpush.bf16.msra.mxu0 0
      %3853 = vmatpush.bf16.msra.mxu0 0
      %3854 = vmatpush.bf16.msra.mxu0 0
      %3855 = vmatpush.bf16.msra.mxu0 %v3846
      %3856 = vmatmul.bf16.gmra.mxu0 %v3843
      %v3857 = vpop.f32.mrf.mxu0
      %v3858 = vadd.f32 0.0, %v3857
      %v3859 = vpop.f32.mrf.mxu0
      %3860 = vdwg.mxu0
      %3861 = vrot.lane.b32.xlu0 %v1297, 48
      %v3862 = vpop.permute.xlu0 %3861
      %v3864 = vsel %vm1131, %v3705, 0
      %v3867 = vsel %vm1726, %v3862, 0
      %3869 = vmatpush.bf16.msra.mxu0 0
      %3870 = vmatpush.bf16.msra.mxu0 0
      %3871 = vmatpush.bf16.msra.mxu0 0
      %3872 = vmatpush.bf16.msra.mxu0 0
      %3873 = vmatpush.bf16.msra.mxu0 0
      %3874 = vmatpush.bf16.msra.mxu0 0
      %3875 = vmatpush.bf16.msra.mxu0 0
      %3876 = vmatpush.bf16.msra.mxu0 %v3867
      %3877 = vmatmul.bf16.gmra.mxu0 %v3864
      %v3878 = vpop.f32.mrf.mxu0
      %v3879 = vadd.f32 0.0, %v3878
      %v3880 = vpop.f32.mrf.mxu0
      %3881 = vdwg.mxu0
      %3882 = vrot.lane.b32.xlu0 %v1321, 48
      %v3883 = vpop.permute.xlu0 %3882
      %v3885 = vsel %vm1131, %v3706, 0
      %v3888 = vsel %vm1726, %v3883, 0
      %3890 = vmatpush.bf16.msra.mxu0 0
      %3891 = vmatpush.bf16.msra.mxu0 0
      %3892 = vmatpush.bf16.msra.mxu0 0
      %3893 = vmatpush.bf16.msra.mxu0 0
      %3894 = vmatpush.bf16.msra.mxu0 0
      %3895 = vmatpush.bf16.msra.mxu0 0
      %3896 = vmatpush.bf16.msra.mxu0 0
      %3897 = vmatpush.bf16.msra.mxu0 %v3888
      %3898 = vmatmul.bf16.gmra.mxu0 %v3885
      %v3899 = vpop.f32.mrf.mxu0
      %v3900 = vadd.f32 0.0, %v3899
      %v3901 = vpop.f32.mrf.mxu0
      %3902 = vdwg.mxu0
      %3903 = vrot.lane.b32.xlu0 %v1345, 48
      %v3904 = vpop.permute.xlu0 %3903
      %v3906 = vsel %vm1131, %v3707, 0
      %v3909 = vsel %vm1726, %v3904, 0
      %3911 = vmatpush.bf16.msra.mxu0 0
      %3912 = vmatpush.bf16.msra.mxu0 0
      %3913 = vmatpush.bf16.msra.mxu0 0
      %3914 = vmatpush.bf16.msra.mxu0 0
      %3915 = vmatpush.bf16.msra.mxu0 0
      %3916 = vmatpush.bf16.msra.mxu0 0
      %3917 = vmatpush.bf16.msra.mxu0 0
      %3918 = vmatpush.bf16.msra.mxu0 %v3909
      %3919 = vmatmul.bf16.gmra.mxu0 %v3906
      %v3920 = vpop.f32.mrf.mxu0
      %v3921 = vadd.f32 0.0, %v3920
      %v3922 = vpop.f32.mrf.mxu0
      %3923 = vdwg.mxu0
      %3924 = vrot.lane.b32.xlu0 %v1369, 48
      %v3925 = vpop.permute.xlu0 %3924
      %v3927 = vsel %vm1131, %v3708, 0
      %v3930 = vsel %vm1726, %v3925, 0
      %3932 = vmatpush.bf16.msra.mxu0 0
      %3933 = vmatpush.bf16.msra.mxu0 0
      %3934 = vmatpush.bf16.msra.mxu0 0
      %3935 = vmatpush.bf16.msra.mxu0 0
      %3936 = vmatpush.bf16.msra.mxu0 0
      %3937 = vmatpush.bf16.msra.mxu0 0
      %3938 = vmatpush.bf16.msra.mxu0 0
      %3939 = vmatpush.bf16.msra.mxu0 %v3930
      %3940 = vmatmul.bf16.gmra.mxu0 %v3927
      %v3941 = vpop.f32.mrf.mxu0
      %v3942 = vadd.f32 0.0, %v3941
      %v3943 = vpop.f32.mrf.mxu0
      %3944 = vdwg.mxu0
      %3945 = vrot.lane.b32.xlu0 %v1393, 48
      %v3946 = vpop.permute.xlu0 %3945
      %v3948 = vsel %vm1131, %v3709, 0
      %v3951 = vsel %vm1726, %v3946, 0
      %3953 = vmatpush.bf16.msra.mxu0 0
      %3954 = vmatpush.bf16.msra.mxu0 0
      %3955 = vmatpush.bf16.msra.mxu0 0
      %3956 = vmatpush.bf16.msra.mxu0 0
      %3957 = vmatpush.bf16.msra.mxu0 0
      %3958 = vmatpush.bf16.msra.mxu0 0
      %3959 = vmatpush.bf16.msra.mxu0 0
      %3960 = vmatpush.bf16.msra.mxu0 %v3951
      %3961 = vmatmul.bf16.gmra.mxu0 %v3948
      %v3962 = vpop.f32.mrf.mxu0
      %v3963 = vadd.f32 0.0, %v3962
      %v3964 = vpop.f32.mrf.mxu0
      %3965 = vdwg.mxu0
      %3966 = vrot.lane.b32.xlu0 %v1417, 48
      %v3967 = vpop.permute.xlu0 %3966
      %v3969 = vsel %vm1131, %v3710, 0
      %v3972 = vsel %vm1726, %v3967, 0
      %3974 = vmatpush.bf16.msra.mxu0 0
      %3975 = vmatpush.bf16.msra.mxu0 0
      %3976 = vmatpush.bf16.msra.mxu0 0
      %3977 = vmatpush.bf16.msra.mxu0 0
      %3978 = vmatpush.bf16.msra.mxu0 0
      %3979 = vmatpush.bf16.msra.mxu0 0
      %3980 = vmatpush.bf16.msra.mxu0 0
      %3981 = vmatpush.bf16.msra.mxu0 %v3972
      %3982 = vmatmul.bf16.gmra.mxu0 %v3969
      %v3983 = vpop.f32.mrf.mxu0
      %v3984 = vadd.f32 0.0, %v3983
      %v3985 = vpop.f32.mrf.mxu0
      %3986 = vdwg.mxu0
      %3987 = vrot.lane.b32.xlu0 %v1441, 48
      %v3988 = vpop.permute.xlu0 %3987
      %v3990 = vsel %vm1131, %v3711, 0
      %v3993 = vsel %vm1726, %v3988, 0
      %3995 = vmatpush.bf16.msra.mxu0 0
      %3996 = vmatpush.bf16.msra.mxu0 0
      %3997 = vmatpush.bf16.msra.mxu0 0
      %3998 = vmatpush.bf16.msra.mxu0 0
      %3999 = vmatpush.bf16.msra.mxu0 0
      %4000 = vmatpush.bf16.msra.mxu0 0
      %4001 = vmatpush.bf16.msra.mxu0 0
      %4002 = vmatpush.bf16.msra.mxu0 %v3993
      %4003 = vmatmul.bf16.gmra.mxu0 %v3990
      %v4004 = vpop.f32.mrf.mxu0
      %v4005 = vadd.f32 0.0, %v4004
      %v4006 = vpop.f32.mrf.mxu0
      %4007 = vdwg.mxu0
      %4008 = vrot.lane.b32.xlu0 %v1465, 48
      %v4009 = vpop.permute.xlu0 %4008
      %v4011 = vsel %vm1131, %v3712, 0
      %v4014 = vsel %vm1726, %v4009, 0
      %4016 = vmatpush.bf16.msra.mxu0 0
      %4017 = vmatpush.bf16.msra.mxu0 0
      %4018 = vmatpush.bf16.msra.mxu0 0
      %4019 = vmatpush.bf16.msra.mxu0 0
      %4020 = vmatpush.bf16.msra.mxu0 0
      %4021 = vmatpush.bf16.msra.mxu0 0
      %4022 = vmatpush.bf16.msra.mxu0 0
      %4023 = vmatpush.bf16.msra.mxu0 %v4014
      %4024 = vmatmul.bf16.gmra.mxu0 %v4011
      %v4025 = vpop.f32.mrf.mxu0
      %v4026 = vadd.f32 0.0, %v4025
      %v4027 = vpop.f32.mrf.mxu0
      %4028 = vdwg.mxu0
      %4029 = vrot.lane.b32.xlu0 %v1489, 48
      %v4030 = vpop.permute.xlu0 %4029
      %v4032 = vsel %vm1131, %v3713, 0
      %v4035 = vsel %vm1726, %v4030, 0
      %4037 = vmatpush.bf16.msra.mxu0 0
      %4038 = vmatpush.bf16.msra.mxu0 0
      %4039 = vmatpush.bf16.msra.mxu0 0
      %4040 = vmatpush.bf16.msra.mxu0 0
      %4041 = vmatpush.bf16.msra.mxu0 0
      %4042 = vmatpush.bf16.msra.mxu0 0
      %4043 = vmatpush.bf16.msra.mxu0 0
      %4044 = vmatpush.bf16.msra.mxu0 %v4035
      %4045 = vmatmul.bf16.gmra.mxu0 %v4032
      %v4046 = vpop.f32.mrf.mxu0
      %v4047 = vadd.f32 0.0, %v4046
      %v4048 = vpop.f32.mrf.mxu0
      %4049 = vdwg.mxu0
      %v4050 = vpack.c.bf16 %v3753, %v3732
      %v4051 = vpack.c.bf16 %v3795, %v3774
      %v4052 = vpack.c.bf16 %v3837, %v3816
      %v4053 = vpack.c.bf16 %v3879, %v3858
      %v4054 = vpack.c.bf16 %v3921, %v3900
      %v4055 = vpack.c.bf16 %v3963, %v3942
      %v4056 = vpack.c.bf16 %v4005, %v3984
      %v4057 = vpack.c.bf16 %v4047, %v4026
      %v4059 = vsel %vm1131, %v4050, 0
      %v4062 = vsel %vm1131, %v4051, 0
      %v4065 = vsel %vm1131, %v4052, 0
      %v4068 = vsel %vm1131, %v4053, 0
      %v4071 = vsel %vm1131, %v4054, 0
      %v4074 = vsel %vm1131, %v4055, 0
      %v4077 = vsel %vm1131, %v4056, 0
      %v4080 = vsel %vm1131, %v4057, 0
      %v4083 = vsel %vm1726, %v1108, 0
      %4085 = vmatpush.bf16.msra.mxu0 0
      %4086 = vmatpush.bf16.msra.mxu0 0
      %4087 = vmatpush.bf16.msra.mxu0 0
      %4088 = vmatpush.bf16.msra.mxu0 0
      %4089 = vmatpush.bf16.msra.mxu0 0
      %4090 = vmatpush.bf16.msra.mxu0 0
      %4091 = vmatpush.bf16.msra.mxu0 0
      %4092 = vmatpush.bf16.msra.mxu0 %v4083
      %4093 = vmatmul.bf16.gmra.mxu0 %v4059
      %v4094 = vpop.f32.mrf.mxu0
      %v4095 = vadd.f32 0.0, %v4094
      %v4096 = vpop.f32.mrf.mxu0
      %v4097 = vadd.f32 0.0, %v4096
      %4098 = vmatmul.bf16.gmra.mxu0 %v4062
      %v4099 = vpop.f32.mrf.mxu0
      %v4100 = vadd.f32 0.0, %v4099
      %v4101 = vpop.f32.mrf.mxu0
      %v4102 = vadd.f32 0.0, %v4101
      %4103 = vmatmul.bf16.gmra.mxu0 %v4065
      %v4104 = vpop.f32.mrf.mxu0
      %v4105 = vadd.f32 0.0, %v4104
      %v4106 = vpop.f32.mrf.mxu0
      %v4107 = vadd.f32 0.0, %v4106
      %4108 = vmatmul.bf16.gmra.mxu0 %v4068
      %v4109 = vpop.f32.mrf.mxu0
      %v4110 = vadd.f32 0.0, %v4109
      %v4111 = vpop.f32.mrf.mxu0
      %v4112 = vadd.f32 0.0, %v4111
      %4113 = vmatmul.bf16.gmra.mxu0 %v4071
      %v4114 = vpop.f32.mrf.mxu0
      %v4115 = vadd.f32 0.0, %v4114
      %v4116 = vpop.f32.mrf.mxu0
      %v4117 = vadd.f32 0.0, %v4116
      %4118 = vmatmul.bf16.gmra.mxu0 %v4074
      %v4119 = vpop.f32.mrf.mxu0
      %v4120 = vadd.f32 0.0, %v4119
      %v4121 = vpop.f32.mrf.mxu0
      %v4122 = vadd.f32 0.0, %v4121
      %4123 = vmatmul.bf16.gmra.mxu0 %v4077
      %v4124 = vpop.f32.mrf.mxu0
      %v4125 = vadd.f32 0.0, %v4124
      %v4126 = vpop.f32.mrf.mxu0
      %v4127 = vadd.f32 0.0, %v4126
      %4128 = vmatmul.bf16.gmra.mxu0 %v4080
      %v4129 = vpop.f32.mrf.mxu0
      %v4130 = vadd.f32 0.0, %v4129
      %v4131 = vpop.f32.mrf.mxu0
      %v4132 = vadd.f32 0.0, %v4131
      %4133 = vdwg.mxu0
      %v4134 = vadd.f32 %v3099, %v4095
      %v4135 = vadd.f32 %v3101, %v4097
      %v4136 = vadd.f32 %v3104, %v4100
      %v4137 = vadd.f32 %v3106, %v4102
      %v4138 = vadd.f32 %v3109, %v4105
      %v4139 = vadd.f32 %v3111, %v4107
      %v4140 = vadd.f32 %v3114, %v4110
      %v4141 = vadd.f32 %v3116, %v4112
      %v4142 = vadd.f32 %v3119, %v4115
      %v4143 = vadd.f32 %v3121, %v4117
      %v4144 = vadd.f32 %v3124, %v4120
      %v4145 = vadd.f32 %v3126, %v4122
      %v4146 = vadd.f32 %v3129, %v4125
      %v4147 = vadd.f32 %v3131, %v4127
      %v4148 = vadd.f32 %v3134, %v4130
      %v4149 = vadd.f32 %v3136, %v4132
      %4150 = vrot.lane.b32.xlu0 %v1128, 104
      %v4151 = vpop.permute.xlu0 %4150
      %4152 = vrot.lane.b32.xlu0 %v1128, 72
      %v4153 = vpop.permute.xlu0 %4152
      %v4155 = vsel %vm1131, %v4151, 0
      %v4158 = vsel %vm1131, %v4153, 0
      %4160 = vmatpush.bf16.xpose.msra.mxu0 0
      %4161 = vmatpush.bf16.xpose.msra.mxu0 0
      %4162 = vmatpush.bf16.xpose.msra.mxu0 0
      %4163 = vmatpush.bf16.xpose.msra.mxu0 0
      %4164 = vmatpush.bf16.xpose.msra.mxu0 0
      %4165 = vmatpush.bf16.xpose.msra.mxu0 0
      %4166 = vmatpush.bf16.xpose.msra.mxu0 0
      %4167 = vmatpush.bf16.xpose.msra.mxu0 %v4158
      %4168 = vmatmul.bf16.gmra.mxu0 %v4155
      %v4169 = vpop.f32.mrf.mxu0
      %v4170 = vadd.f32 0.0, %v4169
      %v4171 = vpop.f32.mrf.mxu0
      %4172 = vdwg.mxu0
      %4173 = vrot.lane.b32.xlu0 %v1153, 104
      %v4174 = vpop.permute.xlu0 %4173
      %4175 = vrot.lane.b32.xlu0 %v1153, 72
      %v4176 = vpop.permute.xlu0 %4175
      %v4178 = vsel %vm1131, %v4174, 0
      %v4181 = vsel %vm1131, %v4176, 0
      %4183 = vmatpush.bf16.xpose.msra.mxu0 0
      %4184 = vmatpush.bf16.xpose.msra.mxu0 0
      %4185 = vmatpush.bf16.xpose.msra.mxu0 0
      %4186 = vmatpush.bf16.xpose.msra.mxu0 0
      %4187 = vmatpush.bf16.xpose.msra.mxu0 0
      %4188 = vmatpush.bf16.xpose.msra.mxu0 0
      %4189 = vmatpush.bf16.xpose.msra.mxu0 0
      %4190 = vmatpush.bf16.xpose.msra.mxu0 %v4181
      %4191 = vmatmul.bf16.gmra.mxu0 %v4178
      %v4192 = vpop.f32.mrf.mxu0
      %v4193 = vadd.f32 0.0, %v4192
      %v4194 = vpop.f32.mrf.mxu0
      %4195 = vdwg.mxu0
      %4196 = vrot.lane.b32.xlu0 %v1177, 104
      %v4197 = vpop.permute.xlu0 %4196
      %4198 = vrot.lane.b32.xlu0 %v1177, 72
      %v4199 = vpop.permute.xlu0 %4198
      %v4201 = vsel %vm1131, %v4197, 0
      %v4204 = vsel %vm1131, %v4199, 0
      %4206 = vmatpush.bf16.xpose.msra.mxu0 0
      %4207 = vmatpush.bf16.xpose.msra.mxu0 0
      %4208 = vmatpush.bf16.xpose.msra.mxu0 0
      %4209 = vmatpush.bf16.xpose.msra.mxu0 0
      %4210 = vmatpush.bf16.xpose.msra.mxu0 0
      %4211 = vmatpush.bf16.xpose.msra.mxu0 0
      %4212 = vmatpush.bf16.xpose.msra.mxu0 0
      %4213 = vmatpush.bf16.xpose.msra.mxu0 %v4204
      %4214 = vmatmul.bf16.gmra.mxu0 %v4201
      %v4215 = vpop.f32.mrf.mxu0
      %v4216 = vadd.f32 0.0, %v4215
      %v4217 = vpop.f32.mrf.mxu0
      %4218 = vdwg.mxu0
      %4219 = vrot.lane.b32.xlu0 %v1201, 104
      %v4220 = vpop.permute.xlu0 %4219
      %4221 = vrot.lane.b32.xlu0 %v1201, 72
      %v4222 = vpop.permute.xlu0 %4221
      %v4224 = vsel %vm1131, %v4220, 0
      %v4227 = vsel %vm1131, %v4222, 0
      %4229 = vmatpush.bf16.xpose.msra.mxu0 0
      %4230 = vmatpush.bf16.xpose.msra.mxu0 0
      %4231 = vmatpush.bf16.xpose.msra.mxu0 0
      %4232 = vmatpush.bf16.xpose.msra.mxu0 0
      %4233 = vmatpush.bf16.xpose.msra.mxu0 0
      %4234 = vmatpush.bf16.xpose.msra.mxu0 0
      %4235 = vmatpush.bf16.xpose.msra.mxu0 0
      %4236 = vmatpush.bf16.xpose.msra.mxu0 %v4227
      %4237 = vmatmul.bf16.gmra.mxu0 %v4224
      %v4238 = vpop.f32.mrf.mxu0
      %v4239 = vadd.f32 0.0, %v4238
      %v4240 = vpop.f32.mrf.mxu0
      %4241 = vdwg.mxu0
      %4242 = vrot.lane.b32.xlu0 %v1225, 104
      %v4243 = vpop.permute.xlu0 %4242
      %4244 = vrot.lane.b32.xlu0 %v1225, 72
      %v4245 = vpop.permute.xlu0 %4244
      %v4247 = vsel %vm1131, %v4243, 0
      %v4250 = vsel %vm1131, %v4245, 0
      %4252 = vmatpush.bf16.xpose.msra.mxu0 0
      %4253 = vmatpush.bf16.xpose.msra.mxu0 0
      %4254 = vmatpush.bf16.xpose.msra.mxu0 0
      %4255 = vmatpush.bf16.xpose.msra.mxu0 0
      %4256 = vmatpush.bf16.xpose.msra.mxu0 0
      %4257 = vmatpush.bf16.xpose.msra.mxu0 0
      %4258 = vmatpush.bf16.xpose.msra.mxu0 0
      %4259 = vmatpush.bf16.xpose.msra.mxu0 %v4250
      %4260 = vmatmul.bf16.gmra.mxu0 %v4247
      %v4261 = vpop.f32.mrf.mxu0
      %v4262 = vadd.f32 0.0, %v4261
      %v4263 = vpop.f32.mrf.mxu0
      %4264 = vdwg.mxu0
      %4265 = vrot.lane.b32.xlu0 %v1249, 104
      %v4266 = vpop.permute.xlu0 %4265
      %4267 = vrot.lane.b32.xlu0 %v1249, 72
      %v4268 = vpop.permute.xlu0 %4267
      %v4270 = vsel %vm1131, %v4266, 0
      %v4273 = vsel %vm1131, %v4268, 0
      %4275 = vmatpush.bf16.xpose.msra.mxu0 0
      %4276 = vmatpush.bf16.xpose.msra.mxu0 0
      %4277 = vmatpush.bf16.xpose.msra.mxu0 0
      %4278 = vmatpush.bf16.xpose.msra.mxu0 0
      %4279 = vmatpush.bf16.xpose.msra.mxu0 0
      %4280 = vmatpush.bf16.xpose.msra.mxu0 0
      %4281 = vmatpush.bf16.xpose.msra.mxu0 0
      %4282 = vmatpush.bf16.xpose.msra.mxu0 %v4273
      %4283 = vmatmul.bf16.gmra.mxu0 %v4270
      %v4284 = vpop.f32.mrf.mxu0
      %v4285 = vadd.f32 0.0, %v4284
      %v4286 = vpop.f32.mrf.mxu0
      %4287 = vdwg.mxu0
      %4288 = vrot.lane.b32.xlu0 %v1273, 104
      %v4289 = vpop.permute.xlu0 %4288
      %4290 = vrot.lane.b32.xlu0 %v1273, 72
      %v4291 = vpop.permute.xlu0 %4290
      %v4293 = vsel %vm1131, %v4289, 0
      %v4296 = vsel %vm1131, %v4291, 0
      %4298 = vmatpush.bf16.xpose.msra.mxu0 0
      %4299 = vmatpush.bf16.xpose.msra.mxu0 0
      %4300 = vmatpush.bf16.xpose.msra.mxu0 0
      %4301 = vmatpush.bf16.xpose.msra.mxu0 0
      %4302 = vmatpush.bf16.xpose.msra.mxu0 0
      %4303 = vmatpush.bf16.xpose.msra.mxu0 0
      %4304 = vmatpush.bf16.xpose.msra.mxu0 0
      %4305 = vmatpush.bf16.xpose.msra.mxu0 %v4296
      %4306 = vmatmul.bf16.gmra.mxu0 %v4293
      %v4307 = vpop.f32.mrf.mxu0
      %v4308 = vadd.f32 0.0, %v4307
      %v4309 = vpop.f32.mrf.mxu0
      %4310 = vdwg.mxu0
      %4311 = vrot.lane.b32.xlu0 %v1297, 104
      %v4312 = vpop.permute.xlu0 %4311
      %4313 = vrot.lane.b32.xlu0 %v1297, 72
      %v4314 = vpop.permute.xlu0 %4313
      %v4316 = vsel %vm1131, %v4312, 0
      %v4319 = vsel %vm1131, %v4314, 0
      %4321 = vmatpush.bf16.xpose.msra.mxu0 0
      %4322 = vmatpush.bf16.xpose.msra.mxu0 0
      %4323 = vmatpush.bf16.xpose.msra.mxu0 0
      %4324 = vmatpush.bf16.xpose.msra.mxu0 0
      %4325 = vmatpush.bf16.xpose.msra.mxu0 0
      %4326 = vmatpush.bf16.xpose.msra.mxu0 0
      %4327 = vmatpush.bf16.xpose.msra.mxu0 0
      %4328 = vmatpush.bf16.xpose.msra.mxu0 %v4319
      %4329 = vmatmul.bf16.gmra.mxu0 %v4316
      %v4330 = vpop.f32.mrf.mxu0
      %v4331 = vadd.f32 0.0, %v4330
      %v4332 = vpop.f32.mrf.mxu0
      %4333 = vdwg.mxu0
      %4334 = vrot.lane.b32.xlu0 %v1321, 104
      %v4335 = vpop.permute.xlu0 %4334
      %4336 = vrot.lane.b32.xlu0 %v1321, 72
      %v4337 = vpop.permute.xlu0 %4336
      %v4339 = vsel %vm1131, %v4335, 0
      %v4342 = vsel %vm1131, %v4337, 0
      %4344 = vmatpush.bf16.xpose.msra.mxu0 0
      %4345 = vmatpush.bf16.xpose.msra.mxu0 0
      %4346 = vmatpush.bf16.xpose.msra.mxu0 0
      %4347 = vmatpush.bf16.xpose.msra.mxu0 0
      %4348 = vmatpush.bf16.xpose.msra.mxu0 0
      %4349 = vmatpush.bf16.xpose.msra.mxu0 0
      %4350 = vmatpush.bf16.xpose.msra.mxu0 0
      %4351 = vmatpush.bf16.xpose.msra.mxu0 %v4342
      %4352 = vmatmul.bf16.gmra.mxu0 %v4339
      %v4353 = vpop.f32.mrf.mxu0
      %v4354 = vadd.f32 0.0, %v4353
      %v4355 = vpop.f32.mrf.mxu0
      %4356 = vdwg.mxu0
      %4357 = vrot.lane.b32.xlu0 %v1345, 104
      %v4358 = vpop.permute.xlu0 %4357
      %4359 = vrot.lane.b32.xlu0 %v1345, 72
      %v4360 = vpop.permute.xlu0 %4359
      %v4362 = vsel %vm1131, %v4358, 0
      %v4365 = vsel %vm1131, %v4360, 0
      %4367 = vmatpush.bf16.xpose.msra.mxu0 0
      %4368 = vmatpush.bf16.xpose.msra.mxu0 0
      %4369 = vmatpush.bf16.xpose.msra.mxu0 0
      %4370 = vmatpush.bf16.xpose.msra.mxu0 0
      %4371 = vmatpush.bf16.xpose.msra.mxu0 0
      %4372 = vmatpush.bf16.xpose.msra.mxu0 0
      %4373 = vmatpush.bf16.xpose.msra.mxu0 0
      %4374 = vmatpush.bf16.xpose.msra.mxu0 %v4365
      %4375 = vmatmul.bf16.gmra.mxu0 %v4362
      %v4376 = vpop.f32.mrf.mxu0
      %v4377 = vadd.f32 0.0, %v4376
      %v4378 = vpop.f32.mrf.mxu0
      %4379 = vdwg.mxu0
      %4380 = vrot.lane.b32.xlu0 %v1369, 104
      %v4381 = vpop.permute.xlu0 %4380
      %4382 = vrot.lane.b32.xlu0 %v1369, 72
      %v4383 = vpop.permute.xlu0 %4382
      %v4385 = vsel %vm1131, %v4381, 0
      %v4388 = vsel %vm1131, %v4383, 0
      %4390 = vmatpush.bf16.xpose.msra.mxu0 0
      %4391 = vmatpush.bf16.xpose.msra.mxu0 0
      %4392 = vmatpush.bf16.xpose.msra.mxu0 0
      %4393 = vmatpush.bf16.xpose.msra.mxu0 0
      %4394 = vmatpush.bf16.xpose.msra.mxu0 0
      %4395 = vmatpush.bf16.xpose.msra.mxu0 0
      %4396 = vmatpush.bf16.xpose.msra.mxu0 0
      %4397 = vmatpush.bf16.xpose.msra.mxu0 %v4388
      %4398 = vmatmul.bf16.gmra.mxu0 %v4385
      %v4399 = vpop.f32.mrf.mxu0
      %v4400 = vadd.f32 0.0, %v4399
      %v4401 = vpop.f32.mrf.mxu0
      %4402 = vdwg.mxu0
      %4403 = vrot.lane.b32.xlu0 %v1393, 104
      %v4404 = vpop.permute.xlu0 %4403
      %4405 = vrot.lane.b32.xlu0 %v1393, 72
      %v4406 = vpop.permute.xlu0 %4405
      %v4408 = vsel %vm1131, %v4404, 0
      %v4411 = vsel %vm1131, %v4406, 0
      %4413 = vmatpush.bf16.xpose.msra.mxu0 0
      %4414 = vmatpush.bf16.xpose.msra.mxu0 0
      %4415 = vmatpush.bf16.xpose.msra.mxu0 0
      %4416 = vmatpush.bf16.xpose.msra.mxu0 0
      %4417 = vmatpush.bf16.xpose.msra.mxu0 0
      %4418 = vmatpush.bf16.xpose.msra.mxu0 0
      %4419 = vmatpush.bf16.xpose.msra.mxu0 0
      %4420 = vmatpush.bf16.xpose.msra.mxu0 %v4411
      %4421 = vmatmul.bf16.gmra.mxu0 %v4408
      %v4422 = vpop.f32.mrf.mxu0
      %v4423 = vadd.f32 0.0, %v4422
      %v4424 = vpop.f32.mrf.mxu0
      %4425 = vdwg.mxu0
      %4426 = vrot.lane.b32.xlu0 %v1417, 104
      %v4427 = vpop.permute.xlu0 %4426
      %4428 = vrot.lane.b32.xlu0 %v1417, 72
      %v4429 = vpop.permute.xlu0 %4428
      %v4431 = vsel %vm1131, %v4427, 0
      %v4434 = vsel %vm1131, %v4429, 0
      %4436 = vmatpush.bf16.xpose.msra.mxu0 0
      %4437 = vmatpush.bf16.xpose.msra.mxu0 0
      %4438 = vmatpush.bf16.xpose.msra.mxu0 0
      %4439 = vmatpush.bf16.xpose.msra.mxu0 0
      %4440 = vmatpush.bf16.xpose.msra.mxu0 0
      %4441 = vmatpush.bf16.xpose.msra.mxu0 0
      %4442 = vmatpush.bf16.xpose.msra.mxu0 0
      %4443 = vmatpush.bf16.xpose.msra.mxu0 %v4434
      %4444 = vmatmul.bf16.gmra.mxu0 %v4431
      %v4445 = vpop.f32.mrf.mxu0
      %v4446 = vadd.f32 0.0, %v4445
      %v4447 = vpop.f32.mrf.mxu0
      %4448 = vdwg.mxu0
      %4449 = vrot.lane.b32.xlu0 %v1441, 104
      %v4450 = vpop.permute.xlu0 %4449
      %4451 = vrot.lane.b32.xlu0 %v1441, 72
      %v4452 = vpop.permute.xlu0 %4451
      %v4454 = vsel %vm1131, %v4450, 0
      %v4457 = vsel %vm1131, %v4452, 0
      %4459 = vmatpush.bf16.xpose.msra.mxu0 0
      %4460 = vmatpush.bf16.xpose.msra.mxu0 0
      %4461 = vmatpush.bf16.xpose.msra.mxu0 0
      %4462 = vmatpush.bf16.xpose.msra.mxu0 0
      %4463 = vmatpush.bf16.xpose.msra.mxu0 0
      %4464 = vmatpush.bf16.xpose.msra.mxu0 0
      %4465 = vmatpush.bf16.xpose.msra.mxu0 0
      %4466 = vmatpush.bf16.xpose.msra.mxu0 %v4457
      %4467 = vmatmul.bf16.gmra.mxu0 %v4454
      %v4468 = vpop.f32.mrf.mxu0
      %v4469 = vadd.f32 0.0, %v4468
      %v4470 = vpop.f32.mrf.mxu0
      %4471 = vdwg.mxu0
      %4472 = vrot.lane.b32.xlu0 %v1465, 104
      %v4473 = vpop.permute.xlu0 %4472
      %4474 = vrot.lane.b32.xlu0 %v1465, 72
      %v4475 = vpop.permute.xlu0 %4474
      %v4477 = vsel %vm1131, %v4473, 0
      %v4480 = vsel %vm1131, %v4475, 0
      %4482 = vmatpush.bf16.xpose.msra.mxu0 0
      %4483 = vmatpush.bf16.xpose.msra.mxu0 0
      %4484 = vmatpush.bf16.xpose.msra.mxu0 0
      %4485 = vmatpush.bf16.xpose.msra.mxu0 0
      %4486 = vmatpush.bf16.xpose.msra.mxu0 0
      %4487 = vmatpush.bf16.xpose.msra.mxu0 0
      %4488 = vmatpush.bf16.xpose.msra.mxu0 0
      %4489 = vmatpush.bf16.xpose.msra.mxu0 %v4480
      %4490 = vmatmul.bf16.gmra.mxu0 %v4477
      %v4491 = vpop.f32.mrf.mxu0
      %v4492 = vadd.f32 0.0, %v4491
      %v4493 = vpop.f32.mrf.mxu0
      %4494 = vdwg.mxu0
      %4495 = vrot.lane.b32.xlu0 %v1489, 104
      %v4496 = vpop.permute.xlu0 %4495
      %4497 = vrot.lane.b32.xlu0 %v1489, 72
      %v4498 = vpop.permute.xlu0 %4497
      %v4500 = vsel %vm1131, %v4496, 0
      %v4503 = vsel %vm1131, %v4498, 0
      %4505 = vmatpush.bf16.xpose.msra.mxu0 0
      %4506 = vmatpush.bf16.xpose.msra.mxu0 0
      %4507 = vmatpush.bf16.xpose.msra.mxu0 0
      %4508 = vmatpush.bf16.xpose.msra.mxu0 0
      %4509 = vmatpush.bf16.xpose.msra.mxu0 0
      %4510 = vmatpush.bf16.xpose.msra.mxu0 0
      %4511 = vmatpush.bf16.xpose.msra.mxu0 0
      %4512 = vmatpush.bf16.xpose.msra.mxu0 %v4503
      %4513 = vmatmul.bf16.gmra.mxu0 %v4500
      %v4514 = vpop.f32.mrf.mxu0
      %v4515 = vadd.f32 0.0, %v4514
      %v4516 = vpop.f32.mrf.mxu0
      %4517 = vdwg.mxu0
      %v4518 = vsel %vm1512, %v4170, -1e+30
      %v4519 = vsel %vm1512, %v4193, -1e+30
      %v4520 = vsel %vm1512, %v4216, -1e+30
      %v4521 = vsel %vm1512, %v4239, -1e+30
      %v4522 = vsel %vm1512, %v4262, -1e+30
      %v4523 = vsel %vm1512, %v4285, -1e+30
      %v4524 = vsel %vm1512, %v4308, -1e+30
      %v4525 = vsel %vm1512, %v4331, -1e+30
      %v4526 = vsel %vm1512, %v4354, -1e+30
      %v4527 = vsel %vm1512, %v4377, -1e+30
      %v4528 = vsel %vm1512, %v4400, -1e+30
      %v4529 = vsel %vm1512, %v4423, -1e+30
      %v4530 = vsel %vm1512, %v4446, -1e+30
      %v4531 = vsel %vm1512, %v4469, -1e+30
      %v4532 = vsel %vm1512, %v4492, -1e+30
      %v4533 = vsel %vm1512, %v4515, -1e+30
      %v4534 = vsel %vm1131, %v4518, -inf
      %4535 = vmax.xlane.f32.xlu0 %v4534
      %v4536 = vpop.xlane.xlu0 %4535
      %v4537 = vsel %vm1131, %v4519, -inf
      %4538 = vmax.xlane.f32.xlu0 %v4537
      %v4539 = vpop.xlane.xlu0 %4538
      %v4540 = vsel %vm1131, %v4520, -inf
      %4541 = vmax.xlane.f32.xlu0 %v4540
      %v4542 = vpop.xlane.xlu0 %4541
      %v4543 = vsel %vm1131, %v4521, -inf
      %4544 = vmax.xlane.f32.xlu0 %v4543
      %v4545 = vpop.xlane.xlu0 %4544
      %v4546 = vsel %vm1131, %v4522, -inf
      %4547 = vmax.xlane.f32.xlu0 %v4546
      %v4548 = vpop.xlane.xlu0 %4547
      %v4549 = vsel %vm1131, %v4523, -inf
      %4550 = vmax.xlane.f32.xlu0 %v4549
      %v4551 = vpop.xlane.xlu0 %4550
      %v4552 = vsel %vm1131, %v4524, -inf
      %4553 = vmax.xlane.f32.xlu0 %v4552
      %v4554 = vpop.xlane.xlu0 %4553
      %v4555 = vsel %vm1131, %v4525, -inf
      %4556 = vmax.xlane.f32.xlu0 %v4555
      %v4557 = vpop.xlane.xlu0 %4556
      %v4558 = vsel %vm1131, %v4526, -inf
      %4559 = vmax.xlane.f32.xlu0 %v4558
      %v4560 = vpop.xlane.xlu0 %4559
      %v4561 = vsel %vm1131, %v4527, -inf
      %4562 = vmax.xlane.f32.xlu0 %v4561
      %v4563 = vpop.xlane.xlu0 %4562
      %v4564 = vsel %vm1131, %v4528, -inf
      %4565 = vmax.xlane.f32.xlu0 %v4564
      %v4566 = vpop.xlane.xlu0 %4565
      %v4567 = vsel %vm1131, %v4529, -inf
      %4568 = vmax.xlane.f32.xlu0 %v4567
      %v4569 = vpop.xlane.xlu0 %4568
      %v4570 = vsel %vm1131, %v4530, -inf
      %4571 = vmax.xlane.f32.xlu0 %v4570
      %v4572 = vpop.xlane.xlu0 %4571
      %v4573 = vsel %vm1131, %v4531, -inf
      %4574 = vmax.xlane.f32.xlu0 %v4573
      %v4575 = vpop.xlane.xlu0 %4574
      %v4576 = vsel %vm1131, %v4532, -inf
      %4577 = vmax.xlane.f32.xlu0 %v4576
      %v4578 = vpop.xlane.xlu0 %4577
      %v4579 = vsel %vm1131, %v4533, -inf
      %4580 = vmax.xlane.f32.xlu0 %v4579
      %v4581 = vpop.xlane.xlu0 %4580
      %v4582 = vsub.f32 %v4518, %v4536
      %v4583 = vsub.f32 %v4519, %v4539
      %v4584 = vsub.f32 %v4520, %v4542
      %v4585 = vsub.f32 %v4521, %v4545
      %v4586 = vsub.f32 %v4522, %v4548
      %v4587 = vsub.f32 %v4523, %v4551
      %v4588 = vsub.f32 %v4524, %v4554
      %v4589 = vsub.f32 %v4525, %v4557
      %v4590 = vsub.f32 %v4526, %v4560
      %v4591 = vsub.f32 %v4527, %v4563
      %v4592 = vsub.f32 %v4528, %v4566
      %v4593 = vsub.f32 %v4529, %v4569
      %v4594 = vsub.f32 %v4530, %v4572
      %v4595 = vsub.f32 %v4531, %v4575
      %v4596 = vsub.f32 %v4532, %v4578
      %v4597 = vsub.f32 %v4533, %v4581
      %v4598 = vmul.f32 %v4582, 1.442695
      %v4599 = vpow.pop %v4598
      %v4600 = vmul.f32 %v4583, 1.442695
      %v4601 = vpow.pop %v4600
      %v4602 = vmul.f32 %v4584, 1.442695
      %v4603 = vpow.pop %v4602
      %v4604 = vmul.f32 %v4585, 1.442695
      %v4605 = vpow.pop %v4604
      %v4606 = vmul.f32 %v4586, 1.442695
      %v4607 = vpow.pop %v4606
      %v4608 = vmul.f32 %v4587, 1.442695
      %v4609 = vpow.pop %v4608
      %v4610 = vmul.f32 %v4588, 1.442695
      %v4611 = vpow.pop %v4610
      %v4612 = vmul.f32 %v4589, 1.442695
      %v4613 = vpow.pop %v4612
      %v4614 = vmul.f32 %v4590, 1.442695
      %v4615 = vpow.pop %v4614
      %v4616 = vmul.f32 %v4591, 1.442695
      %v4617 = vpow.pop %v4616
      %v4618 = vmul.f32 %v4592, 1.442695
      %v4619 = vpow.pop %v4618
      %v4620 = vmul.f32 %v4593, 1.442695
      %v4621 = vpow.pop %v4620
      %v4622 = vmul.f32 %v4594, 1.442695
      %v4623 = vpow.pop %v4622
      %v4624 = vmul.f32 %v4595, 1.442695
      %v4625 = vpow.pop %v4624
      %v4626 = vmul.f32 %v4596, 1.442695
      %v4627 = vpow.pop %v4626
      %v4628 = vmul.f32 %v4597, 1.442695
      %v4629 = vpow.pop %v4628
      %v4630 = vsel %vm1131, %v4599, 0.0
      %4631 = vadd.xlane.f32.xlu0 %v4630
      %v4632 = vpop.xlane.xlu0 %4631
      %v4633 = vsel %vm1131, %v4601, 0.0
      %4634 = vadd.xlane.f32.xlu0 %v4633
      %v4635 = vpop.xlane.xlu0 %4634
      %v4636 = vsel %vm1131, %v4603, 0.0
      %4637 = vadd.xlane.f32.xlu0 %v4636
      %v4638 = vpop.xlane.xlu0 %4637
      %v4639 = vsel %vm1131, %v4605, 0.0
      %4640 = vadd.xlane.f32.xlu0 %v4639
      %v4641 = vpop.xlane.xlu0 %4640
      %v4642 = vsel %vm1131, %v4607, 0.0
      %4643 = vadd.xlane.f32.xlu0 %v4642
      %v4644 = vpop.xlane.xlu0 %4643
      %v4645 = vsel %vm1131, %v4609, 0.0
      %4646 = vadd.xlane.f32.xlu0 %v4645
      %v4647 = vpop.xlane.xlu0 %4646
      %v4648 = vsel %vm1131, %v4611, 0.0
      %4649 = vadd.xlane.f32.xlu0 %v4648
      %v4650 = vpop.xlane.xlu0 %4649
      %v4651 = vsel %vm1131, %v4613, 0.0
      %4652 = vadd.xlane.f32.xlu0 %v4651
      %v4653 = vpop.xlane.xlu0 %4652
      %v4654 = vsel %vm1131, %v4615, 0.0
      %4655 = vadd.xlane.f32.xlu0 %v4654
      %v4656 = vpop.xlane.xlu0 %4655
      %v4657 = vsel %vm1131, %v4617, 0.0
      %4658 = vadd.xlane.f32.xlu0 %v4657
      %v4659 = vpop.xlane.xlu0 %4658
      %v4660 = vsel %vm1131, %v4619, 0.0
      %4661 = vadd.xlane.f32.xlu0 %v4660
      %v4662 = vpop.xlane.xlu0 %4661
      %v4663 = vsel %vm1131, %v4621, 0.0
      %4664 = vadd.xlane.f32.xlu0 %v4663
      %v4665 = vpop.xlane.xlu0 %4664
      %v4666 = vsel %vm1131, %v4623, 0.0
      %4667 = vadd.xlane.f32.xlu0 %v4666
      %v4668 = vpop.xlane.xlu0 %4667
      %v4669 = vsel %vm1131, %v4625, 0.0
      %4670 = vadd.xlane.f32.xlu0 %v4669
      %v4671 = vpop.xlane.xlu0 %4670
      %v4672 = vsel %vm1131, %v4627, 0.0
      %4673 = vadd.xlane.f32.xlu0 %v4672
      %v4674 = vpop.xlane.xlu0 %4673
      %v4675 = vsel %vm1131, %v4629, 0.0
      %4676 = vadd.xlane.f32.xlu0 %v4675
      %v4677 = vpop.xlane.xlu0 %4676
      %v4678 = vrcp.pop %v4632
      %v4679 = vrcp.pop %v4635
      %v4680 = vrcp.pop %v4638
      %v4681 = vrcp.pop %v4641
      %v4682 = vrcp.pop %v4644
      %v4683 = vrcp.pop %v4647
      %v4684 = vrcp.pop %v4650
      %v4685 = vrcp.pop %v4653
      %v4686 = vrcp.pop %v4656
      %v4687 = vrcp.pop %v4659
      %v4688 = vrcp.pop %v4662
      %v4689 = vrcp.pop %v4665
      %v4690 = vrcp.pop %v4668
      %v4691 = vrcp.pop %v4671
      %v4692 = vrcp.pop %v4674
      %v4693 = vrcp.pop %v4677
      %v4694 = vmul.f32 %v4599, %v4678
      %v4695 = vmul.f32 %v4601, %v4679
      %v4696 = vmul.f32 %v4603, %v4680
      %v4697 = vmul.f32 %v4605, %v4681
      %v4698 = vmul.f32 %v4607, %v4682
      %v4699 = vmul.f32 %v4609, %v4683
      %v4700 = vmul.f32 %v4611, %v4684
      %v4701 = vmul.f32 %v4613, %v4685
      %v4702 = vmul.f32 %v4615, %v4686
      %v4703 = vmul.f32 %v4617, %v4687
      %v4704 = vmul.f32 %v4619, %v4688
      %v4705 = vmul.f32 %v4621, %v4689
      %v4706 = vmul.f32 %v4623, %v4690
      %v4707 = vmul.f32 %v4625, %v4691
      %v4708 = vmul.f32 %v4627, %v4692
      %v4709 = vmul.f32 %v4629, %v4693
      %v4710 = vpack.c.bf16 %v4694, %v4694
      %v4711 = vpack.c.bf16 %v4695, %v4695
      %v4712 = vpack.c.bf16 %v4696, %v4696
      %v4713 = vpack.c.bf16 %v4697, %v4697
      %v4714 = vpack.c.bf16 %v4698, %v4698
      %v4715 = vpack.c.bf16 %v4699, %v4699
      %v4716 = vpack.c.bf16 %v4700, %v4700
      %v4717 = vpack.c.bf16 %v4701, %v4701
      %v4718 = vpack.c.bf16 %v4702, %v4702
      %v4719 = vpack.c.bf16 %v4703, %v4703
      %v4720 = vpack.c.bf16 %v4704, %v4704
      %v4721 = vpack.c.bf16 %v4705, %v4705
      %v4722 = vpack.c.bf16 %v4706, %v4706
      %v4723 = vpack.c.bf16 %v4707, %v4707
      %v4724 = vpack.c.bf16 %v4708, %v4708
      %v4725 = vpack.c.bf16 %v4709, %v4709
      %4726 = vrot.lane.b32.xlu0 %v1128, 40
      %v4727 = vpop.permute.xlu0 %4726
      %v4729 = vsel %vm1131, %v4710, 0
      %v4732 = vsel %vm1726, %v4727, 0
      %4734 = vmatpush.bf16.msra.mxu0 0
      %4735 = vmatpush.bf16.msra.mxu0 0
      %4736 = vmatpush.bf16.msra.mxu0 0
      %4737 = vmatpush.bf16.msra.mxu0 0
      %4738 = vmatpush.bf16.msra.mxu0 0
      %4739 = vmatpush.bf16.msra.mxu0 0
      %4740 = vmatpush.bf16.msra.mxu0 0
      %4741 = vmatpush.bf16.msra.mxu0 %v4732
      %4742 = vmatmul.bf16.gmra.mxu0 %v4729
      %v4743 = vpop.f32.mrf.mxu0
      %v4744 = vadd.f32 0.0, %v4743
      %v4745 = vpop.f32.mrf.mxu0
      %4746 = vdwg.mxu0
      %4747 = vrot.lane.b32.xlu0 %v1153, 40
      %v4748 = vpop.permute.xlu0 %4747
      %v4750 = vsel %vm1131, %v4711, 0
      %v4753 = vsel %vm1726, %v4748, 0
      %4755 = vmatpush.bf16.msra.mxu0 0
      %4756 = vmatpush.bf16.msra.mxu0 0
      %4757 = vmatpush.bf16.msra.mxu0 0
      %4758 = vmatpush.bf16.msra.mxu0 0
      %4759 = vmatpush.bf16.msra.mxu0 0
      %4760 = vmatpush.bf16.msra.mxu0 0
      %4761 = vmatpush.bf16.msra.mxu0 0
      %4762 = vmatpush.bf16.msra.mxu0 %v4753
      %4763 = vmatmul.bf16.gmra.mxu0 %v4750
      %v4764 = vpop.f32.mrf.mxu0
      %v4765 = vadd.f32 0.0, %v4764
      %v4766 = vpop.f32.mrf.mxu0
      %4767 = vdwg.mxu0
      %4768 = vrot.lane.b32.xlu0 %v1177, 40
      %v4769 = vpop.permute.xlu0 %4768
      %v4771 = vsel %vm1131, %v4712, 0
      %v4774 = vsel %vm1726, %v4769, 0
      %4776 = vmatpush.bf16.msra.mxu0 0
      %4777 = vmatpush.bf16.msra.mxu0 0
      %4778 = vmatpush.bf16.msra.mxu0 0
      %4779 = vmatpush.bf16.msra.mxu0 0
      %4780 = vmatpush.bf16.msra.mxu0 0
      %4781 = vmatpush.bf16.msra.mxu0 0
      %4782 = vmatpush.bf16.msra.mxu0 0
      %4783 = vmatpush.bf16.msra.mxu0 %v4774
      %4784 = vmatmul.bf16.gmra.mxu0 %v4771
      %v4785 = vpop.f32.mrf.mxu0
      %v4786 = vadd.f32 0.0, %v4785
      %v4787 = vpop.f32.mrf.mxu0
      %4788 = vdwg.mxu0
      %4789 = vrot.lane.b32.xlu0 %v1201, 40
      %v4790 = vpop.permute.xlu0 %4789
      %v4792 = vsel %vm1131, %v4713, 0
      %v4795 = vsel %vm1726, %v4790, 0
      %4797 = vmatpush.bf16.msra.mxu0 0
      %4798 = vmatpush.bf16.msra.mxu0 0
      %4799 = vmatpush.bf16.msra.mxu0 0
      %4800 = vmatpush.bf16.msra.mxu0 0
      %4801 = vmatpush.bf16.msra.mxu0 0
      %4802 = vmatpush.bf16.msra.mxu0 0
      %4803 = vmatpush.bf16.msra.mxu0 0
      %4804 = vmatpush.bf16.msra.mxu0 %v4795
      %4805 = vmatmul.bf16.gmra.mxu0 %v4792
      %v4806 = vpop.f32.mrf.mxu0
      %v4807 = vadd.f32 0.0, %v4806
      %v4808 = vpop.f32.mrf.mxu0
      %4809 = vdwg.mxu0
      %4810 = vrot.lane.b32.xlu0 %v1225, 40
      %v4811 = vpop.permute.xlu0 %4810
      %v4813 = vsel %vm1131, %v4714, 0
      %v4816 = vsel %vm1726, %v4811, 0
      %4818 = vmatpush.bf16.msra.mxu0 0
      %4819 = vmatpush.bf16.msra.mxu0 0
      %4820 = vmatpush.bf16.msra.mxu0 0
      %4821 = vmatpush.bf16.msra.mxu0 0
      %4822 = vmatpush.bf16.msra.mxu0 0
      %4823 = vmatpush.bf16.msra.mxu0 0
      %4824 = vmatpush.bf16.msra.mxu0 0
      %4825 = vmatpush.bf16.msra.mxu0 %v4816
      %4826 = vmatmul.bf16.gmra.mxu0 %v4813
      %v4827 = vpop.f32.mrf.mxu0
      %v4828 = vadd.f32 0.0, %v4827
      %v4829 = vpop.f32.mrf.mxu0
      %4830 = vdwg.mxu0
      %4831 = vrot.lane.b32.xlu0 %v1249, 40
      %v4832 = vpop.permute.xlu0 %4831
      %v4834 = vsel %vm1131, %v4715, 0
      %v4837 = vsel %vm1726, %v4832, 0
      %4839 = vmatpush.bf16.msra.mxu0 0
      %4840 = vmatpush.bf16.msra.mxu0 0
      %4841 = vmatpush.bf16.msra.mxu0 0
      %4842 = vmatpush.bf16.msra.mxu0 0
      %4843 = vmatpush.bf16.msra.mxu0 0
      %4844 = vmatpush.bf16.msra.mxu0 0
      %4845 = vmatpush.bf16.msra.mxu0 0
      %4846 = vmatpush.bf16.msra.mxu0 %v4837
      %4847 = vmatmul.bf16.gmra.mxu0 %v4834
      %v4848 = vpop.f32.mrf.mxu0
      %v4849 = vadd.f32 0.0, %v4848
      %v4850 = vpop.f32.mrf.mxu0
      %4851 = vdwg.mxu0
      %4852 = vrot.lane.b32.xlu0 %v1273, 40
      %v4853 = vpop.permute.xlu0 %4852
      %v4855 = vsel %vm1131, %v4716, 0
      %v4858 = vsel %vm1726, %v4853, 0
      %4860 = vmatpush.bf16.msra.mxu0 0
      %4861 = vmatpush.bf16.msra.mxu0 0
      %4862 = vmatpush.bf16.msra.mxu0 0
      %4863 = vmatpush.bf16.msra.mxu0 0
      %4864 = vmatpush.bf16.msra.mxu0 0
      %4865 = vmatpush.bf16.msra.mxu0 0
      %4866 = vmatpush.bf16.msra.mxu0 0
      %4867 = vmatpush.bf16.msra.mxu0 %v4858
      %4868 = vmatmul.bf16.gmra.mxu0 %v4855
      %v4869 = vpop.f32.mrf.mxu0
      %v4870 = vadd.f32 0.0, %v4869
      %v4871 = vpop.f32.mrf.mxu0
      %4872 = vdwg.mxu0
      %4873 = vrot.lane.b32.xlu0 %v1297, 40
      %v4874 = vpop.permute.xlu0 %4873
      %v4876 = vsel %vm1131, %v4717, 0
      %v4879 = vsel %vm1726, %v4874, 0
      %4881 = vmatpush.bf16.msra.mxu0 0
      %4882 = vmatpush.bf16.msra.mxu0 0
      %4883 = vmatpush.bf16.msra.mxu0 0
      %4884 = vmatpush.bf16.msra.mxu0 0
      %4885 = vmatpush.bf16.msra.mxu0 0
      %4886 = vmatpush.bf16.msra.mxu0 0
      %4887 = vmatpush.bf16.msra.mxu0 0
      %4888 = vmatpush.bf16.msra.mxu0 %v4879
      %4889 = vmatmul.bf16.gmra.mxu0 %v4876
      %v4890 = vpop.f32.mrf.mxu0
      %v4891 = vadd.f32 0.0, %v4890
      %v4892 = vpop.f32.mrf.mxu0
      %4893 = vdwg.mxu0
      %4894 = vrot.lane.b32.xlu0 %v1321, 40
      %v4895 = vpop.permute.xlu0 %4894
      %v4897 = vsel %vm1131, %v4718, 0
      %v4900 = vsel %vm1726, %v4895, 0
      %4902 = vmatpush.bf16.msra.mxu0 0
      %4903 = vmatpush.bf16.msra.mxu0 0
      %4904 = vmatpush.bf16.msra.mxu0 0
      %4905 = vmatpush.bf16.msra.mxu0 0
      %4906 = vmatpush.bf16.msra.mxu0 0
      %4907 = vmatpush.bf16.msra.mxu0 0
      %4908 = vmatpush.bf16.msra.mxu0 0
      %4909 = vmatpush.bf16.msra.mxu0 %v4900
      %4910 = vmatmul.bf16.gmra.mxu0 %v4897
      %v4911 = vpop.f32.mrf.mxu0
      %v4912 = vadd.f32 0.0, %v4911
      %v4913 = vpop.f32.mrf.mxu0
      %4914 = vdwg.mxu0
      %4915 = vrot.lane.b32.xlu0 %v1345, 40
      %v4916 = vpop.permute.xlu0 %4915
      %v4918 = vsel %vm1131, %v4719, 0
      %v4921 = vsel %vm1726, %v4916, 0
      %4923 = vmatpush.bf16.msra.mxu0 0
      %4924 = vmatpush.bf16.msra.mxu0 0
      %4925 = vmatpush.bf16.msra.mxu0 0
      %4926 = vmatpush.bf16.msra.mxu0 0
      %4927 = vmatpush.bf16.msra.mxu0 0
      %4928 = vmatpush.bf16.msra.mxu0 0
      %4929 = vmatpush.bf16.msra.mxu0 0
      %4930 = vmatpush.bf16.msra.mxu0 %v4921
      %4931 = vmatmul.bf16.gmra.mxu0 %v4918
      %v4932 = vpop.f32.mrf.mxu0
      %v4933 = vadd.f32 0.0, %v4932
      %v4934 = vpop.f32.mrf.mxu0
      %4935 = vdwg.mxu0
      %4936 = vrot.lane.b32.xlu0 %v1369, 40
      %v4937 = vpop.permute.xlu0 %4936
      %v4939 = vsel %vm1131, %v4720, 0
      %v4942 = vsel %vm1726, %v4937, 0
      %4944 = vmatpush.bf16.msra.mxu0 0
      %4945 = vmatpush.bf16.msra.mxu0 0
      %4946 = vmatpush.bf16.msra.mxu0 0
      %4947 = vmatpush.bf16.msra.mxu0 0
      %4948 = vmatpush.bf16.msra.mxu0 0
      %4949 = vmatpush.bf16.msra.mxu0 0
      %4950 = vmatpush.bf16.msra.mxu0 0
      %4951 = vmatpush.bf16.msra.mxu0 %v4942
      %4952 = vmatmul.bf16.gmra.mxu0 %v4939
      %v4953 = vpop.f32.mrf.mxu0
      %v4954 = vadd.f32 0.0, %v4953
      %v4955 = vpop.f32.mrf.mxu0
      %4956 = vdwg.mxu0
      %4957 = vrot.lane.b32.xlu0 %v1393, 40
      %v4958 = vpop.permute.xlu0 %4957
      %v4960 = vsel %vm1131, %v4721, 0
      %v4963 = vsel %vm1726, %v4958, 0
      %4965 = vmatpush.bf16.msra.mxu0 0
      %4966 = vmatpush.bf16.msra.mxu0 0
      %4967 = vmatpush.bf16.msra.mxu0 0
      %4968 = vmatpush.bf16.msra.mxu0 0
      %4969 = vmatpush.bf16.msra.mxu0 0
      %4970 = vmatpush.bf16.msra.mxu0 0
      %4971 = vmatpush.bf16.msra.mxu0 0
      %4972 = vmatpush.bf16.msra.mxu0 %v4963
      %4973 = vmatmul.bf16.gmra.mxu0 %v4960
      %v4974 = vpop.f32.mrf.mxu0
      %v4975 = vadd.f32 0.0, %v4974
      %v4976 = vpop.f32.mrf.mxu0
      %4977 = vdwg.mxu0
      %4978 = vrot.lane.b32.xlu0 %v1417, 40
      %v4979 = vpop.permute.xlu0 %4978
      %v4981 = vsel %vm1131, %v4722, 0
      %v4984 = vsel %vm1726, %v4979, 0
      %4986 = vmatpush.bf16.msra.mxu0 0
      %4987 = vmatpush.bf16.msra.mxu0 0
      %4988 = vmatpush.bf16.msra.mxu0 0
      %4989 = vmatpush.bf16.msra.mxu0 0
      %4990 = vmatpush.bf16.msra.mxu0 0
      %4991 = vmatpush.bf16.msra.mxu0 0
      %4992 = vmatpush.bf16.msra.mxu0 0
      %4993 = vmatpush.bf16.msra.mxu0 %v4984
      %4994 = vmatmul.bf16.gmra.mxu0 %v4981
      %v4995 = vpop.f32.mrf.mxu0
      %v4996 = vadd.f32 0.0, %v4995
      %v4997 = vpop.f32.mrf.mxu0
      %4998 = vdwg.mxu0
      %4999 = vrot.lane.b32.xlu0 %v1441, 40
      %v5000 = vpop.permute.xlu0 %4999
      %v5002 = vsel %vm1131, %v4723, 0
      %v5005 = vsel %vm1726, %v5000, 0
      %5007 = vmatpush.bf16.msra.mxu0 0
      %5008 = vmatpush.bf16.msra.mxu0 0
      %5009 = vmatpush.bf16.msra.mxu0 0
      %5010 = vmatpush.bf16.msra.mxu0 0
      %5011 = vmatpush.bf16.msra.mxu0 0
      %5012 = vmatpush.bf16.msra.mxu0 0
      %5013 = vmatpush.bf16.msra.mxu0 0
      %5014 = vmatpush.bf16.msra.mxu0 %v5005
      %5015 = vmatmul.bf16.gmra.mxu0 %v5002
      %v5016 = vpop.f32.mrf.mxu0
      %v5017 = vadd.f32 0.0, %v5016
      %v5018 = vpop.f32.mrf.mxu0
      %5019 = vdwg.mxu0
      %5020 = vrot.lane.b32.xlu0 %v1465, 40
      %v5021 = vpop.permute.xlu0 %5020
      %v5023 = vsel %vm1131, %v4724, 0
      %v5026 = vsel %vm1726, %v5021, 0
      %5028 = vmatpush.bf16.msra.mxu0 0
      %5029 = vmatpush.bf16.msra.mxu0 0
      %5030 = vmatpush.bf16.msra.mxu0 0
      %5031 = vmatpush.bf16.msra.mxu0 0
      %5032 = vmatpush.bf16.msra.mxu0 0
      %5033 = vmatpush.bf16.msra.mxu0 0
      %5034 = vmatpush.bf16.msra.mxu0 0
      %5035 = vmatpush.bf16.msra.mxu0 %v5026
      %5036 = vmatmul.bf16.gmra.mxu0 %v5023
      %v5037 = vpop.f32.mrf.mxu0
      %v5038 = vadd.f32 0.0, %v5037
      %v5039 = vpop.f32.mrf.mxu0
      %5040 = vdwg.mxu0
      %5041 = vrot.lane.b32.xlu0 %v1489, 40
      %v5042 = vpop.permute.xlu0 %5041
      %v5044 = vsel %vm1131, %v4725, 0
      %v5047 = vsel %vm1726, %v5042, 0
      %5049 = vmatpush.bf16.msra.mxu0 0
      %5050 = vmatpush.bf16.msra.mxu0 0
      %5051 = vmatpush.bf16.msra.mxu0 0
      %5052 = vmatpush.bf16.msra.mxu0 0
      %5053 = vmatpush.bf16.msra.mxu0 0
      %5054 = vmatpush.bf16.msra.mxu0 0
      %5055 = vmatpush.bf16.msra.mxu0 0
      %5056 = vmatpush.bf16.msra.mxu0 %v5047
      %5057 = vmatmul.bf16.gmra.mxu0 %v5044
      %v5058 = vpop.f32.mrf.mxu0
      %v5059 = vadd.f32 0.0, %v5058
      %v5060 = vpop.f32.mrf.mxu0
      %5061 = vdwg.mxu0
      %v5062 = vpack.c.bf16 %v4765, %v4744
      %v5063 = vpack.c.bf16 %v4807, %v4786
      %v5064 = vpack.c.bf16 %v4849, %v4828
      %v5065 = vpack.c.bf16 %v4891, %v4870
      %v5066 = vpack.c.bf16 %v4933, %v4912
      %v5067 = vpack.c.bf16 %v4975, %v4954
      %v5068 = vpack.c.bf16 %v5017, %v4996
      %v5069 = vpack.c.bf16 %v5059, %v5038
      %v5071 = vsel %vm1131, %v5062, 0
      %v5074 = vsel %vm1131, %v5063, 0
      %v5077 = vsel %vm1131, %v5064, 0
      %v5080 = vsel %vm1131, %v5065, 0
      %v5083 = vsel %vm1131, %v5066, 0
      %v5086 = vsel %vm1131, %v5067, 0
      %v5089 = vsel %vm1131, %v5068, 0
      %v5092 = vsel %vm1131, %v5069, 0
      %v5095 = vsel %vm1726, %v1109, 0
      %5097 = vmatpush.bf16.msra.mxu0 0
      %5098 = vmatpush.bf16.msra.mxu0 0
      %5099 = vmatpush.bf16.msra.mxu0 0
      %5100 = vmatpush.bf16.msra.mxu0 0
      %5101 = vmatpush.bf16.msra.mxu0 0
      %5102 = vmatpush.bf16.msra.mxu0 0
      %5103 = vmatpush.bf16.msra.mxu0 0
      %5104 = vmatpush.bf16.msra.mxu0 %v5095
      %5105 = vmatmul.bf16.gmra.mxu0 %v5071
      %v5106 = vpop.f32.mrf.mxu0
      %v5107 = vadd.f32 0.0, %v5106
      %v5108 = vpop.f32.mrf.mxu0
      %v5109 = vadd.f32 0.0, %v5108
      %5110 = vmatmul.bf16.gmra.mxu0 %v5074
      %v5111 = vpop.f32.mrf.mxu0
      %v5112 = vadd.f32 0.0, %v5111
      %v5113 = vpop.f32.mrf.mxu0
      %v5114 = vadd.f32 0.0, %v5113
      %5115 = vmatmul.bf16.gmra.mxu0 %v5077
      %v5116 = vpop.f32.mrf.mxu0
      %v5117 = vadd.f32 0.0, %v5116
      %v5118 = vpop.f32.mrf.mxu0
      %v5119 = vadd.f32 0.0, %v5118
      %5120 = vmatmul.bf16.gmra.mxu0 %v5080
      %v5121 = vpop.f32.mrf.mxu0
      %v5122 = vadd.f32 0.0, %v5121
      %v5123 = vpop.f32.mrf.mxu0
      %v5124 = vadd.f32 0.0, %v5123
      %5125 = vmatmul.bf16.gmra.mxu0 %v5083
      %v5126 = vpop.f32.mrf.mxu0
      %v5127 = vadd.f32 0.0, %v5126
      %v5128 = vpop.f32.mrf.mxu0
      %v5129 = vadd.f32 0.0, %v5128
      %5130 = vmatmul.bf16.gmra.mxu0 %v5086
      %v5131 = vpop.f32.mrf.mxu0
      %v5132 = vadd.f32 0.0, %v5131
      %v5133 = vpop.f32.mrf.mxu0
      %v5134 = vadd.f32 0.0, %v5133
      %5135 = vmatmul.bf16.gmra.mxu0 %v5089
      %v5136 = vpop.f32.mrf.mxu0
      %v5137 = vadd.f32 0.0, %v5136
      %v5138 = vpop.f32.mrf.mxu0
      %v5139 = vadd.f32 0.0, %v5138
      %5140 = vmatmul.bf16.gmra.mxu0 %v5092
      %v5141 = vpop.f32.mrf.mxu0
      %v5142 = vadd.f32 0.0, %v5141
      %v5143 = vpop.f32.mrf.mxu0
      %v5144 = vadd.f32 0.0, %v5143
      %5145 = vdwg.mxu0
      %v5146 = vadd.f32 %v4134, %v5107
      %v5147 = vadd.f32 %v4135, %v5109
      %v5148 = vadd.f32 %v4136, %v5112
      %v5149 = vadd.f32 %v4137, %v5114
      %v5150 = vadd.f32 %v4138, %v5117
      %v5151 = vadd.f32 %v4139, %v5119
      %v5152 = vadd.f32 %v4140, %v5122
      %v5153 = vadd.f32 %v4141, %v5124
      %v5154 = vadd.f32 %v4142, %v5127
      %v5155 = vadd.f32 %v4143, %v5129
      %v5156 = vadd.f32 %v4144, %v5132
      %v5157 = vadd.f32 %v4145, %v5134
      %v5158 = vadd.f32 %v4146, %v5137
      %v5159 = vadd.f32 %v4147, %v5139
      %v5160 = vadd.f32 %v4148, %v5142
      %v5161 = vadd.f32 %v4149, %v5144
      %v5162 = vadd.f32 %v589, %v5146
      %v5163 = vadd.f32 %v590, %v5147
      %v5164 = vadd.f32 %v591, %v5148
      %v5165 = vadd.f32 %v592, %v5149
      %v5166 = vadd.f32 %v593, %v5150
      %v5167 = vadd.f32 %v594, %v5151
      %v5168 = vadd.f32 %v595, %v5152
      %v5169 = vadd.f32 %v596, %v5153
      %v5170 = vadd.f32 %v597, %v5154
      %v5171 = vadd.f32 %v598, %v5155
      %v5172 = vadd.f32 %v599, %v5156
      %v5173 = vadd.f32 %v600, %v5157
      %v5174 = vadd.f32 %v601, %v5158
      %v5175 = vadd.f32 %v602, %v5159
      %v5176 = vadd.f32 %v603, %v5160
      %v5177 = vadd.f32 %v604, %v5161
      %v5178 = vperm.slane %v605, 2
      %v5179 = vadd.f32 %v5162, %v5178
      %v5180 = vadd.f32 %v5163, %v5178
      %v5181 = vadd.f32 %v5164, %v5178
      %v5182 = vadd.f32 %v5165, %v5178
      %v5183 = vadd.f32 %v5166, %v5178
      %v5184 = vadd.f32 %v5167, %v5178
      %v5185 = vadd.f32 %v5168, %v5178
      %v5186 = vadd.f32 %v5169, %v5178
      %v5187 = vadd.f32 %v5170, %v5178
      %v5188 = vadd.f32 %v5171, %v5178
      %v5189 = vadd.f32 %v5172, %v5178
      %v5190 = vadd.f32 %v5173, %v5178
      %v5191 = vadd.f32 %v5174, %v5178
      %v5192 = vadd.f32 %v5175, %v5178
      %v5193 = vadd.f32 %v5176, %v5178
      %v5194 = vadd.f32 %v5177, %v5178
      %v5195 = vsel %vm606, %v5179, 0.0
      %5196 = vadd.xlane.f32.xlu0 %v5195
      %v5197 = vpop.xlane.xlu0 %5196
      %v5198 = vsel %vm606, %v5180, 0.0
      %5199 = vadd.xlane.f32.xlu0 %v5198
      %v5200 = vpop.xlane.xlu0 %5199
      %v5201 = vsel %vm606, %v5181, 0.0
      %5202 = vadd.xlane.f32.xlu0 %v5201
      %v5203 = vpop.xlane.xlu0 %5202
      %v5204 = vsel %vm606, %v5182, 0.0
      %5205 = vadd.xlane.f32.xlu0 %v5204
      %v5206 = vpop.xlane.xlu0 %5205
      %v5207 = vsel %vm606, %v5183, 0.0
      %5208 = vadd.xlane.f32.xlu0 %v5207
      %v5209 = vpop.xlane.xlu0 %5208
      %v5210 = vsel %vm606, %v5184, 0.0
      %5211 = vadd.xlane.f32.xlu0 %v5210
      %v5212 = vpop.xlane.xlu0 %5211
      %v5213 = vsel %vm606, %v5185, 0.0
      %5214 = vadd.xlane.f32.xlu0 %v5213
      %v5215 = vpop.xlane.xlu0 %5214
      %v5216 = vsel %vm606, %v5186, 0.0
      %5217 = vadd.xlane.f32.xlu0 %v5216
      %v5218 = vpop.xlane.xlu0 %5217
      %v5219 = vsel %vm606, %v5187, 0.0
      %5220 = vadd.xlane.f32.xlu0 %v5219
      %v5221 = vpop.xlane.xlu0 %5220
      %v5222 = vsel %vm606, %v5188, 0.0
      %5223 = vadd.xlane.f32.xlu0 %v5222
      %v5224 = vpop.xlane.xlu0 %5223
      %v5225 = vsel %vm606, %v5189, 0.0
      %5226 = vadd.xlane.f32.xlu0 %v5225
      %v5227 = vpop.xlane.xlu0 %5226
      %v5228 = vsel %vm606, %v5190, 0.0
      %5229 = vadd.xlane.f32.xlu0 %v5228
      %v5230 = vpop.xlane.xlu0 %5229
      %v5231 = vsel %vm606, %v5191, 0.0
      %5232 = vadd.xlane.f32.xlu0 %v5231
      %v5233 = vpop.xlane.xlu0 %5232
      %v5234 = vsel %vm606, %v5192, 0.0
      %5235 = vadd.xlane.f32.xlu0 %v5234
      %v5236 = vpop.xlane.xlu0 %5235
      %v5237 = vsel %vm606, %v5193, 0.0
      %5238 = vadd.xlane.f32.xlu0 %v5237
      %v5239 = vpop.xlane.xlu0 %5238
      %v5240 = vsel %vm606, %v5194, 0.0
      %5241 = vadd.xlane.f32.xlu0 %v5240
      %v5242 = vpop.xlane.xlu0 %5241
      %v5243 = vmul.f32 %v5197, %v661
      %v5244 = vmul.f32 %v5200, %v661
      %v5245 = vmul.f32 %v5203, %v661
      %v5246 = vmul.f32 %v5206, %v661
      %v5247 = vmul.f32 %v5209, %v661
      %v5248 = vmul.f32 %v5212, %v661
      %v5249 = vmul.f32 %v5215, %v661
      %v5250 = vmul.f32 %v5218, %v661
      %v5251 = vmul.f32 %v5221, %v661
      %v5252 = vmul.f32 %v5224, %v661
      %v5253 = vmul.f32 %v5227, %v661
      %v5254 = vmul.f32 %v5230, %v661
      %v5255 = vmul.f32 %v5233, %v661
      %v5256 = vmul.f32 %v5236, %v661
      %v5257 = vmul.f32 %v5239, %v661
      %v5258 = vmul.f32 %v5242, %v661
      %v5259 = vsub.f32 %v5179, %v5243
      %v5260 = vsub.f32 %v5180, %v5244
      %v5261 = vsub.f32 %v5181, %v5245
      %v5262 = vsub.f32 %v5182, %v5246
      %v5263 = vsub.f32 %v5183, %v5247
      %v5264 = vsub.f32 %v5184, %v5248
      %v5265 = vsub.f32 %v5185, %v5249
      %v5266 = vsub.f32 %v5186, %v5250
      %v5267 = vsub.f32 %v5187, %v5251
      %v5268 = vsub.f32 %v5188, %v5252
      %v5269 = vsub.f32 %v5189, %v5253
      %v5270 = vsub.f32 %v5190, %v5254
      %v5271 = vsub.f32 %v5191, %v5255
      %v5272 = vsub.f32 %v5192, %v5256
      %v5273 = vsub.f32 %v5193, %v5257
      %v5274 = vsub.f32 %v5194, %v5258
      %v5275 = vmul.f32 %v5259, %v5259
      %v5276 = vmul.f32 %v5260, %v5260
      %v5277 = vmul.f32 %v5261, %v5261
      %v5278 = vmul.f32 %v5262, %v5262
      %v5279 = vmul.f32 %v5263, %v5263
      %v5280 = vmul.f32 %v5264, %v5264
      %v5281 = vmul.f32 %v5265, %v5265
      %v5282 = vmul.f32 %v5266, %v5266
      %v5283 = vmul.f32 %v5267, %v5267
      %v5284 = vmul.f32 %v5268, %v5268
      %v5285 = vmul.f32 %v5269, %v5269
      %v5286 = vmul.f32 %v5270, %v5270
      %v5287 = vmul.f32 %v5271, %v5271
      %v5288 = vmul.f32 %v5272, %v5272
      %v5289 = vmul.f32 %v5273, %v5273
      %v5290 = vmul.f32 %v5274, %v5274
      %v5291 = vsel %vm606, %v5275, 0.0
      %5292 = vadd.xlane.f32.xlu0 %v5291
      %v5293 = vpop.xlane.xlu0 %5292
      %v5294 = vsel %vm606, %v5276, 0.0
      %5295 = vadd.xlane.f32.xlu0 %v5294
      %v5296 = vpop.xlane.xlu0 %5295
      %v5297 = vsel %vm606, %v5277, 0.0
      %5298 = vadd.xlane.f32.xlu0 %v5297
      %v5299 = vpop.xlane.xlu0 %5298
      %v5300 = vsel %vm606, %v5278, 0.0
      %5301 = vadd.xlane.f32.xlu0 %v5300
      %v5302 = vpop.xlane.xlu0 %5301
      %v5303 = vsel %vm606, %v5279, 0.0
      %5304 = vadd.xlane.f32.xlu0 %v5303
      %v5305 = vpop.xlane.xlu0 %5304
      %v5306 = vsel %vm606, %v5280, 0.0
      %5307 = vadd.xlane.f32.xlu0 %v5306
      %v5308 = vpop.xlane.xlu0 %5307
      %v5309 = vsel %vm606, %v5281, 0.0
      %5310 = vadd.xlane.f32.xlu0 %v5309
      %v5311 = vpop.xlane.xlu0 %5310
      %v5312 = vsel %vm606, %v5282, 0.0
      %5313 = vadd.xlane.f32.xlu0 %v5312
      %v5314 = vpop.xlane.xlu0 %5313
      %v5315 = vsel %vm606, %v5283, 0.0
      %5316 = vadd.xlane.f32.xlu0 %v5315
      %v5317 = vpop.xlane.xlu0 %5316
      %v5318 = vsel %vm606, %v5284, 0.0
      %5319 = vadd.xlane.f32.xlu0 %v5318
      %v5320 = vpop.xlane.xlu0 %5319
      %v5321 = vsel %vm606, %v5285, 0.0
      %5322 = vadd.xlane.f32.xlu0 %v5321
      %v5323 = vpop.xlane.xlu0 %5322
      %v5324 = vsel %vm606, %v5286, 0.0
      %5325 = vadd.xlane.f32.xlu0 %v5324
      %v5326 = vpop.xlane.xlu0 %5325
      %v5327 = vsel %vm606, %v5287, 0.0
      %5328 = vadd.xlane.f32.xlu0 %v5327
      %v5329 = vpop.xlane.xlu0 %5328
      %v5330 = vsel %vm606, %v5288, 0.0
      %5331 = vadd.xlane.f32.xlu0 %v5330
      %v5332 = vpop.xlane.xlu0 %5331
      %v5333 = vsel %vm606, %v5289, 0.0
      %5334 = vadd.xlane.f32.xlu0 %v5333
      %v5335 = vpop.xlane.xlu0 %5334
      %v5336 = vsel %vm606, %v5290, 0.0
      %5337 = vadd.xlane.f32.xlu0 %v5336
      %v5338 = vpop.xlane.xlu0 %5337
      %v5339 = vmul.f32 %v5293, %v661
      %v5340 = vmul.f32 %v5296, %v661
      %v5341 = vmul.f32 %v5299, %v661
      %v5342 = vmul.f32 %v5302, %v661
      %v5343 = vmul.f32 %v5305, %v661
      %v5344 = vmul.f32 %v5308, %v661
      %v5345 = vmul.f32 %v5311, %v661
      %v5346 = vmul.f32 %v5314, %v661
      %v5347 = vmul.f32 %v5317, %v661
      %v5348 = vmul.f32 %v5320, %v661
      %v5349 = vmul.f32 %v5323, %v661
      %v5350 = vmul.f32 %v5326, %v661
      %v5351 = vmul.f32 %v5329, %v661
      %v5352 = vmul.f32 %v5332, %v661
      %v5353 = vmul.f32 %v5335, %v661
      %v5354 = vmul.f32 %v5338, %v661
      %v5355 = vadd.f32 %v5339, 1e-05
      %v5356 = vadd.f32 %v5340, 1e-05
      %v5357 = vadd.f32 %v5341, 1e-05
      %v5358 = vadd.f32 %v5342, 1e-05
      %v5359 = vadd.f32 %v5343, 1e-05
      %v5360 = vadd.f32 %v5344, 1e-05
      %v5361 = vadd.f32 %v5345, 1e-05
      %v5362 = vadd.f32 %v5346, 1e-05
      %v5363 = vadd.f32 %v5347, 1e-05
      %v5364 = vadd.f32 %v5348, 1e-05
      %v5365 = vadd.f32 %v5349, 1e-05
      %v5366 = vadd.f32 %v5350, 1e-05
      %v5367 = vadd.f32 %v5351, 1e-05
      %v5368 = vadd.f32 %v5352, 1e-05
      %v5369 = vadd.f32 %v5353, 1e-05
      %v5370 = vadd.f32 %v5354, 1e-05
      %v5371 = vrsqrt.pop %v5355
      %v5372 = vmul.f32 %v5371, %v5355
      %v5373 = vmul.f32 %v5372, %v5371
      %v5374 = vmul.f32 0.5, %v5373
      %v5375 = vsub.f32 1.5, %v5374
      %v5376 = vmul.f32 %v5371, %v5375
      %vm5377 = vweird.f32 %v5355
      %vm5378 = vweird.f32 %v5371
      %vm5379 = vmor %vm5377, %vm5378
      %v5380 = vsel %vm5379, %v5371, %v5376
      %v5381 = vrsqrt.pop %v5356
      %v5382 = vmul.f32 %v5381, %v5356
      %v5383 = vmul.f32 %v5382, %v5381
      %v5384 = vmul.f32 0.5, %v5383
      %v5385 = vsub.f32 1.5, %v5384
      %v5386 = vmul.f32 %v5381, %v5385
      %vm5387 = vweird.f32 %v5356
      %vm5388 = vweird.f32 %v5381
      %vm5389 = vmor %vm5387, %vm5388
      %v5390 = vsel %vm5389, %v5381, %v5386
      %v5391 = vrsqrt.pop %v5357
      %v5392 = vmul.f32 %v5391, %v5357
      %v5393 = vmul.f32 %v5392, %v5391
      %v5394 = vmul.f32 0.5, %v5393
      %v5395 = vsub.f32 1.5, %v5394
      %v5396 = vmul.f32 %v5391, %v5395
      %vm5397 = vweird.f32 %v5357
      %vm5398 = vweird.f32 %v5391
      %vm5399 = vmor %vm5397, %vm5398
      %v5400 = vsel %vm5399, %v5391, %v5396
      %v5401 = vrsqrt.pop %v5358
      %v5402 = vmul.f32 %v5401, %v5358
      %v5403 = vmul.f32 %v5402, %v5401
      %v5404 = vmul.f32 0.5, %v5403
      %v5405 = vsub.f32 1.5, %v5404
      %v5406 = vmul.f32 %v5401, %v5405
      %vm5407 = vweird.f32 %v5358
      %vm5408 = vweird.f32 %v5401
      %vm5409 = vmor %vm5407, %vm5408
      %v5410 = vsel %vm5409, %v5401, %v5406
      %v5411 = vrsqrt.pop %v5359
      %v5412 = vmul.f32 %v5411, %v5359
      %v5413 = vmul.f32 %v5412, %v5411
      %v5414 = vmul.f32 0.5, %v5413
      %v5415 = vsub.f32 1.5, %v5414
      %v5416 = vmul.f32 %v5411, %v5415
      %vm5417 = vweird.f32 %v5359
      %vm5418 = vweird.f32 %v5411
      %vm5419 = vmor %vm5417, %vm5418
      %v5420 = vsel %vm5419, %v5411, %v5416
      %v5421 = vrsqrt.pop %v5360
      %v5422 = vmul.f32 %v5421, %v5360
      %v5423 = vmul.f32 %v5422, %v5421
      %v5424 = vmul.f32 0.5, %v5423
      %v5425 = vsub.f32 1.5, %v5424
      %v5426 = vmul.f32 %v5421, %v5425
      %vm5427 = vweird.f32 %v5360
      %vm5428 = vweird.f32 %v5421
      %vm5429 = vmor %vm5427, %vm5428
      %v5430 = vsel %vm5429, %v5421, %v5426
      %v5431 = vrsqrt.pop %v5361
      %v5432 = vmul.f32 %v5431, %v5361
      %v5433 = vmul.f32 %v5432, %v5431
      %v5434 = vmul.f32 0.5, %v5433
      %v5435 = vsub.f32 1.5, %v5434
      %v5436 = vmul.f32 %v5431, %v5435
      %vm5437 = vweird.f32 %v5361
      %vm5438 = vweird.f32 %v5431
      %vm5439 = vmor %vm5437, %vm5438
      %v5440 = vsel %vm5439, %v5431, %v5436
      %v5441 = vrsqrt.pop %v5362
      %v5442 = vmul.f32 %v5441, %v5362
      %v5443 = vmul.f32 %v5442, %v5441
      %v5444 = vmul.f32 0.5, %v5443
      %v5445 = vsub.f32 1.5, %v5444
      %v5446 = vmul.f32 %v5441, %v5445
      %vm5447 = vweird.f32 %v5362
      %vm5448 = vweird.f32 %v5441
      %vm5449 = vmor %vm5447, %vm5448
      %v5450 = vsel %vm5449, %v5441, %v5446
      %v5451 = vrsqrt.pop %v5363
      %v5452 = vmul.f32 %v5451, %v5363
      %v5453 = vmul.f32 %v5452, %v5451
      %v5454 = vmul.f32 0.5, %v5453
      %v5455 = vsub.f32 1.5, %v5454
      %v5456 = vmul.f32 %v5451, %v5455
      %vm5457 = vweird.f32 %v5363
      %vm5458 = vweird.f32 %v5451
      %vm5459 = vmor %vm5457, %vm5458
      %v5460 = vsel %vm5459, %v5451, %v5456
      %v5461 = vrsqrt.pop %v5364
      %v5462 = vmul.f32 %v5461, %v5364
      %v5463 = vmul.f32 %v5462, %v5461
      %v5464 = vmul.f32 0.5, %v5463
      %v5465 = vsub.f32 1.5, %v5464
      %v5466 = vmul.f32 %v5461, %v5465
      %vm5467 = vweird.f32 %v5364
      %vm5468 = vweird.f32 %v5461
      %vm5469 = vmor %vm5467, %vm5468
      %v5470 = vsel %vm5469, %v5461, %v5466
      %v5471 = vrsqrt.pop %v5365
      %v5472 = vmul.f32 %v5471, %v5365
      %v5473 = vmul.f32 %v5472, %v5471
      %v5474 = vmul.f32 0.5, %v5473
      %v5475 = vsub.f32 1.5, %v5474
      %v5476 = vmul.f32 %v5471, %v5475
      %vm5477 = vweird.f32 %v5365
      %vm5478 = vweird.f32 %v5471
      %vm5479 = vmor %vm5477, %vm5478
      %v5480 = vsel %vm5479, %v5471, %v5476
      %v5481 = vrsqrt.pop %v5366
      %v5482 = vmul.f32 %v5481, %v5366
      %v5483 = vmul.f32 %v5482, %v5481
      %v5484 = vmul.f32 0.5, %v5483
      %v5485 = vsub.f32 1.5, %v5484
      %v5486 = vmul.f32 %v5481, %v5485
      %vm5487 = vweird.f32 %v5366
      %vm5488 = vweird.f32 %v5481
      %vm5489 = vmor %vm5487, %vm5488
      %v5490 = vsel %vm5489, %v5481, %v5486
      %v5491 = vrsqrt.pop %v5367
      %v5492 = vmul.f32 %v5491, %v5367
      %v5493 = vmul.f32 %v5492, %v5491
      %v5494 = vmul.f32 0.5, %v5493
      %v5495 = vsub.f32 1.5, %v5494
      %v5496 = vmul.f32 %v5491, %v5495
      %vm5497 = vweird.f32 %v5367
      %vm5498 = vweird.f32 %v5491
      %vm5499 = vmor %vm5497, %vm5498
      %v5500 = vsel %vm5499, %v5491, %v5496
      %v5501 = vrsqrt.pop %v5368
      %v5502 = vmul.f32 %v5501, %v5368
      %v5503 = vmul.f32 %v5502, %v5501
      %v5504 = vmul.f32 0.5, %v5503
      %v5505 = vsub.f32 1.5, %v5504
      %v5506 = vmul.f32 %v5501, %v5505
      %vm5507 = vweird.f32 %v5368
      %vm5508 = vweird.f32 %v5501
      %vm5509 = vmor %vm5507, %vm5508
      %v5510 = vsel %vm5509, %v5501, %v5506
      %v5511 = vrsqrt.pop %v5369
      %v5512 = vmul.f32 %v5511, %v5369
      %v5513 = vmul.f32 %v5512, %v5511
      %v5514 = vmul.f32 0.5, %v5513
      %v5515 = vsub.f32 1.5, %v5514
      %v5516 = vmul.f32 %v5511, %v5515
      %vm5517 = vweird.f32 %v5369
      %vm5518 = vweird.f32 %v5511
      %vm5519 = vmor %vm5517, %vm5518
      %v5520 = vsel %vm5519, %v5511, %v5516
      %v5521 = vrsqrt.pop %v5370
      %v5522 = vmul.f32 %v5521, %v5370
      %v5523 = vmul.f32 %v5522, %v5521
      %v5524 = vmul.f32 0.5, %v5523
      %v5525 = vsub.f32 1.5, %v5524
      %v5526 = vmul.f32 %v5521, %v5525
      %vm5527 = vweird.f32 %v5370
      %vm5528 = vweird.f32 %v5521
      %vm5529 = vmor %vm5527, %vm5528
      %v5530 = vsel %vm5529, %v5521, %v5526
      %v5531 = vmul.f32 %v5259, %v5380
      %v5532 = vmul.f32 %v5260, %v5390
      %v5533 = vmul.f32 %v5261, %v5400
      %v5534 = vmul.f32 %v5262, %v5410
      %v5535 = vmul.f32 %v5263, %v5420
      %v5536 = vmul.f32 %v5264, %v5430
      %v5537 = vmul.f32 %v5265, %v5440
      %v5538 = vmul.f32 %v5266, %v5450
      %v5539 = vmul.f32 %v5267, %v5460
      %v5540 = vmul.f32 %v5268, %v5470
      %v5541 = vmul.f32 %v5269, %v5480
      %v5542 = vmul.f32 %v5270, %v5490
      %v5543 = vmul.f32 %v5271, %v5500
      %v5544 = vmul.f32 %v5272, %v5510
      %v5545 = vmul.f32 %v5273, %v5520
      %v5546 = vmul.f32 %v5274, %v5530
      %v5547 = vperm.slane %v605, 3
      %v5548 = vmul.f32 %v5531, %v5547
      %v5549 = vmul.f32 %v5532, %v5547
      %v5550 = vmul.f32 %v5533, %v5547
      %v5551 = vmul.f32 %v5534, %v5547
      %v5552 = vmul.f32 %v5535, %v5547
      %v5553 = vmul.f32 %v5536, %v5547
      %v5554 = vmul.f32 %v5537, %v5547
      %v5555 = vmul.f32 %v5538, %v5547
      %v5556 = vmul.f32 %v5539, %v5547
      %v5557 = vmul.f32 %v5540, %v5547
      %v5558 = vmul.f32 %v5541, %v5547
      %v5559 = vmul.f32 %v5542, %v5547
      %v5560 = vmul.f32 %v5543, %v5547
      %v5561 = vmul.f32 %v5544, %v5547
      %v5562 = vmul.f32 %v5545, %v5547
      %v5563 = vmul.f32 %v5546, %v5547
      %v5564 = vperm.slane %v605, 4
      %v5565 = vadd.f32 %v5548, %v5564
      %v5566 = vadd.f32 %v5549, %v5564
      %v5567 = vadd.f32 %v5550, %v5564
      %v5568 = vadd.f32 %v5551, %v5564
      %v5569 = vadd.f32 %v5552, %v5564
      %v5570 = vadd.f32 %v5553, %v5564
      %v5571 = vadd.f32 %v5554, %v5564
      %v5572 = vadd.f32 %v5555, %v5564
      %v5573 = vadd.f32 %v5556, %v5564
      %v5574 = vadd.f32 %v5557, %v5564
      %v5575 = vadd.f32 %v5558, %v5564
      %v5576 = vadd.f32 %v5559, %v5564
      %v5577 = vadd.f32 %v5560, %v5564
      %v5578 = vadd.f32 %v5561, %v5564
      %v5579 = vadd.f32 %v5562, %v5564
      %v5580 = vadd.f32 %v5563, %v5564
      %v5581 = vpack.c.bf16 %v5566, %v5565
      %v5582 = vpack.c.bf16 %v5568, %v5567
      %v5583 = vpack.c.bf16 %v5570, %v5569
      %v5584 = vpack.c.bf16 %v5572, %v5571
      %v5585 = vpack.c.bf16 %v5574, %v5573
      %v5586 = vpack.c.bf16 %v5576, %v5575
      %v5587 = vpack.c.bf16 %v5578, %v5577
      %v5588 = vpack.c.bf16 %v5580, %v5579
      %v5589 = vld [vmem:[%s6] sm:$0xf]
      %v5590 = vld [vmem:[%s6 + $0x4] sm:$0xf]
      %v5591 = vld [vmem:[%s6 + $0x8] sm:$0xf]
      %v5592 = vld [vmem:[%s6 + $0xc] sm:$0xf]
      %v5593 = vld [vmem:[%s7] sm:$0x1]
      %v5595 = vperm.slane %v5593, 0
      %v5601 = vunpack.c.l.b16 %v5589
      %v5602 = vunpack.c.l.b16 %v5590
      %v5603 = vunpack.c.l.b16 %v5591
      %v5604 = vunpack.c.l.b16 %v5592
      %v5605 = vpack.c.b16 %v5602, %v5601
      %v5606 = vpack.c.b16 %v5604, %v5603
      %v5610 = vsel %vm606, %v5581, 0
      %v5613 = vsel %vm606, %v5582, 0
      %v5616 = vsel %vm606, %v5583, 0
      %v5619 = vsel %vm606, %v5584, 0
      %v5622 = vsel %vm606, %v5585, 0
      %v5625 = vsel %vm606, %v5586, 0
      %v5628 = vsel %vm606, %v5587, 0
      %v5631 = vsel %vm606, %v5588, 0
      %5633 = vmatpush.bf16.msra.mxu0 0
      %5634 = vmatpush.bf16.msra.mxu0 0
      %5635 = vmatpush.bf16.msra.mxu0 0
      %5636 = vmatpush.bf16.msra.mxu0 0
      %5637 = vmatpush.bf16.msra.mxu0 0
      %5638 = vmatpush.bf16.msra.mxu0 0
      %5639 = vmatpush.bf16.msra.mxu0 %v5606
      %5640 = vmatpush.bf16.msra.mxu0 %v5605
      %5641 = vmatmul.bf16.gmra.mxu0 %v5610
      %v5642 = vpop.f32.mrf.mxu0
      %v5643 = vadd.f32 %v5595, %v5642
      %v5644 = vpop.f32.mrf.mxu0
      %v5645 = vadd.f32 %v5595, %v5644
      %5646 = vmatmul.bf16.gmra.mxu0 %v5613
      %v5647 = vpop.f32.mrf.mxu0
      %v5648 = vadd.f32 %v5595, %v5647
      %v5649 = vpop.f32.mrf.mxu0
      %v5650 = vadd.f32 %v5595, %v5649
      %5651 = vmatmul.bf16.gmra.mxu0 %v5616
      %v5652 = vpop.f32.mrf.mxu0
      %v5653 = vadd.f32 %v5595, %v5652
      %v5654 = vpop.f32.mrf.mxu0
      %v5655 = vadd.f32 %v5595, %v5654
      %5656 = vmatmul.bf16.gmra.mxu0 %v5619
      %v5657 = vpop.f32.mrf.mxu0
      %v5658 = vadd.f32 %v5595, %v5657
      %v5659 = vpop.f32.mrf.mxu0
      %v5660 = vadd.f32 %v5595, %v5659
      %5661 = vmatmul.bf16.gmra.mxu0 %v5622
      %v5662 = vpop.f32.mrf.mxu0
      %v5663 = vadd.f32 %v5595, %v5662
      %v5664 = vpop.f32.mrf.mxu0
      %v5665 = vadd.f32 %v5595, %v5664
      %5666 = vmatmul.bf16.gmra.mxu0 %v5625
      %v5667 = vpop.f32.mrf.mxu0
      %v5668 = vadd.f32 %v5595, %v5667
      %v5669 = vpop.f32.mrf.mxu0
      %v5670 = vadd.f32 %v5595, %v5669
      %5671 = vmatmul.bf16.gmra.mxu0 %v5628
      %v5672 = vpop.f32.mrf.mxu0
      %v5673 = vadd.f32 %v5595, %v5672
      %v5674 = vpop.f32.mrf.mxu0
      %v5675 = vadd.f32 %v5595, %v5674
      %5676 = vmatmul.bf16.gmra.mxu0 %v5631
      %v5677 = vpop.f32.mrf.mxu0
      %v5678 = vadd.f32 %v5595, %v5677
      %v5679 = vpop.f32.mrf.mxu0
      %v5680 = vadd.f32 %v5595, %v5679
      %5681 = vdwg.mxu0
      %v5682 = vmul.f32 %v5643, %v5643
      %v5683 = vmul.f32 %v5645, %v5645
      %v5684 = vmul.f32 %v5648, %v5648
      %v5685 = vmul.f32 %v5650, %v5650
      %v5686 = vmul.f32 %v5653, %v5653
      %v5687 = vmul.f32 %v5655, %v5655
      %v5688 = vmul.f32 %v5658, %v5658
      %v5689 = vmul.f32 %v5660, %v5660
      %v5690 = vmul.f32 %v5663, %v5663
      %v5691 = vmul.f32 %v5665, %v5665
      %v5692 = vmul.f32 %v5668, %v5668
      %v5693 = vmul.f32 %v5670, %v5670
      %v5694 = vmul.f32 %v5673, %v5673
      %v5695 = vmul.f32 %v5675, %v5675
      %v5696 = vmul.f32 %v5678, %v5678
      %v5697 = vmul.f32 %v5680, %v5680
      %v5698 = vmul.f32 %v5643, %v5682
      %v5699 = vmul.f32 %v5645, %v5683
      %v5700 = vmul.f32 %v5648, %v5684
      %v5701 = vmul.f32 %v5650, %v5685
      %v5702 = vmul.f32 %v5653, %v5686
      %v5703 = vmul.f32 %v5655, %v5687
      %v5704 = vmul.f32 %v5658, %v5688
      %v5705 = vmul.f32 %v5660, %v5689
      %v5706 = vmul.f32 %v5663, %v5690
      %v5707 = vmul.f32 %v5665, %v5691
      %v5708 = vmul.f32 %v5668, %v5692
      %v5709 = vmul.f32 %v5670, %v5693
      %v5710 = vmul.f32 %v5673, %v5694
      %v5711 = vmul.f32 %v5675, %v5695
      %v5712 = vmul.f32 %v5678, %v5696
      %v5713 = vmul.f32 %v5680, %v5697
      %v5714 = vmul.f32 %v5698, 0.044715
      %v5715 = vmul.f32 %v5699, 0.044715
      %v5716 = vmul.f32 %v5700, 0.044715
      %v5717 = vmul.f32 %v5701, 0.044715
      %v5718 = vmul.f32 %v5702, 0.044715
      %v5719 = vmul.f32 %v5703, 0.044715
      %v5720 = vmul.f32 %v5704, 0.044715
      %v5721 = vmul.f32 %v5705, 0.044715
      %v5722 = vmul.f32 %v5706, 0.044715
      %v5723 = vmul.f32 %v5707, 0.044715
      %v5724 = vmul.f32 %v5708, 0.044715
      %v5725 = vmul.f32 %v5709, 0.044715
      %v5726 = vmul.f32 %v5710, 0.044715
      %v5727 = vmul.f32 %v5711, 0.044715
      %v5728 = vmul.f32 %v5712, 0.044715
      %v5729 = vmul.f32 %v5713, 0.044715
      %v5730 = vadd.f32 %v5643, %v5714
      %v5731 = vadd.f32 %v5645, %v5715
      %v5732 = vadd.f32 %v5648, %v5716
      %v5733 = vadd.f32 %v5650, %v5717
      %v5734 = vadd.f32 %v5653, %v5718
      %v5735 = vadd.f32 %v5655, %v5719
      %v5736 = vadd.f32 %v5658, %v5720
      %v5737 = vadd.f32 %v5660, %v5721
      %v5738 = vadd.f32 %v5663, %v5722
      %v5739 = vadd.f32 %v5665, %v5723
      %v5740 = vadd.f32 %v5668, %v5724
      %v5741 = vadd.f32 %v5670, %v5725
      %v5742 = vadd.f32 %v5673, %v5726
      %v5743 = vadd.f32 %v5675, %v5727
      %v5744 = vadd.f32 %v5678, %v5728
      %v5745 = vadd.f32 %v5680, %v5729
      %v5746 = vmul.f32 %v5730, 0.7978846
      %v5747 = vmul.f32 %v5731, 0.7978846
      %v5748 = vmul.f32 %v5732, 0.7978846
      %v5749 = vmul.f32 %v5733, 0.7978846
      %v5750 = vmul.f32 %v5734, 0.7978846
      %v5751 = vmul.f32 %v5735, 0.7978846
      %v5752 = vmul.f32 %v5736, 0.7978846
      %v5753 = vmul.f32 %v5737, 0.7978846
      %v5754 = vmul.f32 %v5738, 0.7978846
      %v5755 = vmul.f32 %v5739, 0.7978846
      %v5756 = vmul.f32 %v5740, 0.7978846
      %v5757 = vmul.f32 %v5741, 0.7978846
      %v5758 = vmul.f32 %v5742, 0.7978846
      %v5759 = vmul.f32 %v5743, 0.7978846
      %v5760 = vmul.f32 %v5744, 0.7978846
      %v5761 = vmul.f32 %v5745, 0.7978846
      %v5762 = vtanh.pop %v5746
      %v5763 = vtanh.pop %v5747
      %v5764 = vtanh.pop %v5748
      %v5765 = vtanh.pop %v5749
      %v5766 = vtanh.pop %v5750
      %v5767 = vtanh.pop %v5751
      %v5768 = vtanh.pop %v5752
      %v5769 = vtanh.pop %v5753
      %v5770 = vtanh.pop %v5754
      %v5771 = vtanh.pop %v5755
      %v5772 = vtanh.pop %v5756
      %v5773 = vtanh.pop %v5757
      %v5774 = vtanh.pop %v5758
      %v5775 = vtanh.pop %v5759
      %v5776 = vtanh.pop %v5760
      %v5777 = vtanh.pop %v5761
      %v5778 = vadd.f32 %v5762, 1.0
      %v5779 = vadd.f32 %v5763, 1.0
      %v5780 = vadd.f32 %v5764, 1.0
      %v5781 = vadd.f32 %v5765, 1.0
      %v5782 = vadd.f32 %v5766, 1.0
      %v5783 = vadd.f32 %v5767, 1.0
      %v5784 = vadd.f32 %v5768, 1.0
      %v5785 = vadd.f32 %v5769, 1.0
      %v5786 = vadd.f32 %v5770, 1.0
      %v5787 = vadd.f32 %v5771, 1.0
      %v5788 = vadd.f32 %v5772, 1.0
      %v5789 = vadd.f32 %v5773, 1.0
      %v5790 = vadd.f32 %v5774, 1.0
      %v5791 = vadd.f32 %v5775, 1.0
      %v5792 = vadd.f32 %v5776, 1.0
      %v5793 = vadd.f32 %v5777, 1.0
      %v5794 = vmul.f32 %v5778, 0.5
      %v5795 = vmul.f32 %v5779, 0.5
      %v5796 = vmul.f32 %v5780, 0.5
      %v5797 = vmul.f32 %v5781, 0.5
      %v5798 = vmul.f32 %v5782, 0.5
      %v5799 = vmul.f32 %v5783, 0.5
      %v5800 = vmul.f32 %v5784, 0.5
      %v5801 = vmul.f32 %v5785, 0.5
      %v5802 = vmul.f32 %v5786, 0.5
      %v5803 = vmul.f32 %v5787, 0.5
      %v5804 = vmul.f32 %v5788, 0.5
      %v5805 = vmul.f32 %v5789, 0.5
      %v5806 = vmul.f32 %v5790, 0.5
      %v5807 = vmul.f32 %v5791, 0.5
      %v5808 = vmul.f32 %v5792, 0.5
      %v5809 = vmul.f32 %v5793, 0.5
      %v5810 = vmul.f32 %v5643, %v5794
      %v5811 = vmul.f32 %v5645, %v5795
      %v5812 = vmul.f32 %v5648, %v5796
      %v5813 = vmul.f32 %v5650, %v5797
      %v5814 = vmul.f32 %v5653, %v5798
      %v5815 = vmul.f32 %v5655, %v5799
      %v5816 = vmul.f32 %v5658, %v5800
      %v5817 = vmul.f32 %v5660, %v5801
      %v5818 = vmul.f32 %v5663, %v5802
      %v5819 = vmul.f32 %v5665, %v5803
      %v5820 = vmul.f32 %v5668, %v5804
      %v5821 = vmul.f32 %v5670, %v5805
      %v5822 = vmul.f32 %v5673, %v5806
      %v5823 = vmul.f32 %v5675, %v5807
      %v5824 = vmul.f32 %v5678, %v5808
      %v5825 = vmul.f32 %v5680, %v5809
      %v5826 = vpack.c.bf16 %v5811, %v5810
      %v5827 = vpack.c.bf16 %v5813, %v5812
      %v5828 = vpack.c.bf16 %v5815, %v5814
      %v5829 = vpack.c.bf16 %v5817, %v5816
      %v5830 = vpack.c.bf16 %v5819, %v5818
      %v5831 = vpack.c.bf16 %v5821, %v5820
      %v5832 = vpack.c.bf16 %v5823, %v5822
      %v5833 = vpack.c.bf16 %v5825, %v5824
      %v5834 = vld [vmem:[%s8] sm:$0xf]
      %v5835 = vld [vmem:[%s8 + $0x4] sm:$0xf]
      %v5836 = vld [vmem:[%s8 + $0x8] sm:$0xf]
      %v5837 = vld [vmem:[%s8 + $0xc] sm:$0xf]
      %v5838 = vld [vmem:[%s8 + $0x10] sm:$0xf]
      %v5839 = vld [vmem:[%s8 + $0x14] sm:$0xf]
      %v5840 = vld [vmem:[%s8 + $0x18] sm:$0xf]
      %v5841 = vld [vmem:[%s8 + $0x1c] sm:$0xf]
      %v5842 = vld [vmem:[%s8 + $0x20] sm:$0xf]
      %v5843 = vld [vmem:[%s8 + $0x24] sm:$0xf]
      %v5844 = vld [vmem:[%s8 + $0x28] sm:$0xf]
      %v5845 = vld [vmem:[%s8 + $0x2c] sm:$0xf]
      %v5846 = vld [vmem:[%s8 + $0x30] sm:$0xf]
      %v5847 = vld [vmem:[%s8 + $0x34] sm:$0xf]
      %v5848 = vld [vmem:[%s8 + $0x38] sm:$0xf]
      %v5849 = vld [vmem:[%s8 + $0x3c] sm:$0xf]
      %v5850 = vperm.slane %v605, 5
      %v5867 = vunpack.c.l.b16 %v5834
      %v5868 = vunpack.c.l.b16 %v5835
      %v5869 = vunpack.c.l.b16 %v5836
      %v5870 = vunpack.c.l.b16 %v5837
      %v5871 = vunpack.c.l.b16 %v5838
      %v5872 = vunpack.c.l.b16 %v5839
      %v5873 = vunpack.c.l.b16 %v5840
      %v5874 = vunpack.c.l.b16 %v5841
      %v5875 = vunpack.c.l.b16 %v5842
      %v5876 = vunpack.c.l.b16 %v5843
      %v5877 = vunpack.c.l.b16 %v5844
      %v5878 = vunpack.c.l.b16 %v5845
      %v5879 = vunpack.c.l.b16 %v5846
      %v5880 = vunpack.c.l.b16 %v5847
      %v5881 = vunpack.c.l.b16 %v5848
      %v5882 = vunpack.c.l.b16 %v5849
      %v5883 = vpack.c.b16 %v5868, %v5867
      %v5884 = vpack.c.b16 %v5870, %v5869
      %v5885 = vpack.c.b16 %v5872, %v5871
      %v5886 = vpack.c.b16 %v5874, %v5873
      %v5887 = vpack.c.b16 %v5876, %v5875
      %v5888 = vpack.c.b16 %v5878, %v5877
      %v5889 = vpack.c.b16 %v5880, %v5879
      %v5890 = vpack.c.b16 %v5882, %v5881
      %5899 = vmatpush.bf16.msra.mxu0 %v5890
      %5900 = vmatpush.bf16.msra.mxu0 %v5889
      %5901 = vmatpush.bf16.msra.mxu0 %v5888
      %5902 = vmatpush.bf16.msra.mxu0 %v5887
      %5903 = vmatpush.bf16.msra.mxu0 %v5886
      %5904 = vmatpush.bf16.msra.mxu0 %v5885
      %5905 = vmatpush.bf16.msra.mxu0 %v5884
      %5906 = vmatpush.bf16.msra.mxu0 %v5883
      %5907 = vmatmul.bf16.gmra.mxu0 %v5826
      %v5908 = vpop.f32.mrf.mxu0
      %v5909 = vadd.f32 %v5850, %v5908
      %v5910 = vpop.f32.mrf.mxu0
      %v5911 = vadd.f32 %v5850, %v5910
      %5912 = vmatmul.bf16.gmra.mxu0 %v5827
      %v5913 = vpop.f32.mrf.mxu0
      %v5914 = vadd.f32 %v5850, %v5913
      %v5915 = vpop.f32.mrf.mxu0
      %v5916 = vadd.f32 %v5850, %v5915
      %5917 = vmatmul.bf16.gmra.mxu0 %v5828
      %v5918 = vpop.f32.mrf.mxu0
      %v5919 = vadd.f32 %v5850, %v5918
      %v5920 = vpop.f32.mrf.mxu0
      %v5921 = vadd.f32 %v5850, %v5920
      %5922 = vmatmul.bf16.gmra.mxu0 %v5829
      %v5923 = vpop.f32.mrf.mxu0
      %v5924 = vadd.f32 %v5850, %v5923
      %v5925 = vpop.f32.mrf.mxu0
      %v5926 = vadd.f32 %v5850, %v5925
      %5927 = vmatmul.bf16.gmra.mxu0 %v5830
      %v5928 = vpop.f32.mrf.mxu0
      %v5929 = vadd.f32 %v5850, %v5928
      %v5930 = vpop.f32.mrf.mxu0
      %v5931 = vadd.f32 %v5850, %v5930
      %5932 = vmatmul.bf16.gmra.mxu0 %v5831
      %v5933 = vpop.f32.mrf.mxu0
      %v5934 = vadd.f32 %v5850, %v5933
      %v5935 = vpop.f32.mrf.mxu0
      %v5936 = vadd.f32 %v5850, %v5935
      %5937 = vmatmul.bf16.gmra.mxu0 %v5832
      %v5938 = vpop.f32.mrf.mxu0
      %v5939 = vadd.f32 %v5850, %v5938
      %v5940 = vpop.f32.mrf.mxu0
      %v5941 = vadd.f32 %v5850, %v5940
      %5942 = vmatmul.bf16.gmra.mxu0 %v5833
      %v5943 = vpop.f32.mrf.mxu0
      %v5944 = vadd.f32 %v5850, %v5943
      %v5945 = vpop.f32.mrf.mxu0
      %v5946 = vadd.f32 %v5850, %v5945
      %5947 = vdwg.mxu0
      %v5948 = vadd.f32 %v5179, %v5909
      %v5949 = vadd.f32 %v5180, %v5911
      %v5950 = vadd.f32 %v5181, %v5914
      %v5951 = vadd.f32 %v5182, %v5916
      %v5952 = vadd.f32 %v5183, %v5919
      %v5953 = vadd.f32 %v5184, %v5921
      %v5954 = vadd.f32 %v5185, %v5924
      %v5955 = vadd.f32 %v5186, %v5926
      %v5956 = vadd.f32 %v5187, %v5929
      %v5957 = vadd.f32 %v5188, %v5931
      %v5958 = vadd.f32 %v5189, %v5934
      %v5959 = vadd.f32 %v5190, %v5936
      %v5960 = vadd.f32 %v5191, %v5939
      %v5961 = vadd.f32 %v5192, %v5941
      %v5962 = vadd.f32 %v5193, %v5944
      %v5963 = vadd.f32 %v5194, %v5946
      %v5980 = vrot.slane %v5949, 7
      %vm5981 = vcmask 1041409
      %v5982 = vsel %vm5981, %v5980, %v5948
      %v5983 = vrot.slane %v5950, 6
      %vm5984 = vcmask 1042434
      %v5985 = vsel %vm5984, %v5983, %v5982
      %v5986 = vrot.slane %v5951, 5
      %vm5987 = vcmask 1043459
      %v5988 = vsel %vm5987, %v5986, %v5985
      %v5989 = vrot.slane %v5952, 4
      %vm5990 = vcmask 1044484
      %v5991 = vsel %vm5990, %v5989, %v5988
      %v5992 = vrot.slane %v5953, 3
      %vm5993 = vcmask 1045509
      %v5994 = vsel %vm5993, %v5992, %v5991
      %v5995 = vrot.slane %v5954, 2
      %vm5996 = vcmask 1046534
      %v5997 = vsel %vm5996, %v5995, %v5994
      %v5998 = vrot.slane %v5955, 1
      %vm5999 = vcmask 1047559
      %v6000 = vsel %vm5999, %v5998, %v5997
      %v6001 = vrot.slane %v5957, 7
      %v6002 = vsel %vm5981, %v6001, %v5956
      %v6003 = vrot.slane %v5958, 6
      %v6004 = vsel %vm5984, %v6003, %v6002
      %v6005 = vrot.slane %v5959, 5
      %v6006 = vsel %vm5987, %v6005, %v6004
      %v6007 = vrot.slane %v5960, 4
      %v6008 = vsel %vm5990, %v6007, %v6006
      %v6009 = vrot.slane %v5961, 3
      %v6010 = vsel %vm5993, %v6009, %v6008
      %v6011 = vrot.slane %v5962, 2
      %v6012 = vsel %vm5996, %v6011, %v6010
      %v6013 = vrot.slane %v5963, 1
      %v6014 = vsel %vm5999, %v6013, %v6012
      %v6017 = vrot.slane %v5948, 1
      %v6018 = vsel %vm5981, %v5949, %v6017
      %v6019 = vrot.slane %v5950, 7
      %v6020 = vsel %vm5984, %v6019, %v6018
      %v6021 = vrot.slane %v5951, 6
      %v6022 = vsel %vm5987, %v6021, %v6020
      %v6023 = vrot.slane %v5952, 5
      %v6024 = vsel %vm5990, %v6023, %v6022
      %v6025 = vrot.slane %v5953, 4
      %v6026 = vsel %vm5993, %v6025, %v6024
      %v6027 = vrot.slane %v5954, 3
      %v6028 = vsel %vm5996, %v6027, %v6026
      %v6029 = vrot.slane %v5955, 2
      %v6030 = vsel %vm5999, %v6029, %v6028
      %v6031 = vrot.slane %v5956, 1
      %v6032 = vsel %vm5981, %v5957, %v6031
      %v6033 = vrot.slane %v5958, 7
      %v6034 = vsel %vm5984, %v6033, %v6032
      %v6035 = vrot.slane %v5959, 6
      %v6036 = vsel %vm5987, %v6035, %v6034
      %v6037 = vrot.slane %v5960, 5
      %v6038 = vsel %vm5990, %v6037, %v6036
      %v6039 = vrot.slane %v5961, 4
      %v6040 = vsel %vm5993, %v6039, %v6038
      %v6041 = vrot.slane %v5962, 3
      %v6042 = vsel %vm5996, %v6041, %v6040
      %v6043 = vrot.slane %v5963, 2
      %v6044 = vsel %vm5999, %v6043, %v6042
      %v6047 = vrot.slane %v5948, 2
      %v6048 = vrot.slane %v5949, 1
      %v6049 = vsel %vm5981, %v6048, %v6047
      %v6050 = vsel %vm5984, %v5950, %v6049
      %v6051 = vrot.slane %v5951, 7
      %v6052 = vsel %vm5987, %v6051, %v6050
      %v6053 = vrot.slane %v5952, 6
      %v6054 = vsel %vm5990, %v6053, %v6052
      %v6055 = vrot.slane %v5953, 5
      %v6056 = vsel %vm5993, %v6055, %v6054
      %v6057 = vrot.slane %v5954, 4
      %v6058 = vsel %vm5996, %v6057, %v6056
      %v6059 = vrot.slane %v5955, 3
      %v6060 = vsel %vm5999, %v6059, %v6058
      %v6061 = vrot.slane %v5956, 2
      %v6062 = vrot.slane %v5957, 1
      %v6063 = vsel %vm5981, %v6062, %v6061
      %v6064 = vsel %vm5984, %v5958, %v6063
      %v6065 = vrot.slane %v5959, 7
      %v6066 = vsel %vm5987, %v6065, %v6064
      %v6067 = vrot.slane %v5960, 6
      %v6068 = vsel %vm5990, %v6067, %v6066
      %v6069 = vrot.slane %v5961, 5
      %v6070 = vsel %vm5993, %v6069, %v6068
      %v6071 = vrot.slane %v5962, 4
      %v6072 = vsel %vm5996, %v6071, %v6070
      %v6073 = vrot.slane %v5963, 3
      %v6074 = vsel %vm5999, %v6073, %v6072
      %v6077 = vrot.slane %v5948, 3
      %v6078 = vrot.slane %v5949, 2
      %v6079 = vsel %vm5981, %v6078, %v6077
      %v6080 = vrot.slane %v5950, 1
      %v6081 = vsel %vm5984, %v6080, %v6079
      %v6082 = vsel %vm5987, %v5951, %v6081
      %v6083 = vrot.slane %v5952, 7
      %v6084 = vsel %vm5990, %v6083, %v6082
      %v6085 = vrot.slane %v5953, 6
      %v6086 = vsel %vm5993, %v6085, %v6084
      %v6087 = vrot.slane %v5954, 5
      %v6088 = vsel %vm5996, %v6087, %v6086
      %v6089 = vrot.slane %v5955, 4
      %v6090 = vsel %vm5999, %v6089, %v6088
      %v6091 = vrot.slane %v5956, 3
      %v6092 = vrot.slane %v5957, 2
      %v6093 = vsel %vm5981, %v6092, %v6091
      %v6094 = vrot.slane %v5958, 1
      %v6095 = vsel %vm5984, %v6094, %v6093
      %v6096 = vsel %vm5987, %v5959, %v6095
      %v6097 = vrot.slane %v5960, 7
      %v6098 = vsel %vm5990, %v6097, %v6096
      %v6099 = vrot.slane %v5961, 6
      %v6100 = vsel %vm5993, %v6099, %v6098
      %v6101 = vrot.slane %v5962, 5
      %v6102 = vsel %vm5996, %v6101, %v6100
      %v6103 = vrot.slane %v5963, 4
      %v6104 = vsel %vm5999, %v6103, %v6102
      %v6107 = vrot.slane %v5948, 4
      %v6108 = vrot.slane %v5949, 3
      %v6109 = vsel %vm5981, %v6108, %v6107
      %v6110 = vrot.slane %v5950, 2
      %v6111 = vsel %vm5984, %v6110, %v6109
      %v6112 = vrot.slane %v5951, 1
      %v6113 = vsel %vm5987, %v6112, %v6111
      %v6114 = vsel %vm5990, %v5952, %v6113
      %v6115 = vrot.slane %v5953, 7
      %v6116 = vsel %vm5993, %v6115, %v6114
      %v6117 = vrot.slane %v5954, 6
      %v6118 = vsel %vm5996, %v6117, %v6116
      %v6119 = vrot.slane %v5955, 5
      %v6120 = vsel %vm5999, %v6119, %v6118
      %v6121 = vrot.slane %v5956, 4
      %v6122 = vrot.slane %v5957, 3
      %v6123 = vsel %vm5981, %v6122, %v6121
      %v6124 = vrot.slane %v5958, 2
      %v6125 = vsel %vm5984, %v6124, %v6123
      %v6126 = vrot.slane %v5959, 1
      %v6127 = vsel %vm5987, %v6126, %v6125
      %v6128 = vsel %vm5990, %v5960, %v6127
      %v6129 = vrot.slane %v5961, 7
      %v6130 = vsel %vm5993, %v6129, %v6128
      %v6131 = vrot.slane %v5962, 6
      %v6132 = vsel %vm5996, %v6131, %v6130
      %v6133 = vrot.slane %v5963, 5
      %v6134 = vsel %vm5999, %v6133, %v6132
      %v6137 = vrot.slane %v5948, 5
      %v6138 = vrot.slane %v5949, 4
      %v6139 = vsel %vm5981, %v6138, %v6137
      %v6140 = vrot.slane %v5950, 3
      %v6141 = vsel %vm5984, %v6140, %v6139
      %v6142 = vrot.slane %v5951, 2
      %v6143 = vsel %vm5987, %v6142, %v6141
      %v6144 = vrot.slane %v5952, 1
      %v6145 = vsel %vm5990, %v6144, %v6143
      %v6146 = vsel %vm5993, %v5953, %v6145
      %v6147 = vrot.slane %v5954, 7
      %v6148 = vsel %vm5996, %v6147, %v6146
      %v6149 = vrot.slane %v5955, 6
      %v6150 = vsel %vm5999, %v6149, %v6148
      %v6151 = vrot.slane %v5956, 5
      %v6152 = vrot.slane %v5957, 4
      %v6153 = vsel %vm5981, %v6152, %v6151
      %v6154 = vrot.slane %v5958, 3
      %v6155 = vsel %vm5984, %v6154, %v6153
      %v6156 = vrot.slane %v5959, 2
      %v6157 = vsel %vm5987, %v6156, %v6155
      %v6158 = vrot.slane %v5960, 1
      %v6159 = vsel %vm5990, %v6158, %v6157
      %v6160 = vsel %vm5993, %v5961, %v6159
      %v6161 = vrot.slane %v5962, 7
      %v6162 = vsel %vm5996, %v6161, %v6160
      %v6163 = vrot.slane %v5963, 6
      %v6164 = vsel %vm5999, %v6163, %v6162
      %v6167 = vrot.slane %v5948, 6
      %v6168 = vrot.slane %v5949, 5
      %v6169 = vsel %vm5981, %v6168, %v6167
      %v6170 = vrot.slane %v5950, 4
      %v6171 = vsel %vm5984, %v6170, %v6169
      %v6172 = vrot.slane %v5951, 3
      %v6173 = vsel %vm5987, %v6172, %v6171
      %v6174 = vrot.slane %v5952, 2
      %v6175 = vsel %vm5990, %v6174, %v6173
      %v6176 = vrot.slane %v5953, 1
      %v6177 = vsel %vm5993, %v6176, %v6175
      %v6178 = vsel %vm5996, %v5954, %v6177
      %v6179 = vrot.slane %v5955, 7
      %v6180 = vsel %vm5999, %v6179, %v6178
      %v6181 = vrot.slane %v5956, 6
      %v6182 = vrot.slane %v5957, 5
      %v6183 = vsel %vm5981, %v6182, %v6181
      %v6184 = vrot.slane %v5958, 4
      %v6185 = vsel %vm5984, %v6184, %v6183
      %v6186 = vrot.slane %v5959, 3
      %v6187 = vsel %vm5987, %v6186, %v6185
      %v6188 = vrot.slane %v5960, 2
      %v6189 = vsel %vm5990, %v6188, %v6187
      %v6190 = vrot.slane %v5961, 1
      %v6191 = vsel %vm5993, %v6190, %v6189
      %v6192 = vsel %vm5996, %v5962, %v6191
      %v6193 = vrot.slane %v5963, 7
      %v6194 = vsel %vm5999, %v6193, %v6192
      %v6197 = vrot.slane %v5948, 7
      %v6198 = vrot.slane %v5949, 6
      %v6199 = vsel %vm5981, %v6198, %v6197
      %v6200 = vrot.slane %v5950, 5
      %v6201 = vsel %vm5984, %v6200, %v6199
      %v6202 = vrot.slane %v5951, 4
      %v6203 = vsel %vm5987, %v6202, %v6201
      %v6204 = vrot.slane %v5952, 3
      %v6205 = vsel %vm5990, %v6204, %v6203
      %v6206 = vrot.slane %v5953, 2
      %v6207 = vsel %vm5993, %v6206, %v6205
      %v6208 = vrot.slane %v5954, 1
      %v6209 = vsel %vm5996, %v6208, %v6207
      %v6210 = vsel %vm5999, %v5955, %v6209
      %v6211 = vrot.slane %v5956, 7
      %v6212 = vrot.slane %v5957, 6
      %v6213 = vsel %vm5981, %v6212, %v6211
      %v6214 = vrot.slane %v5958, 5
      %v6215 = vsel %vm5984, %v6214, %v6213
      %v6216 = vrot.slane %v5959, 4
      %v6217 = vsel %vm5987, %v6216, %v6215
      %v6218 = vrot.slane %v5960, 3
      %v6219 = vsel %vm5990, %v6218, %v6217
      %v6220 = vrot.slane %v5961, 2
      %v6221 = vsel %vm5993, %v6220, %v6219
      %v6222 = vrot.slane %v5962, 1
      %v6223 = vsel %vm5996, %v6222, %v6221
      %v6224 = vsel %vm5999, %v5963, %v6223
      %s6227 = scalar_lea.vmem %s9, 8
      %v6228 = vld [vmem:[%s6227] sm:$0xff]
      %v6229 = vsel %vm606, %v6000, 0.0
      %6230 = vadd.xlane.f32.xlu0 %v6229
      %v6231 = vpop.xlane.xlu0 %6230
      %v6232 = vsel %vm606, %v6014, 0.0
      %6233 = vadd.xlane.f32.xlu0 %v6232
      %v6234 = vpop.xlane.xlu0 %6233
      %v6235 = vsel %vm606, %v6030, 0.0
      %6236 = vadd.xlane.f32.xlu0 %v6235
      %v6237 = vpop.xlane.xlu0 %6236
      %v6238 = vsel %vm606, %v6044, 0.0
      %6239 = vadd.xlane.f32.xlu0 %v6238
      %v6240 = vpop.xlane.xlu0 %6239
      %v6241 = vsel %vm606, %v6060, 0.0
      %6242 = vadd.xlane.f32.xlu0 %v6241
      %v6243 = vpop.xlane.xlu0 %6242
      %v6244 = vsel %vm606, %v6074, 0.0
      %6245 = vadd.xlane.f32.xlu0 %v6244
      %v6246 = vpop.xlane.xlu0 %6245
      %v6247 = vsel %vm606, %v6090, 0.0
      %6248 = vadd.xlane.f32.xlu0 %v6247
      %v6249 = vpop.xlane.xlu0 %6248
      %v6250 = vsel %vm606, %v6104, 0.0
      %6251 = vadd.xlane.f32.xlu0 %v6250
      %v6252 = vpop.xlane.xlu0 %6251
      %v6253 = vsel %vm606, %v6120, 0.0
      %6254 = vadd.xlane.f32.xlu0 %v6253
      %v6255 = vpop.xlane.xlu0 %6254
      %v6256 = vsel %vm606, %v6134, 0.0
      %6257 = vadd.xlane.f32.xlu0 %v6256
      %v6258 = vpop.xlane.xlu0 %6257
      %v6259 = vsel %vm606, %v6150, 0.0
      %6260 = vadd.xlane.f32.xlu0 %v6259
      %v6261 = vpop.xlane.xlu0 %6260
      %v6262 = vsel %vm606, %v6164, 0.0
      %6263 = vadd.xlane.f32.xlu0 %v6262
      %v6264 = vpop.xlane.xlu0 %6263
      %v6265 = vsel %vm606, %v6180, 0.0
      %6266 = vadd.xlane.f32.xlu0 %v6265
      %v6267 = vpop.xlane.xlu0 %6266
      %v6268 = vsel %vm606, %v6194, 0.0
      %6269 = vadd.xlane.f32.xlu0 %v6268
      %v6270 = vpop.xlane.xlu0 %6269
      %v6271 = vsel %vm606, %v6210, 0.0
      %6272 = vadd.xlane.f32.xlu0 %v6271
      %v6273 = vpop.xlane.xlu0 %6272
      %v6274 = vsel %vm606, %v6224, 0.0
      %6275 = vadd.xlane.f32.xlu0 %v6274
      %v6276 = vpop.xlane.xlu0 %6275
      %v6277 = vmul.f32 %v6231, %v661
      %v6278 = vmul.f32 %v6234, %v661
      %v6279 = vmul.f32 %v6237, %v661
      %v6280 = vmul.f32 %v6240, %v661
      %v6281 = vmul.f32 %v6243, %v661
      %v6282 = vmul.f32 %v6246, %v661
      %v6283 = vmul.f32 %v6249, %v661
      %v6284 = vmul.f32 %v6252, %v661
      %v6285 = vmul.f32 %v6255, %v661
      %v6286 = vmul.f32 %v6258, %v661
      %v6287 = vmul.f32 %v6261, %v661
      %v6288 = vmul.f32 %v6264, %v661
      %v6289 = vmul.f32 %v6267, %v661
      %v6290 = vmul.f32 %v6270, %v661
      %v6291 = vmul.f32 %v6273, %v661
      %v6292 = vmul.f32 %v6276, %v661
      %v6293 = vsub.f32 %v6000, %v6277
      %v6294 = vsub.f32 %v6014, %v6278
      %v6295 = vsub.f32 %v6030, %v6279
      %v6296 = vsub.f32 %v6044, %v6280
      %v6297 = vsub.f32 %v6060, %v6281
      %v6298 = vsub.f32 %v6074, %v6282
      %v6299 = vsub.f32 %v6090, %v6283
      %v6300 = vsub.f32 %v6104, %v6284
      %v6301 = vsub.f32 %v6120, %v6285
      %v6302 = vsub.f32 %v6134, %v6286
      %v6303 = vsub.f32 %v6150, %v6287
      %v6304 = vsub.f32 %v6164, %v6288
      %v6305 = vsub.f32 %v6180, %v6289
      %v6306 = vsub.f32 %v6194, %v6290
      %v6307 = vsub.f32 %v6210, %v6291
      %v6308 = vsub.f32 %v6224, %v6292
      %v6309 = vmul.f32 %v6293, %v6293
      %v6310 = vmul.f32 %v6294, %v6294
      %v6311 = vmul.f32 %v6295, %v6295
      %v6312 = vmul.f32 %v6296, %v6296
      %v6313 = vmul.f32 %v6297, %v6297
      %v6314 = vmul.f32 %v6298, %v6298
      %v6315 = vmul.f32 %v6299, %v6299
      %v6316 = vmul.f32 %v6300, %v6300
      %v6317 = vmul.f32 %v6301, %v6301
      %v6318 = vmul.f32 %v6302, %v6302
      %v6319 = vmul.f32 %v6303, %v6303
      %v6320 = vmul.f32 %v6304, %v6304
      %v6321 = vmul.f32 %v6305, %v6305
      %v6322 = vmul.f32 %v6306, %v6306
      %v6323 = vmul.f32 %v6307, %v6307
      %v6324 = vmul.f32 %v6308, %v6308
      %v6325 = vsel %vm606, %v6309, 0.0
      %6326 = vadd.xlane.f32.xlu0 %v6325
      %v6327 = vpop.xlane.xlu0 %6326
      %v6328 = vsel %vm606, %v6310, 0.0
      %6329 = vadd.xlane.f32.xlu0 %v6328
      %v6330 = vpop.xlane.xlu0 %6329
      %v6331 = vsel %vm606, %v6311, 0.0
      %6332 = vadd.xlane.f32.xlu0 %v6331
      %v6333 = vpop.xlane.xlu0 %6332
      %v6334 = vsel %vm606, %v6312, 0.0
      %6335 = vadd.xlane.f32.xlu0 %v6334
      %v6336 = vpop.xlane.xlu0 %6335
      %v6337 = vsel %vm606, %v6313, 0.0
      %6338 = vadd.xlane.f32.xlu0 %v6337
      %v6339 = vpop.xlane.xlu0 %6338
      %v6340 = vsel %vm606, %v6314, 0.0
      %6341 = vadd.xlane.f32.xlu0 %v6340
      %v6342 = vpop.xlane.xlu0 %6341
      %v6343 = vsel %vm606, %v6315, 0.0
      %6344 = vadd.xlane.f32.xlu0 %v6343
      %v6345 = vpop.xlane.xlu0 %6344
      %v6346 = vsel %vm606, %v6316, 0.0
      %6347 = vadd.xlane.f32.xlu0 %v6346
      %v6348 = vpop.xlane.xlu0 %6347
      %v6349 = vsel %vm606, %v6317, 0.0
      %6350 = vadd.xlane.f32.xlu0 %v6349
      %v6351 = vpop.xlane.xlu0 %6350
      %v6352 = vsel %vm606, %v6318, 0.0
      %6353 = vadd.xlane.f32.xlu0 %v6352
      %v6354 = vpop.xlane.xlu0 %6353
      %v6355 = vsel %vm606, %v6319, 0.0
      %6356 = vadd.xlane.f32.xlu0 %v6355
      %v6357 = vpop.xlane.xlu0 %6356
      %v6358 = vsel %vm606, %v6320, 0.0
      %6359 = vadd.xlane.f32.xlu0 %v6358
      %v6360 = vpop.xlane.xlu0 %6359
      %v6361 = vsel %vm606, %v6321, 0.0
      %6362 = vadd.xlane.f32.xlu0 %v6361
      %v6363 = vpop.xlane.xlu0 %6362
      %v6364 = vsel %vm606, %v6322, 0.0
      %6365 = vadd.xlane.f32.xlu0 %v6364
      %v6366 = vpop.xlane.xlu0 %6365
      %v6367 = vsel %vm606, %v6323, 0.0
      %6368 = vadd.xlane.f32.xlu0 %v6367
      %v6369 = vpop.xlane.xlu0 %6368
      %v6370 = vsel %vm606, %v6324, 0.0
      %6371 = vadd.xlane.f32.xlu0 %v6370
      %v6372 = vpop.xlane.xlu0 %6371
      %v6373 = vmul.f32 %v6327, %v661
      %v6374 = vmul.f32 %v6330, %v661
      %v6375 = vmul.f32 %v6333, %v661
      %v6376 = vmul.f32 %v6336, %v661
      %v6377 = vmul.f32 %v6339, %v661
      %v6378 = vmul.f32 %v6342, %v661
      %v6379 = vmul.f32 %v6345, %v661
      %v6380 = vmul.f32 %v6348, %v661
      %v6381 = vmul.f32 %v6351, %v661
      %v6382 = vmul.f32 %v6354, %v661
      %v6383 = vmul.f32 %v6357, %v661
      %v6384 = vmul.f32 %v6360, %v661
      %v6385 = vmul.f32 %v6363, %v661
      %v6386 = vmul.f32 %v6366, %v661
      %v6387 = vmul.f32 %v6369, %v661
      %v6388 = vmul.f32 %v6372, %v661
      %v6389 = vadd.f32 %v6373, 1e-05
      %v6390 = vadd.f32 %v6374, 1e-05
      %v6391 = vadd.f32 %v6375, 1e-05
      %v6392 = vadd.f32 %v6376, 1e-05
      %v6393 = vadd.f32 %v6377, 1e-05
      %v6394 = vadd.f32 %v6378, 1e-05
      %v6395 = vadd.f32 %v6379, 1e-05
      %v6396 = vadd.f32 %v6380, 1e-05
      %v6397 = vadd.f32 %v6381, 1e-05
      %v6398 = vadd.f32 %v6382, 1e-05
      %v6399 = vadd.f32 %v6383, 1e-05
      %v6400 = vadd.f32 %v6384, 1e-05
      %v6401 = vadd.f32 %v6385, 1e-05
      %v6402 = vadd.f32 %v6386, 1e-05
      %v6403 = vadd.f32 %v6387, 1e-05
      %v6404 = vadd.f32 %v6388, 1e-05
      %v6405 = vrsqrt.pop %v6389
      %v6406 = vmul.f32 %v6405, %v6389
      %v6407 = vmul.f32 %v6406, %v6405
      %v6408 = vmul.f32 0.5, %v6407
      %v6409 = vsub.f32 1.5, %v6408
      %v6410 = vmul.f32 %v6405, %v6409
      %vm6411 = vweird.f32 %v6389
      %vm6412 = vweird.f32 %v6405
      %vm6413 = vmor %vm6411, %vm6412
      %v6414 = vsel %vm6413, %v6405, %v6410
      %v6415 = vrsqrt.pop %v6390
      %v6416 = vmul.f32 %v6415, %v6390
      %v6417 = vmul.f32 %v6416, %v6415
      %v6418 = vmul.f32 0.5, %v6417
      %v6419 = vsub.f32 1.5, %v6418
      %v6420 = vmul.f32 %v6415, %v6419
      %vm6421 = vweird.f32 %v6390
      %vm6422 = vweird.f32 %v6415
      %vm6423 = vmor %vm6421, %vm6422
      %v6424 = vsel %vm6423, %v6415, %v6420
      %v6425 = vrsqrt.pop %v6391
      %v6426 = vmul.f32 %v6425, %v6391
      %v6427 = vmul.f32 %v6426, %v6425
      %v6428 = vmul.f32 0.5, %v6427
      %v6429 = vsub.f32 1.5, %v6428
      %v6430 = vmul.f32 %v6425, %v6429
      %vm6431 = vweird.f32 %v6391
      %vm6432 = vweird.f32 %v6425
      %vm6433 = vmor %vm6431, %vm6432
      %v6434 = vsel %vm6433, %v6425, %v6430
      %v6435 = vrsqrt.pop %v6392
      %v6436 = vmul.f32 %v6435, %v6392
      %v6437 = vmul.f32 %v6436, %v6435
      %v6438 = vmul.f32 0.5, %v6437
      %v6439 = vsub.f32 1.5, %v6438
      %v6440 = vmul.f32 %v6435, %v6439
      %vm6441 = vweird.f32 %v6392
      %vm6442 = vweird.f32 %v6435
      %vm6443 = vmor %vm6441, %vm6442
      %v6444 = vsel %vm6443, %v6435, %v6440
      %v6445 = vrsqrt.pop %v6393
      %v6446 = vmul.f32 %v6445, %v6393
      %v6447 = vmul.f32 %v6446, %v6445
      %v6448 = vmul.f32 0.5, %v6447
      %v6449 = vsub.f32 1.5, %v6448
      %v6450 = vmul.f32 %v6445, %v6449
      %vm6451 = vweird.f32 %v6393
      %vm6452 = vweird.f32 %v6445
      %vm6453 = vmor %vm6451, %vm6452
      %v6454 = vsel %vm6453, %v6445, %v6450
      %v6455 = vrsqrt.pop %v6394
      %v6456 = vmul.f32 %v6455, %v6394
      %v6457 = vmul.f32 %v6456, %v6455
      %v6458 = vmul.f32 0.5, %v6457
      %v6459 = vsub.f32 1.5, %v6458
      %v6460 = vmul.f32 %v6455, %v6459
      %vm6461 = vweird.f32 %v6394
      %vm6462 = vweird.f32 %v6455
      %vm6463 = vmor %vm6461, %vm6462
      %v6464 = vsel %vm6463, %v6455, %v6460
      %v6465 = vrsqrt.pop %v6395
      %v6466 = vmul.f32 %v6465, %v6395
      %v6467 = vmul.f32 %v6466, %v6465
      %v6468 = vmul.f32 0.5, %v6467
      %v6469 = vsub.f32 1.5, %v6468
      %v6470 = vmul.f32 %v6465, %v6469
      %vm6471 = vweird.f32 %v6395
      %vm6472 = vweird.f32 %v6465
      %vm6473 = vmor %vm6471, %vm6472
      %v6474 = vsel %vm6473, %v6465, %v6470
      %v6475 = vrsqrt.pop %v6396
      %v6476 = vmul.f32 %v6475, %v6396
      %v6477 = vmul.f32 %v6476, %v6475
      %v6478 = vmul.f32 0.5, %v6477
      %v6479 = vsub.f32 1.5, %v6478
      %v6480 = vmul.f32 %v6475, %v6479
      %vm6481 = vweird.f32 %v6396
      %vm6482 = vweird.f32 %v6475
      %vm6483 = vmor %vm6481, %vm6482
      %v6484 = vsel %vm6483, %v6475, %v6480
      %v6485 = vrsqrt.pop %v6397
      %v6486 = vmul.f32 %v6485, %v6397
      %v6487 = vmul.f32 %v6486, %v6485
      %v6488 = vmul.f32 0.5, %v6487
      %v6489 = vsub.f32 1.5, %v6488
      %v6490 = vmul.f32 %v6485, %v6489
      %vm6491 = vweird.f32 %v6397
      %vm6492 = vweird.f32 %v6485
      %vm6493 = vmor %vm6491, %vm6492
      %v6494 = vsel %vm6493, %v6485, %v6490
      %v6495 = vrsqrt.pop %v6398
      %v6496 = vmul.f32 %v6495, %v6398
      %v6497 = vmul.f32 %v6496, %v6495
      %v6498 = vmul.f32 0.5, %v6497
      %v6499 = vsub.f32 1.5, %v6498
      %v6500 = vmul.f32 %v6495, %v6499
      %vm6501 = vweird.f32 %v6398
      %vm6502 = vweird.f32 %v6495
      %vm6503 = vmor %vm6501, %vm6502
      %v6504 = vsel %vm6503, %v6495, %v6500
      %v6505 = vrsqrt.pop %v6399
      %v6506 = vmul.f32 %v6505, %v6399
      %v6507 = vmul.f32 %v6506, %v6505
      %v6508 = vmul.f32 0.5, %v6507
      %v6509 = vsub.f32 1.5, %v6508
      %v6510 = vmul.f32 %v6505, %v6509
      %vm6511 = vweird.f32 %v6399
      %vm6512 = vweird.f32 %v6505
      %vm6513 = vmor %vm6511, %vm6512
      %v6514 = vsel %vm6513, %v6505, %v6510
      %v6515 = vrsqrt.pop %v6400
      %v6516 = vmul.f32 %v6515, %v6400
      %v6517 = vmul.f32 %v6516, %v6515
      %v6518 = vmul.f32 0.5, %v6517
      %v6519 = vsub.f32 1.5, %v6518
      %v6520 = vmul.f32 %v6515, %v6519
      %vm6521 = vweird.f32 %v6400
      %vm6522 = vweird.f32 %v6515
      %vm6523 = vmor %vm6521, %vm6522
      %v6524 = vsel %vm6523, %v6515, %v6520
      %v6525 = vrsqrt.pop %v6401
      %v6526 = vmul.f32 %v6525, %v6401
      %v6527 = vmul.f32 %v6526, %v6525
      %v6528 = vmul.f32 0.5, %v6527
      %v6529 = vsub.f32 1.5, %v6528
      %v6530 = vmul.f32 %v6525, %v6529
      %vm6531 = vweird.f32 %v6401
      %vm6532 = vweird.f32 %v6525
      %vm6533 = vmor %vm6531, %vm6532
      %v6534 = vsel %vm6533, %v6525, %v6530
      %v6535 = vrsqrt.pop %v6402
      %v6536 = vmul.f32 %v6535, %v6402
      %v6537 = vmul.f32 %v6536, %v6535
      %v6538 = vmul.f32 0.5, %v6537
      %v6539 = vsub.f32 1.5, %v6538
      %v6540 = vmul.f32 %v6535, %v6539
      %vm6541 = vweird.f32 %v6402
      %vm6542 = vweird.f32 %v6535
      %vm6543 = vmor %vm6541, %vm6542
      %v6544 = vsel %vm6543, %v6535, %v6540
      %v6545 = vrsqrt.pop %v6403
      %v6546 = vmul.f32 %v6545, %v6403
      %v6547 = vmul.f32 %v6546, %v6545
      %v6548 = vmul.f32 0.5, %v6547
      %v6549 = vsub.f32 1.5, %v6548
      %v6550 = vmul.f32 %v6545, %v6549
      %vm6551 = vweird.f32 %v6403
      %vm6552 = vweird.f32 %v6545
      %vm6553 = vmor %vm6551, %vm6552
      %v6554 = vsel %vm6553, %v6545, %v6550
      %v6555 = vrsqrt.pop %v6404
      %v6556 = vmul.f32 %v6555, %v6404
      %v6557 = vmul.f32 %v6556, %v6555
      %v6558 = vmul.f32 0.5, %v6557
      %v6559 = vsub.f32 1.5, %v6558
      %v6560 = vmul.f32 %v6555, %v6559
      %vm6561 = vweird.f32 %v6404
      %vm6562 = vweird.f32 %v6555
      %vm6563 = vmor %vm6561, %vm6562
      %v6564 = vsel %vm6563, %v6555, %v6560
      %v6565 = vmul.f32 %v6293, %v6414
      %v6566 = vmul.f32 %v6294, %v6424
      %v6567 = vmul.f32 %v6295, %v6434
      %v6568 = vmul.f32 %v6296, %v6444
      %v6569 = vmul.f32 %v6297, %v6454
      %v6570 = vmul.f32 %v6298, %v6464
      %v6571 = vmul.f32 %v6299, %v6474
      %v6572 = vmul.f32 %v6300, %v6484
      %v6573 = vmul.f32 %v6301, %v6494
      %v6574 = vmul.f32 %v6302, %v6504
      %v6575 = vmul.f32 %v6303, %v6514
      %v6576 = vmul.f32 %v6304, %v6524
      %v6577 = vmul.f32 %v6305, %v6534
      %v6578 = vmul.f32 %v6306, %v6544
      %v6579 = vmul.f32 %v6307, %v6554
      %v6580 = vmul.f32 %v6308, %v6564
      %v6581 = vperm.slane %v6228, 0
      %v6582 = vmul.f32 %v6565, %v6581
      %v6583 = vmul.f32 %v6566, %v6581
      %v6584 = vmul.f32 %v6567, %v6581
      %v6585 = vmul.f32 %v6568, %v6581
      %v6586 = vmul.f32 %v6569, %v6581
      %v6587 = vmul.f32 %v6570, %v6581
      %v6588 = vmul.f32 %v6571, %v6581
      %v6589 = vmul.f32 %v6572, %v6581
      %v6590 = vmul.f32 %v6573, %v6581
      %v6591 = vmul.f32 %v6574, %v6581
      %v6592 = vmul.f32 %v6575, %v6581
      %v6593 = vmul.f32 %v6576, %v6581
      %v6594 = vmul.f32 %v6577, %v6581
      %v6595 = vmul.f32 %v6578, %v6581
      %v6596 = vmul.f32 %v6579, %v6581
      %v6597 = vmul.f32 %v6580, %v6581
      %v6598 = vperm.slane %v6228, 1
      %v6599 = vadd.f32 %v6582, %v6598
      %v6600 = vadd.f32 %v6583, %v6598
      %v6601 = vadd.f32 %v6584, %v6598
      %v6602 = vadd.f32 %v6585, %v6598
      %v6603 = vadd.f32 %v6586, %v6598
      %v6604 = vadd.f32 %v6587, %v6598
      %v6605 = vadd.f32 %v6588, %v6598
      %v6606 = vadd.f32 %v6589, %v6598
      %v6607 = vadd.f32 %v6590, %v6598
      %v6608 = vadd.f32 %v6591, %v6598
      %v6609 = vadd.f32 %v6592, %v6598
      %v6610 = vadd.f32 %v6593, %v6598
      %v6611 = vadd.f32 %v6594, %v6598
      %v6612 = vadd.f32 %v6595, %v6598
      %v6613 = vadd.f32 %v6596, %v6598
      %v6614 = vadd.f32 %v6597, %v6598
      %v6615 = vpack.c.bf16 %v6600, %v6599
      %v6616 = vpack.c.bf16 %v6602, %v6601
      %v6617 = vpack.c.bf16 %v6604, %v6603
      %v6618 = vpack.c.bf16 %v6606, %v6605
      %v6619 = vpack.c.bf16 %v6608, %v6607
      %v6620 = vpack.c.bf16 %v6610, %v6609
      %v6621 = vpack.c.bf16 %v6612, %v6611
      %v6622 = vpack.c.bf16 %v6614, %v6613
      %s6623 = scalar_lea.vmem %s3, 16
      %v6624 = vld [vmem:[%s6623] sm:$0xf]
      %v6625 = vld [vmem:[%s6623 + $0x4] sm:$0xf]
      %v6626 = vld [vmem:[%s6623 + $0x8] sm:$0xf]
      %v6627 = vld [vmem:[%s6623 + $0xc] sm:$0xf]
      %s6628 = scalar_lea.vmem %s4, 1
      %v6629 = vld [vmem:[%s6628] sm:$0x1]
      %v6631 = vperm.slane %v6629, 0
      %v6637 = vunpack.c.l.b16 %v6624
      %v6638 = vunpack.c.l.b16 %v6625
      %v6639 = vunpack.c.l.b16 %v6626
      %v6640 = vunpack.c.l.b16 %v6627
      %v6641 = vpack.c.b16 %v6638, %v6637
      %v6642 = vpack.c.b16 %v6640, %v6639
      %v6646 = vsel %vm606, %v6615, 0
      %v6649 = vsel %vm606, %v6616, 0
      %v6652 = vsel %vm606, %v6617, 0
      %v6655 = vsel %vm606, %v6618, 0
      %v6658 = vsel %vm606, %v6619, 0
      %v6661 = vsel %vm606, %v6620, 0
      %v6664 = vsel %vm606, %v6621, 0
      %v6667 = vsel %vm606, %v6622, 0
      %6669 = vmatpush.bf16.msra.mxu0 0
      %6670 = vmatpush.bf16.msra.mxu0 0
      %6671 = vmatpush.bf16.msra.mxu0 0
      %6672 = vmatpush.bf16.msra.mxu0 0
      %6673 = vmatpush.bf16.msra.mxu0 0
      %6674 = vmatpush.bf16.msra.mxu0 0
      %6675 = vmatpush.bf16.msra.mxu0 %v6642
      %6676 = vmatpush.bf16.msra.mxu0 %v6641
      %6677 = vmatmul.bf16.gmra.mxu0 %v6646
      %v6678 = vpop.f32.mrf.mxu0
      %v6679 = vadd.f32 %v6631, %v6678
      %v6680 = vpop.f32.mrf.mxu0
      %v6681 = vadd.f32 %v6631, %v6680
      %6682 = vmatmul.bf16.gmra.mxu0 %v6649
      %v6683 = vpop.f32.mrf.mxu0
      %v6684 = vadd.f32 %v6631, %v6683
      %v6685 = vpop.f32.mrf.mxu0
      %v6686 = vadd.f32 %v6631, %v6685
      %6687 = vmatmul.bf16.gmra.mxu0 %v6652
      %v6688 = vpop.f32.mrf.mxu0
      %v6689 = vadd.f32 %v6631, %v6688
      %v6690 = vpop.f32.mrf.mxu0
      %v6691 = vadd.f32 %v6631, %v6690
      %6692 = vmatmul.bf16.gmra.mxu0 %v6655
      %v6693 = vpop.f32.mrf.mxu0
      %v6694 = vadd.f32 %v6631, %v6693
      %v6695 = vpop.f32.mrf.mxu0
      %v6696 = vadd.f32 %v6631, %v6695
      %6697 = vmatmul.bf16.gmra.mxu0 %v6658
      %v6698 = vpop.f32.mrf.mxu0
      %v6699 = vadd.f32 %v6631, %v6698
      %v6700 = vpop.f32.mrf.mxu0
      %v6701 = vadd.f32 %v6631, %v6700
      %6702 = vmatmul.bf16.gmra.mxu0 %v6661
      %v6703 = vpop.f32.mrf.mxu0
      %v6704 = vadd.f32 %v6631, %v6703
      %v6705 = vpop.f32.mrf.mxu0
      %v6706 = vadd.f32 %v6631, %v6705
      %6707 = vmatmul.bf16.gmra.mxu0 %v6664
      %v6708 = vpop.f32.mrf.mxu0
      %v6709 = vadd.f32 %v6631, %v6708
      %v6710 = vpop.f32.mrf.mxu0
      %v6711 = vadd.f32 %v6631, %v6710
      %6712 = vmatmul.bf16.gmra.mxu0 %v6667
      %v6713 = vpop.f32.mrf.mxu0
      %v6714 = vadd.f32 %v6631, %v6713
      %v6715 = vpop.f32.mrf.mxu0
      %v6716 = vadd.f32 %v6631, %v6715
      %6717 = vdwg.mxu0
      %s6718 = scalar_lea.vmem %s5, 16
      %v6719 = vld [vmem:[%s6718] sm:$0xf]
      %v6720 = vld [vmem:[%s6718 + $0x4] sm:$0xf]
      %v6721 = vld [vmem:[%s6718 + $0x8] sm:$0xf]
      %v6722 = vld [vmem:[%s6718 + $0xc] sm:$0xf]
      %v6723 = vpack.c.bf16 %v6679, %v6679
      %v6724 = vpack.c.bf16 %v6681, %v6681
      %v6725 = vpack.c.bf16 %v6684, %v6684
      %v6726 = vpack.c.bf16 %v6686, %v6686
      %v6727 = vpack.c.bf16 %v6689, %v6689
      %v6728 = vpack.c.bf16 %v6691, %v6691
      %v6729 = vpack.c.bf16 %v6694, %v6694
      %v6730 = vpack.c.bf16 %v6696, %v6696
      %v6731 = vpack.c.bf16 %v6699, %v6699
      %v6732 = vpack.c.bf16 %v6701, %v6701
      %v6733 = vpack.c.bf16 %v6704, %v6704
      %v6734 = vpack.c.bf16 %v6706, %v6706
      %v6735 = vpack.c.bf16 %v6709, %v6709
      %v6736 = vpack.c.bf16 %v6711, %v6711
      %v6737 = vpack.c.bf16 %v6714, %v6714
      %v6738 = vpack.c.bf16 %v6716, %v6716
      %v6741 = vunpack.c.l.b16 %v6723
      %v6742 = vunpack.c.l.b16 %v6724
      %v6743 = vpack.c.b16 %v6742, %v6741
      %6744 = vrot.lane.b32.xlu0 %v6743, 96
      %v6745 = vpop.permute.xlu0 %6744
      %v6747 = vsel %vm1131, %v6743, 0
      %v6750 = vsel %vm1131, %v6745, 0
      %6752 = vmatpush.bf16.xpose.msra.mxu0 0
      %6753 = vmatpush.bf16.xpose.msra.mxu0 0
      %6754 = vmatpush.bf16.xpose.msra.mxu0 0
      %6755 = vmatpush.bf16.xpose.msra.mxu0 0
      %6756 = vmatpush.bf16.xpose.msra.mxu0 0
      %6757 = vmatpush.bf16.xpose.msra.mxu0 0
      %6758 = vmatpush.bf16.xpose.msra.mxu0 0
      %6759 = vmatpush.bf16.xpose.msra.mxu0 %v6750
      %6760 = vmatmul.bf16.gmra.mxu0 %v6747
      %v6761 = vpop.f32.mrf.mxu0
      %v6762 = vadd.f32 0.0, %v6761
      %v6763 = vpop.f32.mrf.mxu0
      %v6764 = vadd.f32 0.0, %v6763
      %6765 = vdwg.mxu0
      %v6768 = vunpack.c.l.b16 %v6725
      %v6769 = vunpack.c.l.b16 %v6726
      %v6770 = vpack.c.b16 %v6769, %v6768
      %6771 = vrot.lane.b32.xlu0 %v6770, 96
      %v6772 = vpop.permute.xlu0 %6771
      %v6774 = vsel %vm1131, %v6770, 0
      %v6777 = vsel %vm1131, %v6772, 0
      %6779 = vmatpush.bf16.xpose.msra.mxu0 0
      %6780 = vmatpush.bf16.xpose.msra.mxu0 0
      %6781 = vmatpush.bf16.xpose.msra.mxu0 0
      %6782 = vmatpush.bf16.xpose.msra.mxu0 0
      %6783 = vmatpush.bf16.xpose.msra.mxu0 0
      %6784 = vmatpush.bf16.xpose.msra.mxu0 0
      %6785 = vmatpush.bf16.xpose.msra.mxu0 0
      %6786 = vmatpush.bf16.xpose.msra.mxu0 %v6777
      %6787 = vmatmul.bf16.gmra.mxu0 %v6774
      %v6788 = vpop.f32.mrf.mxu0
      %v6789 = vadd.f32 0.0, %v6788
      %v6790 = vpop.f32.mrf.mxu0
      %v6791 = vadd.f32 0.0, %v6790
      %6792 = vdwg.mxu0
      %v6795 = vunpack.c.l.b16 %v6727
      %v6796 = vunpack.c.l.b16 %v6728
      %v6797 = vpack.c.b16 %v6796, %v6795
      %6798 = vrot.lane.b32.xlu0 %v6797, 96
      %v6799 = vpop.permute.xlu0 %6798
      %v6801 = vsel %vm1131, %v6797, 0
      %v6804 = vsel %vm1131, %v6799, 0
      %6806 = vmatpush.bf16.xpose.msra.mxu0 0
      %6807 = vmatpush.bf16.xpose.msra.mxu0 0
      %6808 = vmatpush.bf16.xpose.msra.mxu0 0
      %6809 = vmatpush.bf16.xpose.msra.mxu0 0
      %6810 = vmatpush.bf16.xpose.msra.mxu0 0
      %6811 = vmatpush.bf16.xpose.msra.mxu0 0
      %6812 = vmatpush.bf16.xpose.msra.mxu0 0
      %6813 = vmatpush.bf16.xpose.msra.mxu0 %v6804
      %6814 = vmatmul.bf16.gmra.mxu0 %v6801
      %v6815 = vpop.f32.mrf.mxu0
      %v6816 = vadd.f32 0.0, %v6815
      %v6817 = vpop.f32.mrf.mxu0
      %v6818 = vadd.f32 0.0, %v6817
      %6819 = vdwg.mxu0
      %v6822 = vunpack.c.l.b16 %v6729
      %v6823 = vunpack.c.l.b16 %v6730
      %v6824 = vpack.c.b16 %v6823, %v6822
      %6825 = vrot.lane.b32.xlu0 %v6824, 96
      %v6826 = vpop.permute.xlu0 %6825
      %v6828 = vsel %vm1131, %v6824, 0
      %v6831 = vsel %vm1131, %v6826, 0
      %6833 = vmatpush.bf16.xpose.msra.mxu0 0
      %6834 = vmatpush.bf16.xpose.msra.mxu0 0
      %6835 = vmatpush.bf16.xpose.msra.mxu0 0
      %6836 = vmatpush.bf16.xpose.msra.mxu0 0
      %6837 = vmatpush.bf16.xpose.msra.mxu0 0
      %6838 = vmatpush.bf16.xpose.msra.mxu0 0
      %6839 = vmatpush.bf16.xpose.msra.mxu0 0
      %6840 = vmatpush.bf16.xpose.msra.mxu0 %v6831
      %6841 = vmatmul.bf16.gmra.mxu0 %v6828
      %v6842 = vpop.f32.mrf.mxu0
      %v6843 = vadd.f32 0.0, %v6842
      %v6844 = vpop.f32.mrf.mxu0
      %v6845 = vadd.f32 0.0, %v6844
      %6846 = vdwg.mxu0
      %v6849 = vunpack.c.l.b16 %v6731
      %v6850 = vunpack.c.l.b16 %v6732
      %v6851 = vpack.c.b16 %v6850, %v6849
      %6852 = vrot.lane.b32.xlu0 %v6851, 96
      %v6853 = vpop.permute.xlu0 %6852
      %v6855 = vsel %vm1131, %v6851, 0
      %v6858 = vsel %vm1131, %v6853, 0
      %6860 = vmatpush.bf16.xpose.msra.mxu0 0
      %6861 = vmatpush.bf16.xpose.msra.mxu0 0
      %6862 = vmatpush.bf16.xpose.msra.mxu0 0
      %6863 = vmatpush.bf16.xpose.msra.mxu0 0
      %6864 = vmatpush.bf16.xpose.msra.mxu0 0
      %6865 = vmatpush.bf16.xpose.msra.mxu0 0
      %6866 = vmatpush.bf16.xpose.msra.mxu0 0
      %6867 = vmatpush.bf16.xpose.msra.mxu0 %v6858
      %6868 = vmatmul.bf16.gmra.mxu0 %v6855
      %v6869 = vpop.f32.mrf.mxu0
      %v6870 = vadd.f32 0.0, %v6869
      %v6871 = vpop.f32.mrf.mxu0
      %v6872 = vadd.f32 0.0, %v6871
      %6873 = vdwg.mxu0
      %v6876 = vunpack.c.l.b16 %v6733
      %v6877 = vunpack.c.l.b16 %v6734
      %v6878 = vpack.c.b16 %v6877, %v6876
      %6879 = vrot.lane.b32.xlu0 %v6878, 96
      %v6880 = vpop.permute.xlu0 %6879
      %v6882 = vsel %vm1131, %v6878, 0
      %v6885 = vsel %vm1131, %v6880, 0
      %6887 = vmatpush.bf16.xpose.msra.mxu0 0
      %6888 = vmatpush.bf16.xpose.msra.mxu0 0
      %6889 = vmatpush.bf16.xpose.msra.mxu0 0
      %6890 = vmatpush.bf16.xpose.msra.mxu0 0
      %6891 = vmatpush.bf16.xpose.msra.mxu0 0
      %6892 = vmatpush.bf16.xpose.msra.mxu0 0
      %6893 = vmatpush.bf16.xpose.msra.mxu0 0
      %6894 = vmatpush.bf16.xpose.msra.mxu0 %v6885
      %6895 = vmatmul.bf16.gmra.mxu0 %v6882
      %v6896 = vpop.f32.mrf.mxu0
      %v6897 = vadd.f32 0.0, %v6896
      %v6898 = vpop.f32.mrf.mxu0
      %v6899 = vadd.f32 0.0, %v6898
      %6900 = vdwg.mxu0
      %v6903 = vunpack.c.l.b16 %v6735
      %v6904 = vunpack.c.l.b16 %v6736
      %v6905 = vpack.c.b16 %v6904, %v6903
      %6906 = vrot.lane.b32.xlu0 %v6905, 96
      %v6907 = vpop.permute.xlu0 %6906
      %v6909 = vsel %vm1131, %v6905, 0
      %v6912 = vsel %vm1131, %v6907, 0
      %6914 = vmatpush.bf16.xpose.msra.mxu0 0
      %6915 = vmatpush.bf16.xpose.msra.mxu0 0
      %6916 = vmatpush.bf16.xpose.msra.mxu0 0
      %6917 = vmatpush.bf16.xpose.msra.mxu0 0
      %6918 = vmatpush.bf16.xpose.msra.mxu0 0
      %6919 = vmatpush.bf16.xpose.msra.mxu0 0
      %6920 = vmatpush.bf16.xpose.msra.mxu0 0
      %6921 = vmatpush.bf16.xpose.msra.mxu0 %v6912
      %6922 = vmatmul.bf16.gmra.mxu0 %v6909
      %v6923 = vpop.f32.mrf.mxu0
      %v6924 = vadd.f32 0.0, %v6923
      %v6925 = vpop.f32.mrf.mxu0
      %v6926 = vadd.f32 0.0, %v6925
      %6927 = vdwg.mxu0
      %v6930 = vunpack.c.l.b16 %v6737
      %v6931 = vunpack.c.l.b16 %v6738
      %v6932 = vpack.c.b16 %v6931, %v6930
      %6933 = vrot.lane.b32.xlu0 %v6932, 96
      %v6934 = vpop.permute.xlu0 %6933
      %v6936 = vsel %vm1131, %v6932, 0
      %v6939 = vsel %vm1131, %v6934, 0
      %6941 = vmatpush.bf16.xpose.msra.mxu0 0
      %6942 = vmatpush.bf16.xpose.msra.mxu0 0
      %6943 = vmatpush.bf16.xpose.msra.mxu0 0
      %6944 = vmatpush.bf16.xpose.msra.mxu0 0
      %6945 = vmatpush.bf16.xpose.msra.mxu0 0
      %6946 = vmatpush.bf16.xpose.msra.mxu0 0
      %6947 = vmatpush.bf16.xpose.msra.mxu0 0
      %6948 = vmatpush.bf16.xpose.msra.mxu0 %v6939
      %6949 = vmatmul.bf16.gmra.mxu0 %v6936
      %v6950 = vpop.f32.mrf.mxu0
      %v6951 = vadd.f32 0.0, %v6950
      %v6952 = vpop.f32.mrf.mxu0
      %v6953 = vadd.f32 0.0, %v6952
      %6954 = vdwg.mxu0
      %vm6955 = vcmask 130048
      %v6956 = vsel %vm6955, %v6762, -inf
      %6957 = vmax.xlane.f32.xlu0 %v6956
      %v6958 = vpop.xlane.xlu0 %6957
      %v6959 = vsel %vm6955, %v6764, -inf
      %6960 = vmax.xlane.f32.xlu0 %v6959
      %v6961 = vpop.xlane.xlu0 %6960
      %v6962 = vsel %vm6955, %v6789, -inf
      %6963 = vmax.xlane.f32.xlu0 %v6962
      %v6964 = vpop.xlane.xlu0 %6963
      %v6965 = vsel %vm6955, %v6791, -inf
      %6966 = vmax.xlane.f32.xlu0 %v6965
      %v6967 = vpop.xlane.xlu0 %6966
      %v6968 = vsel %vm6955, %v6816, -inf
      %6969 = vmax.xlane.f32.xlu0 %v6968
      %v6970 = vpop.xlane.xlu0 %6969
      %v6971 = vsel %vm6955, %v6818, -inf
      %6972 = vmax.xlane.f32.xlu0 %v6971
      %v6973 = vpop.xlane.xlu0 %6972
      %v6974 = vsel %vm6955, %v6843, -inf
      %6975 = vmax.xlane.f32.xlu0 %v6974
      %v6976 = vpop.xlane.xlu0 %6975
      %v6977 = vsel %vm6955, %v6845, -inf
      %6978 = vmax.xlane.f32.xlu0 %v6977
      %v6979 = vpop.xlane.xlu0 %6978
      %v6980 = vsel %vm6955, %v6870, -inf
      %6981 = vmax.xlane.f32.xlu0 %v6980
      %v6982 = vpop.xlane.xlu0 %6981
      %v6983 = vsel %vm6955, %v6872, -inf
      %6984 = vmax.xlane.f32.xlu0 %v6983
      %v6985 = vpop.xlane.xlu0 %6984
      %v6986 = vsel %vm6955, %v6897, -inf
      %6987 = vmax.xlane.f32.xlu0 %v6986
      %v6988 = vpop.xlane.xlu0 %6987
      %v6989 = vsel %vm6955, %v6899, -inf
      %6990 = vmax.xlane.f32.xlu0 %v6989
      %v6991 = vpop.xlane.xlu0 %6990
      %v6992 = vsel %vm6955, %v6924, -inf
      %6993 = vmax.xlane.f32.xlu0 %v6992
      %v6994 = vpop.xlane.xlu0 %6993
      %v6995 = vsel %vm6955, %v6926, -inf
      %6996 = vmax.xlane.f32.xlu0 %v6995
      %v6997 = vpop.xlane.xlu0 %6996
      %v6998 = vsel %vm6955, %v6951, -inf
      %6999 = vmax.xlane.f32.xlu0 %v6998
      %v7000 = vpop.xlane.xlu0 %6999
      %v7001 = vsel %vm6955, %v6953, -inf
      %7002 = vmax.xlane.f32.xlu0 %v7001
      %v7003 = vpop.xlane.xlu0 %7002
      %v7004 = vsub.f32 %v6762, %v6958
      %v7005 = vsub.f32 %v6764, %v6961
      %v7006 = vsub.f32 %v6789, %v6964
      %v7007 = vsub.f32 %v6791, %v6967
      %v7008 = vsub.f32 %v6816, %v6970
      %v7009 = vsub.f32 %v6818, %v6973
      %v7010 = vsub.f32 %v6843, %v6976
      %v7011 = vsub.f32 %v6845, %v6979
      %v7012 = vsub.f32 %v6870, %v6982
      %v7013 = vsub.f32 %v6872, %v6985
      %v7014 = vsub.f32 %v6897, %v6988
      %v7015 = vsub.f32 %v6899, %v6991
      %v7016 = vsub.f32 %v6924, %v6994
      %v7017 = vsub.f32 %v6926, %v6997
      %v7018 = vsub.f32 %v6951, %v7000
      %v7019 = vsub.f32 %v6953, %v7003
      %v7020 = vmul.f32 %v7004, 1.442695
      %v7021 = vpow.pop %v7020
      %v7022 = vmul.f32 %v7005, 1.442695
      %v7023 = vpow.pop %v7022
      %v7024 = vmul.f32 %v7006, 1.442695
      %v7025 = vpow.pop %v7024
      %v7026 = vmul.f32 %v7007, 1.442695
      %v7027 = vpow.pop %v7026
      %v7028 = vmul.f32 %v7008, 1.442695
      %v7029 = vpow.pop %v7028
      %v7030 = vmul.f32 %v7009, 1.442695
      %v7031 = vpow.pop %v7030
      %v7032 = vmul.f32 %v7010, 1.442695
      %v7033 = vpow.pop %v7032
      %v7034 = vmul.f32 %v7011, 1.442695
      %v7035 = vpow.pop %v7034
      %v7036 = vmul.f32 %v7012, 1.442695
      %v7037 = vpow.pop %v7036
      %v7038 = vmul.f32 %v7013, 1.442695
      %v7039 = vpow.pop %v7038
      %v7040 = vmul.f32 %v7014, 1.442695
      %v7041 = vpow.pop %v7040
      %v7042 = vmul.f32 %v7015, 1.442695
      %v7043 = vpow.pop %v7042
      %v7044 = vmul.f32 %v7016, 1.442695
      %v7045 = vpow.pop %v7044
      %v7046 = vmul.f32 %v7017, 1.442695
      %v7047 = vpow.pop %v7046
      %v7048 = vmul.f32 %v7018, 1.442695
      %v7049 = vpow.pop %v7048
      %v7050 = vmul.f32 %v7019, 1.442695
      %v7051 = vpow.pop %v7050
      %v7052 = vsel %vm6955, %v7021, 0.0
      %7053 = vadd.xlane.f32.xlu0 %v7052
      %v7054 = vpop.xlane.xlu0 %7053
      %v7055 = vsel %vm6955, %v7023, 0.0
      %7056 = vadd.xlane.f32.xlu0 %v7055
      %v7057 = vpop.xlane.xlu0 %7056
      %v7058 = vsel %vm6955, %v7025, 0.0
      %7059 = vadd.xlane.f32.xlu0 %v7058
      %v7060 = vpop.xlane.xlu0 %7059
      %v7061 = vsel %vm6955, %v7027, 0.0
      %7062 = vadd.xlane.f32.xlu0 %v7061
      %v7063 = vpop.xlane.xlu0 %7062
      %v7064 = vsel %vm6955, %v7029, 0.0
      %7065 = vadd.xlane.f32.xlu0 %v7064
      %v7066 = vpop.xlane.xlu0 %7065
      %v7067 = vsel %vm6955, %v7031, 0.0
      %7068 = vadd.xlane.f32.xlu0 %v7067
      %v7069 = vpop.xlane.xlu0 %7068
      %v7070 = vsel %vm6955, %v7033, 0.0
      %7071 = vadd.xlane.f32.xlu0 %v7070
      %v7072 = vpop.xlane.xlu0 %7071
      %v7073 = vsel %vm6955, %v7035, 0.0
      %7074 = vadd.xlane.f32.xlu0 %v7073
      %v7075 = vpop.xlane.xlu0 %7074
      %v7076 = vsel %vm6955, %v7037, 0.0
      %7077 = vadd.xlane.f32.xlu0 %v7076
      %v7078 = vpop.xlane.xlu0 %7077
      %v7079 = vsel %vm6955, %v7039, 0.0
      %7080 = vadd.xlane.f32.xlu0 %v7079
      %v7081 = vpop.xlane.xlu0 %7080
      %v7082 = vsel %vm6955, %v7041, 0.0
      %7083 = vadd.xlane.f32.xlu0 %v7082
      %v7084 = vpop.xlane.xlu0 %7083
      %v7085 = vsel %vm6955, %v7043, 0.0
      %7086 = vadd.xlane.f32.xlu0 %v7085
      %v7087 = vpop.xlane.xlu0 %7086
      %v7088 = vsel %vm6955, %v7045, 0.0
      %7089 = vadd.xlane.f32.xlu0 %v7088
      %v7090 = vpop.xlane.xlu0 %7089
      %v7091 = vsel %vm6955, %v7047, 0.0
      %7092 = vadd.xlane.f32.xlu0 %v7091
      %v7093 = vpop.xlane.xlu0 %7092
      %v7094 = vsel %vm6955, %v7049, 0.0
      %7095 = vadd.xlane.f32.xlu0 %v7094
      %v7096 = vpop.xlane.xlu0 %7095
      %v7097 = vsel %vm6955, %v7051, 0.0
      %7098 = vadd.xlane.f32.xlu0 %v7097
      %v7099 = vpop.xlane.xlu0 %7098
      %v7100 = vrcp.pop %v7054
      %v7101 = vrcp.pop %v7057
      %v7102 = vrcp.pop %v7060
      %v7103 = vrcp.pop %v7063
      %v7104 = vrcp.pop %v7066
      %v7105 = vrcp.pop %v7069
      %v7106 = vrcp.pop %v7072
      %v7107 = vrcp.pop %v7075
      %v7108 = vrcp.pop %v7078
      %v7109 = vrcp.pop %v7081
      %v7110 = vrcp.pop %v7084
      %v7111 = vrcp.pop %v7087
      %v7112 = vrcp.pop %v7090
      %v7113 = vrcp.pop %v7093
      %v7114 = vrcp.pop %v7096
      %v7115 = vrcp.pop %v7099
      %v7116 = vmul.f32 %v7021, %v7100
      %v7117 = vmul.f32 %v7023, %v7101
      %v7118 = vmul.f32 %v7025, %v7102
      %v7119 = vmul.f32 %v7027, %v7103
      %v7120 = vmul.f32 %v7029, %v7104
      %v7121 = vmul.f32 %v7031, %v7105
      %v7122 = vmul.f32 %v7033, %v7106
      %v7123 = vmul.f32 %v7035, %v7107
      %v7124 = vmul.f32 %v7037, %v7108
      %v7125 = vmul.f32 %v7039, %v7109
      %v7126 = vmul.f32 %v7041, %v7110
      %v7127 = vmul.f32 %v7043, %v7111
      %v7128 = vmul.f32 %v7045, %v7112
      %v7129 = vmul.f32 %v7047, %v7113
      %v7130 = vmul.f32 %v7049, %v7114
      %v7131 = vmul.f32 %v7051, %v7115
      %v7132 = vpack.c.bf16 %v7116, %v7116
      %v7133 = vpack.c.bf16 %v7117, %v7117
      %v7134 = vpack.c.bf16 %v7118, %v7118
      %v7135 = vpack.c.bf16 %v7119, %v7119
      %v7136 = vpack.c.bf16 %v7120, %v7120
      %v7137 = vpack.c.bf16 %v7121, %v7121
      %v7138 = vpack.c.bf16 %v7122, %v7122
      %v7139 = vpack.c.bf16 %v7123, %v7123
      %v7140 = vpack.c.bf16 %v7124, %v7124
      %v7141 = vpack.c.bf16 %v7125, %v7125
      %v7142 = vpack.c.bf16 %v7126, %v7126
      %v7143 = vpack.c.bf16 %v7127, %v7127
      %v7144 = vpack.c.bf16 %v7128, %v7128
      %v7145 = vpack.c.bf16 %v7129, %v7129
      %v7146 = vpack.c.bf16 %v7130, %v7130
      %v7147 = vpack.c.bf16 %v7131, %v7131
      %v7150 = vunpack.c.l.b16 %v7132
      %v7151 = vunpack.c.l.b16 %v7133
      %v7152 = vpack.c.b16 %v7151, %v7150
      %7153 = vrot.lane.b32.xlu0 %v6743, 64
      %v7154 = vpop.permute.xlu0 %7153
      %v7157 = vsel %vm6955, %v7152, 0
      %7159 = vmatpush.bf16.msra.mxu0 0
      %7160 = vmatpush.bf16.msra.mxu0 0
      %7161 = vmatpush.bf16.msra.mxu0 0
      %7162 = vmatpush.bf16.msra.mxu0 0
      %7163 = vmatpush.bf16.msra.mxu0 0
      %7164 = vmatpush.bf16.msra.mxu0 0
      %7165 = vmatpush.bf16.msra.mxu0 0
      %7166 = vmatpush.bf16.msra.mxu0 %v7154
      %7167 = vmatmul.bf16.gmra.mxu0 %v7157
      %v7168 = vpop.f32.mrf.mxu0
      %v7169 = vadd.f32 0.0, %v7168
      %v7170 = vpop.f32.mrf.mxu0
      %v7171 = vadd.f32 0.0, %v7170
      %7172 = vdwg.mxu0
      %v7175 = vunpack.c.l.b16 %v7134
      %v7176 = vunpack.c.l.b16 %v7135
      %v7177 = vpack.c.b16 %v7176, %v7175
      %7178 = vrot.lane.b32.xlu0 %v6770, 64
      %v7179 = vpop.permute.xlu0 %7178
      %v7182 = vsel %vm6955, %v7177, 0
      %7184 = vmatpush.bf16.msra.mxu0 0
      %7185 = vmatpush.bf16.msra.mxu0 0
      %7186 = vmatpush.bf16.msra.mxu0 0
      %7187 = vmatpush.bf16.msra.mxu0 0
      %7188 = vmatpush.bf16.msra.mxu0 0
      %7189 = vmatpush.bf16.msra.mxu0 0
      %7190 = vmatpush.bf16.msra.mxu0 0
      %7191 = vmatpush.bf16.msra.mxu0 %v7179
      %7192 = vmatmul.bf16.gmra.mxu0 %v7182
      %v7193 = vpop.f32.mrf.mxu0
      %v7194 = vadd.f32 0.0, %v7193
      %v7195 = vpop.f32.mrf.mxu0
      %v7196 = vadd.f32 0.0, %v7195
      %7197 = vdwg.mxu0
      %v7200 = vunpack.c.l.b16 %v7136
      %v7201 = vunpack.c.l.b16 %v7137
      %v7202 = vpack.c.b16 %v7201, %v7200
      %7203 = vrot.lane.b32.xlu0 %v6797, 64
      %v7204 = vpop.permute.xlu0 %7203
      %v7207 = vsel %vm6955, %v7202, 0
      %7209 = vmatpush.bf16.msra.mxu0 0
      %7210 = vmatpush.bf16.msra.mxu0 0
      %7211 = vmatpush.bf16.msra.mxu0 0
      %7212 = vmatpush.bf16.msra.mxu0 0
      %7213 = vmatpush.bf16.msra.mxu0 0
      %7214 = vmatpush.bf16.msra.mxu0 0
      %7215 = vmatpush.bf16.msra.mxu0 0
      %7216 = vmatpush.bf16.msra.mxu0 %v7204
      %7217 = vmatmul.bf16.gmra.mxu0 %v7207
      %v7218 = vpop.f32.mrf.mxu0
      %v7219 = vadd.f32 0.0, %v7218
      %v7220 = vpop.f32.mrf.mxu0
      %v7221 = vadd.f32 0.0, %v7220
      %7222 = vdwg.mxu0
      %v7225 = vunpack.c.l.b16 %v7138
      %v7226 = vunpack.c.l.b16 %v7139
      %v7227 = vpack.c.b16 %v7226, %v7225
      %7228 = vrot.lane.b32.xlu0 %v6824, 64
      %v7229 = vpop.permute.xlu0 %7228
      %v7232 = vsel %vm6955, %v7227, 0
      %7234 = vmatpush.bf16.msra.mxu0 0
      %7235 = vmatpush.bf16.msra.mxu0 0
      %7236 = vmatpush.bf16.msra.mxu0 0
      %7237 = vmatpush.bf16.msra.mxu0 0
      %7238 = vmatpush.bf16.msra.mxu0 0
      %7239 = vmatpush.bf16.msra.mxu0 0
      %7240 = vmatpush.bf16.msra.mxu0 0
      %7241 = vmatpush.bf16.msra.mxu0 %v7229
      %7242 = vmatmul.bf16.gmra.mxu0 %v7232
      %v7243 = vpop.f32.mrf.mxu0
      %v7244 = vadd.f32 0.0, %v7243
      %v7245 = vpop.f32.mrf.mxu0
      %v7246 = vadd.f32 0.0, %v7245
      %7247 = vdwg.mxu0
      %v7250 = vunpack.c.l.b16 %v7140
      %v7251 = vunpack.c.l.b16 %v7141
      %v7252 = vpack.c.b16 %v7251, %v7250
      %7253 = vrot.lane.b32.xlu0 %v6851, 64
      %v7254 = vpop.permute.xlu0 %7253
      %v7257 = vsel %vm6955, %v7252, 0
      %7259 = vmatpush.bf16.msra.mxu0 0
      %7260 = vmatpush.bf16.msra.mxu0 0
      %7261 = vmatpush.bf16.msra.mxu0 0
      %7262 = vmatpush.bf16.msra.mxu0 0
      %7263 = vmatpush.bf16.msra.mxu0 0
      %7264 = vmatpush.bf16.msra.mxu0 0
      %7265 = vmatpush.bf16.msra.mxu0 0
      %7266 = vmatpush.bf16.msra.mxu0 %v7254
      %7267 = vmatmul.bf16.gmra.mxu0 %v7257
      %v7268 = vpop.f32.mrf.mxu0
      %v7269 = vadd.f32 0.0, %v7268
      %v7270 = vpop.f32.mrf.mxu0
      %v7271 = vadd.f32 0.0, %v7270
      %7272 = vdwg.mxu0
      %v7275 = vunpack.c.l.b16 %v7142
      %v7276 = vunpack.c.l.b16 %v7143
      %v7277 = vpack.c.b16 %v7276, %v7275
      %7278 = vrot.lane.b32.xlu0 %v6878, 64
      %v7279 = vpop.permute.xlu0 %7278
      %v7282 = vsel %vm6955, %v7277, 0
      %7284 = vmatpush.bf16.msra.mxu0 0
      %7285 = vmatpush.bf16.msra.mxu0 0
      %7286 = vmatpush.bf16.msra.mxu0 0
      %7287 = vmatpush.bf16.msra.mxu0 0
      %7288 = vmatpush.bf16.msra.mxu0 0
      %7289 = vmatpush.bf16.msra.mxu0 0
      %7290 = vmatpush.bf16.msra.mxu0 0
      %7291 = vmatpush.bf16.msra.mxu0 %v7279
      %7292 = vmatmul.bf16.gmra.mxu0 %v7282
      %v7293 = vpop.f32.mrf.mxu0
      %v7294 = vadd.f32 0.0, %v7293
      %v7295 = vpop.f32.mrf.mxu0
      %v7296 = vadd.f32 0.0, %v7295
      %7297 = vdwg.mxu0
      %v7300 = vunpack.c.l.b16 %v7144
      %v7301 = vunpack.c.l.b16 %v7145
      %v7302 = vpack.c.b16 %v7301, %v7300
      %7303 = vrot.lane.b32.xlu0 %v6905, 64
      %v7304 = vpop.permute.xlu0 %7303
      %v7307 = vsel %vm6955, %v7302, 0
      %7309 = vmatpush.bf16.msra.mxu0 0
      %7310 = vmatpush.bf16.msra.mxu0 0
      %7311 = vmatpush.bf16.msra.mxu0 0
      %7312 = vmatpush.bf16.msra.mxu0 0
      %7313 = vmatpush.bf16.msra.mxu0 0
      %7314 = vmatpush.bf16.msra.mxu0 0
      %7315 = vmatpush.bf16.msra.mxu0 0
      %7316 = vmatpush.bf16.msra.mxu0 %v7304
      %7317 = vmatmul.bf16.gmra.mxu0 %v7307
      %v7318 = vpop.f32.mrf.mxu0
      %v7319 = vadd.f32 0.0, %v7318
      %v7320 = vpop.f32.mrf.mxu0
      %v7321 = vadd.f32 0.0, %v7320
      %7322 = vdwg.mxu0
      %v7325 = vunpack.c.l.b16 %v7146
      %v7326 = vunpack.c.l.b16 %v7147
      %v7327 = vpack.c.b16 %v7326, %v7325
      %7328 = vrot.lane.b32.xlu0 %v6932, 64
      %v7329 = vpop.permute.xlu0 %7328
      %v7332 = vsel %vm6955, %v7327, 0
      %7334 = vmatpush.bf16.msra.mxu0 0
      %7335 = vmatpush.bf16.msra.mxu0 0
      %7336 = vmatpush.bf16.msra.mxu0 0
      %7337 = vmatpush.bf16.msra.mxu0 0
      %7338 = vmatpush.bf16.msra.mxu0 0
      %7339 = vmatpush.bf16.msra.mxu0 0
      %7340 = vmatpush.bf16.msra.mxu0 0
      %7341 = vmatpush.bf16.msra.mxu0 %v7329
      %7342 = vmatmul.bf16.gmra.mxu0 %v7332
      %v7343 = vpop.f32.mrf.mxu0
      %v7344 = vadd.f32 0.0, %v7343
      %v7345 = vpop.f32.mrf.mxu0
      %v7346 = vadd.f32 0.0, %v7345
      %7347 = vdwg.mxu0
      %v7348 = vpack.c.bf16 %v7171, %v7169
      %v7349 = vpack.c.bf16 %v7196, %v7194
      %v7350 = vpack.c.bf16 %v7221, %v7219
      %v7351 = vpack.c.bf16 %v7246, %v7244
      %v7352 = vpack.c.bf16 %v7271, %v7269
      %v7353 = vpack.c.bf16 %v7296, %v7294
      %v7354 = vpack.c.bf16 %v7321, %v7319
      %v7355 = vpack.c.bf16 %v7346, %v7344
      %7356 = vrot.lane.b32.xlu0 %v6743, 120
      %v7357 = vpop.permute.xlu0 %7356
      %7358 = vrot.lane.b32.xlu0 %v6743, 88
      %v7359 = vpop.permute.xlu0 %7358
      %v7361 = vsel %vm1131, %v7357, 0
      %v7364 = vsel %vm1131, %v7359, 0
      %7366 = vmatpush.bf16.xpose.msra.mxu0 0
      %7367 = vmatpush.bf16.xpose.msra.mxu0 0
      %7368 = vmatpush.bf16.xpose.msra.mxu0 0
      %7369 = vmatpush.bf16.xpose.msra.mxu0 0
      %7370 = vmatpush.bf16.xpose.msra.mxu0 0
      %7371 = vmatpush.bf16.xpose.msra.mxu0 0
      %7372 = vmatpush.bf16.xpose.msra.mxu0 0
      %7373 = vmatpush.bf16.xpose.msra.mxu0 %v7364
      %7374 = vmatmul.bf16.gmra.mxu0 %v7361
      %v7375 = vpop.f32.mrf.mxu0
      %v7376 = vadd.f32 0.0, %v7375
      %v7377 = vpop.f32.mrf.mxu0
      %v7378 = vadd.f32 0.0, %v7377
      %7379 = vdwg.mxu0
      %7380 = vrot.lane.b32.xlu0 %v6770, 120
      %v7381 = vpop.permute.xlu0 %7380
      %7382 = vrot.lane.b32.xlu0 %v6770, 88
      %v7383 = vpop.permute.xlu0 %7382
      %v7385 = vsel %vm1131, %v7381, 0
      %v7388 = vsel %vm1131, %v7383, 0
      %7390 = vmatpush.bf16.xpose.msra.mxu0 0
      %7391 = vmatpush.bf16.xpose.msra.mxu0 0
      %7392 = vmatpush.bf16.xpose.msra.mxu0 0
      %7393 = vmatpush.bf16.xpose.msra.mxu0 0
      %7394 = vmatpush.bf16.xpose.msra.mxu0 0
      %7395 = vmatpush.bf16.xpose.msra.mxu0 0
      %7396 = vmatpush.bf16.xpose.msra.mxu0 0
      %7397 = vmatpush.bf16.xpose.msra.mxu0 %v7388
      %7398 = vmatmul.bf16.gmra.mxu0 %v7385
      %v7399 = vpop.f32.mrf.mxu0
      %v7400 = vadd.f32 0.0, %v7399
      %v7401 = vpop.f32.mrf.mxu0
      %v7402 = vadd.f32 0.0, %v7401
      %7403 = vdwg.mxu0
      %7404 = vrot.lane.b32.xlu0 %v6797, 120
      %v7405 = vpop.permute.xlu0 %7404
      %7406 = vrot.lane.b32.xlu0 %v6797, 88
      %v7407 = vpop.permute.xlu0 %7406
      %v7409 = vsel %vm1131, %v7405, 0
      %v7412 = vsel %vm1131, %v7407, 0
      %7414 = vmatpush.bf16.xpose.msra.mxu0 0
      %7415 = vmatpush.bf16.xpose.msra.mxu0 0
      %7416 = vmatpush.bf16.xpose.msra.mxu0 0
      %7417 = vmatpush.bf16.xpose.msra.mxu0 0
      %7418 = vmatpush.bf16.xpose.msra.mxu0 0
      %7419 = vmatpush.bf16.xpose.msra.mxu0 0
      %7420 = vmatpush.bf16.xpose.msra.mxu0 0
      %7421 = vmatpush.bf16.xpose.msra.mxu0 %v7412
      %7422 = vmatmul.bf16.gmra.mxu0 %v7409
      %v7423 = vpop.f32.mrf.mxu0
      %v7424 = vadd.f32 0.0, %v7423
      %v7425 = vpop.f32.mrf.mxu0
      %v7426 = vadd.f32 0.0, %v7425
      %7427 = vdwg.mxu0
      %7428 = vrot.lane.b32.xlu0 %v6824, 120
      %v7429 = vpop.permute.xlu0 %7428
      %7430 = vrot.lane.b32.xlu0 %v6824, 88
      %v7431 = vpop.permute.xlu0 %7430
      %v7433 = vsel %vm1131, %v7429, 0
      %v7436 = vsel %vm1131, %v7431, 0
      %7438 = vmatpush.bf16.xpose.msra.mxu0 0
      %7439 = vmatpush.bf16.xpose.msra.mxu0 0
      %7440 = vmatpush.bf16.xpose.msra.mxu0 0
      %7441 = vmatpush.bf16.xpose.msra.mxu0 0
      %7442 = vmatpush.bf16.xpose.msra.mxu0 0
      %7443 = vmatpush.bf16.xpose.msra.mxu0 0
      %7444 = vmatpush.bf16.xpose.msra.mxu0 0
      %7445 = vmatpush.bf16.xpose.msra.mxu0 %v7436
      %7446 = vmatmul.bf16.gmra.mxu0 %v7433
      %v7447 = vpop.f32.mrf.mxu0
      %v7448 = vadd.f32 0.0, %v7447
      %v7449 = vpop.f32.mrf.mxu0
      %v7450 = vadd.f32 0.0, %v7449
      %7451 = vdwg.mxu0
      %7452 = vrot.lane.b32.xlu0 %v6851, 120
      %v7453 = vpop.permute.xlu0 %7452
      %7454 = vrot.lane.b32.xlu0 %v6851, 88
      %v7455 = vpop.permute.xlu0 %7454
      %v7457 = vsel %vm1131, %v7453, 0
      %v7460 = vsel %vm1131, %v7455, 0
      %7462 = vmatpush.bf16.xpose.msra.mxu0 0
      %7463 = vmatpush.bf16.xpose.msra.mxu0 0
      %7464 = vmatpush.bf16.xpose.msra.mxu0 0
      %7465 = vmatpush.bf16.xpose.msra.mxu0 0
      %7466 = vmatpush.bf16.xpose.msra.mxu0 0
      %7467 = vmatpush.bf16.xpose.msra.mxu0 0
      %7468 = vmatpush.bf16.xpose.msra.mxu0 0
      %7469 = vmatpush.bf16.xpose.msra.mxu0 %v7460
      %7470 = vmatmul.bf16.gmra.mxu0 %v7457
      %v7471 = vpop.f32.mrf.mxu0
      %v7472 = vadd.f32 0.0, %v7471
      %v7473 = vpop.f32.mrf.mxu0
      %v7474 = vadd.f32 0.0, %v7473
      %7475 = vdwg.mxu0
      %7476 = vrot.lane.b32.xlu0 %v6878, 120
      %v7477 = vpop.permute.xlu0 %7476
      %7478 = vrot.lane.b32.xlu0 %v6878, 88
      %v7479 = vpop.permute.xlu0 %7478
      %v7481 = vsel %vm1131, %v7477, 0
      %v7484 = vsel %vm1131, %v7479, 0
      %7486 = vmatpush.bf16.xpose.msra.mxu0 0
      %7487 = vmatpush.bf16.xpose.msra.mxu0 0
      %7488 = vmatpush.bf16.xpose.msra.mxu0 0
      %7489 = vmatpush.bf16.xpose.msra.mxu0 0
      %7490 = vmatpush.bf16.xpose.msra.mxu0 0
      %7491 = vmatpush.bf16.xpose.msra.mxu0 0
      %7492 = vmatpush.bf16.xpose.msra.mxu0 0
      %7493 = vmatpush.bf16.xpose.msra.mxu0 %v7484
      %7494 = vmatmul.bf16.gmra.mxu0 %v7481
      %v7495 = vpop.f32.mrf.mxu0
      %v7496 = vadd.f32 0.0, %v7495
      %v7497 = vpop.f32.mrf.mxu0
      %v7498 = vadd.f32 0.0, %v7497
      %7499 = vdwg.mxu0
      %7500 = vrot.lane.b32.xlu0 %v6905, 120
      %v7501 = vpop.permute.xlu0 %7500
      %7502 = vrot.lane.b32.xlu0 %v6905, 88
      %v7503 = vpop.permute.xlu0 %7502
      %v7505 = vsel %vm1131, %v7501, 0
      %v7508 = vsel %vm1131, %v7503, 0
      %7510 = vmatpush.bf16.xpose.msra.mxu0 0
      %7511 = vmatpush.bf16.xpose.msra.mxu0 0
      %7512 = vmatpush.bf16.xpose.msra.mxu0 0
      %7513 = vmatpush.bf16.xpose.msra.mxu0 0
      %7514 = vmatpush.bf16.xpose.msra.mxu0 0
      %7515 = vmatpush.bf16.xpose.msra.mxu0 0
      %7516 = vmatpush.bf16.xpose.msra.mxu0 0
      %7517 = vmatpush.bf16.xpose.msra.mxu0 %v7508
      %7518 = vmatmul.bf16.gmra.mxu0 %v7505
      %v7519 = vpop.f32.mrf.mxu0
      %v7520 = vadd.f32 0.0, %v7519
      %v7521 = vpop.f32.mrf.mxu0
      %v7522 = vadd.f32 0.0, %v7521
      %7523 = vdwg.mxu0
      %7524 = vrot.lane.b32.xlu0 %v6932, 120
      %v7525 = vpop.permute.xlu0 %7524
      %7526 = vrot.lane.b32.xlu0 %v6932, 88
      %v7527 = vpop.permute.xlu0 %7526
      %v7529 = vsel %vm1131, %v7525, 0
      %v7532 = vsel %vm1131, %v7527, 0
      %7534 = vmatpush.bf16.xpose.msra.mxu0 0
      %7535 = vmatpush.bf16.xpose.msra.mxu0 0
      %7536 = vmatpush.bf16.xpose.msra.mxu0 0
      %7537 = vmatpush.bf16.xpose.msra.mxu0 0
      %7538 = vmatpush.bf16.xpose.msra.mxu0 0
      %7539 = vmatpush.bf16.xpose.msra.mxu0 0
      %7540 = vmatpush.bf16.xpose.msra.mxu0 0
      %7541 = vmatpush.bf16.xpose.msra.mxu0 %v7532
      %7542 = vmatmul.bf16.gmra.mxu0 %v7529
      %v7543 = vpop.f32.mrf.mxu0
      %v7544 = vadd.f32 0.0, %v7543
      %v7545 = vpop.f32.mrf.mxu0
      %v7546 = vadd.f32 0.0, %v7545
      %7547 = vdwg.mxu0
      %v7548 = vsel %vm6955, %v7376, -inf
      %7549 = vmax.xlane.f32.xlu0 %v7548
      %v7550 = vpop.xlane.xlu0 %7549
      %v7551 = vsel %vm6955, %v7378, -inf
      %7552 = vmax.xlane.f32.xlu0 %v7551
      %v7553 = vpop.xlane.xlu0 %7552
      %v7554 = vsel %vm6955, %v7400, -inf
      %7555 = vmax.xlane.f32.xlu0 %v7554
      %v7556 = vpop.xlane.xlu0 %7555
      %v7557 = vsel %vm6955, %v7402, -inf
      %7558 = vmax.xlane.f32.xlu0 %v7557
      %v7559 = vpop.xlane.xlu0 %7558
      %v7560 = vsel %vm6955, %v7424, -inf
      %7561 = vmax.xlane.f32.xlu0 %v7560
      %v7562 = vpop.xlane.xlu0 %7561
      %v7563 = vsel %vm6955, %v7426, -inf
      %7564 = vmax.xlane.f32.xlu0 %v7563
      %v7565 = vpop.xlane.xlu0 %7564
      %v7566 = vsel %vm6955, %v7448, -inf
      %7567 = vmax.xlane.f32.xlu0 %v7566
      %v7568 = vpop.xlane.xlu0 %7567
      %v7569 = vsel %vm6955, %v7450, -inf
      %7570 = vmax.xlane.f32.xlu0 %v7569
      %v7571 = vpop.xlane.xlu0 %7570
      %v7572 = vsel %vm6955, %v7472, -inf
      %7573 = vmax.xlane.f32.xlu0 %v7572
      %v7574 = vpop.xlane.xlu0 %7573
      %v7575 = vsel %vm6955, %v7474, -inf
      %7576 = vmax.xlane.f32.xlu0 %v7575
      %v7577 = vpop.xlane.xlu0 %7576
      %v7578 = vsel %vm6955, %v7496, -inf
      %7579 = vmax.xlane.f32.xlu0 %v7578
      %v7580 = vpop.xlane.xlu0 %7579
      %v7581 = vsel %vm6955, %v7498, -inf
      %7582 = vmax.xlane.f32.xlu0 %v7581
      %v7583 = vpop.xlane.xlu0 %7582
      %v7584 = vsel %vm6955, %v7520, -inf
      %7585 = vmax.xlane.f32.xlu0 %v7584
      %v7586 = vpop.xlane.xlu0 %7585
      %v7587 = vsel %vm6955, %v7522, -inf
      %7588 = vmax.xlane.f32.xlu0 %v7587
      %v7589 = vpop.xlane.xlu0 %7588
      %v7590 = vsel %vm6955, %v7544, -inf
      %7591 = vmax.xlane.f32.xlu0 %v7590
      %v7592 = vpop.xlane.xlu0 %7591
      %v7593 = vsel %vm6955, %v7546, -inf
      %7594 = vmax.xlane.f32.xlu0 %v7593
      %v7595 = vpop.xlane.xlu0 %7594
      %v7596 = vsub.f32 %v7376, %v7550
      %v7597 = vsub.f32 %v7378, %v7553
      %v7598 = vsub.f32 %v7400, %v7556
      %v7599 = vsub.f32 %v7402, %v7559
      %v7600 = vsub.f32 %v7424, %v7562
      %v7601 = vsub.f32 %v7426, %v7565
      %v7602 = vsub.f32 %v7448, %v7568
      %v7603 = vsub.f32 %v7450, %v7571
      %v7604 = vsub.f32 %v7472, %v7574
      %v7605 = vsub.f32 %v7474, %v7577
      %v7606 = vsub.f32 %v7496, %v7580
      %v7607 = vsub.f32 %v7498, %v7583
      %v7608 = vsub.f32 %v7520, %v7586
      %v7609 = vsub.f32 %v7522, %v7589
      %v7610 = vsub.f32 %v7544, %v7592
      %v7611 = vsub.f32 %v7546, %v7595
      %v7612 = vmul.f32 %v7596, 1.442695
      %v7613 = vpow.pop %v7612
      %v7614 = vmul.f32 %v7597, 1.442695
      %v7615 = vpow.pop %v7614
      %v7616 = vmul.f32 %v7598, 1.442695
      %v7617 = vpow.pop %v7616
      %v7618 = vmul.f32 %v7599, 1.442695
      %v7619 = vpow.pop %v7618
      %v7620 = vmul.f32 %v7600, 1.442695
      %v7621 = vpow.pop %v7620
      %v7622 = vmul.f32 %v7601, 1.442695
      %v7623 = vpow.pop %v7622
      %v7624 = vmul.f32 %v7602, 1.442695
      %v7625 = vpow.pop %v7624
      %v7626 = vmul.f32 %v7603, 1.442695
      %v7627 = vpow.pop %v7626
      %v7628 = vmul.f32 %v7604, 1.442695
      %v7629 = vpow.pop %v7628
      %v7630 = vmul.f32 %v7605, 1.442695
      %v7631 = vpow.pop %v7630
      %v7632 = vmul.f32 %v7606, 1.442695
      %v7633 = vpow.pop %v7632
      %v7634 = vmul.f32 %v7607, 1.442695
      %v7635 = vpow.pop %v7634
      %v7636 = vmul.f32 %v7608, 1.442695
      %v7637 = vpow.pop %v7636
      %v7638 = vmul.f32 %v7609, 1.442695
      %v7639 = vpow.pop %v7638
      %v7640 = vmul.f32 %v7610, 1.442695
      %v7641 = vpow.pop %v7640
      %v7642 = vmul.f32 %v7611, 1.442695
      %v7643 = vpow.pop %v7642
      %v7644 = vsel %vm6955, %v7613, 0.0
      %7645 = vadd.xlane.f32.xlu0 %v7644
      %v7646 = vpop.xlane.xlu0 %7645
      %v7647 = vsel %vm6955, %v7615, 0.0
      %7648 = vadd.xlane.f32.xlu0 %v7647
      %v7649 = vpop.xlane.xlu0 %7648
      %v7650 = vsel %vm6955, %v7617, 0.0
      %7651 = vadd.xlane.f32.xlu0 %v7650
      %v7652 = vpop.xlane.xlu0 %7651
      %v7653 = vsel %vm6955, %v7619, 0.0
      %7654 = vadd.xlane.f32.xlu0 %v7653
      %v7655 = vpop.xlane.xlu0 %7654
      %v7656 = vsel %vm6955, %v7621, 0.0
      %7657 = vadd.xlane.f32.xlu0 %v7656
      %v7658 = vpop.xlane.xlu0 %7657
      %v7659 = vsel %vm6955, %v7623, 0.0
      %7660 = vadd.xlane.f32.xlu0 %v7659
      %v7661 = vpop.xlane.xlu0 %7660
      %v7662 = vsel %vm6955, %v7625, 0.0
      %7663 = vadd.xlane.f32.xlu0 %v7662
      %v7664 = vpop.xlane.xlu0 %7663
      %v7665 = vsel %vm6955, %v7627, 0.0
      %7666 = vadd.xlane.f32.xlu0 %v7665
      %v7667 = vpop.xlane.xlu0 %7666
      %v7668 = vsel %vm6955, %v7629, 0.0
      %7669 = vadd.xlane.f32.xlu0 %v7668
      %v7670 = vpop.xlane.xlu0 %7669
      %v7671 = vsel %vm6955, %v7631, 0.0
      %7672 = vadd.xlane.f32.xlu0 %v7671
      %v7673 = vpop.xlane.xlu0 %7672
      %v7674 = vsel %vm6955, %v7633, 0.0
      %7675 = vadd.xlane.f32.xlu0 %v7674
      %v7676 = vpop.xlane.xlu0 %7675
      %v7677 = vsel %vm6955, %v7635, 0.0
      %7678 = vadd.xlane.f32.xlu0 %v7677
      %v7679 = vpop.xlane.xlu0 %7678
      %v7680 = vsel %vm6955, %v7637, 0.0
      %7681 = vadd.xlane.f32.xlu0 %v7680
      %v7682 = vpop.xlane.xlu0 %7681
      %v7683 = vsel %vm6955, %v7639, 0.0
      %7684 = vadd.xlane.f32.xlu0 %v7683
      %v7685 = vpop.xlane.xlu0 %7684
      %v7686 = vsel %vm6955, %v7641, 0.0
      %7687 = vadd.xlane.f32.xlu0 %v7686
      %v7688 = vpop.xlane.xlu0 %7687
      %v7689 = vsel %vm6955, %v7643, 0.0
      %7690 = vadd.xlane.f32.xlu0 %v7689
      %v7691 = vpop.xlane.xlu0 %7690
      %v7692 = vrcp.pop %v7646
      %v7693 = vrcp.pop %v7649
      %v7694 = vrcp.pop %v7652
      %v7695 = vrcp.pop %v7655
      %v7696 = vrcp.pop %v7658
      %v7697 = vrcp.pop %v7661
      %v7698 = vrcp.pop %v7664
      %v7699 = vrcp.pop %v7667
      %v7700 = vrcp.pop %v7670
      %v7701 = vrcp.pop %v7673
      %v7702 = vrcp.pop %v7676
      %v7703 = vrcp.pop %v7679
      %v7704 = vrcp.pop %v7682
      %v7705 = vrcp.pop %v7685
      %v7706 = vrcp.pop %v7688
      %v7707 = vrcp.pop %v7691
      %v7708 = vmul.f32 %v7613, %v7692
      %v7709 = vmul.f32 %v7615, %v7693
      %v7710 = vmul.f32 %v7617, %v7694
      %v7711 = vmul.f32 %v7619, %v7695
      %v7712 = vmul.f32 %v7621, %v7696
      %v7713 = vmul.f32 %v7623, %v7697
      %v7714 = vmul.f32 %v7625, %v7698
      %v7715 = vmul.f32 %v7627, %v7699
      %v7716 = vmul.f32 %v7629, %v7700
      %v7717 = vmul.f32 %v7631, %v7701
      %v7718 = vmul.f32 %v7633, %v7702
      %v7719 = vmul.f32 %v7635, %v7703
      %v7720 = vmul.f32 %v7637, %v7704
      %v7721 = vmul.f32 %v7639, %v7705
      %v7722 = vmul.f32 %v7641, %v7706
      %v7723 = vmul.f32 %v7643, %v7707
      %v7724 = vpack.c.bf16 %v7708, %v7708
      %v7725 = vpack.c.bf16 %v7709, %v7709
      %v7726 = vpack.c.bf16 %v7710, %v7710
      %v7727 = vpack.c.bf16 %v7711, %v7711
      %v7728 = vpack.c.bf16 %v7712, %v7712
      %v7729 = vpack.c.bf16 %v7713, %v7713
      %v7730 = vpack.c.bf16 %v7714, %v7714
      %v7731 = vpack.c.bf16 %v7715, %v7715
      %v7732 = vpack.c.bf16 %v7716, %v7716
      %v7733 = vpack.c.bf16 %v7717, %v7717
      %v7734 = vpack.c.bf16 %v7718, %v7718
      %v7735 = vpack.c.bf16 %v7719, %v7719
      %v7736 = vpack.c.bf16 %v7720, %v7720
      %v7737 = vpack.c.bf16 %v7721, %v7721
      %v7738 = vpack.c.bf16 %v7722, %v7722
      %v7739 = vpack.c.bf16 %v7723, %v7723
      %v7742 = vunpack.c.l.b16 %v7724
      %v7743 = vunpack.c.l.b16 %v7725
      %v7744 = vpack.c.b16 %v7743, %v7742
      %7745 = vrot.lane.b32.xlu0 %v6743, 56
      %v7746 = vpop.permute.xlu0 %7745
      %v7749 = vsel %vm6955, %v7744, 0
      %7751 = vmatpush.bf16.msra.mxu0 0
      %7752 = vmatpush.bf16.msra.mxu0 0
      %7753 = vmatpush.bf16.msra.mxu0 0
      %7754 = vmatpush.bf16.msra.mxu0 0
      %7755 = vmatpush.bf16.msra.mxu0 0
      %7756 = vmatpush.bf16.msra.mxu0 0
      %7757 = vmatpush.bf16.msra.mxu0 0
      %7758 = vmatpush.bf16.msra.mxu0 %v7746
      %7759 = vmatmul.bf16.gmra.mxu0 %v7749
      %v7760 = vpop.f32.mrf.mxu0
      %v7761 = vadd.f32 0.0, %v7760
      %v7762 = vpop.f32.mrf.mxu0
      %v7763 = vadd.f32 0.0, %v7762
      %7764 = vdwg.mxu0
      %v7767 = vunpack.c.l.b16 %v7726
      %v7768 = vunpack.c.l.b16 %v7727
      %v7769 = vpack.c.b16 %v7768, %v7767
      %7770 = vrot.lane.b32.xlu0 %v6770, 56
      %v7771 = vpop.permute.xlu0 %7770
      %v7774 = vsel %vm6955, %v7769, 0
      %7776 = vmatpush.bf16.msra.mxu0 0
      %7777 = vmatpush.bf16.msra.mxu0 0
      %7778 = vmatpush.bf16.msra.mxu0 0
      %7779 = vmatpush.bf16.msra.mxu0 0
      %7780 = vmatpush.bf16.msra.mxu0 0
      %7781 = vmatpush.bf16.msra.mxu0 0
      %7782 = vmatpush.bf16.msra.mxu0 0
      %7783 = vmatpush.bf16.msra.mxu0 %v7771
      %7784 = vmatmul.bf16.gmra.mxu0 %v7774
      %v7785 = vpop.f32.mrf.mxu0
      %v7786 = vadd.f32 0.0, %v7785
      %v7787 = vpop.f32.mrf.mxu0
      %v7788 = vadd.f32 0.0, %v7787
      %7789 = vdwg.mxu0
      %v7792 = vunpack.c.l.b16 %v7728
      %v7793 = vunpack.c.l.b16 %v7729
      %v7794 = vpack.c.b16 %v7793, %v7792
      %7795 = vrot.lane.b32.xlu0 %v6797, 56
      %v7796 = vpop.permute.xlu0 %7795
      %v7799 = vsel %vm6955, %v7794, 0
      %7801 = vmatpush.bf16.msra.mxu0 0
      %7802 = vmatpush.bf16.msra.mxu0 0
      %7803 = vmatpush.bf16.msra.mxu0 0
      %7804 = vmatpush.bf16.msra.mxu0 0
      %7805 = vmatpush.bf16.msra.mxu0 0
      %7806 = vmatpush.bf16.msra.mxu0 0
      %7807 = vmatpush.bf16.msra.mxu0 0
      %7808 = vmatpush.bf16.msra.mxu0 %v7796
      %7809 = vmatmul.bf16.gmra.mxu0 %v7799
      %v7810 = vpop.f32.mrf.mxu0
      %v7811 = vadd.f32 0.0, %v7810
      %v7812 = vpop.f32.mrf.mxu0
      %v7813 = vadd.f32 0.0, %v7812
      %7814 = vdwg.mxu0
      %v7817 = vunpack.c.l.b16 %v7730
      %v7818 = vunpack.c.l.b16 %v7731
      %v7819 = vpack.c.b16 %v7818, %v7817
      %7820 = vrot.lane.b32.xlu0 %v6824, 56
      %v7821 = vpop.permute.xlu0 %7820
      %v7824 = vsel %vm6955, %v7819, 0
      %7826 = vmatpush.bf16.msra.mxu0 0
      %7827 = vmatpush.bf16.msra.mxu0 0
      %7828 = vmatpush.bf16.msra.mxu0 0
      %7829 = vmatpush.bf16.msra.mxu0 0
      %7830 = vmatpush.bf16.msra.mxu0 0
      %7831 = vmatpush.bf16.msra.mxu0 0
      %7832 = vmatpush.bf16.msra.mxu0 0
      %7833 = vmatpush.bf16.msra.mxu0 %v7821
      %7834 = vmatmul.bf16.gmra.mxu0 %v7824
      %v7835 = vpop.f32.mrf.mxu0
      %v7836 = vadd.f32 0.0, %v7835
      %v7837 = vpop.f32.mrf.mxu0
      %v7838 = vadd.f32 0.0, %v7837
      %7839 = vdwg.mxu0
      %v7842 = vunpack.c.l.b16 %v7732
      %v7843 = vunpack.c.l.b16 %v7733
      %v7844 = vpack.c.b16 %v7843, %v7842
      %7845 = vrot.lane.b32.xlu0 %v6851, 56
      %v7846 = vpop.permute.xlu0 %7845
      %v7849 = vsel %vm6955, %v7844, 0
      %7851 = vmatpush.bf16.msra.mxu0 0
      %7852 = vmatpush.bf16.msra.mxu0 0
      %7853 = vmatpush.bf16.msra.mxu0 0
      %7854 = vmatpush.bf16.msra.mxu0 0
      %7855 = vmatpush.bf16.msra.mxu0 0
      %7856 = vmatpush.bf16.msra.mxu0 0
      %7857 = vmatpush.bf16.msra.mxu0 0
      %7858 = vmatpush.bf16.msra.mxu0 %v7846
      %7859 = vmatmul.bf16.gmra.mxu0 %v7849
      %v7860 = vpop.f32.mrf.mxu0
      %v7861 = vadd.f32 0.0, %v7860
      %v7862 = vpop.f32.mrf.mxu0
      %v7863 = vadd.f32 0.0, %v7862
      %7864 = vdwg.mxu0
      %v7867 = vunpack.c.l.b16 %v7734
      %v7868 = vunpack.c.l.b16 %v7735
      %v7869 = vpack.c.b16 %v7868, %v7867
      %7870 = vrot.lane.b32.xlu0 %v6878, 56
      %v7871 = vpop.permute.xlu0 %7870
      %v7874 = vsel %vm6955, %v7869, 0
      %7876 = vmatpush.bf16.msra.mxu0 0
      %7877 = vmatpush.bf16.msra.mxu0 0
      %7878 = vmatpush.bf16.msra.mxu0 0
      %7879 = vmatpush.bf16.msra.mxu0 0
      %7880 = vmatpush.bf16.msra.mxu0 0
      %7881 = vmatpush.bf16.msra.mxu0 0
      %7882 = vmatpush.bf16.msra.mxu0 0
      %7883 = vmatpush.bf16.msra.mxu0 %v7871
      %7884 = vmatmul.bf16.gmra.mxu0 %v7874
      %v7885 = vpop.f32.mrf.mxu0
      %v7886 = vadd.f32 0.0, %v7885
      %v7887 = vpop.f32.mrf.mxu0
      %v7888 = vadd.f32 0.0, %v7887
      %7889 = vdwg.mxu0
      %v7892 = vunpack.c.l.b16 %v7736
      %v7893 = vunpack.c.l.b16 %v7737
      %v7894 = vpack.c.b16 %v7893, %v7892
      %7895 = vrot.lane.b32.xlu0 %v6905, 56
      %v7896 = vpop.permute.xlu0 %7895
      %v7899 = vsel %vm6955, %v7894, 0
      %7901 = vmatpush.bf16.msra.mxu0 0
      %7902 = vmatpush.bf16.msra.mxu0 0
      %7903 = vmatpush.bf16.msra.mxu0 0
      %7904 = vmatpush.bf16.msra.mxu0 0
      %7905 = vmatpush.bf16.msra.mxu0 0
      %7906 = vmatpush.bf16.msra.mxu0 0
      %7907 = vmatpush.bf16.msra.mxu0 0
      %7908 = vmatpush.bf16.msra.mxu0 %v7896
      %7909 = vmatmul.bf16.gmra.mxu0 %v7899
      %v7910 = vpop.f32.mrf.mxu0
      %v7911 = vadd.f32 0.0, %v7910
      %v7912 = vpop.f32.mrf.mxu0
      %v7913 = vadd.f32 0.0, %v7912
      %7914 = vdwg.mxu0
      %v7917 = vunpack.c.l.b16 %v7738
      %v7918 = vunpack.c.l.b16 %v7739
      %v7919 = vpack.c.b16 %v7918, %v7917
      %7920 = vrot.lane.b32.xlu0 %v6932, 56
      %v7921 = vpop.permute.xlu0 %7920
      %v7924 = vsel %vm6955, %v7919, 0
      %7926 = vmatpush.bf16.msra.mxu0 0
      %7927 = vmatpush.bf16.msra.mxu0 0
      %7928 = vmatpush.bf16.msra.mxu0 0
      %7929 = vmatpush.bf16.msra.mxu0 0
      %7930 = vmatpush.bf16.msra.mxu0 0
      %7931 = vmatpush.bf16.msra.mxu0 0
      %7932 = vmatpush.bf16.msra.mxu0 0
      %7933 = vmatpush.bf16.msra.mxu0 %v7921
      %7934 = vmatmul.bf16.gmra.mxu0 %v7924
      %v7935 = vpop.f32.mrf.mxu0
      %v7936 = vadd.f32 0.0, %v7935
      %v7937 = vpop.f32.mrf.mxu0
      %v7938 = vadd.f32 0.0, %v7937
      %7939 = vdwg.mxu0
      %v7940 = vpack.c.bf16 %v7763, %v7761
      %v7941 = vpack.c.bf16 %v7788, %v7786
      %v7942 = vpack.c.bf16 %v7813, %v7811
      %v7943 = vpack.c.bf16 %v7838, %v7836
      %v7944 = vpack.c.bf16 %v7863, %v7861
      %v7945 = vpack.c.bf16 %v7888, %v7886
      %v7946 = vpack.c.bf16 %v7913, %v7911
      %v7947 = vpack.c.bf16 %v7938, %v7936
      %v7949 = vsel %vm1131, %v7940, 0
      %v7952 = vsel %vm1131, %v7941, 0
      %v7955 = vsel %vm1131, %v7942, 0
      %v7958 = vsel %vm1131, %v7943, 0
      %v7961 = vsel %vm1131, %v7944, 0
      %v7964 = vsel %vm1131, %v7945, 0
      %v7967 = vsel %vm1131, %v7946, 0
      %v7970 = vsel %vm1131, %v7947, 0
      %v7973 = vsel %vm1726, %v6720, 0
      %7975 = vmatpush.bf16.msra.mxu0 0
      %7976 = vmatpush.bf16.msra.mxu0 0
      %7977 = vmatpush.bf16.msra.mxu0 0
      %7978 = vmatpush.bf16.msra.mxu0 0
      %7979 = vmatpush.bf16.msra.mxu0 0
      %7980 = vmatpush.bf16.msra.mxu0 0
      %7981 = vmatpush.bf16.msra.mxu0 0
      %7982 = vmatpush.bf16.msra.mxu0 %v7973
      %7983 = vmatmul.bf16.gmra.mxu0 %v7949
      %v7984 = vpop.f32.mrf.mxu0
      %v7985 = vadd.f32 0.0, %v7984
      %v7986 = vpop.f32.mrf.mxu0
      %v7987 = vadd.f32 0.0, %v7986
      %7988 = vmatmul.bf16.gmra.mxu0 %v7952
      %v7989 = vpop.f32.mrf.mxu0
      %v7990 = vadd.f32 0.0, %v7989
      %v7991 = vpop.f32.mrf.mxu0
      %v7992 = vadd.f32 0.0, %v7991
      %7993 = vmatmul.bf16.gmra.mxu0 %v7955
      %v7994 = vpop.f32.mrf.mxu0
      %v7995 = vadd.f32 0.0, %v7994
      %v7996 = vpop.f32.mrf.mxu0
      %v7997 = vadd.f32 0.0, %v7996
      %7998 = vmatmul.bf16.gmra.mxu0 %v7958
      %v7999 = vpop.f32.mrf.mxu0
      %v8000 = vadd.f32 0.0, %v7999
      %v8001 = vpop.f32.mrf.mxu0
      %v8002 = vadd.f32 0.0, %v8001
      %8003 = vmatmul.bf16.gmra.mxu0 %v7961
      %v8004 = vpop.f32.mrf.mxu0
      %v8005 = vadd.f32 0.0, %v8004
      %v8006 = vpop.f32.mrf.mxu0
      %v8007 = vadd.f32 0.0, %v8006
      %8008 = vmatmul.bf16.gmra.mxu0 %v7964
      %v8009 = vpop.f32.mrf.mxu0
      %v8010 = vadd.f32 0.0, %v8009
      %v8011 = vpop.f32.mrf.mxu0
      %v8012 = vadd.f32 0.0, %v8011
      %8013 = vmatmul.bf16.gmra.mxu0 %v7967
      %v8014 = vpop.f32.mrf.mxu0
      %v8015 = vadd.f32 0.0, %v8014
      %v8016 = vpop.f32.mrf.mxu0
      %v8017 = vadd.f32 0.0, %v8016
      %8018 = vmatmul.bf16.gmra.mxu0 %v7970
      %v8019 = vpop.f32.mrf.mxu0
      %v8020 = vadd.f32 0.0, %v8019
      %v8021 = vpop.f32.mrf.mxu0
      %v8022 = vadd.f32 0.0, %v8021
      %8023 = vdwg.mxu0
      %v8025 = vsel %vm1131, %v7348, 0
      %v8028 = vsel %vm1131, %v7349, 0
      %v8031 = vsel %vm1131, %v7350, 0
      %v8034 = vsel %vm1131, %v7351, 0
      %v8037 = vsel %vm1131, %v7352, 0
      %v8040 = vsel %vm1131, %v7353, 0
      %v8043 = vsel %vm1131, %v7354, 0
      %v8046 = vsel %vm1131, %v7355, 0
      %v8049 = vsel %vm1726, %v6719, 0
      %8051 = vmatpush.bf16.msra.mxu0 0
      %8052 = vmatpush.bf16.msra.mxu0 0
      %8053 = vmatpush.bf16.msra.mxu0 0
      %8054 = vmatpush.bf16.msra.mxu0 0
      %8055 = vmatpush.bf16.msra.mxu0 0
      %8056 = vmatpush.bf16.msra.mxu0 0
      %8057 = vmatpush.bf16.msra.mxu0 0
      %8058 = vmatpush.bf16.msra.mxu0 %v8049
      %8059 = vmatmul.bf16.gmra.mxu0 %v8025
      %v8060 = vpop.f32.mrf.mxu0
      %v8061 = vadd.f32 %v7985, %v8060
      %v8062 = vpop.f32.mrf.mxu0
      %v8063 = vadd.f32 %v7987, %v8062
      %8064 = vmatmul.bf16.gmra.mxu0 %v8028
      %v8065 = vpop.f32.mrf.mxu0
      %v8066 = vadd.f32 %v7990, %v8065
      %v8067 = vpop.f32.mrf.mxu0
      %v8068 = vadd.f32 %v7992, %v8067
      %8069 = vmatmul.bf16.gmra.mxu0 %v8031
      %v8070 = vpop.f32.mrf.mxu0
      %v8071 = vadd.f32 %v7995, %v8070
      %v8072 = vpop.f32.mrf.mxu0
      %v8073 = vadd.f32 %v7997, %v8072
      %8074 = vmatmul.bf16.gmra.mxu0 %v8034
      %v8075 = vpop.f32.mrf.mxu0
      %v8076 = vadd.f32 %v8000, %v8075
      %v8077 = vpop.f32.mrf.mxu0
      %v8078 = vadd.f32 %v8002, %v8077
      %8079 = vmatmul.bf16.gmra.mxu0 %v8037
      %v8080 = vpop.f32.mrf.mxu0
      %v8081 = vadd.f32 %v8005, %v8080
      %v8082 = vpop.f32.mrf.mxu0
      %v8083 = vadd.f32 %v8007, %v8082
      %8084 = vmatmul.bf16.gmra.mxu0 %v8040
      %v8085 = vpop.f32.mrf.mxu0
      %v8086 = vadd.f32 %v8010, %v8085
      %v8087 = vpop.f32.mrf.mxu0
      %v8088 = vadd.f32 %v8012, %v8087
      %8089 = vmatmul.bf16.gmra.mxu0 %v8043
      %v8090 = vpop.f32.mrf.mxu0
      %v8091 = vadd.f32 %v8015, %v8090
      %v8092 = vpop.f32.mrf.mxu0
      %v8093 = vadd.f32 %v8017, %v8092
      %8094 = vmatmul.bf16.gmra.mxu0 %v8046
      %v8095 = vpop.f32.mrf.mxu0
      %v8096 = vadd.f32 %v8020, %v8095
      %v8097 = vpop.f32.mrf.mxu0
      %v8098 = vadd.f32 %v8022, %v8097
      %8099 = vdwg.mxu0
      %8100 = vrot.lane.b32.xlu0 %v6743, 112
      %v8101 = vpop.permute.xlu0 %8100
      %8102 = vrot.lane.b32.xlu0 %v6743, 80
      %v8103 = vpop.permute.xlu0 %8102
      %v8105 = vsel %vm1131, %v8101, 0
      %v8108 = vsel %vm1131, %v8103, 0
      %8110 = vmatpush.bf16.xpose.msra.mxu0 0
      %8111 = vmatpush.bf16.xpose.msra.mxu0 0
      %8112 = vmatpush.bf16.xpose.msra.mxu0 0
      %8113 = vmatpush.bf16.xpose.msra.mxu0 0
      %8114 = vmatpush.bf16.xpose.msra.mxu0 0
      %8115 = vmatpush.bf16.xpose.msra.mxu0 0
      %8116 = vmatpush.bf16.xpose.msra.mxu0 0
      %8117 = vmatpush.bf16.xpose.msra.mxu0 %v8108
      %8118 = vmatmul.bf16.gmra.mxu0 %v8105
      %v8119 = vpop.f32.mrf.mxu0
      %v8120 = vadd.f32 0.0, %v8119
      %v8121 = vpop.f32.mrf.mxu0
      %v8122 = vadd.f32 0.0, %v8121
      %8123 = vdwg.mxu0
      %8124 = vrot.lane.b32.xlu0 %v6770, 112
      %v8125 = vpop.permute.xlu0 %8124
      %8126 = vrot.lane.b32.xlu0 %v6770, 80
      %v8127 = vpop.permute.xlu0 %8126
      %v8129 = vsel %vm1131, %v8125, 0
      %v8132 = vsel %vm1131, %v8127, 0
      %8134 = vmatpush.bf16.xpose.msra.mxu0 0
      %8135 = vmatpush.bf16.xpose.msra.mxu0 0
      %8136 = vmatpush.bf16.xpose.msra.mxu0 0
      %8137 = vmatpush.bf16.xpose.msra.mxu0 0
      %8138 = vmatpush.bf16.xpose.msra.mxu0 0
      %8139 = vmatpush.bf16.xpose.msra.mxu0 0
      %8140 = vmatpush.bf16.xpose.msra.mxu0 0
      %8141 = vmatpush.bf16.xpose.msra.mxu0 %v8132
      %8142 = vmatmul.bf16.gmra.mxu0 %v8129
      %v8143 = vpop.f32.mrf.mxu0
      %v8144 = vadd.f32 0.0, %v8143
      %v8145 = vpop.f32.mrf.mxu0
      %v8146 = vadd.f32 0.0, %v8145
      %8147 = vdwg.mxu0
      %8148 = vrot.lane.b32.xlu0 %v6797, 112
      %v8149 = vpop.permute.xlu0 %8148
      %8150 = vrot.lane.b32.xlu0 %v6797, 80
      %v8151 = vpop.permute.xlu0 %8150
      %v8153 = vsel %vm1131, %v8149, 0
      %v8156 = vsel %vm1131, %v8151, 0
      %8158 = vmatpush.bf16.xpose.msra.mxu0 0
      %8159 = vmatpush.bf16.xpose.msra.mxu0 0
      %8160 = vmatpush.bf16.xpose.msra.mxu0 0
      %8161 = vmatpush.bf16.xpose.msra.mxu0 0
      %8162 = vmatpush.bf16.xpose.msra.mxu0 0
      %8163 = vmatpush.bf16.xpose.msra.mxu0 0
      %8164 = vmatpush.bf16.xpose.msra.mxu0 0
      %8165 = vmatpush.bf16.xpose.msra.mxu0 %v8156
      %8166 = vmatmul.bf16.gmra.mxu0 %v8153
      %v8167 = vpop.f32.mrf.mxu0
      %v8168 = vadd.f32 0.0, %v8167
      %v8169 = vpop.f32.mrf.mxu0
      %v8170 = vadd.f32 0.0, %v8169
      %8171 = vdwg.mxu0
      %8172 = vrot.lane.b32.xlu0 %v6824, 112
      %v8173 = vpop.permute.xlu0 %8172
      %8174 = vrot.lane.b32.xlu0 %v6824, 80
      %v8175 = vpop.permute.xlu0 %8174
      %v8177 = vsel %vm1131, %v8173, 0
      %v8180 = vsel %vm1131, %v8175, 0
      %8182 = vmatpush.bf16.xpose.msra.mxu0 0
      %8183 = vmatpush.bf16.xpose.msra.mxu0 0
      %8184 = vmatpush.bf16.xpose.msra.mxu0 0
      %8185 = vmatpush.bf16.xpose.msra.mxu0 0
      %8186 = vmatpush.bf16.xpose.msra.mxu0 0
      %8187 = vmatpush.bf16.xpose.msra.mxu0 0
      %8188 = vmatpush.bf16.xpose.msra.mxu0 0
      %8189 = vmatpush.bf16.xpose.msra.mxu0 %v8180
      %8190 = vmatmul.bf16.gmra.mxu0 %v8177
      %v8191 = vpop.f32.mrf.mxu0
      %v8192 = vadd.f32 0.0, %v8191
      %v8193 = vpop.f32.mrf.mxu0
      %v8194 = vadd.f32 0.0, %v8193
      %8195 = vdwg.mxu0
      %8196 = vrot.lane.b32.xlu0 %v6851, 112
      %v8197 = vpop.permute.xlu0 %8196
      %8198 = vrot.lane.b32.xlu0 %v6851, 80
      %v8199 = vpop.permute.xlu0 %8198
      %v8201 = vsel %vm1131, %v8197, 0
      %v8204 = vsel %vm1131, %v8199, 0
      %8206 = vmatpush.bf16.xpose.msra.mxu0 0
      %8207 = vmatpush.bf16.xpose.msra.mxu0 0
      %8208 = vmatpush.bf16.xpose.msra.mxu0 0
      %8209 = vmatpush.bf16.xpose.msra.mxu0 0
      %8210 = vmatpush.bf16.xpose.msra.mxu0 0
      %8211 = vmatpush.bf16.xpose.msra.mxu0 0
      %8212 = vmatpush.bf16.xpose.msra.mxu0 0
      %8213 = vmatpush.bf16.xpose.msra.mxu0 %v8204
      %8214 = vmatmul.bf16.gmra.mxu0 %v8201
      %v8215 = vpop.f32.mrf.mxu0
      %v8216 = vadd.f32 0.0, %v8215
      %v8217 = vpop.f32.mrf.mxu0
      %v8218 = vadd.f32 0.0, %v8217
      %8219 = vdwg.mxu0
      %8220 = vrot.lane.b32.xlu0 %v6878, 112
      %v8221 = vpop.permute.xlu0 %8220
      %8222 = vrot.lane.b32.xlu0 %v6878, 80
      %v8223 = vpop.permute.xlu0 %8222
      %v8225 = vsel %vm1131, %v8221, 0
      %v8228 = vsel %vm1131, %v8223, 0
      %8230 = vmatpush.bf16.xpose.msra.mxu0 0
      %8231 = vmatpush.bf16.xpose.msra.mxu0 0
      %8232 = vmatpush.bf16.xpose.msra.mxu0 0
      %8233 = vmatpush.bf16.xpose.msra.mxu0 0
      %8234 = vmatpush.bf16.xpose.msra.mxu0 0
      %8235 = vmatpush.bf16.xpose.msra.mxu0 0
      %8236 = vmatpush.bf16.xpose.msra.mxu0 0
      %8237 = vmatpush.bf16.xpose.msra.mxu0 %v8228
      %8238 = vmatmul.bf16.gmra.mxu0 %v8225
      %v8239 = vpop.f32.mrf.mxu0
      %v8240 = vadd.f32 0.0, %v8239
      %v8241 = vpop.f32.mrf.mxu0
      %v8242 = vadd.f32 0.0, %v8241
      %8243 = vdwg.mxu0
      %8244 = vrot.lane.b32.xlu0 %v6905, 112
      %v8245 = vpop.permute.xlu0 %8244
      %8246 = vrot.lane.b32.xlu0 %v6905, 80
      %v8247 = vpop.permute.xlu0 %8246
      %v8249 = vsel %vm1131, %v8245, 0
      %v8252 = vsel %vm1131, %v8247, 0
      %8254 = vmatpush.bf16.xpose.msra.mxu0 0
      %8255 = vmatpush.bf16.xpose.msra.mxu0 0
      %8256 = vmatpush.bf16.xpose.msra.mxu0 0
      %8257 = vmatpush.bf16.xpose.msra.mxu0 0
      %8258 = vmatpush.bf16.xpose.msra.mxu0 0
      %8259 = vmatpush.bf16.xpose.msra.mxu0 0
      %8260 = vmatpush.bf16.xpose.msra.mxu0 0
      %8261 = vmatpush.bf16.xpose.msra.mxu0 %v8252
      %8262 = vmatmul.bf16.gmra.mxu0 %v8249
      %v8263 = vpop.f32.mrf.mxu0
      %v8264 = vadd.f32 0.0, %v8263
      %v8265 = vpop.f32.mrf.mxu0
      %v8266 = vadd.f32 0.0, %v8265
      %8267 = vdwg.mxu0
      %8268 = vrot.lane.b32.xlu0 %v6932, 112
      %v8269 = vpop.permute.xlu0 %8268
      %8270 = vrot.lane.b32.xlu0 %v6932, 80
      %v8271 = vpop.permute.xlu0 %8270
      %v8273 = vsel %vm1131, %v8269, 0
      %v8276 = vsel %vm1131, %v8271, 0
      %8278 = vmatpush.bf16.xpose.msra.mxu0 0
      %8279 = vmatpush.bf16.xpose.msra.mxu0 0
      %8280 = vmatpush.bf16.xpose.msra.mxu0 0
      %8281 = vmatpush.bf16.xpose.msra.mxu0 0
      %8282 = vmatpush.bf16.xpose.msra.mxu0 0
      %8283 = vmatpush.bf16.xpose.msra.mxu0 0
      %8284 = vmatpush.bf16.xpose.msra.mxu0 0
      %8285 = vmatpush.bf16.xpose.msra.mxu0 %v8276
      %8286 = vmatmul.bf16.gmra.mxu0 %v8273
      %v8287 = vpop.f32.mrf.mxu0
      %v8288 = vadd.f32 0.0, %v8287
      %v8289 = vpop.f32.mrf.mxu0
      %v8290 = vadd.f32 0.0, %v8289
      %8291 = vdwg.mxu0
      %v8292 = vsel %vm6955, %v8120, -inf
      %8293 = vmax.xlane.f32.xlu0 %v8292
      %v8294 = vpop.xlane.xlu0 %8293
      %v8295 = vsel %vm6955, %v8122, -inf
      %8296 = vmax.xlane.f32.xlu0 %v8295
      %v8297 = vpop.xlane.xlu0 %8296
      %v8298 = vsel %vm6955, %v8144, -inf
      %8299 = vmax.xlane.f32.xlu0 %v8298
      %v8300 = vpop.xlane.xlu0 %8299
      %v8301 = vsel %vm6955, %v8146, -inf
      %8302 = vmax.xlane.f32.xlu0 %v8301
      %v8303 = vpop.xlane.xlu0 %8302
      %v8304 = vsel %vm6955, %v8168, -inf
      %8305 = vmax.xlane.f32.xlu0 %v8304
      %v8306 = vpop.xlane.xlu0 %8305
      %v8307 = vsel %vm6955, %v8170, -inf
      %8308 = vmax.xlane.f32.xlu0 %v8307
      %v8309 = vpop.xlane.xlu0 %8308
      %v8310 = vsel %vm6955, %v8192, -inf
      %8311 = vmax.xlane.f32.xlu0 %v8310
      %v8312 = vpop.xlane.xlu0 %8311
      %v8313 = vsel %vm6955, %v8194, -inf
      %8314 = vmax.xlane.f32.xlu0 %v8313
      %v8315 = vpop.xlane.xlu0 %8314
      %v8316 = vsel %vm6955, %v8216, -inf
      %8317 = vmax.xlane.f32.xlu0 %v8316
      %v8318 = vpop.xlane.xlu0 %8317
      %v8319 = vsel %vm6955, %v8218, -inf
      %8320 = vmax.xlane.f32.xlu0 %v8319
      %v8321 = vpop.xlane.xlu0 %8320
      %v8322 = vsel %vm6955, %v8240, -inf
      %8323 = vmax.xlane.f32.xlu0 %v8322
      %v8324 = vpop.xlane.xlu0 %8323
      %v8325 = vsel %vm6955, %v8242, -inf
      %8326 = vmax.xlane.f32.xlu0 %v8325
      %v8327 = vpop.xlane.xlu0 %8326
      %v8328 = vsel %vm6955, %v8264, -inf
      %8329 = vmax.xlane.f32.xlu0 %v8328
      %v8330 = vpop.xlane.xlu0 %8329
      %v8331 = vsel %vm6955, %v8266, -inf
      %8332 = vmax.xlane.f32.xlu0 %v8331
      %v8333 = vpop.xlane.xlu0 %8332
      %v8334 = vsel %vm6955, %v8288, -inf
      %8335 = vmax.xlane.f32.xlu0 %v8334
      %v8336 = vpop.xlane.xlu0 %8335
      %v8337 = vsel %vm6955, %v8290, -inf
      %8338 = vmax.xlane.f32.xlu0 %v8337
      %v8339 = vpop.xlane.xlu0 %8338
      %v8340 = vsub.f32 %v8120, %v8294
      %v8341 = vsub.f32 %v8122, %v8297
      %v8342 = vsub.f32 %v8144, %v8300
      %v8343 = vsub.f32 %v8146, %v8303
      %v8344 = vsub.f32 %v8168, %v8306
      %v8345 = vsub.f32 %v8170, %v8309
      %v8346 = vsub.f32 %v8192, %v8312
      %v8347 = vsub.f32 %v8194, %v8315
      %v8348 = vsub.f32 %v8216, %v8318
      %v8349 = vsub.f32 %v8218, %v8321
      %v8350 = vsub.f32 %v8240, %v8324
      %v8351 = vsub.f32 %v8242, %v8327
      %v8352 = vsub.f32 %v8264, %v8330
      %v8353 = vsub.f32 %v8266, %v8333
      %v8354 = vsub.f32 %v8288, %v8336
      %v8355 = vsub.f32 %v8290, %v8339
      %v8356 = vmul.f32 %v8340, 1.442695
      %v8357 = vpow.pop %v8356
      %v8358 = vmul.f32 %v8341, 1.442695
      %v8359 = vpow.pop %v8358
      %v8360 = vmul.f32 %v8342, 1.442695
      %v8361 = vpow.pop %v8360
      %v8362 = vmul.f32 %v8343, 1.442695
      %v8363 = vpow.pop %v8362
      %v8364 = vmul.f32 %v8344, 1.442695
      %v8365 = vpow.pop %v8364
      %v8366 = vmul.f32 %v8345, 1.442695
      %v8367 = vpow.pop %v8366
      %v8368 = vmul.f32 %v8346, 1.442695
      %v8369 = vpow.pop %v8368
      %v8370 = vmul.f32 %v8347, 1.442695
      %v8371 = vpow.pop %v8370
      %v8372 = vmul.f32 %v8348, 1.442695
      %v8373 = vpow.pop %v8372
      %v8374 = vmul.f32 %v8349, 1.442695
      %v8375 = vpow.pop %v8374
      %v8376 = vmul.f32 %v8350, 1.442695
      %v8377 = vpow.pop %v8376
      %v8378 = vmul.f32 %v8351, 1.442695
      %v8379 = vpow.pop %v8378
      %v8380 = vmul.f32 %v8352, 1.442695
      %v8381 = vpow.pop %v8380
      %v8382 = vmul.f32 %v8353, 1.442695
      %v8383 = vpow.pop %v8382
      %v8384 = vmul.f32 %v8354, 1.442695
      %v8385 = vpow.pop %v8384
      %v8386 = vmul.f32 %v8355, 1.442695
      %v8387 = vpow.pop %v8386
      %v8388 = vsel %vm6955, %v8357, 0.0
      %8389 = vadd.xlane.f32.xlu0 %v8388
      %v8390 = vpop.xlane.xlu0 %8389
      %v8391 = vsel %vm6955, %v8359, 0.0
      %8392 = vadd.xlane.f32.xlu0 %v8391
      %v8393 = vpop.xlane.xlu0 %8392
      %v8394 = vsel %vm6955, %v8361, 0.0
      %8395 = vadd.xlane.f32.xlu0 %v8394
      %v8396 = vpop.xlane.xlu0 %8395
      %v8397 = vsel %vm6955, %v8363, 0.0
      %8398 = vadd.xlane.f32.xlu0 %v8397
      %v8399 = vpop.xlane.xlu0 %8398
      %v8400 = vsel %vm6955, %v8365, 0.0
      %8401 = vadd.xlane.f32.xlu0 %v8400
      %v8402 = vpop.xlane.xlu0 %8401
      %v8403 = vsel %vm6955, %v8367, 0.0
      %8404 = vadd.xlane.f32.xlu0 %v8403
      %v8405 = vpop.xlane.xlu0 %8404
      %v8406 = vsel %vm6955, %v8369, 0.0
      %8407 = vadd.xlane.f32.xlu0 %v8406
      %v8408 = vpop.xlane.xlu0 %8407
      %v8409 = vsel %vm6955, %v8371, 0.0
      %8410 = vadd.xlane.f32.xlu0 %v8409
      %v8411 = vpop.xlane.xlu0 %8410
      %v8412 = vsel %vm6955, %v8373, 0.0
      %8413 = vadd.xlane.f32.xlu0 %v8412
      %v8414 = vpop.xlane.xlu0 %8413
      %v8415 = vsel %vm6955, %v8375, 0.0
      %8416 = vadd.xlane.f32.xlu0 %v8415
      %v8417 = vpop.xlane.xlu0 %8416
      %v8418 = vsel %vm6955, %v8377, 0.0
      %8419 = vadd.xlane.f32.xlu0 %v8418
      %v8420 = vpop.xlane.xlu0 %8419
      %v8421 = vsel %vm6955, %v8379, 0.0
      %8422 = vadd.xlane.f32.xlu0 %v8421
      %v8423 = vpop.xlane.xlu0 %8422
      %v8424 = vsel %vm6955, %v8381, 0.0
      %8425 = vadd.xlane.f32.xlu0 %v8424
      %v8426 = vpop.xlane.xlu0 %8425
      %v8427 = vsel %vm6955, %v8383, 0.0
      %8428 = vadd.xlane.f32.xlu0 %v8427
      %v8429 = vpop.xlane.xlu0 %8428
      %v8430 = vsel %vm6955, %v8385, 0.0
      %8431 = vadd.xlane.f32.xlu0 %v8430
      %v8432 = vpop.xlane.xlu0 %8431
      %v8433 = vsel %vm6955, %v8387, 0.0
      %8434 = vadd.xlane.f32.xlu0 %v8433
      %v8435 = vpop.xlane.xlu0 %8434
      %v8436 = vrcp.pop %v8390
      %v8437 = vrcp.pop %v8393
      %v8438 = vrcp.pop %v8396
      %v8439 = vrcp.pop %v8399
      %v8440 = vrcp.pop %v8402
      %v8441 = vrcp.pop %v8405
      %v8442 = vrcp.pop %v8408
      %v8443 = vrcp.pop %v8411
      %v8444 = vrcp.pop %v8414
      %v8445 = vrcp.pop %v8417
      %v8446 = vrcp.pop %v8420
      %v8447 = vrcp.pop %v8423
      %v8448 = vrcp.pop %v8426
      %v8449 = vrcp.pop %v8429
      %v8450 = vrcp.pop %v8432
      %v8451 = vrcp.pop %v8435
      %v8452 = vmul.f32 %v8357, %v8436
      %v8453 = vmul.f32 %v8359, %v8437
      %v8454 = vmul.f32 %v8361, %v8438
      %v8455 = vmul.f32 %v8363, %v8439
      %v8456 = vmul.f32 %v8365, %v8440
      %v8457 = vmul.f32 %v8367, %v8441
      %v8458 = vmul.f32 %v8369, %v8442
      %v8459 = vmul.f32 %v8371, %v8443
      %v8460 = vmul.f32 %v8373, %v8444
      %v8461 = vmul.f32 %v8375, %v8445
      %v8462 = vmul.f32 %v8377, %v8446
      %v8463 = vmul.f32 %v8379, %v8447
      %v8464 = vmul.f32 %v8381, %v8448
      %v8465 = vmul.f32 %v8383, %v8449
      %v8466 = vmul.f32 %v8385, %v8450
      %v8467 = vmul.f32 %v8387, %v8451
      %v8468 = vpack.c.bf16 %v8452, %v8452
      %v8469 = vpack.c.bf16 %v8453, %v8453
      %v8470 = vpack.c.bf16 %v8454, %v8454
      %v8471 = vpack.c.bf16 %v8455, %v8455
      %v8472 = vpack.c.bf16 %v8456, %v8456
      %v8473 = vpack.c.bf16 %v8457, %v8457
      %v8474 = vpack.c.bf16 %v8458, %v8458
      %v8475 = vpack.c.bf16 %v8459, %v8459
      %v8476 = vpack.c.bf16 %v8460, %v8460
      %v8477 = vpack.c.bf16 %v8461, %v8461
      %v8478 = vpack.c.bf16 %v8462, %v8462
      %v8479 = vpack.c.bf16 %v8463, %v8463
      %v8480 = vpack.c.bf16 %v8464, %v8464
      %v8481 = vpack.c.bf16 %v8465, %v8465
      %v8482 = vpack.c.bf16 %v8466, %v8466
      %v8483 = vpack.c.bf16 %v8467, %v8467
      %v8486 = vunpack.c.l.b16 %v8468
      %v8487 = vunpack.c.l.b16 %v8469
      %v8488 = vpack.c.b16 %v8487, %v8486
      %8489 = vrot.lane.b32.xlu0 %v6743, 48
      %v8490 = vpop.permute.xlu0 %8489
      %v8493 = vsel %vm6955, %v8488, 0
      %8495 = vmatpush.bf16.msra.mxu0 0
      %8496 = vmatpush.bf16.msra.mxu0 0
      %8497 = vmatpush.bf16.msra.mxu0 0
      %8498 = vmatpush.bf16.msra.mxu0 0
      %8499 = vmatpush.bf16.msra.mxu0 0
      %8500 = vmatpush.bf16.msra.mxu0 0
      %8501 = vmatpush.bf16.msra.mxu0 0
      %8502 = vmatpush.bf16.msra.mxu0 %v8490
      %8503 = vmatmul.bf16.gmra.mxu0 %v8493
      %v8504 = vpop.f32.mrf.mxu0
      %v8505 = vadd.f32 0.0, %v8504
      %v8506 = vpop.f32.mrf.mxu0
      %v8507 = vadd.f32 0.0, %v8506
      %8508 = vdwg.mxu0
      %v8511 = vunpack.c.l.b16 %v8470
      %v8512 = vunpack.c.l.b16 %v8471
      %v8513 = vpack.c.b16 %v8512, %v8511
      %8514 = vrot.lane.b32.xlu0 %v6770, 48
      %v8515 = vpop.permute.xlu0 %8514
      %v8518 = vsel %vm6955, %v8513, 0
      %8520 = vmatpush.bf16.msra.mxu0 0
      %8521 = vmatpush.bf16.msra.mxu0 0
      %8522 = vmatpush.bf16.msra.mxu0 0
      %8523 = vmatpush.bf16.msra.mxu0 0
      %8524 = vmatpush.bf16.msra.mxu0 0
      %8525 = vmatpush.bf16.msra.mxu0 0
      %8526 = vmatpush.bf16.msra.mxu0 0
      %8527 = vmatpush.bf16.msra.mxu0 %v8515
      %8528 = vmatmul.bf16.gmra.mxu0 %v8518
      %v8529 = vpop.f32.mrf.mxu0
      %v8530 = vadd.f32 0.0, %v8529
      %v8531 = vpop.f32.mrf.mxu0
      %v8532 = vadd.f32 0.0, %v8531
      %8533 = vdwg.mxu0
      %v8536 = vunpack.c.l.b16 %v8472
      %v8537 = vunpack.c.l.b16 %v8473
      %v8538 = vpack.c.b16 %v8537, %v8536
      %8539 = vrot.lane.b32.xlu0 %v6797, 48
      %v8540 = vpop.permute.xlu0 %8539
      %v8543 = vsel %vm6955, %v8538, 0
      %8545 = vmatpush.bf16.msra.mxu0 0
      %8546 = vmatpush.bf16.msra.mxu0 0
      %8547 = vmatpush.bf16.msra.mxu0 0
      %8548 = vmatpush.bf16.msra.mxu0 0
      %8549 = vmatpush.bf16.msra.mxu0 0
      %8550 = vmatpush.bf16.msra.mxu0 0
      %8551 = vmatpush.bf16.msra.mxu0 0
      %8552 = vmatpush.bf16.msra.mxu0 %v8540
      %8553 = vmatmul.bf16.gmra.mxu0 %v8543
      %v8554 = vpop.f32.mrf.mxu0
      %v8555 = vadd.f32 0.0, %v8554
      %v8556 = vpop.f32.mrf.mxu0
      %v8557 = vadd.f32 0.0, %v8556
      %8558 = vdwg.mxu0
      %v8561 = vunpack.c.l.b16 %v8474
      %v8562 = vunpack.c.l.b16 %v8475
      %v8563 = vpack.c.b16 %v8562, %v8561
      %8564 = vrot.lane.b32.xlu0 %v6824, 48
      %v8565 = vpop.permute.xlu0 %8564
      %v8568 = vsel %vm6955, %v8563, 0
      %8570 = vmatpush.bf16.msra.mxu0 0
      %8571 = vmatpush.bf16.msra.mxu0 0
      %8572 = vmatpush.bf16.msra.mxu0 0
      %8573 = vmatpush.bf16.msra.mxu0 0
      %8574 = vmatpush.bf16.msra.mxu0 0
      %8575 = vmatpush.bf16.msra.mxu0 0
      %8576 = vmatpush.bf16.msra.mxu0 0
      %8577 = vmatpush.bf16.msra.mxu0 %v8565
      %8578 = vmatmul.bf16.gmra.mxu0 %v8568
      %v8579 = vpop.f32.mrf.mxu0
      %v8580 = vadd.f32 0.0, %v8579
      %v8581 = vpop.f32.mrf.mxu0
      %v8582 = vadd.f32 0.0, %v8581
      %8583 = vdwg.mxu0
      %v8586 = vunpack.c.l.b16 %v8476
      %v8587 = vunpack.c.l.b16 %v8477
      %v8588 = vpack.c.b16 %v8587, %v8586
      %8589 = vrot.lane.b32.xlu0 %v6851, 48
      %v8590 = vpop.permute.xlu0 %8589
      %v8593 = vsel %vm6955, %v8588, 0
      %8595 = vmatpush.bf16.msra.mxu0 0
      %8596 = vmatpush.bf16.msra.mxu0 0
      %8597 = vmatpush.bf16.msra.mxu0 0
      %8598 = vmatpush.bf16.msra.mxu0 0
      %8599 = vmatpush.bf16.msra.mxu0 0
      %8600 = vmatpush.bf16.msra.mxu0 0
      %8601 = vmatpush.bf16.msra.mxu0 0
      %8602 = vmatpush.bf16.msra.mxu0 %v8590
      %8603 = vmatmul.bf16.gmra.mxu0 %v8593
      %v8604 = vpop.f32.mrf.mxu0
      %v8605 = vadd.f32 0.0, %v8604
      %v8606 = vpop.f32.mrf.mxu0
      %v8607 = vadd.f32 0.0, %v8606
      %8608 = vdwg.mxu0
      %v8611 = vunpack.c.l.b16 %v8478
      %v8612 = vunpack.c.l.b16 %v8479
      %v8613 = vpack.c.b16 %v8612, %v8611
      %8614 = vrot.lane.b32.xlu0 %v6878, 48
      %v8615 = vpop.permute.xlu0 %8614
      %v8618 = vsel %vm6955, %v8613, 0
      %8620 = vmatpush.bf16.msra.mxu0 0
      %8621 = vmatpush.bf16.msra.mxu0 0
      %8622 = vmatpush.bf16.msra.mxu0 0
      %8623 = vmatpush.bf16.msra.mxu0 0
      %8624 = vmatpush.bf16.msra.mxu0 0
      %8625 = vmatpush.bf16.msra.mxu0 0
      %8626 = vmatpush.bf16.msra.mxu0 0
      %8627 = vmatpush.bf16.msra.mxu0 %v8615
      %8628 = vmatmul.bf16.gmra.mxu0 %v8618
      %v8629 = vpop.f32.mrf.mxu0
      %v8630 = vadd.f32 0.0, %v8629
      %v8631 = vpop.f32.mrf.mxu0
      %v8632 = vadd.f32 0.0, %v8631
      %8633 = vdwg.mxu0
      %v8636 = vunpack.c.l.b16 %v8480
      %v8637 = vunpack.c.l.b16 %v8481
      %v8638 = vpack.c.b16 %v8637, %v8636
      %8639 = vrot.lane.b32.xlu0 %v6905, 48
      %v8640 = vpop.permute.xlu0 %8639
      %v8643 = vsel %vm6955, %v8638, 0
      %8645 = vmatpush.bf16.msra.mxu0 0
      %8646 = vmatpush.bf16.msra.mxu0 0
      %8647 = vmatpush.bf16.msra.mxu0 0
      %8648 = vmatpush.bf16.msra.mxu0 0
      %8649 = vmatpush.bf16.msra.mxu0 0
      %8650 = vmatpush.bf16.msra.mxu0 0
      %8651 = vmatpush.bf16.msra.mxu0 0
      %8652 = vmatpush.bf16.msra.mxu0 %v8640
      %8653 = vmatmul.bf16.gmra.mxu0 %v8643
      %v8654 = vpop.f32.mrf.mxu0
      %v8655 = vadd.f32 0.0, %v8654
      %v8656 = vpop.f32.mrf.mxu0
      %v8657 = vadd.f32 0.0, %v8656
      %8658 = vdwg.mxu0
      %v8661 = vunpack.c.l.b16 %v8482
      %v8662 = vunpack.c.l.b16 %v8483
      %v8663 = vpack.c.b16 %v8662, %v8661
      %8664 = vrot.lane.b32.xlu0 %v6932, 48
      %v8665 = vpop.permute.xlu0 %8664
      %v8668 = vsel %vm6955, %v8663, 0
      %8670 = vmatpush.bf16.msra.mxu0 0
      %8671 = vmatpush.bf16.msra.mxu0 0
      %8672 = vmatpush.bf16.msra.mxu0 0
      %8673 = vmatpush.bf16.msra.mxu0 0
      %8674 = vmatpush.bf16.msra.mxu0 0
      %8675 = vmatpush.bf16.msra.mxu0 0
      %8676 = vmatpush.bf16.msra.mxu0 0
      %8677 = vmatpush.bf16.msra.mxu0 %v8665
      %8678 = vmatmul.bf16.gmra.mxu0 %v8668
      %v8679 = vpop.f32.mrf.mxu0
      %v8680 = vadd.f32 0.0, %v8679
      %v8681 = vpop.f32.mrf.mxu0
      %v8682 = vadd.f32 0.0, %v8681
      %8683 = vdwg.mxu0
      %v8684 = vpack.c.bf16 %v8507, %v8505
      %v8685 = vpack.c.bf16 %v8532, %v8530
      %v8686 = vpack.c.bf16 %v8557, %v8555
      %v8687 = vpack.c.bf16 %v8582, %v8580
      %v8688 = vpack.c.bf16 %v8607, %v8605
      %v8689 = vpack.c.bf16 %v8632, %v8630
      %v8690 = vpack.c.bf16 %v8657, %v8655
      %v8691 = vpack.c.bf16 %v8682, %v8680
      %v8693 = vsel %vm1131, %v8684, 0
      %v8696 = vsel %vm1131, %v8685, 0
      %v8699 = vsel %vm1131, %v8686, 0
      %v8702 = vsel %vm1131, %v8687, 0
      %v8705 = vsel %vm1131, %v8688, 0
      %v8708 = vsel %vm1131, %v8689, 0
      %v8711 = vsel %vm1131, %v8690, 0
      %v8714 = vsel %vm1131, %v8691, 0
      %v8717 = vsel %vm1726, %v6721, 0
      %8719 = vmatpush.bf16.msra.mxu0 0
      %8720 = vmatpush.bf16.msra.mxu0 0
      %8721 = vmatpush.bf16.msra.mxu0 0
      %8722 = vmatpush.bf16.msra.mxu0 0
      %8723 = vmatpush.bf16.msra.mxu0 0
      %8724 = vmatpush.bf16.msra.mxu0 0
      %8725 = vmatpush.bf16.msra.mxu0 0
      %8726 = vmatpush.bf16.msra.mxu0 %v8717
      %8727 = vmatmul.bf16.gmra.mxu0 %v8693
      %v8728 = vpop.f32.mrf.mxu0
      %v8729 = vadd.f32 0.0, %v8728
      %v8730 = vpop.f32.mrf.mxu0
      %v8731 = vadd.f32 0.0, %v8730
      %8732 = vmatmul.bf16.gmra.mxu0 %v8696
      %v8733 = vpop.f32.mrf.mxu0
      %v8734 = vadd.f32 0.0, %v8733
      %v8735 = vpop.f32.mrf.mxu0
      %v8736 = vadd.f32 0.0, %v8735
      %8737 = vmatmul.bf16.gmra.mxu0 %v8699
      %v8738 = vpop.f32.mrf.mxu0
      %v8739 = vadd.f32 0.0, %v8738
      %v8740 = vpop.f32.mrf.mxu0
      %v8741 = vadd.f32 0.0, %v8740
      %8742 = vmatmul.bf16.gmra.mxu0 %v8702
      %v8743 = vpop.f32.mrf.mxu0
      %v8744 = vadd.f32 0.0, %v8743
      %v8745 = vpop.f32.mrf.mxu0
      %v8746 = vadd.f32 0.0, %v8745
      %8747 = vmatmul.bf16.gmra.mxu0 %v8705
      %v8748 = vpop.f32.mrf.mxu0
      %v8749 = vadd.f32 0.0, %v8748
      %v8750 = vpop.f32.mrf.mxu0
      %v8751 = vadd.f32 0.0, %v8750
      %8752 = vmatmul.bf16.gmra.mxu0 %v8708
      %v8753 = vpop.f32.mrf.mxu0
      %v8754 = vadd.f32 0.0, %v8753
      %v8755 = vpop.f32.mrf.mxu0
      %v8756 = vadd.f32 0.0, %v8755
      %8757 = vmatmul.bf16.gmra.mxu0 %v8711
      %v8758 = vpop.f32.mrf.mxu0
      %v8759 = vadd.f32 0.0, %v8758
      %v8760 = vpop.f32.mrf.mxu0
      %v8761 = vadd.f32 0.0, %v8760
      %8762 = vmatmul.bf16.gmra.mxu0 %v8714
      %v8763 = vpop.f32.mrf.mxu0
      %v8764 = vadd.f32 0.0, %v8763
      %v8765 = vpop.f32.mrf.mxu0
      %v8766 = vadd.f32 0.0, %v8765
      %8767 = vdwg.mxu0
      %v8768 = vadd.f32 %v8061, %v8729
      %v8769 = vadd.f32 %v8063, %v8731
      %v8770 = vadd.f32 %v8066, %v8734
      %v8771 = vadd.f32 %v8068, %v8736
      %v8772 = vadd.f32 %v8071, %v8739
      %v8773 = vadd.f32 %v8073, %v8741
      %v8774 = vadd.f32 %v8076, %v8744
      %v8775 = vadd.f32 %v8078, %v8746
      %v8776 = vadd.f32 %v8081, %v8749
      %v8777 = vadd.f32 %v8083, %v8751
      %v8778 = vadd.f32 %v8086, %v8754
      %v8779 = vadd.f32 %v8088, %v8756
      %v8780 = vadd.f32 %v8091, %v8759
      %v8781 = vadd.f32 %v8093, %v8761
      %v8782 = vadd.f32 %v8096, %v8764
      %v8783 = vadd.f32 %v8098, %v8766
      %8784 = vrot.lane.b32.xlu0 %v6743, 104
      %v8785 = vpop.permute.xlu0 %8784
      %8786 = vrot.lane.b32.xlu0 %v6743, 72
      %v8787 = vpop.permute.xlu0 %8786
      %v8789 = vsel %vm1131, %v8785, 0
      %v8792 = vsel %vm1131, %v8787, 0
      %8794 = vmatpush.bf16.xpose.msra.mxu0 0
      %8795 = vmatpush.bf16.xpose.msra.mxu0 0
      %8796 = vmatpush.bf16.xpose.msra.mxu0 0
      %8797 = vmatpush.bf16.xpose.msra.mxu0 0
      %8798 = vmatpush.bf16.xpose.msra.mxu0 0
      %8799 = vmatpush.bf16.xpose.msra.mxu0 0
      %8800 = vmatpush.bf16.xpose.msra.mxu0 0
      %8801 = vmatpush.bf16.xpose.msra.mxu0 %v8792
      %8802 = vmatmul.bf16.gmra.mxu0 %v8789
      %v8803 = vpop.f32.mrf.mxu0
      %v8804 = vadd.f32 0.0, %v8803
      %v8805 = vpop.f32.mrf.mxu0
      %v8806 = vadd.f32 0.0, %v8805
      %8807 = vdwg.mxu0
      %8808 = vrot.lane.b32.xlu0 %v6770, 104
      %v8809 = vpop.permute.xlu0 %8808
      %8810 = vrot.lane.b32.xlu0 %v6770, 72
      %v8811 = vpop.permute.xlu0 %8810
      %v8813 = vsel %vm1131, %v8809, 0
      %v8816 = vsel %vm1131, %v8811, 0
      %8818 = vmatpush.bf16.xpose.msra.mxu0 0
      %8819 = vmatpush.bf16.xpose.msra.mxu0 0
      %8820 = vmatpush.bf16.xpose.msra.mxu0 0
      %8821 = vmatpush.bf16.xpose.msra.mxu0 0
      %8822 = vmatpush.bf16.xpose.msra.mxu0 0
      %8823 = vmatpush.bf16.xpose.msra.mxu0 0
      %8824 = vmatpush.bf16.xpose.msra.mxu0 0
      %8825 = vmatpush.bf16.xpose.msra.mxu0 %v8816
      %8826 = vmatmul.bf16.gmra.mxu0 %v8813
      %v8827 = vpop.f32.mrf.mxu0
      %v8828 = vadd.f32 0.0, %v8827
      %v8829 = vpop.f32.mrf.mxu0
      %v8830 = vadd.f32 0.0, %v8829
      %8831 = vdwg.mxu0
      %8832 = vrot.lane.b32.xlu0 %v6797, 104
      %v8833 = vpop.permute.xlu0 %8832
      %8834 = vrot.lane.b32.xlu0 %v6797, 72
      %v8835 = vpop.permute.xlu0 %8834
      %v8837 = vsel %vm1131, %v8833, 0
      %v8840 = vsel %vm1131, %v8835, 0
      %8842 = vmatpush.bf16.xpose.msra.mxu0 0
      %8843 = vmatpush.bf16.xpose.msra.mxu0 0
      %8844 = vmatpush.bf16.xpose.msra.mxu0 0
      %8845 = vmatpush.bf16.xpose.msra.mxu0 0
      %8846 = vmatpush.bf16.xpose.msra.mxu0 0
      %8847 = vmatpush.bf16.xpose.msra.mxu0 0
      %8848 = vmatpush.bf16.xpose.msra.mxu0 0
      %8849 = vmatpush.bf16.xpose.msra.mxu0 %v8840
      %8850 = vmatmul.bf16.gmra.mxu0 %v8837
      %v8851 = vpop.f32.mrf.mxu0
      %v8852 = vadd.f32 0.0, %v8851
      %v8853 = vpop.f32.mrf.mxu0
      %v8854 = vadd.f32 0.0, %v8853
      %8855 = vdwg.mxu0
      %8856 = vrot.lane.b32.xlu0 %v6824, 104
      %v8857 = vpop.permute.xlu0 %8856
      %8858 = vrot.lane.b32.xlu0 %v6824, 72
      %v8859 = vpop.permute.xlu0 %8858
      %v8861 = vsel %vm1131, %v8857, 0
      %v8864 = vsel %vm1131, %v8859, 0
      %8866 = vmatpush.bf16.xpose.msra.mxu0 0
      %8867 = vmatpush.bf16.xpose.msra.mxu0 0
      %8868 = vmatpush.bf16.xpose.msra.mxu0 0
      %8869 = vmatpush.bf16.xpose.msra.mxu0 0
      %8870 = vmatpush.bf16.xpose.msra.mxu0 0
      %8871 = vmatpush.bf16.xpose.msra.mxu0 0
      %8872 = vmatpush.bf16.xpose.msra.mxu0 0
      %8873 = vmatpush.bf16.xpose.msra.mxu0 %v8864
      %8874 = vmatmul.bf16.gmra.mxu0 %v8861
      %v8875 = vpop.f32.mrf.mxu0
      %v8876 = vadd.f32 0.0, %v8875
      %v8877 = vpop.f32.mrf.mxu0
      %v8878 = vadd.f32 0.0, %v8877
      %8879 = vdwg.mxu0
      %8880 = vrot.lane.b32.xlu0 %v6851, 104
      %v8881 = vpop.permute.xlu0 %8880
      %8882 = vrot.lane.b32.xlu0 %v6851, 72
      %v8883 = vpop.permute.xlu0 %8882
      %v8885 = vsel %vm1131, %v8881, 0
      %v8888 = vsel %vm1131, %v8883, 0
      %8890 = vmatpush.bf16.xpose.msra.mxu0 0
      %8891 = vmatpush.bf16.xpose.msra.mxu0 0
      %8892 = vmatpush.bf16.xpose.msra.mxu0 0
      %8893 = vmatpush.bf16.xpose.msra.mxu0 0
      %8894 = vmatpush.bf16.xpose.msra.mxu0 0
      %8895 = vmatpush.bf16.xpose.msra.mxu0 0
      %8896 = vmatpush.bf16.xpose.msra.mxu0 0
      %8897 = vmatpush.bf16.xpose.msra.mxu0 %v8888
      %8898 = vmatmul.bf16.gmra.mxu0 %v8885
      %v8899 = vpop.f32.mrf.mxu0
      %v8900 = vadd.f32 0.0, %v8899
      %v8901 = vpop.f32.mrf.mxu0
      %v8902 = vadd.f32 0.0, %v8901
      %8903 = vdwg.mxu0
      %8904 = vrot.lane.b32.xlu0 %v6878, 104
      %v8905 = vpop.permute.xlu0 %8904
      %8906 = vrot.lane.b32.xlu0 %v6878, 72
      %v8907 = vpop.permute.xlu0 %8906
      %v8909 = vsel %vm1131, %v8905, 0
      %v8912 = vsel %vm1131, %v8907, 0
      %8914 = vmatpush.bf16.xpose.msra.mxu0 0
      %8915 = vmatpush.bf16.xpose.msra.mxu0 0
      %8916 = vmatpush.bf16.xpose.msra.mxu0 0
      %8917 = vmatpush.bf16.xpose.msra.mxu0 0
      %8918 = vmatpush.bf16.xpose.msra.mxu0 0
      %8919 = vmatpush.bf16.xpose.msra.mxu0 0
      %8920 = vmatpush.bf16.xpose.msra.mxu0 0
      %8921 = vmatpush.bf16.xpose.msra.mxu0 %v8912
      %8922 = vmatmul.bf16.gmra.mxu0 %v8909
      %v8923 = vpop.f32.mrf.mxu0
      %v8924 = vadd.f32 0.0, %v8923
      %v8925 = vpop.f32.mrf.mxu0
      %v8926 = vadd.f32 0.0, %v8925
      %8927 = vdwg.mxu0
      %8928 = vrot.lane.b32.xlu0 %v6905, 104
      %v8929 = vpop.permute.xlu0 %8928
      %8930 = vrot.lane.b32.xlu0 %v6905, 72
      %v8931 = vpop.permute.xlu0 %8930
      %v8933 = vsel %vm1131, %v8929, 0
      %v8936 = vsel %vm1131, %v8931, 0
      %8938 = vmatpush.bf16.xpose.msra.mxu0 0
      %8939 = vmatpush.bf16.xpose.msra.mxu0 0
      %8940 = vmatpush.bf16.xpose.msra.mxu0 0
      %8941 = vmatpush.bf16.xpose.msra.mxu0 0
      %8942 = vmatpush.bf16.xpose.msra.mxu0 0
      %8943 = vmatpush.bf16.xpose.msra.mxu0 0
      %8944 = vmatpush.bf16.xpose.msra.mxu0 0
      %8945 = vmatpush.bf16.xpose.msra.mxu0 %v8936
      %8946 = vmatmul.bf16.gmra.mxu0 %v8933
      %v8947 = vpop.f32.mrf.mxu0
      %v8948 = vadd.f32 0.0, %v8947
      %v8949 = vpop.f32.mrf.mxu0
      %v8950 = vadd.f32 0.0, %v8949
      %8951 = vdwg.mxu0
      %8952 = vrot.lane.b32.xlu0 %v6932, 104
      %v8953 = vpop.permute.xlu0 %8952
      %8954 = vrot.lane.b32.xlu0 %v6932, 72
      %v8955 = vpop.permute.xlu0 %8954
      %v8957 = vsel %vm1131, %v8953, 0
      %v8960 = vsel %vm1131, %v8955, 0
      %8962 = vmatpush.bf16.xpose.msra.mxu0 0
      %8963 = vmatpush.bf16.xpose.msra.mxu0 0
      %8964 = vmatpush.bf16.xpose.msra.mxu0 0
      %8965 = vmatpush.bf16.xpose.msra.mxu0 0
      %8966 = vmatpush.bf16.xpose.msra.mxu0 0
      %8967 = vmatpush.bf16.xpose.msra.mxu0 0
      %8968 = vmatpush.bf16.xpose.msra.mxu0 0
      %8969 = vmatpush.bf16.xpose.msra.mxu0 %v8960
      %8970 = vmatmul.bf16.gmra.mxu0 %v8957
      %v8971 = vpop.f32.mrf.mxu0
      %v8972 = vadd.f32 0.0, %v8971
      %v8973 = vpop.f32.mrf.mxu0
      %v8974 = vadd.f32 0.0, %v8973
      %8975 = vdwg.mxu0
      %v8976 = vsel %vm6955, %v8804, -inf
      %8977 = vmax.xlane.f32.xlu0 %v8976
      %v8978 = vpop.xlane.xlu0 %8977
      %v8979 = vsel %vm6955, %v8806, -inf
      %8980 = vmax.xlane.f32.xlu0 %v8979
      %v8981 = vpop.xlane.xlu0 %8980
      %v8982 = vsel %vm6955, %v8828, -inf
      %8983 = vmax.xlane.f32.xlu0 %v8982
      %v8984 = vpop.xlane.xlu0 %8983
      %v8985 = vsel %vm6955, %v8830, -inf
      %8986 = vmax.xlane.f32.xlu0 %v8985
      %v8987 = vpop.xlane.xlu0 %8986
      %v8988 = vsel %vm6955, %v8852, -inf
      %8989 = vmax.xlane.f32.xlu0 %v8988
      %v8990 = vpop.xlane.xlu0 %8989
      %v8991 = vsel %vm6955, %v8854, -inf
      %8992 = vmax.xlane.f32.xlu0 %v8991
      %v8993 = vpop.xlane.xlu0 %8992
      %v8994 = vsel %vm6955, %v8876, -inf
      %8995 = vmax.xlane.f32.xlu0 %v8994
      %v8996 = vpop.xlane.xlu0 %8995
      %v8997 = vsel %vm6955, %v8878, -inf
      %8998 = vmax.xlane.f32.xlu0 %v8997
      %v8999 = vpop.xlane.xlu0 %8998
      %v9000 = vsel %vm6955, %v8900, -inf
      %9001 = vmax.xlane.f32.xlu0 %v9000
      %v9002 = vpop.xlane.xlu0 %9001
      %v9003 = vsel %vm6955, %v8902, -inf
      %9004 = vmax.xlane.f32.xlu0 %v9003
      %v9005 = vpop.xlane.xlu0 %9004
      %v9006 = vsel %vm6955, %v8924, -inf
      %9007 = vmax.xlane.f32.xlu0 %v9006
      %v9008 = vpop.xlane.xlu0 %9007
      %v9009 = vsel %vm6955, %v8926, -inf
      %9010 = vmax.xlane.f32.xlu0 %v9009
      %v9011 = vpop.xlane.xlu0 %9010
      %v9012 = vsel %vm6955, %v8948, -inf
      %9013 = vmax.xlane.f32.xlu0 %v9012
      %v9014 = vpop.xlane.xlu0 %9013
      %v9015 = vsel %vm6955, %v8950, -inf
      %9016 = vmax.xlane.f32.xlu0 %v9015
      %v9017 = vpop.xlane.xlu0 %9016
      %v9018 = vsel %vm6955, %v8972, -inf
      %9019 = vmax.xlane.f32.xlu0 %v9018
      %v9020 = vpop.xlane.xlu0 %9019
      %v9021 = vsel %vm6955, %v8974, -inf
      %9022 = vmax.xlane.f32.xlu0 %v9021
      %v9023 = vpop.xlane.xlu0 %9022
      %v9024 = vsub.f32 %v8804, %v8978
      %v9025 = vsub.f32 %v8806, %v8981
      %v9026 = vsub.f32 %v8828, %v8984
      %v9027 = vsub.f32 %v8830, %v8987
      %v9028 = vsub.f32 %v8852, %v8990
      %v9029 = vsub.f32 %v8854, %v8993
      %v9030 = vsub.f32 %v8876, %v8996
      %v9031 = vsub.f32 %v8878, %v8999
      %v9032 = vsub.f32 %v8900, %v9002
      %v9033 = vsub.f32 %v8902, %v9005
      %v9034 = vsub.f32 %v8924, %v9008
      %v9035 = vsub.f32 %v8926, %v9011
      %v9036 = vsub.f32 %v8948, %v9014
      %v9037 = vsub.f32 %v8950, %v9017
      %v9038 = vsub.f32 %v8972, %v9020
      %v9039 = vsub.f32 %v8974, %v9023
      %v9040 = vmul.f32 %v9024, 1.442695
      %v9041 = vpow.pop %v9040
      %v9042 = vmul.f32 %v9025, 1.442695
      %v9043 = vpow.pop %v9042
      %v9044 = vmul.f32 %v9026, 1.442695
      %v9045 = vpow.pop %v9044
      %v9046 = vmul.f32 %v9027, 1.442695
      %v9047 = vpow.pop %v9046
      %v9048 = vmul.f32 %v9028, 1.442695
      %v9049 = vpow.pop %v9048
      %v9050 = vmul.f32 %v9029, 1.442695
      %v9051 = vpow.pop %v9050
      %v9052 = vmul.f32 %v9030, 1.442695
      %v9053 = vpow.pop %v9052
      %v9054 = vmul.f32 %v9031, 1.442695
      %v9055 = vpow.pop %v9054
      %v9056 = vmul.f32 %v9032, 1.442695
      %v9057 = vpow.pop %v9056
      %v9058 = vmul.f32 %v9033, 1.442695
      %v9059 = vpow.pop %v9058
      %v9060 = vmul.f32 %v9034, 1.442695
      %v9061 = vpow.pop %v9060
      %v9062 = vmul.f32 %v9035, 1.442695
      %v9063 = vpow.pop %v9062
      %v9064 = vmul.f32 %v9036, 1.442695
      %v9065 = vpow.pop %v9064
      %v9066 = vmul.f32 %v9037, 1.442695
      %v9067 = vpow.pop %v9066
      %v9068 = vmul.f32 %v9038, 1.442695
      %v9069 = vpow.pop %v9068
      %v9070 = vmul.f32 %v9039, 1.442695
      %v9071 = vpow.pop %v9070
      %v9072 = vsel %vm6955, %v9041, 0.0
      %9073 = vadd.xlane.f32.xlu0 %v9072
      %v9074 = vpop.xlane.xlu0 %9073
      %v9075 = vsel %vm6955, %v9043, 0.0
      %9076 = vadd.xlane.f32.xlu0 %v9075
      %v9077 = vpop.xlane.xlu0 %9076
      %v9078 = vsel %vm6955, %v9045, 0.0
      %9079 = vadd.xlane.f32.xlu0 %v9078
      %v9080 = vpop.xlane.xlu0 %9079
      %v9081 = vsel %vm6955, %v9047, 0.0
      %9082 = vadd.xlane.f32.xlu0 %v9081
      %v9083 = vpop.xlane.xlu0 %9082
      %v9084 = vsel %vm6955, %v9049, 0.0
      %9085 = vadd.xlane.f32.xlu0 %v9084
      %v9086 = vpop.xlane.xlu0 %9085
      %v9087 = vsel %vm6955, %v9051, 0.0
      %9088 = vadd.xlane.f32.xlu0 %v9087
      %v9089 = vpop.xlane.xlu0 %9088
      %v9090 = vsel %vm6955, %v9053, 0.0
      %9091 = vadd.xlane.f32.xlu0 %v9090
      %v9092 = vpop.xlane.xlu0 %9091
      %v9093 = vsel %vm6955, %v9055, 0.0
      %9094 = vadd.xlane.f32.xlu0 %v9093
      %v9095 = vpop.xlane.xlu0 %9094
      %v9096 = vsel %vm6955, %v9057, 0.0
      %9097 = vadd.xlane.f32.xlu0 %v9096
      %v9098 = vpop.xlane.xlu0 %9097
      %v9099 = vsel %vm6955, %v9059, 0.0
      %9100 = vadd.xlane.f32.xlu0 %v9099
      %v9101 = vpop.xlane.xlu0 %9100
      %v9102 = vsel %vm6955, %v9061, 0.0
      %9103 = vadd.xlane.f32.xlu0 %v9102
      %v9104 = vpop.xlane.xlu0 %9103
      %v9105 = vsel %vm6955, %v9063, 0.0
      %9106 = vadd.xlane.f32.xlu0 %v9105
      %v9107 = vpop.xlane.xlu0 %9106
      %v9108 = vsel %vm6955, %v9065, 0.0
      %9109 = vadd.xlane.f32.xlu0 %v9108
      %v9110 = vpop.xlane.xlu0 %9109
      %v9111 = vsel %vm6955, %v9067, 0.0
      %9112 = vadd.xlane.f32.xlu0 %v9111
      %v9113 = vpop.xlane.xlu0 %9112
      %v9114 = vsel %vm6955, %v9069, 0.0
      %9115 = vadd.xlane.f32.xlu0 %v9114
      %v9116 = vpop.xlane.xlu0 %9115
      %v9117 = vsel %vm6955, %v9071, 0.0
      %9118 = vadd.xlane.f32.xlu0 %v9117
      %v9119 = vpop.xlane.xlu0 %9118
      %v9120 = vrcp.pop %v9074
      %v9121 = vrcp.pop %v9077
      %v9122 = vrcp.pop %v9080
      %v9123 = vrcp.pop %v9083
      %v9124 = vrcp.pop %v9086
      %v9125 = vrcp.pop %v9089
      %v9126 = vrcp.pop %v9092
      %v9127 = vrcp.pop %v9095
      %v9128 = vrcp.pop %v9098
      %v9129 = vrcp.pop %v9101
      %v9130 = vrcp.pop %v9104
      %v9131 = vrcp.pop %v9107
      %v9132 = vrcp.pop %v9110
      %v9133 = vrcp.pop %v9113
      %v9134 = vrcp.pop %v9116
      %v9135 = vrcp.pop %v9119
      %v9136 = vmul.f32 %v9041, %v9120
      %v9137 = vmul.f32 %v9043, %v9121
      %v9138 = vmul.f32 %v9045, %v9122
      %v9139 = vmul.f32 %v9047, %v9123
      %v9140 = vmul.f32 %v9049, %v9124
      %v9141 = vmul.f32 %v9051, %v9125
      %v9142 = vmul.f32 %v9053, %v9126
      %v9143 = vmul.f32 %v9055, %v9127
      %v9144 = vmul.f32 %v9057, %v9128
      %v9145 = vmul.f32 %v9059, %v9129
      %v9146 = vmul.f32 %v9061, %v9130
      %v9147 = vmul.f32 %v9063, %v9131
      %v9148 = vmul.f32 %v9065, %v9132
      %v9149 = vmul.f32 %v9067, %v9133
      %v9150 = vmul.f32 %v9069, %v9134
      %v9151 = vmul.f32 %v9071, %v9135
      %v9152 = vpack.c.bf16 %v9136, %v9136
      %v9153 = vpack.c.bf16 %v9137, %v9137
      %v9154 = vpack.c.bf16 %v9138, %v9138
      %v9155 = vpack.c.bf16 %v9139, %v9139
      %v9156 = vpack.c.bf16 %v9140, %v9140
      %v9157 = vpack.c.bf16 %v9141, %v9141
      %v9158 = vpack.c.bf16 %v9142, %v9142
      %v9159 = vpack.c.bf16 %v9143, %v9143
      %v9160 = vpack.c.bf16 %v9144, %v9144
      %v9161 = vpack.c.bf16 %v9145, %v9145
      %v9162 = vpack.c.bf16 %v9146, %v9146
      %v9163 = vpack.c.bf16 %v9147, %v9147
      %v9164 = vpack.c.bf16 %v9148, %v9148
      %v9165 = vpack.c.bf16 %v9149, %v9149
      %v9166 = vpack.c.bf16 %v9150, %v9150
      %v9167 = vpack.c.bf16 %v9151, %v9151
      %v9170 = vunpack.c.l.b16 %v9152
      %v9171 = vunpack.c.l.b16 %v9153
      %v9172 = vpack.c.b16 %v9171, %v9170
      %9173 = vrot.lane.b32.xlu0 %v6743, 40
      %v9174 = vpop.permute.xlu0 %9173
      %v9177 = vsel %vm6955, %v9172, 0
      %9179 = vmatpush.bf16.msra.mxu0 0
      %9180 = vmatpush.bf16.msra.mxu0 0
      %9181 = vmatpush.bf16.msra.mxu0 0
      %9182 = vmatpush.bf16.msra.mxu0 0
      %9183 = vmatpush.bf16.msra.mxu0 0
      %9184 = vmatpush.bf16.msra.mxu0 0
      %9185 = vmatpush.bf16.msra.mxu0 0
      %9186 = vmatpush.bf16.msra.mxu0 %v9174
      %9187 = vmatmul.bf16.gmra.mxu0 %v9177
      %v9188 = vpop.f32.mrf.mxu0
      %v9189 = vadd.f32 0.0, %v9188
      %v9190 = vpop.f32.mrf.mxu0
      %v9191 = vadd.f32 0.0, %v9190
      %9192 = vdwg.mxu0
      %v9195 = vunpack.c.l.b16 %v9154
      %v9196 = vunpack.c.l.b16 %v9155
      %v9197 = vpack.c.b16 %v9196, %v9195
      %9198 = vrot.lane.b32.xlu0 %v6770, 40
      %v9199 = vpop.permute.xlu0 %9198
      %v9202 = vsel %vm6955, %v9197, 0
      %9204 = vmatpush.bf16.msra.mxu0 0
      %9205 = vmatpush.bf16.msra.mxu0 0
      %9206 = vmatpush.bf16.msra.mxu0 0
      %9207 = vmatpush.bf16.msra.mxu0 0
      %9208 = vmatpush.bf16.msra.mxu0 0
      %9209 = vmatpush.bf16.msra.mxu0 0
      %9210 = vmatpush.bf16.msra.mxu0 0
      %9211 = vmatpush.bf16.msra.mxu0 %v9199
      %9212 = vmatmul.bf16.gmra.mxu0 %v9202
      %v9213 = vpop.f32.mrf.mxu0
      %v9214 = vadd.f32 0.0, %v9213
      %v9215 = vpop.f32.mrf.mxu0
      %v9216 = vadd.f32 0.0, %v9215
      %9217 = vdwg.mxu0
      %v9220 = vunpack.c.l.b16 %v9156
      %v9221 = vunpack.c.l.b16 %v9157
      %v9222 = vpack.c.b16 %v9221, %v9220
      %9223 = vrot.lane.b32.xlu0 %v6797, 40
      %v9224 = vpop.permute.xlu0 %9223
      %v9227 = vsel %vm6955, %v9222, 0
      %9229 = vmatpush.bf16.msra.mxu0 0
      %9230 = vmatpush.bf16.msra.mxu0 0
      %9231 = vmatpush.bf16.msra.mxu0 0
      %9232 = vmatpush.bf16.msra.mxu0 0
      %9233 = vmatpush.bf16.msra.mxu0 0
      %9234 = vmatpush.bf16.msra.mxu0 0
      %9235 = vmatpush.bf16.msra.mxu0 0
      %9236 = vmatpush.bf16.msra.mxu0 %v9224
      %9237 = vmatmul.bf16.gmra.mxu0 %v9227
      %v9238 = vpop.f32.mrf.mxu0
      %v9239 = vadd.f32 0.0, %v9238
      %v9240 = vpop.f32.mrf.mxu0
      %v9241 = vadd.f32 0.0, %v9240
      %9242 = vdwg.mxu0
      %v9245 = vunpack.c.l.b16 %v9158
      %v9246 = vunpack.c.l.b16 %v9159
      %v9247 = vpack.c.b16 %v9246, %v9245
      %9248 = vrot.lane.b32.xlu0 %v6824, 40
      %v9249 = vpop.permute.xlu0 %9248
      %v9252 = vsel %vm6955, %v9247, 0
      %9254 = vmatpush.bf16.msra.mxu0 0
      %9255 = vmatpush.bf16.msra.mxu0 0
      %9256 = vmatpush.bf16.msra.mxu0 0
      %9257 = vmatpush.bf16.msra.mxu0 0
      %9258 = vmatpush.bf16.msra.mxu0 0
      %9259 = vmatpush.bf16.msra.mxu0 0
      %9260 = vmatpush.bf16.msra.mxu0 0
      %9261 = vmatpush.bf16.msra.mxu0 %v9249
      %9262 = vmatmul.bf16.gmra.mxu0 %v9252
      %v9263 = vpop.f32.mrf.mxu0
      %v9264 = vadd.f32 0.0, %v9263
      %v9265 = vpop.f32.mrf.mxu0
      %v9266 = vadd.f32 0.0, %v9265
      %9267 = vdwg.mxu0
      %v9270 = vunpack.c.l.b16 %v9160
      %v9271 = vunpack.c.l.b16 %v9161
      %v9272 = vpack.c.b16 %v9271, %v9270
      %9273 = vrot.lane.b32.xlu0 %v6851, 40
      %v9274 = vpop.permute.xlu0 %9273
      %v9277 = vsel %vm6955, %v9272, 0
      %9279 = vmatpush.bf16.msra.mxu0 0
      %9280 = vmatpush.bf16.msra.mxu0 0
      %9281 = vmatpush.bf16.msra.mxu0 0
      %9282 = vmatpush.bf16.msra.mxu0 0
      %9283 = vmatpush.bf16.msra.mxu0 0
      %9284 = vmatpush.bf16.msra.mxu0 0
      %9285 = vmatpush.bf16.msra.mxu0 0
      %9286 = vmatpush.bf16.msra.mxu0 %v9274
      %9287 = vmatmul.bf16.gmra.mxu0 %v9277
      %v9288 = vpop.f32.mrf.mxu0
      %v9289 = vadd.f32 0.0, %v9288
      %v9290 = vpop.f32.mrf.mxu0
      %v9291 = vadd.f32 0.0, %v9290
      %9292 = vdwg.mxu0
      %v9295 = vunpack.c.l.b16 %v9162
      %v9296 = vunpack.c.l.b16 %v9163
      %v9297 = vpack.c.b16 %v9296, %v9295
      %9298 = vrot.lane.b32.xlu0 %v6878, 40
      %v9299 = vpop.permute.xlu0 %9298
      %v9302 = vsel %vm6955, %v9297, 0
      %9304 = vmatpush.bf16.msra.mxu0 0
      %9305 = vmatpush.bf16.msra.mxu0 0
      %9306 = vmatpush.bf16.msra.mxu0 0
      %9307 = vmatpush.bf16.msra.mxu0 0
      %9308 = vmatpush.bf16.msra.mxu0 0
      %9309 = vmatpush.bf16.msra.mxu0 0
      %9310 = vmatpush.bf16.msra.mxu0 0
      %9311 = vmatpush.bf16.msra.mxu0 %v9299
      %9312 = vmatmul.bf16.gmra.mxu0 %v9302
      %v9313 = vpop.f32.mrf.mxu0
      %v9314 = vadd.f32 0.0, %v9313
      %v9315 = vpop.f32.mrf.mxu0
      %v9316 = vadd.f32 0.0, %v9315
      %9317 = vdwg.mxu0
      %v9320 = vunpack.c.l.b16 %v9164
      %v9321 = vunpack.c.l.b16 %v9165
      %v9322 = vpack.c.b16 %v9321, %v9320
      %9323 = vrot.lane.b32.xlu0 %v6905, 40
      %v9324 = vpop.permute.xlu0 %9323
      %v9327 = vsel %vm6955, %v9322, 0
      %9329 = vmatpush.bf16.msra.mxu0 0
      %9330 = vmatpush.bf16.msra.mxu0 0
      %9331 = vmatpush.bf16.msra.mxu0 0
      %9332 = vmatpush.bf16.msra.mxu0 0
      %9333 = vmatpush.bf16.msra.mxu0 0
      %9334 = vmatpush.bf16.msra.mxu0 0
      %9335 = vmatpush.bf16.msra.mxu0 0
      %9336 = vmatpush.bf16.msra.mxu0 %v9324
      %9337 = vmatmul.bf16.gmra.mxu0 %v9327
      %v9338 = vpop.f32.mrf.mxu0
      %v9339 = vadd.f32 0.0, %v9338
      %v9340 = vpop.f32.mrf.mxu0
      %v9341 = vadd.f32 0.0, %v9340
      %9342 = vdwg.mxu0
      %v9345 = vunpack.c.l.b16 %v9166
      %v9346 = vunpack.c.l.b16 %v9167
      %v9347 = vpack.c.b16 %v9346, %v9345
      %9348 = vrot.lane.b32.xlu0 %v6932, 40
      %v9349 = vpop.permute.xlu0 %9348
      %v9352 = vsel %vm6955, %v9347, 0
      %9354 = vmatpush.bf16.msra.mxu0 0
      %9355 = vmatpush.bf16.msra.mxu0 0
      %9356 = vmatpush.bf16.msra.mxu0 0
      %9357 = vmatpush.bf16.msra.mxu0 0
      %9358 = vmatpush.bf16.msra.mxu0 0
      %9359 = vmatpush.bf16.msra.mxu0 0
      %9360 = vmatpush.bf16.msra.mxu0 0
      %9361 = vmatpush.bf16.msra.mxu0 %v9349
      %9362 = vmatmul.bf16.gmra.mxu0 %v9352
      %v9363 = vpop.f32.mrf.mxu0
      %v9364 = vadd.f32 0.0, %v9363
      %v9365 = vpop.f32.mrf.mxu0
      %v9366 = vadd.f32 0.0, %v9365
      %9367 = vdwg.mxu0
      %v9368 = vpack.c.bf16 %v9191, %v9189
      %v9369 = vpack.c.bf16 %v9216, %v9214
      %v9370 = vpack.c.bf16 %v9241, %v9239
      %v9371 = vpack.c.bf16 %v9266, %v9264
      %v9372 = vpack.c.bf16 %v9291, %v9289
      %v9373 = vpack.c.bf16 %v9316, %v9314
      %v9374 = vpack.c.bf16 %v9341, %v9339
      %v9375 = vpack.c.bf16 %v9366, %v9364
      %v9377 = vsel %vm1131, %v9368, 0
      %v9380 = vsel %vm1131, %v9369, 0
      %v9383 = vsel %vm1131, %v9370, 0
      %v9386 = vsel %vm1131, %v9371, 0
      %v9389 = vsel %vm1131, %v9372, 0
      %v9392 = vsel %vm1131, %v9373, 0
      %v9395 = vsel %vm1131, %v9374, 0
      %v9398 = vsel %vm1131, %v9375, 0
      %v9401 = vsel %vm1726, %v6722, 0
      %9403 = vmatpush.bf16.msra.mxu0 0
      %9404 = vmatpush.bf16.msra.mxu0 0
      %9405 = vmatpush.bf16.msra.mxu0 0
      %9406 = vmatpush.bf16.msra.mxu0 0
      %9407 = vmatpush.bf16.msra.mxu0 0
      %9408 = vmatpush.bf16.msra.mxu0 0
      %9409 = vmatpush.bf16.msra.mxu0 0
      %9410 = vmatpush.bf16.msra.mxu0 %v9401
      %9411 = vmatmul.bf16.gmra.mxu0 %v9377
      %v9412 = vpop.f32.mrf.mxu0
      %v9413 = vadd.f32 0.0, %v9412
      %v9414 = vpop.f32.mrf.mxu0
      %v9415 = vadd.f32 0.0, %v9414
      %9416 = vmatmul.bf16.gmra.mxu0 %v9380
      %v9417 = vpop.f32.mrf.mxu0
      %v9418 = vadd.f32 0.0, %v9417
      %v9419 = vpop.f32.mrf.mxu0
      %v9420 = vadd.f32 0.0, %v9419
      %9421 = vmatmul.bf16.gmra.mxu0 %v9383
      %v9422 = vpop.f32.mrf.mxu0
      %v9423 = vadd.f32 0.0, %v9422
      %v9424 = vpop.f32.mrf.mxu0
      %v9425 = vadd.f32 0.0, %v9424
      %9426 = vmatmul.bf16.gmra.mxu0 %v9386
      %v9427 = vpop.f32.mrf.mxu0
      %v9428 = vadd.f32 0.0, %v9427
      %v9429 = vpop.f32.mrf.mxu0
      %v9430 = vadd.f32 0.0, %v9429
      %9431 = vmatmul.bf16.gmra.mxu0 %v9389
      %v9432 = vpop.f32.mrf.mxu0
      %v9433 = vadd.f32 0.0, %v9432
      %v9434 = vpop.f32.mrf.mxu0
      %v9435 = vadd.f32 0.0, %v9434
      %9436 = vmatmul.bf16.gmra.mxu0 %v9392
      %v9437 = vpop.f32.mrf.mxu0
      %v9438 = vadd.f32 0.0, %v9437
      %v9439 = vpop.f32.mrf.mxu0
      %v9440 = vadd.f32 0.0, %v9439
      %9441 = vmatmul.bf16.gmra.mxu0 %v9395
      %v9442 = vpop.f32.mrf.mxu0
      %v9443 = vadd.f32 0.0, %v9442
      %v9444 = vpop.f32.mrf.mxu0
      %v9445 = vadd.f32 0.0, %v9444
      %9446 = vmatmul.bf16.gmra.mxu0 %v9398
      %v9447 = vpop.f32.mrf.mxu0
      %v9448 = vadd.f32 0.0, %v9447
      %v9449 = vpop.f32.mrf.mxu0
      %v9450 = vadd.f32 0.0, %v9449
      %9451 = vdwg.mxu0
      %v9452 = vadd.f32 %v8768, %v9413
      %v9453 = vadd.f32 %v8769, %v9415
      %v9454 = vadd.f32 %v8770, %v9418
      %v9455 = vadd.f32 %v8771, %v9420
      %v9456 = vadd.f32 %v8772, %v9423
      %v9457 = vadd.f32 %v8773, %v9425
      %v9458 = vadd.f32 %v8774, %v9428
      %v9459 = vadd.f32 %v8775, %v9430
      %v9460 = vadd.f32 %v8776, %v9433
      %v9461 = vadd.f32 %v8777, %v9435
      %v9462 = vadd.f32 %v8778, %v9438
      %v9463 = vadd.f32 %v8779, %v9440
      %v9464 = vadd.f32 %v8780, %v9443
      %v9465 = vadd.f32 %v8781, %v9445
      %v9466 = vadd.f32 %v8782, %v9448
      %v9467 = vadd.f32 %v8783, %v9450
      %v9468 = vadd.f32 %v6000, %v9452
      %v9469 = vadd.f32 %v6014, %v9453
      %v9470 = vadd.f32 %v6030, %v9454
      %v9471 = vadd.f32 %v6044, %v9455
      %v9472 = vadd.f32 %v6060, %v9456
      %v9473 = vadd.f32 %v6074, %v9457
      %v9474 = vadd.f32 %v6090, %v9458
      %v9475 = vadd.f32 %v6104, %v9459
      %v9476 = vadd.f32 %v6120, %v9460
      %v9477 = vadd.f32 %v6134, %v9461
      %v9478 = vadd.f32 %v6150, %v9462
      %v9479 = vadd.f32 %v6164, %v9463
      %v9480 = vadd.f32 %v6180, %v9464
      %v9481 = vadd.f32 %v6194, %v9465
      %v9482 = vadd.f32 %v6210, %v9466
      %v9483 = vadd.f32 %v6224, %v9467
      %v9484 = vperm.slane %v6228, 2
      %v9485 = vadd.f32 %v9468, %v9484
      %v9486 = vadd.f32 %v9469, %v9484
      %v9487 = vadd.f32 %v9470, %v9484
      %v9488 = vadd.f32 %v9471, %v9484
      %v9489 = vadd.f32 %v9472, %v9484
      %v9490 = vadd.f32 %v9473, %v9484
      %v9491 = vadd.f32 %v9474, %v9484
      %v9492 = vadd.f32 %v9475, %v9484
      %v9493 = vadd.f32 %v9476, %v9484
      %v9494 = vadd.f32 %v9477, %v9484
      %v9495 = vadd.f32 %v9478, %v9484
      %v9496 = vadd.f32 %v9479, %v9484
      %v9497 = vadd.f32 %v9480, %v9484
      %v9498 = vadd.f32 %v9481, %v9484
      %v9499 = vadd.f32 %v9482, %v9484
      %v9500 = vadd.f32 %v9483, %v9484
      %v9501 = vsel %vm606, %v9485, 0.0
      %9502 = vadd.xlane.f32.xlu0 %v9501
      %v9503 = vpop.xlane.xlu0 %9502
      %v9504 = vsel %vm606, %v9486, 0.0
      %9505 = vadd.xlane.f32.xlu0 %v9504
      %v9506 = vpop.xlane.xlu0 %9505
      %v9507 = vsel %vm606, %v9487, 0.0
      %9508 = vadd.xlane.f32.xlu0 %v9507
      %v9509 = vpop.xlane.xlu0 %9508
      %v9510 = vsel %vm606, %v9488, 0.0
      %9511 = vadd.xlane.f32.xlu0 %v9510
      %v9512 = vpop.xlane.xlu0 %9511
      %v9513 = vsel %vm606, %v9489, 0.0
      %9514 = vadd.xlane.f32.xlu0 %v9513
      %v9515 = vpop.xlane.xlu0 %9514
      %v9516 = vsel %vm606, %v9490, 0.0
      %9517 = vadd.xlane.f32.xlu0 %v9516
      %v9518 = vpop.xlane.xlu0 %9517
      %v9519 = vsel %vm606, %v9491, 0.0
      %9520 = vadd.xlane.f32.xlu0 %v9519
      %v9521 = vpop.xlane.xlu0 %9520
      %v9522 = vsel %vm606, %v9492, 0.0
      %9523 = vadd.xlane.f32.xlu0 %v9522
      %v9524 = vpop.xlane.xlu0 %9523
      %v9525 = vsel %vm606, %v9493, 0.0
      %9526 = vadd.xlane.f32.xlu0 %v9525
      %v9527 = vpop.xlane.xlu0 %9526
      %v9528 = vsel %vm606, %v9494, 0.0
      %9529 = vadd.xlane.f32.xlu0 %v9528
      %v9530 = vpop.xlane.xlu0 %9529
      %v9531 = vsel %vm606, %v9495, 0.0
      %9532 = vadd.xlane.f32.xlu0 %v9531
      %v9533 = vpop.xlane.xlu0 %9532
      %v9534 = vsel %vm606, %v9496, 0.0
      %9535 = vadd.xlane.f32.xlu0 %v9534
      %v9536 = vpop.xlane.xlu0 %9535
      %v9537 = vsel %vm606, %v9497, 0.0
      %9538 = vadd.xlane.f32.xlu0 %v9537
      %v9539 = vpop.xlane.xlu0 %9538
      %v9540 = vsel %vm606, %v9498, 0.0
      %9541 = vadd.xlane.f32.xlu0 %v9540
      %v9542 = vpop.xlane.xlu0 %9541
      %v9543 = vsel %vm606, %v9499, 0.0
      %9544 = vadd.xlane.f32.xlu0 %v9543
      %v9545 = vpop.xlane.xlu0 %9544
      %v9546 = vsel %vm606, %v9500, 0.0
      %9547 = vadd.xlane.f32.xlu0 %v9546
      %v9548 = vpop.xlane.xlu0 %9547
      %v9549 = vmul.f32 %v9503, %v661
      %v9550 = vmul.f32 %v9506, %v661
      %v9551 = vmul.f32 %v9509, %v661
      %v9552 = vmul.f32 %v9512, %v661
      %v9553 = vmul.f32 %v9515, %v661
      %v9554 = vmul.f32 %v9518, %v661
      %v9555 = vmul.f32 %v9521, %v661
      %v9556 = vmul.f32 %v9524, %v661
      %v9557 = vmul.f32 %v9527, %v661
      %v9558 = vmul.f32 %v9530, %v661
      %v9559 = vmul.f32 %v9533, %v661
      %v9560 = vmul.f32 %v9536, %v661
      %v9561 = vmul.f32 %v9539, %v661
      %v9562 = vmul.f32 %v9542, %v661
      %v9563 = vmul.f32 %v9545, %v661
      %v9564 = vmul.f32 %v9548, %v661
      %v9565 = vsub.f32 %v9485, %v9549
      %v9566 = vsub.f32 %v9486, %v9550
      %v9567 = vsub.f32 %v9487, %v9551
      %v9568 = vsub.f32 %v9488, %v9552
      %v9569 = vsub.f32 %v9489, %v9553
      %v9570 = vsub.f32 %v9490, %v9554
      %v9571 = vsub.f32 %v9491, %v9555
      %v9572 = vsub.f32 %v9492, %v9556
      %v9573 = vsub.f32 %v9493, %v9557
      %v9574 = vsub.f32 %v9494, %v9558
      %v9575 = vsub.f32 %v9495, %v9559
      %v9576 = vsub.f32 %v9496, %v9560
      %v9577 = vsub.f32 %v9497, %v9561
      %v9578 = vsub.f32 %v9498, %v9562
      %v9579 = vsub.f32 %v9499, %v9563
      %v9580 = vsub.f32 %v9500, %v9564
      %v9581 = vmul.f32 %v9565, %v9565
      %v9582 = vmul.f32 %v9566, %v9566
      %v9583 = vmul.f32 %v9567, %v9567
      %v9584 = vmul.f32 %v9568, %v9568
      %v9585 = vmul.f32 %v9569, %v9569
      %v9586 = vmul.f32 %v9570, %v9570
      %v9587 = vmul.f32 %v9571, %v9571
      %v9588 = vmul.f32 %v9572, %v9572
      %v9589 = vmul.f32 %v9573, %v9573
      %v9590 = vmul.f32 %v9574, %v9574
      %v9591 = vmul.f32 %v9575, %v9575
      %v9592 = vmul.f32 %v9576, %v9576
      %v9593 = vmul.f32 %v9577, %v9577
      %v9594 = vmul.f32 %v9578, %v9578
      %v9595 = vmul.f32 %v9579, %v9579
      %v9596 = vmul.f32 %v9580, %v9580
      %v9597 = vsel %vm606, %v9581, 0.0
      %9598 = vadd.xlane.f32.xlu0 %v9597
      %v9599 = vpop.xlane.xlu0 %9598
      %v9600 = vsel %vm606, %v9582, 0.0
      %9601 = vadd.xlane.f32.xlu0 %v9600
      %v9602 = vpop.xlane.xlu0 %9601
      %v9603 = vsel %vm606, %v9583, 0.0
      %9604 = vadd.xlane.f32.xlu0 %v9603
      %v9605 = vpop.xlane.xlu0 %9604
      %v9606 = vsel %vm606, %v9584, 0.0
      %9607 = vadd.xlane.f32.xlu0 %v9606
      %v9608 = vpop.xlane.xlu0 %9607
      %v9609 = vsel %vm606, %v9585, 0.0
      %9610 = vadd.xlane.f32.xlu0 %v9609
      %v9611 = vpop.xlane.xlu0 %9610
      %v9612 = vsel %vm606, %v9586, 0.0
      %9613 = vadd.xlane.f32.xlu0 %v9612
      %v9614 = vpop.xlane.xlu0 %9613
      %v9615 = vsel %vm606, %v9587, 0.0
      %9616 = vadd.xlane.f32.xlu0 %v9615
      %v9617 = vpop.xlane.xlu0 %9616
      %v9618 = vsel %vm606, %v9588, 0.0
      %9619 = vadd.xlane.f32.xlu0 %v9618
      %v9620 = vpop.xlane.xlu0 %9619
      %v9621 = vsel %vm606, %v9589, 0.0
      %9622 = vadd.xlane.f32.xlu0 %v9621
      %v9623 = vpop.xlane.xlu0 %9622
      %v9624 = vsel %vm606, %v9590, 0.0
      %9625 = vadd.xlane.f32.xlu0 %v9624
      %v9626 = vpop.xlane.xlu0 %9625
      %v9627 = vsel %vm606, %v9591, 0.0
      %9628 = vadd.xlane.f32.xlu0 %v9627
      %v9629 = vpop.xlane.xlu0 %9628
      %v9630 = vsel %vm606, %v9592, 0.0
      %9631 = vadd.xlane.f32.xlu0 %v9630
      %v9632 = vpop.xlane.xlu0 %9631
      %v9633 = vsel %vm606, %v9593, 0.0
      %9634 = vadd.xlane.f32.xlu0 %v9633
      %v9635 = vpop.xlane.xlu0 %9634
      %v9636 = vsel %vm606, %v9594, 0.0
      %9637 = vadd.xlane.f32.xlu0 %v9636
      %v9638 = vpop.xlane.xlu0 %9637
      %v9639 = vsel %vm606, %v9595, 0.0
      %9640 = vadd.xlane.f32.xlu0 %v9639
      %v9641 = vpop.xlane.xlu0 %9640
      %v9642 = vsel %vm606, %v9596, 0.0
      %9643 = vadd.xlane.f32.xlu0 %v9642
      %v9644 = vpop.xlane.xlu0 %9643
      %v9645 = vmul.f32 %v9599, %v661
      %v9646 = vmul.f32 %v9602, %v661
      %v9647 = vmul.f32 %v9605, %v661
      %v9648 = vmul.f32 %v9608, %v661
      %v9649 = vmul.f32 %v9611, %v661
      %v9650 = vmul.f32 %v9614, %v661
      %v9651 = vmul.f32 %v9617, %v661
      %v9652 = vmul.f32 %v9620, %v661
      %v9653 = vmul.f32 %v9623, %v661
      %v9654 = vmul.f32 %v9626, %v661
      %v9655 = vmul.f32 %v9629, %v661
      %v9656 = vmul.f32 %v9632, %v661
      %v9657 = vmul.f32 %v9635, %v661
      %v9658 = vmul.f32 %v9638, %v661
      %v9659 = vmul.f32 %v9641, %v661
      %v9660 = vmul.f32 %v9644, %v661
      %v9661 = vadd.f32 %v9645, 1e-05
      %v9662 = vadd.f32 %v9646, 1e-05
      %v9663 = vadd.f32 %v9647, 1e-05
      %v9664 = vadd.f32 %v9648, 1e-05
      %v9665 = vadd.f32 %v9649, 1e-05
      %v9666 = vadd.f32 %v9650, 1e-05
      %v9667 = vadd.f32 %v9651, 1e-05
      %v9668 = vadd.f32 %v9652, 1e-05
      %v9669 = vadd.f32 %v9653, 1e-05
      %v9670 = vadd.f32 %v9654, 1e-05
      %v9671 = vadd.f32 %v9655, 1e-05
      %v9672 = vadd.f32 %v9656, 1e-05
      %v9673 = vadd.f32 %v9657, 1e-05
      %v9674 = vadd.f32 %v9658, 1e-05
      %v9675 = vadd.f32 %v9659, 1e-05
      %v9676 = vadd.f32 %v9660, 1e-05
      %v9677 = vrsqrt.pop %v9661
      %v9678 = vmul.f32 %v9677, %v9661
      %v9679 = vmul.f32 %v9678, %v9677
      %v9680 = vmul.f32 0.5, %v9679
      %v9681 = vsub.f32 1.5, %v9680
      %v9682 = vmul.f32 %v9677, %v9681
      %vm9683 = vweird.f32 %v9661
      %vm9684 = vweird.f32 %v9677
      %vm9685 = vmor %vm9683, %vm9684
      %v9686 = vsel %vm9685, %v9677, %v9682
      %v9687 = vrsqrt.pop %v9662
      %v9688 = vmul.f32 %v9687, %v9662
      %v9689 = vmul.f32 %v9688, %v9687
      %v9690 = vmul.f32 0.5, %v9689
      %v9691 = vsub.f32 1.5, %v9690
      %v9692 = vmul.f32 %v9687, %v9691
      %vm9693 = vweird.f32 %v9662
      %vm9694 = vweird.f32 %v9687
      %vm9695 = vmor %vm9693, %vm9694
      %v9696 = vsel %vm9695, %v9687, %v9692
      %v9697 = vrsqrt.pop %v9663
      %v9698 = vmul.f32 %v9697, %v9663
      %v9699 = vmul.f32 %v9698, %v9697
      %v9700 = vmul.f32 0.5, %v9699
      %v9701 = vsub.f32 1.5, %v9700
      %v9702 = vmul.f32 %v9697, %v9701
      %vm9703 = vweird.f32 %v9663
      %vm9704 = vweird.f32 %v9697
      %vm9705 = vmor %vm9703, %vm9704
      %v9706 = vsel %vm9705, %v9697, %v9702
      %v9707 = vrsqrt.pop %v9664
      %v9708 = vmul.f32 %v9707, %v9664
      %v9709 = vmul.f32 %v9708, %v9707
      %v9710 = vmul.f32 0.5, %v9709
      %v9711 = vsub.f32 1.5, %v9710
      %v9712 = vmul.f32 %v9707, %v9711
      %vm9713 = vweird.f32 %v9664
      %vm9714 = vweird.f32 %v9707
      %vm9715 = vmor %vm9713, %vm9714
      %v9716 = vsel %vm9715, %v9707, %v9712
      %v9717 = vrsqrt.pop %v9665
      %v9718 = vmul.f32 %v9717, %v9665
      %v9719 = vmul.f32 %v9718, %v9717
      %v9720 = vmul.f32 0.5, %v9719
      %v9721 = vsub.f32 1.5, %v9720
      %v9722 = vmul.f32 %v9717, %v9721
      %vm9723 = vweird.f32 %v9665
      %vm9724 = vweird.f32 %v9717
      %vm9725 = vmor %vm9723, %vm9724
      %v9726 = vsel %vm9725, %v9717, %v9722
      %v9727 = vrsqrt.pop %v9666
      %v9728 = vmul.f32 %v9727, %v9666
      %v9729 = vmul.f32 %v9728, %v9727
      %v9730 = vmul.f32 0.5, %v9729
      %v9731 = vsub.f32 1.5, %v9730
      %v9732 = vmul.f32 %v9727, %v9731
      %vm9733 = vweird.f32 %v9666
      %vm9734 = vweird.f32 %v9727
      %vm9735 = vmor %vm9733, %vm9734
      %v9736 = vsel %vm9735, %v9727, %v9732
      %v9737 = vrsqrt.pop %v9667
      %v9738 = vmul.f32 %v9737, %v9667
      %v9739 = vmul.f32 %v9738, %v9737
      %v9740 = vmul.f32 0.5, %v9739
      %v9741 = vsub.f32 1.5, %v9740
      %v9742 = vmul.f32 %v9737, %v9741
      %vm9743 = vweird.f32 %v9667
      %vm9744 = vweird.f32 %v9737
      %vm9745 = vmor %vm9743, %vm9744
      %v9746 = vsel %vm9745, %v9737, %v9742
      %v9747 = vrsqrt.pop %v9668
      %v9748 = vmul.f32 %v9747, %v9668
      %v9749 = vmul.f32 %v9748, %v9747
      %v9750 = vmul.f32 0.5, %v9749
      %v9751 = vsub.f32 1.5, %v9750
      %v9752 = vmul.f32 %v9747, %v9751
      %vm9753 = vweird.f32 %v9668
      %vm9754 = vweird.f32 %v9747
      %vm9755 = vmor %vm9753, %vm9754
      %v9756 = vsel %vm9755, %v9747, %v9752
      %v9757 = vrsqrt.pop %v9669
      %v9758 = vmul.f32 %v9757, %v9669
      %v9759 = vmul.f32 %v9758, %v9757
      %v9760 = vmul.f32 0.5, %v9759
      %v9761 = vsub.f32 1.5, %v9760
      %v9762 = vmul.f32 %v9757, %v9761
      %vm9763 = vweird.f32 %v9669
      %vm9764 = vweird.f32 %v9757
      %vm9765 = vmor %vm9763, %vm9764
      %v9766 = vsel %vm9765, %v9757, %v9762
      %v9767 = vrsqrt.pop %v9670
      %v9768 = vmul.f32 %v9767, %v9670
      %v9769 = vmul.f32 %v9768, %v9767
      %v9770 = vmul.f32 0.5, %v9769
      %v9771 = vsub.f32 1.5, %v9770
      %v9772 = vmul.f32 %v9767, %v9771
      %vm9773 = vweird.f32 %v9670
      %vm9774 = vweird.f32 %v9767
      %vm9775 = vmor %vm9773, %vm9774
      %v9776 = vsel %vm9775, %v9767, %v9772
      %v9777 = vrsqrt.pop %v9671
      %v9778 = vmul.f32 %v9777, %v9671
      %v9779 = vmul.f32 %v9778, %v9777
      %v9780 = vmul.f32 0.5, %v9779
      %v9781 = vsub.f32 1.5, %v9780
      %v9782 = vmul.f32 %v9777, %v9781
      %vm9783 = vweird.f32 %v9671
      %vm9784 = vweird.f32 %v9777
      %vm9785 = vmor %vm9783, %vm9784
      %v9786 = vsel %vm9785, %v9777, %v9782
      %v9787 = vrsqrt.pop %v9672
      %v9788 = vmul.f32 %v9787, %v9672
      %v9789 = vmul.f32 %v9788, %v9787
      %v9790 = vmul.f32 0.5, %v9789
      %v9791 = vsub.f32 1.5, %v9790
      %v9792 = vmul.f32 %v9787, %v9791
      %vm9793 = vweird.f32 %v9672
      %vm9794 = vweird.f32 %v9787
      %vm9795 = vmor %vm9793, %vm9794
      %v9796 = vsel %vm9795, %v9787, %v9792
      %v9797 = vrsqrt.pop %v9673
      %v9798 = vmul.f32 %v9797, %v9673
      %v9799 = vmul.f32 %v9798, %v9797
      %v9800 = vmul.f32 0.5, %v9799
      %v9801 = vsub.f32 1.5, %v9800
      %v9802 = vmul.f32 %v9797, %v9801
      %vm9803 = vweird.f32 %v9673
      %vm9804 = vweird.f32 %v9797
      %vm9805 = vmor %vm9803, %vm9804
      %v9806 = vsel %vm9805, %v9797, %v9802
      %v9807 = vrsqrt.pop %v9674
      %v9808 = vmul.f32 %v9807, %v9674
      %v9809 = vmul.f32 %v9808, %v9807
      %v9810 = vmul.f32 0.5, %v9809
      %v9811 = vsub.f32 1.5, %v9810
      %v9812 = vmul.f32 %v9807, %v9811
      %vm9813 = vweird.f32 %v9674
      %vm9814 = vweird.f32 %v9807
      %vm9815 = vmor %vm9813, %vm9814
      %v9816 = vsel %vm9815, %v9807, %v9812
      %v9817 = vrsqrt.pop %v9675
      %v9818 = vmul.f32 %v9817, %v9675
      %v9819 = vmul.f32 %v9818, %v9817
      %v9820 = vmul.f32 0.5, %v9819
      %v9821 = vsub.f32 1.5, %v9820
      %v9822 = vmul.f32 %v9817, %v9821
      %vm9823 = vweird.f32 %v9675
      %vm9824 = vweird.f32 %v9817
      %vm9825 = vmor %vm9823, %vm9824
      %v9826 = vsel %vm9825, %v9817, %v9822
      %v9827 = vrsqrt.pop %v9676
      %v9828 = vmul.f32 %v9827, %v9676
      %v9829 = vmul.f32 %v9828, %v9827
      %v9830 = vmul.f32 0.5, %v9829
      %v9831 = vsub.f32 1.5, %v9830
      %v9832 = vmul.f32 %v9827, %v9831
      %vm9833 = vweird.f32 %v9676
      %vm9834 = vweird.f32 %v9827
      %vm9835 = vmor %vm9833, %vm9834
      %v9836 = vsel %vm9835, %v9827, %v9832
      %v9837 = vmul.f32 %v9565, %v9686
      %v9838 = vmul.f32 %v9566, %v9696
      %v9839 = vmul.f32 %v9567, %v9706
      %v9840 = vmul.f32 %v9568, %v9716
      %v9841 = vmul.f32 %v9569, %v9726
      %v9842 = vmul.f32 %v9570, %v9736
      %v9843 = vmul.f32 %v9571, %v9746
      %v9844 = vmul.f32 %v9572, %v9756
      %v9845 = vmul.f32 %v9573, %v9766
      %v9846 = vmul.f32 %v9574, %v9776
      %v9847 = vmul.f32 %v9575, %v9786
      %v9848 = vmul.f32 %v9576, %v9796
      %v9849 = vmul.f32 %v9577, %v9806
      %v9850 = vmul.f32 %v9578, %v9816
      %v9851 = vmul.f32 %v9579, %v9826
      %v9852 = vmul.f32 %v9580, %v9836
      %v9853 = vperm.slane %v6228, 3
      %v9854 = vmul.f32 %v9837, %v9853
      %v9855 = vmul.f32 %v9838, %v9853
      %v9856 = vmul.f32 %v9839, %v9853
      %v9857 = vmul.f32 %v9840, %v9853
      %v9858 = vmul.f32 %v9841, %v9853
      %v9859 = vmul.f32 %v9842, %v9853
      %v9860 = vmul.f32 %v9843, %v9853
      %v9861 = vmul.f32 %v9844, %v9853
      %v9862 = vmul.f32 %v9845, %v9853
      %v9863 = vmul.f32 %v9846, %v9853
      %v9864 = vmul.f32 %v9847, %v9853
      %v9865 = vmul.f32 %v9848, %v9853
      %v9866 = vmul.f32 %v9849, %v9853
      %v9867 = vmul.f32 %v9850, %v9853
      %v9868 = vmul.f32 %v9851, %v9853
      %v9869 = vmul.f32 %v9852, %v9853
      %v9870 = vperm.slane %v6228, 4
      %v9871 = vadd.f32 %v9854, %v9870
      %v9872 = vadd.f32 %v9855, %v9870
      %v9873 = vadd.f32 %v9856, %v9870
      %v9874 = vadd.f32 %v9857, %v9870
      %v9875 = vadd.f32 %v9858, %v9870
      %v9876 = vadd.f32 %v9859, %v9870
      %v9877 = vadd.f32 %v9860, %v9870
      %v9878 = vadd.f32 %v9861, %v9870
      %v9879 = vadd.f32 %v9862, %v9870
      %v9880 = vadd.f32 %v9863, %v9870
      %v9881 = vadd.f32 %v9864, %v9870
      %v9882 = vadd.f32 %v9865, %v9870
      %v9883 = vadd.f32 %v9866, %v9870
      %v9884 = vadd.f32 %v9867, %v9870
      %v9885 = vadd.f32 %v9868, %v9870
      %v9886 = vadd.f32 %v9869, %v9870
      %v9887 = vpack.c.bf16 %v9872, %v9871
      %v9888 = vpack.c.bf16 %v9874, %v9873
      %v9889 = vpack.c.bf16 %v9876, %v9875
      %v9890 = vpack.c.bf16 %v9878, %v9877
      %v9891 = vpack.c.bf16 %v9880, %v9879
      %v9892 = vpack.c.bf16 %v9882, %v9881
      %v9893 = vpack.c.bf16 %v9884, %v9883
      %v9894 = vpack.c.bf16 %v9886, %v9885
      %s9895 = scalar_lea.vmem %s6, 16
      %v9896 = vld [vmem:[%s9895] sm:$0xf]
      %v9897 = vld [vmem:[%s9895 + $0x4] sm:$0xf]
      %v9898 = vld [vmem:[%s9895 + $0x8] sm:$0xf]
      %v9899 = vld [vmem:[%s9895 + $0xc] sm:$0xf]
      %s9900 = scalar_lea.vmem %s7, 1
      %v9901 = vld [vmem:[%s9900] sm:$0x1]
      %v9903 = vperm.slane %v9901, 0
      %v9909 = vunpack.c.l.b16 %v9896
      %v9910 = vunpack.c.l.b16 %v9897
      %v9911 = vunpack.c.l.b16 %v9898
      %v9912 = vunpack.c.l.b16 %v9899
      %v9913 = vpack.c.b16 %v9910, %v9909
      %v9914 = vpack.c.b16 %v9912, %v9911
      %v9918 = vsel %vm606, %v9887, 0
      %v9921 = vsel %vm606, %v9888, 0
      %v9924 = vsel %vm606, %v9889, 0
      %v9927 = vsel %vm606, %v9890, 0
      %v9930 = vsel %vm606, %v9891, 0
      %v9933 = vsel %vm606, %v9892, 0
      %v9936 = vsel %vm606, %v9893, 0
      %v9939 = vsel %vm606, %v9894, 0
      %9941 = vmatpush.bf16.msra.mxu0 0
      %9942 = vmatpush.bf16.msra.mxu0 0
      %9943 = vmatpush.bf16.msra.mxu0 0
      %9944 = vmatpush.bf16.msra.mxu0 0
      %9945 = vmatpush.bf16.msra.mxu0 0
      %9946 = vmatpush.bf16.msra.mxu0 0
      %9947 = vmatpush.bf16.msra.mxu0 %v9914
      %9948 = vmatpush.bf16.msra.mxu0 %v9913
      %9949 = vmatmul.bf16.gmra.mxu0 %v9918
      %v9950 = vpop.f32.mrf.mxu0
      %v9951 = vadd.f32 %v9903, %v9950
      %v9952 = vpop.f32.mrf.mxu0
      %v9953 = vadd.f32 %v9903, %v9952
      %9954 = vmatmul.bf16.gmra.mxu0 %v9921
      %v9955 = vpop.f32.mrf.mxu0
      %v9956 = vadd.f32 %v9903, %v9955
      %v9957 = vpop.f32.mrf.mxu0
      %v9958 = vadd.f32 %v9903, %v9957
      %9959 = vmatmul.bf16.gmra.mxu0 %v9924
      %v9960 = vpop.f32.mrf.mxu0
      %v9961 = vadd.f32 %v9903, %v9960
      %v9962 = vpop.f32.mrf.mxu0
      %v9963 = vadd.f32 %v9903, %v9962
      %9964 = vmatmul.bf16.gmra.mxu0 %v9927
      %v9965 = vpop.f32.mrf.mxu0
      %v9966 = vadd.f32 %v9903, %v9965
      %v9967 = vpop.f32.mrf.mxu0
      %v9968 = vadd.f32 %v9903, %v9967
      %9969 = vmatmul.bf16.gmra.mxu0 %v9930
      %v9970 = vpop.f32.mrf.mxu0
      %v9971 = vadd.f32 %v9903, %v9970
      %v9972 = vpop.f32.mrf.mxu0
      %v9973 = vadd.f32 %v9903, %v9972
      %9974 = vmatmul.bf16.gmra.mxu0 %v9933
      %v9975 = vpop.f32.mrf.mxu0
      %v9976 = vadd.f32 %v9903, %v9975
      %v9977 = vpop.f32.mrf.mxu0
      %v9978 = vadd.f32 %v9903, %v9977
      %9979 = vmatmul.bf16.gmra.mxu0 %v9936
      %v9980 = vpop.f32.mrf.mxu0
      %v9981 = vadd.f32 %v9903, %v9980
      %v9982 = vpop.f32.mrf.mxu0
      %v9983 = vadd.f32 %v9903, %v9982
      %9984 = vmatmul.bf16.gmra.mxu0 %v9939
      %v9985 = vpop.f32.mrf.mxu0
      %v9986 = vadd.f32 %v9903, %v9985
      %v9987 = vpop.f32.mrf.mxu0
      %v9988 = vadd.f32 %v9903, %v9987
      %9989 = vdwg.mxu0
      %v9990 = vmul.f32 %v9951, %v9951
      %v9991 = vmul.f32 %v9953, %v9953
      %v9992 = vmul.f32 %v9956, %v9956
      %v9993 = vmul.f32 %v9958, %v9958
      %v9994 = vmul.f32 %v9961, %v9961
      %v9995 = vmul.f32 %v9963, %v9963
      %v9996 = vmul.f32 %v9966, %v9966
      %v9997 = vmul.f32 %v9968, %v9968
      %v9998 = vmul.f32 %v9971, %v9971
      %v9999 = vmul.f32 %v9973, %v9973
      %v10000 = vmul.f32 %v9976, %v9976
      %v10001 = vmul.f32 %v9978, %v9978
      %v10002 = vmul.f32 %v9981, %v9981
      %v10003 = vmul.f32 %v9983, %v9983
      %v10004 = vmul.f32 %v9986, %v9986
      %v10005 = vmul.f32 %v9988, %v9988
      %v10006 = vmul.f32 %v9951, %v9990
      %v10007 = vmul.f32 %v9953, %v9991
      %v10008 = vmul.f32 %v9956, %v9992
      %v10009 = vmul.f32 %v9958, %v9993
      %v10010 = vmul.f32 %v9961, %v9994
      %v10011 = vmul.f32 %v9963, %v9995
      %v10012 = vmul.f32 %v9966, %v9996
      %v10013 = vmul.f32 %v9968, %v9997
      %v10014 = vmul.f32 %v9971, %v9998
      %v10015 = vmul.f32 %v9973, %v9999
      %v10016 = vmul.f32 %v9976, %v10000
      %v10017 = vmul.f32 %v9978, %v10001
      %v10018 = vmul.f32 %v9981, %v10002
      %v10019 = vmul.f32 %v9983, %v10003
      %v10020 = vmul.f32 %v9986, %v10004
      %v10021 = vmul.f32 %v9988, %v10005
      %v10022 = vmul.f32 %v10006, 0.044715
      %v10023 = vmul.f32 %v10007, 0.044715
      %v10024 = vmul.f32 %v10008, 0.044715
      %v10025 = vmul.f32 %v10009, 0.044715
      %v10026 = vmul.f32 %v10010, 0.044715
      %v10027 = vmul.f32 %v10011, 0.044715
      %v10028 = vmul.f32 %v10012, 0.044715
      %v10029 = vmul.f32 %v10013, 0.044715
      %v10030 = vmul.f32 %v10014, 0.044715
      %v10031 = vmul.f32 %v10015, 0.044715
      %v10032 = vmul.f32 %v10016, 0.044715
      %v10033 = vmul.f32 %v10017, 0.044715
      %v10034 = vmul.f32 %v10018, 0.044715
      %v10035 = vmul.f32 %v10019, 0.044715
      %v10036 = vmul.f32 %v10020, 0.044715
      %v10037 = vmul.f32 %v10021, 0.044715
      %v10038 = vadd.f32 %v9951, %v10022
      %v10039 = vadd.f32 %v9953, %v10023
      %v10040 = vadd.f32 %v9956, %v10024
      %v10041 = vadd.f32 %v9958, %v10025
      %v10042 = vadd.f32 %v9961, %v10026
      %v10043 = vadd.f32 %v9963, %v10027
      %v10044 = vadd.f32 %v9966, %v10028
      %v10045 = vadd.f32 %v9968, %v10029
      %v10046 = vadd.f32 %v9971, %v10030
      %v10047 = vadd.f32 %v9973, %v10031
      %v10048 = vadd.f32 %v9976, %v10032
      %v10049 = vadd.f32 %v9978, %v10033
      %v10050 = vadd.f32 %v9981, %v10034
      %v10051 = vadd.f32 %v9983, %v10035
      %v10052 = vadd.f32 %v9986, %v10036
      %v10053 = vadd.f32 %v9988, %v10037
      %v10054 = vmul.f32 %v10038, 0.7978846
      %v10055 = vmul.f32 %v10039, 0.7978846
      %v10056 = vmul.f32 %v10040, 0.7978846
      %v10057 = vmul.f32 %v10041, 0.7978846
      %v10058 = vmul.f32 %v10042, 0.7978846
      %v10059 = vmul.f32 %v10043, 0.7978846
      %v10060 = vmul.f32 %v10044, 0.7978846
      %v10061 = vmul.f32 %v10045, 0.7978846
      %v10062 = vmul.f32 %v10046, 0.7978846
      %v10063 = vmul.f32 %v10047, 0.7978846
      %v10064 = vmul.f32 %v10048, 0.7978846
      %v10065 = vmul.f32 %v10049, 0.7978846
      %v10066 = vmul.f32 %v10050, 0.7978846
      %v10067 = vmul.f32 %v10051, 0.7978846
      %v10068 = vmul.f32 %v10052, 0.7978846
      %v10069 = vmul.f32 %v10053, 0.7978846
      %v10070 = vtanh.pop %v10054
      %v10071 = vtanh.pop %v10055
      %v10072 = vtanh.pop %v10056
      %v10073 = vtanh.pop %v10057
      %v10074 = vtanh.pop %v10058
      %v10075 = vtanh.pop %v10059
      %v10076 = vtanh.pop %v10060
      %v10077 = vtanh.pop %v10061
      %v10078 = vtanh.pop %v10062
      %v10079 = vtanh.pop %v10063
      %v10080 = vtanh.pop %v10064
      %v10081 = vtanh.pop %v10065
      %v10082 = vtanh.pop %v10066
      %v10083 = vtanh.pop %v10067
      %v10084 = vtanh.pop %v10068
      %v10085 = vtanh.pop %v10069
      %v10086 = vadd.f32 %v10070, 1.0
      %v10087 = vadd.f32 %v10071, 1.0
      %v10088 = vadd.f32 %v10072, 1.0
      %v10089 = vadd.f32 %v10073, 1.0
      %v10090 = vadd.f32 %v10074, 1.0
      %v10091 = vadd.f32 %v10075, 1.0
      %v10092 = vadd.f32 %v10076, 1.0
      %v10093 = vadd.f32 %v10077, 1.0
      %v10094 = vadd.f32 %v10078, 1.0
      %v10095 = vadd.f32 %v10079, 1.0
      %v10096 = vadd.f32 %v10080, 1.0
      %v10097 = vadd.f32 %v10081, 1.0
      %v10098 = vadd.f32 %v10082, 1.0
      %v10099 = vadd.f32 %v10083, 1.0
      %v10100 = vadd.f32 %v10084, 1.0
      %v10101 = vadd.f32 %v10085, 1.0
      %v10102 = vmul.f32 %v10086, 0.5
      %v10103 = vmul.f32 %v10087, 0.5
      %v10104 = vmul.f32 %v10088, 0.5
      %v10105 = vmul.f32 %v10089, 0.5
      %v10106 = vmul.f32 %v10090, 0.5
      %v10107 = vmul.f32 %v10091, 0.5
      %v10108 = vmul.f32 %v10092, 0.5
      %v10109 = vmul.f32 %v10093, 0.5
      %v10110 = vmul.f32 %v10094, 0.5
      %v10111 = vmul.f32 %v10095, 0.5
      %v10112 = vmul.f32 %v10096, 0.5
      %v10113 = vmul.f32 %v10097, 0.5
      %v10114 = vmul.f32 %v10098, 0.5
      %v10115 = vmul.f32 %v10099, 0.5
      %v10116 = vmul.f32 %v10100, 0.5
      %v10117 = vmul.f32 %v10101, 0.5
      %v10118 = vmul.f32 %v9951, %v10102
      %v10119 = vmul.f32 %v9953, %v10103
      %v10120 = vmul.f32 %v9956, %v10104
      %v10121 = vmul.f32 %v9958, %v10105
      %v10122 = vmul.f32 %v9961, %v10106
      %v10123 = vmul.f32 %v9963, %v10107
      %v10124 = vmul.f32 %v9966, %v10108
      %v10125 = vmul.f32 %v9968, %v10109
      %v10126 = vmul.f32 %v9971, %v10110
      %v10127 = vmul.f32 %v9973, %v10111
      %v10128 = vmul.f32 %v9976, %v10112
      %v10129 = vmul.f32 %v9978, %v10113
      %v10130 = vmul.f32 %v9981, %v10114
      %v10131 = vmul.f32 %v9983, %v10115
      %v10132 = vmul.f32 %v9986, %v10116
      %v10133 = vmul.f32 %v9988, %v10117
      %v10134 = vpack.c.bf16 %v10119, %v10118
      %v10135 = vpack.c.bf16 %v10121, %v10120
      %v10136 = vpack.c.bf16 %v10123, %v10122
      %v10137 = vpack.c.bf16 %v10125, %v10124
      %v10138 = vpack.c.bf16 %v10127, %v10126
      %v10139 = vpack.c.bf16 %v10129, %v10128
      %v10140 = vpack.c.bf16 %v10131, %v10130
      %v10141 = vpack.c.bf16 %v10133, %v10132
      %s10142 = scalar_lea.vmem %s8, 64
      %v10143 = vld [vmem:[%s10142] sm:$0xf]
      %v10144 = vld [vmem:[%s10142 + $0x4] sm:$0xf]
      %v10145 = vld [vmem:[%s10142 + $0x8] sm:$0xf]
      %v10146 = vld [vmem:[%s10142 + $0xc] sm:$0xf]
      %v10147 = vld [vmem:[%s10142 + $0x10] sm:$0xf]
      %v10148 = vld [vmem:[%s10142 + $0x14] sm:$0xf]
      %v10149 = vld [vmem:[%s10142 + $0x18] sm:$0xf]
      %v10150 = vld [vmem:[%s10142 + $0x1c] sm:$0xf]
      %v10151 = vld [vmem:[%s10142 + $0x20] sm:$0xf]
      %v10152 = vld [vmem:[%s10142 + $0x24] sm:$0xf]
      %v10153 = vld [vmem:[%s10142 + $0x28] sm:$0xf]
      %v10154 = vld [vmem:[%s10142 + $0x2c] sm:$0xf]
      %v10155 = vld [vmem:[%s10142 + $0x30] sm:$0xf]
      %v10156 = vld [vmem:[%s10142 + $0x34] sm:$0xf]
      %v10157 = vld [vmem:[%s10142 + $0x38] sm:$0xf]
      %v10158 = vld [vmem:[%s10142 + $0x3c] sm:$0xf]
      %v10159 = vperm.slane %v6228, 5
      %v10176 = vunpack.c.l.b16 %v10143
      %v10177 = vunpack.c.l.b16 %v10144
      %v10178 = vunpack.c.l.b16 %v10145
      %v10179 = vunpack.c.l.b16 %v10146
      %v10180 = vunpack.c.l.b16 %v10147
      %v10181 = vunpack.c.l.b16 %v10148
      %v10182 = vunpack.c.l.b16 %v10149
      %v10183 = vunpack.c.l.b16 %v10150
      %v10184 = vunpack.c.l.b16 %v10151
      %v10185 = vunpack.c.l.b16 %v10152
      %v10186 = vunpack.c.l.b16 %v10153
      %v10187 = vunpack.c.l.b16 %v10154
      %v10188 = vunpack.c.l.b16 %v10155
      %v10189 = vunpack.c.l.b16 %v10156
      %v10190 = vunpack.c.l.b16 %v10157
      %v10191 = vunpack.c.l.b16 %v10158
      %v10192 = vpack.c.b16 %v10177, %v10176
      %v10193 = vpack.c.b16 %v10179, %v10178
      %v10194 = vpack.c.b16 %v10181, %v10180
      %v10195 = vpack.c.b16 %v10183, %v10182
      %v10196 = vpack.c.b16 %v10185, %v10184
      %v10197 = vpack.c.b16 %v10187, %v10186
      %v10198 = vpack.c.b16 %v10189, %v10188
      %v10199 = vpack.c.b16 %v10191, %v10190
      %10208 = vmatpush.bf16.msra.mxu0 %v10199
      %10209 = vmatpush.bf16.msra.mxu0 %v10198
      %10210 = vmatpush.bf16.msra.mxu0 %v10197
      %10211 = vmatpush.bf16.msra.mxu0 %v10196
      %10212 = vmatpush.bf16.msra.mxu0 %v10195
      %10213 = vmatpush.bf16.msra.mxu0 %v10194
      %10214 = vmatpush.bf16.msra.mxu0 %v10193
      %10215 = vmatpush.bf16.msra.mxu0 %v10192
      %10216 = vmatmul.bf16.gmra.mxu0 %v10134
      %v10217 = vpop.f32.mrf.mxu0
      %v10218 = vadd.f32 %v10159, %v10217
      %v10219 = vpop.f32.mrf.mxu0
      %v10220 = vadd.f32 %v10159, %v10219
      %10221 = vmatmul.bf16.gmra.mxu0 %v10135
      %v10222 = vpop.f32.mrf.mxu0
      %v10223 = vadd.f32 %v10159, %v10222
      %v10224 = vpop.f32.mrf.mxu0
      %v10225 = vadd.f32 %v10159, %v10224
      %10226 = vmatmul.bf16.gmra.mxu0 %v10136
      %v10227 = vpop.f32.mrf.mxu0
      %v10228 = vadd.f32 %v10159, %v10227
      %v10229 = vpop.f32.mrf.mxu0
      %v10230 = vadd.f32 %v10159, %v10229
      %10231 = vmatmul.bf16.gmra.mxu0 %v10137
      %v10232 = vpop.f32.mrf.mxu0
      %v10233 = vadd.f32 %v10159, %v10232
      %v10234 = vpop.f32.mrf.mxu0
      %v10235 = vadd.f32 %v10159, %v10234
      %10236 = vmatmul.bf16.gmra.mxu0 %v10138
      %v10237 = vpop.f32.mrf.mxu0
      %v10238 = vadd.f32 %v10159, %v10237
      %v10239 = vpop.f32.mrf.mxu0
      %v10240 = vadd.f32 %v10159, %v10239
      %10241 = vmatmul.bf16.gmra.mxu0 %v10139
      %v10242 = vpop.f32.mrf.mxu0
      %v10243 = vadd.f32 %v10159, %v10242
      %v10244 = vpop.f32.mrf.mxu0
      %v10245 = vadd.f32 %v10159, %v10244
      %10246 = vmatmul.bf16.gmra.mxu0 %v10140
      %v10247 = vpop.f32.mrf.mxu0
      %v10248 = vadd.f32 %v10159, %v10247
      %v10249 = vpop.f32.mrf.mxu0
      %v10250 = vadd.f32 %v10159, %v10249
      %10251 = vmatmul.bf16.gmra.mxu0 %v10141
      %v10252 = vpop.f32.mrf.mxu0
      %v10253 = vadd.f32 %v10159, %v10252
      %v10254 = vpop.f32.mrf.mxu0
      %v10255 = vadd.f32 %v10159, %v10254
      %10256 = vdwg.mxu0
      %v10257 = vadd.f32 %v9485, %v10218
      %v10258 = vadd.f32 %v9486, %v10220
      %v10259 = vadd.f32 %v9487, %v10223
      %v10260 = vadd.f32 %v9488, %v10225
      %v10261 = vadd.f32 %v9489, %v10228
      %v10262 = vadd.f32 %v9490, %v10230
      %v10263 = vadd.f32 %v9491, %v10233
      %v10264 = vadd.f32 %v9492, %v10235
      %v10265 = vadd.f32 %v9493, %v10238
      %v10266 = vadd.f32 %v9494, %v10240
      %v10267 = vadd.f32 %v9495, %v10243
      %v10268 = vadd.f32 %v9496, %v10245
      %v10269 = vadd.f32 %v9497, %v10248
      %v10270 = vadd.f32 %v9498, %v10250
      %v10271 = vadd.f32 %v9499, %v10253
      %v10272 = vadd.f32 %v9500, %v10255
      %10275 = vrot.lane.b32.xlu0 %v10259, 32
      %v10276 = vpop.permute.xlu0 %10275
      %10277 = vrot.lane.b32.xlu0 %v10260, 32
      %v10278 = vpop.permute.xlu0 %10277
      %10283 = vrot.lane.b32.xlu0 %v10261, 64
      %v10284 = vpop.permute.xlu0 %10283
      %10285 = vrot.lane.b32.xlu0 %v10262, 64
      %v10286 = vpop.permute.xlu0 %10285
      %10291 = vrot.lane.b32.xlu0 %v10263, 96
      %v10292 = vpop.permute.xlu0 %10291
      %10293 = vrot.lane.b32.xlu0 %v10264, 96
      %v10294 = vpop.permute.xlu0 %10293
      %10299 = vrot.lane.b32.xlu0 %v10267, 32
      %v10300 = vpop.permute.xlu0 %10299
      %10301 = vrot.lane.b32.xlu0 %v10268, 32
      %v10302 = vpop.permute.xlu0 %10301
      %10307 = vrot.lane.b32.xlu0 %v10269, 64
      %v10308 = vpop.permute.xlu0 %10307
      %10309 = vrot.lane.b32.xlu0 %v10270, 64
      %v10310 = vpop.permute.xlu0 %10309
      %10315 = vrot.lane.b32.xlu0 %v10271, 96
      %v10316 = vpop.permute.xlu0 %10315
      %10317 = vrot.lane.b32.xlu0 %v10272, 96
      %v10318 = vpop.permute.xlu0 %10317
      %v10321 = vsel %vm606, %v10257, %v10276
      %v10322 = vsel %vm606, %v10258, %v10278
      %vm10323 = vcmask 523264
      %v10324 = vsel %vm10323, %v10321, %v10284
      %v10325 = vsel %vm10323, %v10322, %v10286
      %vm10326 = vcmask 785408
      %v10327 = vsel %vm10326, %v10324, %v10292
      %v10328 = vsel %vm10326, %v10325, %v10294
      %v10329 = vsel %vm606, %v10265, %v10300
      %v10330 = vsel %vm606, %v10266, %v10302
      %v10331 = vsel %vm10323, %v10329, %v10308
      %v10332 = vsel %vm10323, %v10330, %v10310
      %v10333 = vsel %vm10326, %v10331, %v10316
      %v10334 = vsel %vm10326, %v10332, %v10318
      %10335 = vst [vmem:[%s359] sm:$0xff] %v10327
      %10336 = vst [vmem:[%s359 + $0x8] sm:$0xff] %v10333
      %10337 = vst [vmem:[%s359 + $0x10] sm:$0xff] %v10328
      %10338 = vst [vmem:[%s359 + $0x18] sm:$0xff] %v10334
      %p10339 = scmp.lt.s32.totalorder %s21, 1
      %s10340 = scalar_select %p10339, %s21, 1
      %s10341 = smul.addr %s10340, 4
      %s10342 = smul.addr %s10341, 8
      %s10343 = scalar_lea.vmem %s10, %s10342
      // Predicated region
      $region61: #{st_attention_forward.1} parent=59 // pred_check
        %p10344 = pneg %p254
      $region62: #{st_attention_forward.1} parent=59 // pred_check_branch
        %10346 = sbr.rel (%p10344) target = $region64
      $region63: #{st_attention_forward.1} parent=59 // pred_region
        _
      $region64: #{st_attention_forward.1} parent=59 // pred_fallthru
        _
    $region60: #{st_attention_forward.1} parent=5 // pred_fallthru
      _
    %p10347 = scmp.le.s32.totalorder 2, %s16
    // Predicated region
    $region65: #{st_attention_forward.1} parent=5 // pred_check
      %p10348 = pneg %p10347
    $region66: #{st_attention_forward.1} parent=5 // pred_check_branch
      %10350 = sbr.rel (%p10348) target = $region68
    $region67: #{st_attention_forward.1} parent=5 // pred_region
      %s10351 = ssub.s32 %s16, 2
      // Predicated region
      $region69: #{st_attention_forward.1} parent=67 // pred_check
        %p10352 = pneg %p260
      $region70: #{st_attention_forward.1} parent=67 // pred_check_branch
        %10354 = sbr.rel (%p10352) target = $region72
      $region71: #{st_attention_forward.1} parent=67 // pred_region
        %p10355 = scmp.lt.s32.totalorder %s22, 1
        %s10356 = scalar_select %p10355, %s22, 1
        %s10357 = smul.addr %s10356, 4
        %s10358 = smul.addr %s10357, 8
        %s10359 = scalar_lea.vmem %s10, %s10358
      $region72: #{st_attention_forward.1} parent=67 // pred_fallthru
        _
    $region68: #{st_attention_forward.1} parent=5 // pred_fallthru
      _
  $region6: #{st_attention_forward.1} parent=0 // loop_footer
    %s20 = sadd.s32 1, %s16
  $region7: #{st_attention_forward.1} parent=0 // loop_footer_branch
    %15 = sbr.rel target = $region3
  $region8: #{st_attention_forward.1} parent=0 // loop_exit
    _

</llo_original>
